<compile_context>
chip_gen: v7x
topology: tpu7x:2x2x1
jax: 0.10.0
libtpu: 0.0.40
codegen_flags: <defaults>
</compile_context>

<pallas_src>
import jax
import jax.numpy as jnp
from jax.experimental import pallas as pl
from jax.experimental.pallas import tpu as pltpu


# --------------------------------------------------------------------------
# Pallas kernel
# --------------------------------------------------------------------------
def _make_kernel(N, H, W, Cin, Cmid, Cout, Wp, has_proj, eps):
    NHW = N * H * W
    inv_nhw = 1.0 / float(NHW)

    def bn(h, gamma, beta):
        # Single-pass training-mode BatchNorm over rows of an (NHW, C) tensor:
        # var = E[x^2] - mean^2, applied as one fused scale/shift.
        s = jnp.sum(h, axis=0, keepdims=True)
        ss = jnp.sum(h * h, axis=0, keepdims=True)
        mean = s * inv_nhw
        var = ss * inv_nhw - mean * mean
        scale = gamma * jax.lax.rsqrt(var + eps)
        shift = beta - mean * scale
        return h * scale + shift

    def kernel(*refs):
        if has_proj:
            (x_ref, w1_ref, g1_ref, b1_ref, w2_ref, g2_ref, b2_ref,
             w3_ref, g3_ref, b3_ref, ws_ref, gsc_ref, bsc_ref,
             o_ref, pad_ref) = refs
        else:
            (x_ref, w1_ref, g1_ref, b1_ref, w2_ref, g2_ref, b2_ref,
             w3_ref, g3_ref, b3_ref, o_ref, pad_ref) = refs

        x2 = x_ref[...]                                     # (NHW, Cin)

        # ---- shortcut projection first: MXU work that can overlap the ------
        # ---- VPU-bound depthwise stage --------------------------------------
        if has_proj:
            sc = jnp.dot(x2, ws_ref[...], preferred_element_type=jnp.float32)
            sc = bn(sc, gsc_ref[...], bsc_ref[...])         # (NHW, Cout)
        else:
            sc = x2                                         # identity (Cin == Cout)

        # ---- conv1: grouped 1x1 as block-diagonal dense matmul + BN + ReLU --
        h = jnp.dot(x2, w1_ref[...], preferred_element_type=jnp.float32)
        h = jnp.maximum(bn(h, g1_ref[...], b1_ref[...]), 0.0)   # (NHW, Cmid)

        # ---- conv2: depthwise 3x3, stride 1, padding 1 -----------------------
        # Pre-zeroed padded scratch; interior lives at W offset 8 so the store
        # hits whole sublane tiles (no masked/shifted store).
        pad_ref[...] = jnp.zeros((N, H + 2, Wp, Cmid), jnp.float32)
        pad_ref[:, 1:H + 1, 8:8 + W, :] = h.reshape(N, H, W, Cmid)
        hp = pad_ref[...]                                   # one aligned full load
        acc = jnp.zeros((N, H, W, Cmid), jnp.float32)
        for kh in range(3):                                 # 9 shifted MACs (VPU)
            for kw in range(3):
                wvec = w2_ref[kh * 3 + kw:kh * 3 + kw + 1, :]      # (1, Cmid)
                acc = acc + hp[:, kh:kh + H, 7 + kw:7 + kw + W, :] * wvec
        h = bn(acc.reshape(NHW, Cmid), g2_ref[...], b2_ref[...])

        # ---- conv3: grouped 1x1 (channel shuffle pre-folded into w3 rows) ----
        h = jnp.dot(h, w3_ref[...], preferred_element_type=jnp.float32)
        h = jnp.maximum(bn(h, g3_ref[...], b3_ref[...]), 0.0)    # (NHW, Cout)

        # ---- residual add ----------------------------------------------------
        o_ref[...] = h + sc

    return kernel


# --------------------------------------------------------------------------
# Glue: parameter massaging + pallas_call wrapper
# --------------------------------------------------------------------------
def _grouped_1x1_to_dense(w, groups):
    """(Cout, Cin/groups, 1, 1) torch-style grouped 1x1 -> block-diag (Cin, Cout)."""
    cout, cin_g = w.shape[0], w.shape[1]
    out_g = cout // groups
    cin = cin_g * groups
    dense = jnp.zeros((cin, cout), jnp.float32)
    for g in range(groups):
        blk = w[g * out_g:(g + 1) * out_g, :, 0, 0]         # (out_g, cin_g)
        dense = dense.at[g * cin_g:(g + 1) * cin_g,
                         g * out_g:(g + 1) * out_g].set(blk.T)
    return dense


def shufflenet_unit_forward(x_nchw, params, groups=3, eps=1e-5):
    N, Cin, H, W = x_nchw.shape
    Cmid = params["w1"].shape[0]
    Cout = params["w3"].shape[0]
    has_proj = (Cin != Cout)
    NHW = N * H * W
    Wp = W + 16           # 8 zero cols left (aligned interior) + W + >=1 zero col right

    x2 = jnp.transpose(x_nchw, (0, 2, 3, 1)).astype(jnp.float32).reshape(NHW, Cin)

    w1d = _grouped_1x1_to_dense(params["w1"], groups)                      # (Cin, Cmid)
    w2f = jnp.transpose(params["w2"][:, 0], (1, 2, 0)).reshape(9, Cmid)    # (9, Cmid)
    w3d = _grouped_1x1_to_dense(params["w3"], groups)                      # (Cmid, Cout)

    # Fold the channel shuffle into w3:  (h @ Pshuf) @ W3 == h @ (Pshuf @ W3),
    # where shuffled channel c' reads input channel perm[c'] = (c'%g)*gs + c'//g,
    # and (Pshuf @ W3)[c, :] = W3[perm^{-1}(c), :].
    gsize = Cmid // groups
    perm = [(c % groups) * gsize + c // groups for c in range(Cmid)]
    inv_perm = [0] * Cmid
    for d, c in enumerate(perm):
        inv_perm[c] = d
    w3d = w3d[jnp.asarray(inv_perm), :]

    g1, b1 = params["g1"].reshape(1, -1), params["b1"].reshape(1, -1)
    g2, b2 = params["g2"].reshape(1, -1), params["b2"].reshape(1, -1)
    g3, b3 = params["g3"].reshape(1, -1), params["b3"].reshape(1, -1)

    args = [x2, w1d, g1, b1, w2f, g2, b2, w3d, g3, b3]
    if has_proj:
        wsd = jnp.transpose(params["ws"][:, :, 0, 0], (1, 0))              # (Cin, Cout)
        args += [wsd, params["gs"].reshape(1, -1), params["bs"].reshape(1, -1)]

    kernel = _make_kernel(N, H, W, Cin, Cmid, Cout, Wp, has_proj, eps)
    vmem = pl.BlockSpec(memory_space=pltpu.MemorySpace.VMEM)

    out_flat = pl.pallas_call(
        kernel,
        out_shape=jax.ShapeDtypeStruct((NHW, Cout), jnp.float32),
        in_specs=[vmem] * len(args),
        out_specs=vmem,
        scratch_shapes=[pltpu.VMEM((N, H + 2, Wp, Cmid), jnp.float32)],
    )(*args)

    out_nhwc = out_flat.reshape(N, H, W, Cout)
    return jnp.transpose(out_nhwc, (0, 3, 1, 2))            # back to NCHW


# --------------------------------------------------------------------------
# Deterministic parameter init (torch-style weight shapes)
# --------------------------------------------------------------------------
def init_params(key, in_channels, out_channels, groups):
    assert out_channels % 4 == 0
    mid = out_channels // 4
    assert in_channels % groups == 0 and mid % groups == 0 and out_channels % groups == 0
    ks = jax.random.split(key, 12)
    nrm = lambda k, s: 0.2 * jax.random.normal(k, s, jnp.float32)
    gam = lambda k, c: 1.0 + 0.1 * jax.random.normal(k, (c,), jnp.float32)
    bet = lambda k, c: 0.1 * jax.random.normal(k, (c,), jnp.float32)
    return {
        "w1": nrm(ks[0], (mid, in_channels // groups, 1, 1)),
        "g1": gam(ks[1], mid), "b1": bet(ks[2], mid),
        "w2": nrm(ks[3], (mid, 1, 3, 3)),
        "g2": gam(ks[4], mid), "b2": bet(ks[5], mid),
        "w3": nrm(ks[6], (out_channels, mid // groups, 1, 1)),
        "g3": gam(ks[7], out_channels), "b3": bet(ks[8], out_channels),
        "ws": nrm(ks[9], (out_channels, in_channels, 1, 1)),
        "gs": gam(ks[10], out_channels), "bs": bet(ks[11], out_channels),
    }


# --------------------------------------------------------------------------
# Pure-JAX reference (NCHW, lax.conv at HIGHEST precision) for correctness
# --------------------------------------------------------------------------
def reference_forward(x, p, groups, eps=1e-5):
    def bn(h, gamma, beta):
        mean = jnp.mean(h, axis=(0, 2, 3), keepdims=True)
        var = jnp.mean(jnp.square(h - mean), axis=(0, 2, 3), keepdims=True)
        return ((h - mean) / jnp.sqrt(var + eps) * gamma.reshape(1, -1, 1, 1)
                + beta.reshape(1, -1, 1, 1))

    def conv(h, w, fg, pad):
        return jax.lax.conv_general_dilated(
            h, w, (1, 1), [(pad, pad), (pad, pad)],
            feature_group_count=fg,
            dimension_numbers=("NCHW", "OIHW", "NCHW"),
            precision=jax.lax.Precision.HIGHEST)

    h = jax.nn.relu(bn(conv(x, p["w1"], groups, 0), p["g1"], p["b1"]))
    h = bn(conv(h, p["w2"], h.shape[1], 1), p["g2"], p["b2"])
    n, c, H, W = h.shape
    gs = c // groups
    h = h.reshape(n, groups, gs, H, W).transpose(0, 2, 1, 3, 4).reshape(n, c, H, W)
    h = jax.nn.relu(bn(conv(h, p["w3"], groups, 0), p["g3"], p["b3"]))
    if x.shape[1] == h.shape[1]:
        sc = x
    else:
        sc = bn(conv(x, p["ws"], 1, 0), p["gs"], p["bs"])
    return h + sc


# --------------------------------------------------------------------------
if __name__ == "__main__":
    in_channels, out_channels, groups = 12, 24, 3     # mid = 6, projection shortcut
    N, H, W = 2, 16, 16

    key = jax.random.PRNGKey(0)
    kx, kp = jax.random.split(key)
    x = jax.random.normal(kx, (N, in_channels, H, W), jnp.float32)
    params = init_params(kp, in_channels, out_channels, groups)

    out = shufflenet_unit_forward(x, params, groups)
    out = jax.block_until_ready(out)

    ref = reference_forward(x, params, groups)
    assert out.shape == (N, out_channels, H, W), out.shape
    max_err = float(jnp.max(jnp.abs(out - ref)))
    # Kernel matmuls run at default (single-pass bf16) MXU precision per the perf
    # guidance; the reference is computed at HIGHEST precision, so allow
    # bf16-rounding-level absolute error on O(1) BN-normalized outputs.
    assert max_err < 6e-2, f"max abs error vs reference: {max_err}"

    print("KERNEL_OK")
</pallas_src>

<mosaic_0001>
module attributes {stable_mosaic.version = 11 : i64} {
  func.func @kernel(%arg0: memref<512x12xf32, #tpu.memory_space<vmem>>, %arg1: memref<12x6xf32, #tpu.memory_space<vmem>>, %arg2: memref<1x6xf32, #tpu.memory_space<vmem>>, %arg3: memref<1x6xf32, #tpu.memory_space<vmem>>, %arg4: memref<9x6xf32, #tpu.memory_space<vmem>>, %arg5: memref<1x6xf32, #tpu.memory_space<vmem>>, %arg6: memref<1x6xf32, #tpu.memory_space<vmem>>, %arg7: memref<6x24xf32, #tpu.memory_space<vmem>>, %arg8: memref<1x24xf32, #tpu.memory_space<vmem>>, %arg9: memref<1x24xf32, #tpu.memory_space<vmem>>, %arg10: memref<12x24xf32, #tpu.memory_space<vmem>>, %arg11: memref<1x24xf32, #tpu.memory_space<vmem>>, %arg12: memref<1x24xf32, #tpu.memory_space<vmem>>, %arg13: memref<512x24xf32, #tpu.memory_space<vmem>>, %arg14: memref<2x18x32x6xf32, #tpu.memory_space<vmem>>) attributes {dimension_semantics = [], scalar_prefetch = 0 : i64, scratch_operands = 1 : i64, tpu.core_type = #tpu.core_type<tc>} {
    %c0 = arith.constant 0 : index
    %c0_0 = arith.constant 0 : index
    %0 = vector.load %arg0[%c0, %c0_0] : memref<512x12xf32, #tpu.memory_space<vmem>>, vector<512x12xf32>
    %c0_1 = arith.constant 0 : index
    %c0_2 = arith.constant 0 : index
    %1 = vector.load %arg10[%c0_1, %c0_2] : memref<12x24xf32, #tpu.memory_space<vmem>>, vector<12x24xf32>
    %cst = arith.constant dense<0.000000e+00> : vector<512x24xf32>
    %2 = tpu.matmul %0, %1, %cst {dimension_numbers = #tpu.dot_dimension_numbers<[1], [0], [0], [1], [0, 0, 1, 1], [], []>} : vector<512x12xf32>, vector<12x24xf32>, vector<512x24xf32> -> vector<512x24xf32>
    %c0_3 = arith.constant 0 : index
    %c0_4 = arith.constant 0 : index
    %3 = vector.load %arg11[%c0_3, %c0_4] : memref<1x24xf32, #tpu.memory_space<vmem>>, vector<1x24xf32>
    %c0_5 = arith.constant 0 : index
    %c0_6 = arith.constant 0 : index
    %4 = vector.load %arg12[%c0_5, %c0_6] : memref<1x24xf32, #tpu.memory_space<vmem>>, vector<1x24xf32>
    %cst_7 = arith.constant dense<0.000000e+00> : vector<24xf32>
    %5 = vector.multi_reduction <add>, %2, %cst_7 [0] : vector<512x24xf32> to vector<24xf32>
    %6 = vector.shape_cast %5 : vector<24xf32> to vector<1x24xf32>
    %7 = arith.mulf %2, %2 : vector<512x24xf32>
    %cst_8 = arith.constant dense<0.000000e+00> : vector<24xf32>
    %8 = vector.multi_reduction <add>, %7, %cst_8 [0] : vector<512x24xf32> to vector<24xf32>
    %9 = vector.shape_cast %8 : vector<24xf32> to vector<1x24xf32>
    %cst_9 = arith.constant 0.001953125 : f32
    %10 = vector.broadcast %cst_9 : f32 to vector<1x24xf32>
    %11 = arith.mulf %6, %10 : vector<1x24xf32>
    %cst_10 = arith.constant 0.001953125 : f32
    %12 = vector.broadcast %cst_10 : f32 to vector<1x24xf32>
    %13 = arith.mulf %9, %12 : vector<1x24xf32>
    %14 = arith.mulf %11, %11 : vector<1x24xf32>
    %15 = arith.subf %13, %14 : vector<1x24xf32>
    %cst_11 = arith.constant 9.99999974E-6 : f32
    %16 = vector.broadcast %cst_11 : f32 to vector<1x24xf32>
    %17 = arith.addf %15, %16 : vector<1x24xf32>
    %18 = math.rsqrt %17 : vector<1x24xf32>
    %19 = arith.mulf %3, %18 : vector<1x24xf32>
    %20 = arith.mulf %11, %19 : vector<1x24xf32>
    %21 = arith.subf %4, %20 : vector<1x24xf32>
    %22 = vector.broadcast %19 : vector<1x24xf32> to vector<512x24xf32>
    %23 = arith.mulf %2, %22 : vector<512x24xf32>
    %24 = vector.broadcast %21 : vector<1x24xf32> to vector<512x24xf32>
    %25 = arith.addf %23, %24 : vector<512x24xf32>
    %c0_12 = arith.constant 0 : index
    %c0_13 = arith.constant 0 : index
    %26 = vector.load %arg1[%c0_12, %c0_13] : memref<12x6xf32, #tpu.memory_space<vmem>>, vector<12x6xf32>
    %cst_14 = arith.constant dense<0.000000e+00> : vector<512x6xf32>
    %27 = tpu.matmul %0, %26, %cst_14 {dimension_numbers = #tpu.dot_dimension_numbers<[1], [0], [0], [1], [0, 0, 1, 1], [], []>} : vector<512x12xf32>, vector<12x6xf32>, vector<512x6xf32> -> vector<512x6xf32>
    %c0_15 = arith.constant 0 : index
    %c0_16 = arith.constant 0 : index
    %28 = vector.load %arg2[%c0_15, %c0_16] : memref<1x6xf32, #tpu.memory_space<vmem>>, vector<1x6xf32>
    %c0_17 = arith.constant 0 : index
    %c0_18 = arith.constant 0 : index
    %29 = vector.load %arg3[%c0_17, %c0_18] : memref<1x6xf32, #tpu.memory_space<vmem>>, vector<1x6xf32>
    %cst_19 = arith.constant dense<0.000000e+00> : vector<6xf32>
    %30 = vector.multi_reduction <add>, %27, %cst_19 [0] : vector<512x6xf32> to vector<6xf32>
    %31 = vector.shape_cast %30 : vector<6xf32> to vector<1x6xf32>
    %32 = arith.mulf %27, %27 : vector<512x6xf32>
    %cst_20 = arith.constant dense<0.000000e+00> : vector<6xf32>
    %33 = vector.multi_reduction <add>, %32, %cst_20 [0] : vector<512x6xf32> to vector<6xf32>
    %34 = vector.shape_cast %33 : vector<6xf32> to vector<1x6xf32>
    %cst_21 = arith.constant 0.001953125 : f32
    %35 = vector.broadcast %cst_21 : f32 to vector<1x6xf32>
    %36 = arith.mulf %31, %35 : vector<1x6xf32>
    %cst_22 = arith.constant 0.001953125 : f32
    %37 = vector.broadcast %cst_22 : f32 to vector<1x6xf32>
    %38 = arith.mulf %34, %37 : vector<1x6xf32>
    %39 = arith.mulf %36, %36 : vector<1x6xf32>
    %40 = arith.subf %38, %39 : vector<1x6xf32>
    %cst_23 = arith.constant 9.99999974E-6 : f32
    %41 = vector.broadcast %cst_23 : f32 to vector<1x6xf32>
    %42 = arith.addf %40, %41 : vector<1x6xf32>
    %43 = math.rsqrt %42 : vector<1x6xf32>
    %44 = arith.mulf %28, %43 : vector<1x6xf32>
    %45 = arith.mulf %36, %44 : vector<1x6xf32>
    %46 = arith.subf %29, %45 : vector<1x6xf32>
    %47 = vector.broadcast %44 : vector<1x6xf32> to vector<512x6xf32>
    %48 = arith.mulf %27, %47 : vector<512x6xf32>
    %49 = vector.broadcast %46 : vector<1x6xf32> to vector<512x6xf32>
    %50 = arith.addf %48, %49 : vector<512x6xf32>
    %cst_24 = arith.constant 0.000000e+00 : f32
    %51 = vector.broadcast %cst_24 : f32 to vector<512x6xf32>
    %52 = arith.maximumf %50, %51 : vector<512x6xf32>
    %cst_25 = arith.constant 0.000000e+00 : f32
    %53 = vector.broadcast %cst_25 : f32 to vector<2x18x32x6xf32>
    %c0_26 = arith.constant 0 : index
    %c0_27 = arith.constant 0 : index
    %c0_28 = arith.constant 0 : index
    %c0_29 = arith.constant 0 : index
    %54 = vector.load %arg14[%c0_26, %c0_27, %c0_28, %c0_29] : memref<2x18x32x6xf32, #tpu.memory_space<vmem>>, vector<2x18x32x6xf32>
    tpu.vector_store %arg14[%c0_26, %c0_27, %c0_28, %c0_29], %53 {strides = array<i32>} : memref<2x18x32x6xf32, #tpu.memory_space<vmem>>, vector<2x18x32x6xf32>,
    %55 = vector.shape_cast %52 : vector<512x6xf32> to vector<2x16x16x6xf32>
    %c0_30 = arith.constant 0 : index
    %c1 = arith.constant 1 : index
    %c8 = arith.constant 8 : index
    %c0_31 = arith.constant 0 : index
    %56 = vector.load %arg14[%c0_30, %c1, %c8, %c0_31] : memref<2x18x32x6xf32, #tpu.memory_space<vmem>>, vector<2x16x16x6xf32>
    tpu.vector_store %arg14[%c0_30, %c1, %c8, %c0_31], %55 {strides = array<i32>} : memref<2x18x32x6xf32, #tpu.memory_space<vmem>>, vector<2x16x16x6xf32>,
    %c0_32 = arith.constant 0 : index
    %c0_33 = arith.constant 0 : index
    %c0_34 = arith.constant 0 : index
    %c0_35 = arith.constant 0 : index
    %57 = vector.load %arg14[%c0_32, %c0_33, %c0_34, %c0_35] : memref<2x18x32x6xf32, #tpu.memory_space<vmem>>, vector<2x18x32x6xf32>
    %cst_36 = arith.constant 0.000000e+00 : f32
    %58 = vector.broadcast %cst_36 : f32 to vector<2x16x16x6xf32>
    %c0_37 = arith.constant 0 : index
    %c0_38 = arith.constant 0 : index
    %59 = vector.load %arg4[%c0_37, %c0_38] : memref<9x6xf32, #tpu.memory_space<vmem>>, vector<1x6xf32>
    %60 = vector.extract_strided_slice %57 {offsets = [0, 0, 7, 0], sizes = [2, 16, 16, 6], strides = [1, 1, 1, 1]} : vector<2x18x32x6xf32> to vector<2x16x16x6xf32>
    %61 = vector.shape_cast %59 : vector<1x6xf32> to vector<1x1x1x6xf32>
    %62 = vector.broadcast %61 : vector<1x1x1x6xf32> to vector<2x16x16x6xf32>
    %63 = arith.mulf %60, %62 : vector<2x16x16x6xf32>
    %64 = arith.addf %58, %63 : vector<2x16x16x6xf32>
    %c1_39 = arith.constant 1 : index
    %c0_40 = arith.constant 0 : index
    %65 = vector.load %arg4[%c1_39, %c0_40] : memref<9x6xf32, #tpu.memory_space<vmem>>, vector<1x6xf32>
    %66 = vector.extract_strided_slice %57 {offsets = [0, 0, 8, 0], sizes = [2, 16, 16, 6], strides = [1, 1, 1, 1]} : vector<2x18x32x6xf32> to vector<2x16x16x6xf32>
    %67 = vector.shape_cast %65 : vector<1x6xf32> to vector<1x1x1x6xf32>
    %68 = vector.broadcast %67 : vector<1x1x1x6xf32> to vector<2x16x16x6xf32>
    %69 = arith.mulf %66, %68 : vector<2x16x16x6xf32>
    %70 = arith.addf %64, %69 : vector<2x16x16x6xf32>
    %c2 = arith.constant 2 : index
    %c0_41 = arith.constant 0 : index
    %71 = vector.load %arg4[%c2, %c0_41] : memref<9x6xf32, #tpu.memory_space<vmem>>, vector<1x6xf32>
    %72 = vector.extract_strided_slice %57 {offsets = [0, 0, 9, 0], sizes = [2, 16, 16, 6], strides = [1, 1, 1, 1]} : vector<2x18x32x6xf32> to vector<2x16x16x6xf32>
    %73 = vector.shape_cast %71 : vector<1x6xf32> to vector<1x1x1x6xf32>
    %74 = vector.broadcast %73 : vector<1x1x1x6xf32> to vector<2x16x16x6xf32>
    %75 = arith.mulf %72, %74 : vector<2x16x16x6xf32>
    %76 = arith.addf %70, %75 : vector<2x16x16x6xf32>
    %c3 = arith.constant 3 : index
    %c0_42 = arith.constant 0 : index
    %77 = vector.load %arg4[%c3, %c0_42] : memref<9x6xf32, #tpu.memory_space<vmem>>, vector<1x6xf32>
    %78 = vector.extract_strided_slice %57 {offsets = [0, 1, 7, 0], sizes = [2, 16, 16, 6], strides = [1, 1, 1, 1]} : vector<2x18x32x6xf32> to vector<2x16x16x6xf32>
    %79 = vector.shape_cast %77 : vector<1x6xf32> to vector<1x1x1x6xf32>
    %80 = vector.broadcast %79 : vector<1x1x1x6xf32> to vector<2x16x16x6xf32>
    %81 = arith.mulf %78, %80 : vector<2x16x16x6xf32>
    %82 = arith.addf %76, %81 : vector<2x16x16x6xf32>
    %c4 = arith.constant 4 : index
    %c0_43 = arith.constant 0 : index
    %83 = vector.load %arg4[%c4, %c0_43] : memref<9x6xf32, #tpu.memory_space<vmem>>, vector<1x6xf32>
    %84 = vector.extract_strided_slice %57 {offsets = [0, 1, 8, 0], sizes = [2, 16, 16, 6], strides = [1, 1, 1, 1]} : vector<2x18x32x6xf32> to vector<2x16x16x6xf32>
    %85 = vector.shape_cast %83 : vector<1x6xf32> to vector<1x1x1x6xf32>
    %86 = vector.broadcast %85 : vector<1x1x1x6xf32> to vector<2x16x16x6xf32>
    %87 = arith.mulf %84, %86 : vector<2x16x16x6xf32>
    %88 = arith.addf %82, %87 : vector<2x16x16x6xf32>
    %c5 = arith.constant 5 : index
    %c0_44 = arith.constant 0 : index
    %89 = vector.load %arg4[%c5, %c0_44] : memref<9x6xf32, #tpu.memory_space<vmem>>, vector<1x6xf32>
    %90 = vector.extract_strided_slice %57 {offsets = [0, 1, 9, 0], sizes = [2, 16, 16, 6], strides = [1, 1, 1, 1]} : vector<2x18x32x6xf32> to vector<2x16x16x6xf32>
    %91 = vector.shape_cast %89 : vector<1x6xf32> to vector<1x1x1x6xf32>
    %92 = vector.broadcast %91 : vector<1x1x1x6xf32> to vector<2x16x16x6xf32>
    %93 = arith.mulf %90, %92 : vector<2x16x16x6xf32>
    %94 = arith.addf %88, %93 : vector<2x16x16x6xf32>
    %c6 = arith.constant 6 : index
    %c0_45 = arith.constant 0 : index
    %95 = vector.load %arg4[%c6, %c0_45] : memref<9x6xf32, #tpu.memory_space<vmem>>, vector<1x6xf32>
    %96 = vector.extract_strided_slice %57 {offsets = [0, 2, 7, 0], sizes = [2, 16, 16, 6], strides = [1, 1, 1, 1]} : vector<2x18x32x6xf32> to vector<2x16x16x6xf32>
    %97 = vector.shape_cast %95 : vector<1x6xf32> to vector<1x1x1x6xf32>
    %98 = vector.broadcast %97 : vector<1x1x1x6xf32> to vector<2x16x16x6xf32>
    %99 = arith.mulf %96, %98 : vector<2x16x16x6xf32>
    %100 = arith.addf %94, %99 : vector<2x16x16x6xf32>
    %c7 = arith.constant 7 : index
    %c0_46 = arith.constant 0 : index
    %101 = vector.load %arg4[%c7, %c0_46] : memref<9x6xf32, #tpu.memory_space<vmem>>, vector<1x6xf32>
    %102 = vector.extract_strided_slice %57 {offsets = [0, 2, 8, 0], sizes = [2, 16, 16, 6], strides = [1, 1, 1, 1]} : vector<2x18x32x6xf32> to vector<2x16x16x6xf32>
    %103 = vector.shape_cast %101 : vector<1x6xf32> to vector<1x1x1x6xf32>
    %104 = vector.broadcast %103 : vector<1x1x1x6xf32> to vector<2x16x16x6xf32>
    %105 = arith.mulf %102, %104 : vector<2x16x16x6xf32>
    %106 = arith.addf %100, %105 : vector<2x16x16x6xf32>
    %c8_47 = arith.constant 8 : index
    %c0_48 = arith.constant 0 : index
    %107 = vector.load %arg4[%c8_47, %c0_48] : memref<9x6xf32, #tpu.memory_space<vmem>>, vector<1x6xf32>
    %108 = vector.extract_strided_slice %57 {offsets = [0, 2, 9, 0], sizes = [2, 16, 16, 6], strides = [1, 1, 1, 1]} : vector<2x18x32x6xf32> to vector<2x16x16x6xf32>
    %109 = vector.shape_cast %107 : vector<1x6xf32> to vector<1x1x1x6xf32>
    %110 = vector.broadcast %109 : vector<1x1x1x6xf32> to vector<2x16x16x6xf32>
    %111 = arith.mulf %108, %110 : vector<2x16x16x6xf32>
    %112 = arith.addf %106, %111 : vector<2x16x16x6xf32>
    %113 = vector.shape_cast %112 : vector<2x16x16x6xf32> to vector<512x6xf32>
    %c0_49 = arith.constant 0 : index
    %c0_50 = arith.constant 0 : index
    %114 = vector.load %arg5[%c0_49, %c0_50] : memref<1x6xf32, #tpu.memory_space<vmem>>, vector<1x6xf32>
    %c0_51 = arith.constant 0 : index
    %c0_52 = arith.constant 0 : index
    %115 = vector.load %arg6[%c0_51, %c0_52] : memref<1x6xf32, #tpu.memory_space<vmem>>, vector<1x6xf32>
    %cst_53 = arith.constant dense<0.000000e+00> : vector<6xf32>
    %116 = vector.multi_reduction <add>, %113, %cst_53 [0] : vector<512x6xf32> to vector<6xf32>
    %117 = vector.shape_cast %116 : vector<6xf32> to vector<1x6xf32>
    %118 = arith.mulf %113, %113 : vector<512x6xf32>
    %cst_54 = arith.constant dense<0.000000e+00> : vector<6xf32>
    %119 = vector.multi_reduction <add>, %118, %cst_54 [0] : vector<512x6xf32> to vector<6xf32>
    %120 = vector.shape_cast %119 : vector<6xf32> to vector<1x6xf32>
    %cst_55 = arith.constant 0.001953125 : f32
    %121 = vector.broadcast %cst_55 : f32 to vector<1x6xf32>
    %122 = arith.mulf %117, %121 : vector<1x6xf32>
    %cst_56 = arith.constant 0.001953125 : f32
    %123 = vector.broadcast %cst_56 : f32 to vector<1x6xf32>
    %124 = arith.mulf %120, %123 : vector<1x6xf32>
    %125 = arith.mulf %122, %122 : vector<1x6xf32>
    %126 = arith.subf %124, %125 : vector<1x6xf32>
    %cst_57 = arith.constant 9.99999974E-6 : f32
    %127 = vector.broadcast %cst_57 : f32 to vector<1x6xf32>
    %128 = arith.addf %126, %127 : vector<1x6xf32>
    %129 = math.rsqrt %128 : vector<1x6xf32>
    %130 = arith.mulf %114, %129 : vector<1x6xf32>
    %131 = arith.mulf %122, %130 : vector<1x6xf32>
    %132 = arith.subf %115, %131 : vector<1x6xf32>
    %133 = vector.broadcast %130 : vector<1x6xf32> to vector<512x6xf32>
    %134 = arith.mulf %113, %133 : vector<512x6xf32>
    %135 = vector.broadcast %132 : vector<1x6xf32> to vector<512x6xf32>
    %136 = arith.addf %134, %135 : vector<512x6xf32>
    %c0_58 = arith.constant 0 : index
    %c0_59 = arith.constant 0 : index
    %137 = vector.load %arg7[%c0_58, %c0_59] : memref<6x24xf32, #tpu.memory_space<vmem>>, vector<6x24xf32>
    %cst_60 = arith.constant dense<0.000000e+00> : vector<512x24xf32>
    %138 = tpu.matmul %136, %137, %cst_60 {dimension_numbers = #tpu.dot_dimension_numbers<[1], [0], [0], [1], [0, 0, 1, 1], [], []>} : vector<512x6xf32>, vector<6x24xf32>, vector<512x24xf32> -> vector<512x24xf32>
    %c0_61 = arith.constant 0 : index
    %c0_62 = arith.constant 0 : index
    %139 = vector.load %arg8[%c0_61, %c0_62] : memref<1x24xf32, #tpu.memory_space<vmem>>, vector<1x24xf32>
    %c0_63 = arith.constant 0 : index
    %c0_64 = arith.constant 0 : index
    %140 = vector.load %arg9[%c0_63, %c0_64] : memref<1x24xf32, #tpu.memory_space<vmem>>, vector<1x24xf32>
    %cst_65 = arith.constant dense<0.000000e+00> : vector<24xf32>
    %141 = vector.multi_reduction <add>, %138, %cst_65 [0] : vector<512x24xf32> to vector<24xf32>
    %142 = vector.shape_cast %141 : vector<24xf32> to vector<1x24xf32>
    %143 = arith.mulf %138, %138 : vector<512x24xf32>
    %cst_66 = arith.constant dense<0.000000e+00> : vector<24xf32>
    %144 = vector.multi_reduction <add>, %143, %cst_66 [0] : vector<512x24xf32> to vector<24xf32>
    %145 = vector.shape_cast %144 : vector<24xf32> to vector<1x24xf32>
    %cst_67 = arith.constant 0.001953125 : f32
    %146 = vector.broadcast %cst_67 : f32 to vector<1x24xf32>
    %147 = arith.mulf %142, %146 : vector<1x24xf32>
    %cst_68 = arith.constant 0.001953125 : f32
    %148 = vector.broadcast %cst_68 : f32 to vector<1x24xf32>
    %149 = arith.mulf %145, %148 : vector<1x24xf32>
    %150 = arith.mulf %147, %147 : vector<1x24xf32>
    %151 = arith.subf %149, %150 : vector<1x24xf32>
    %cst_69 = arith.constant 9.99999974E-6 : f32
    %152 = vector.broadcast %cst_69 : f32 to vector<1x24xf32>
    %153 = arith.addf %151, %152 : vector<1x24xf32>
    %154 = math.rsqrt %153 : vector<1x24xf32>
    %155 = arith.mulf %139, %154 : vector<1x24xf32>
    %156 = arith.mulf %147, %155 : vector<1x24xf32>
    %157 = arith.subf %140, %156 : vector<1x24xf32>
    %158 = vector.broadcast %155 : vector<1x24xf32> to vector<512x24xf32>
    %159 = arith.mulf %138, %158 : vector<512x24xf32>
    %160 = vector.broadcast %157 : vector<1x24xf32> to vector<512x24xf32>
    %161 = arith.addf %159, %160 : vector<512x24xf32>
    %cst_70 = arith.constant 0.000000e+00 : f32
    %162 = vector.broadcast %cst_70 : f32 to vector<512x24xf32>
    %163 = arith.maximumf %161, %162 : vector<512x24xf32>
    %164 = arith.addf %163, %25 : vector<512x24xf32>
    %c0_71 = arith.constant 0 : index
    %c0_72 = arith.constant 0 : index
    %165 = vector.load %arg13[%c0_71, %c0_72] : memref<512x24xf32, #tpu.memory_space<vmem>>, vector<512x24xf32>
    tpu.vector_store %arg13[%c0_71, %c0_72], %164 {strides = array<i32>} : memref<512x24xf32, #tpu.memory_space<vmem>>, vector<512x24xf32>,
    return
  }
}

</mosaic_0001>

<llo_original>
// kernel: tpu_custom_call.1
$region0: #{tpu_custom_call.1}
  #allocation0 [shape = 'u32[]', space=smem, size = 0x4, offset = 0x4, fixed_abs, tag = 'smem constant byte address 0x4 - core index']
  #allocation1 [shape = 'u32[144,128]{1,0:T(1,128)}', space=vmem, size = 0x12000, scoped, tag = 'internal scratch']
  #allocation2 [shape = 'f32[2,18,32,6]{3,2,1,0:T(8,128)}', space=vmem, size = 0x90000, scoped, tag = 'scratch operand']
  %s0 = inlined_call_operand.vmem [shape: f32[512,12], index: 0, kind: input, shape index: {}]
  %s1 = inlined_call_operand.vmem [shape: f32[12,6], index: 1, kind: input, shape index: {}]
  %s2 = inlined_call_operand.vmem [shape: f32[1,6], index: 2, kind: input, shape index: {}]
  %s3 = inlined_call_operand.vmem [shape: f32[1,6], index: 3, kind: input, shape index: {}]
  %s4 = inlined_call_operand.vmem [shape: f32[9,6], index: 4, kind: input, shape index: {}]
  %s5 = inlined_call_operand.vmem [shape: f32[1,6], index: 5, kind: input, shape index: {}]
  %s6 = inlined_call_operand.vmem [shape: f32[1,6], index: 6, kind: input, shape index: {}]
  %s7 = inlined_call_operand.vmem [shape: f32[6,24], index: 7, kind: input, shape index: {}]
  %s8 = inlined_call_operand.vmem [shape: f32[1,24], index: 8, kind: input, shape index: {}]
  %s9 = inlined_call_operand.vmem [shape: f32[1,24], index: 9, kind: input, shape index: {}]
  %s10 = inlined_call_operand.vmem [shape: f32[12,24], index: 10, kind: input, shape index: {}]
  %s11 = inlined_call_operand.vmem [shape: f32[1,24], index: 11, kind: input, shape index: {}]
  %s12 = inlined_call_operand.vmem [shape: f32[1,24], index: 12, kind: input, shape index: {}]
  %s13 = inlined_call_operand.vmem [shape: f32[512,24], index: 13, kind: output, shape index: {}]
  %s14 = sld [smem:[#allocation0]]
  $region62: #{tpu_custom_call.1} parent=0
    _
  %s16 = ssub.s32 1, %s14
  %s17 = scalar_select 0, %s16, %s14
  // Predicated region
  $region2: #{tpu_custom_call.1} parent=0 // pred_check
    _
  $region3: #{tpu_custom_call.1} parent=0 // pred_check_branch
    %19 = sbr.rel (0) target = $region5
  $region4: #{tpu_custom_call.1} parent=0 // pred_region
    _
  $region5: #{tpu_custom_call.1} parent=0 // pred_fallthru
    _
  // Predicated region
  $region6: #{tpu_custom_call.1} parent=0 // pred_check
    _
  $region7: #{tpu_custom_call.1} parent=0 // pred_check_branch
    %21 = sbr.rel (0) target = $region9
  $region8: #{tpu_custom_call.1} parent=0 // pred_region
    _
  $region9: #{tpu_custom_call.1} parent=0 // pred_fallthru
    _
  // Predicated region
  $region10: #{tpu_custom_call.1} parent=0 // pred_check
    _
  $region11: #{tpu_custom_call.1} parent=0 // pred_check_branch
    %23 = sbr.rel (0) target = $region13
  $region12: #{tpu_custom_call.1} parent=0 // pred_region
    _
  $region13: #{tpu_custom_call.1} parent=0 // pred_fallthru
    _
  // Predicated region
  $region14: #{tpu_custom_call.1} parent=0 // pred_check
    _
  $region15: #{tpu_custom_call.1} parent=0 // pred_check_branch
    %25 = sbr.rel (0) target = $region17
  $region16: #{tpu_custom_call.1} parent=0 // pred_region
    _
  $region17: #{tpu_custom_call.1} parent=0 // pred_fallthru
    _
  // Predicated region
  $region18: #{tpu_custom_call.1} parent=0 // pred_check
    _
  $region19: #{tpu_custom_call.1} parent=0 // pred_check_branch
    %27 = sbr.rel (0) target = $region21
  $region20: #{tpu_custom_call.1} parent=0 // pred_region
    _
  $region21: #{tpu_custom_call.1} parent=0 // pred_fallthru
    _
  // Predicated region
  $region22: #{tpu_custom_call.1} parent=0 // pred_check
    _
  $region23: #{tpu_custom_call.1} parent=0 // pred_check_branch
    %29 = sbr.rel (0) target = $region25
  $region24: #{tpu_custom_call.1} parent=0 // pred_region
    _
  $region25: #{tpu_custom_call.1} parent=0 // pred_fallthru
    _
  // Predicated region
  $region26: #{tpu_custom_call.1} parent=0 // pred_check
    _
  $region27: #{tpu_custom_call.1} parent=0 // pred_check_branch
    %31 = sbr.rel (0) target = $region29
  $region28: #{tpu_custom_call.1} parent=0 // pred_region
    _
  $region29: #{tpu_custom_call.1} parent=0 // pred_fallthru
    _
  // Predicated region
  $region30: #{tpu_custom_call.1} parent=0 // pred_check
    _
  $region31: #{tpu_custom_call.1} parent=0 // pred_check_branch
    %33 = sbr.rel (0) target = $region33
  $region32: #{tpu_custom_call.1} parent=0 // pred_region
    _
  $region33: #{tpu_custom_call.1} parent=0 // pred_fallthru
    _
  // Predicated region
  $region34: #{tpu_custom_call.1} parent=0 // pred_check
    _
  $region35: #{tpu_custom_call.1} parent=0 // pred_check_branch
    %35 = sbr.rel (0) target = $region37
  $region36: #{tpu_custom_call.1} parent=0 // pred_region
    _
  $region37: #{tpu_custom_call.1} parent=0 // pred_fallthru
    _
  // Predicated region
  $region38: #{tpu_custom_call.1} parent=0 // pred_check
    _
  $region39: #{tpu_custom_call.1} parent=0 // pred_check_branch
    %37 = sbr.rel (0) target = $region41
  $region40: #{tpu_custom_call.1} parent=0 // pred_region
    _
  $region41: #{tpu_custom_call.1} parent=0 // pred_fallthru
    _
  // Predicated region
  $region42: #{tpu_custom_call.1} parent=0 // pred_check
    _
  $region43: #{tpu_custom_call.1} parent=0 // pred_check_branch
    %39 = sbr.rel (0) target = $region45
  $region44: #{tpu_custom_call.1} parent=0 // pred_region
    _
  $region45: #{tpu_custom_call.1} parent=0 // pred_fallthru
    _
  // Predicated region
  $region46: #{tpu_custom_call.1} parent=0 // pred_check
    _
  $region47: #{tpu_custom_call.1} parent=0 // pred_check_branch
    %41 = sbr.rel (0) target = $region49
  $region48: #{tpu_custom_call.1} parent=0 // pred_region
    _
  $region49: #{tpu_custom_call.1} parent=0 // pred_fallthru
    _
  // Predicated region
  $region50: #{tpu_custom_call.1} parent=0 // pred_check
    _
  $region51: #{tpu_custom_call.1} parent=0 // pred_check_branch
    %43 = sbr.rel (0) target = $region53
  $region52: #{tpu_custom_call.1} parent=0 // pred_region
    _
  $region53: #{tpu_custom_call.1} parent=0 // pred_fallthru
    _
  %v44 = vld [vmem:[%s0] sm:$0xff]
  %v45 = vld [vmem:[%s0 + $0x8] sm:$0xff]
  %v46 = vld [vmem:[%s0 + $0x10] sm:$0xff]
  %v47 = vld [vmem:[%s0 + $0x18] sm:$0xff]
  %v48 = vld [vmem:[%s0 + $0x20] sm:$0xff]
  %v49 = vld [vmem:[%s0 + $0x28] sm:$0xff]
  %v50 = vld [vmem:[%s0 + $0x30] sm:$0xff]
  %v51 = vld [vmem:[%s0 + $0x38] sm:$0xff]
  %v52 = vld [vmem:[%s0 + $0x40] sm:$0xff]
  %v53 = vld [vmem:[%s0 + $0x48] sm:$0xff]
  %v54 = vld [vmem:[%s0 + $0x50] sm:$0xff]
  %v55 = vld [vmem:[%s0 + $0x58] sm:$0xff]
  %v56 = vld [vmem:[%s0 + $0x60] sm:$0xff]
  %v57 = vld [vmem:[%s0 + $0x68] sm:$0xff]
  %v58 = vld [vmem:[%s0 + $0x70] sm:$0xff]
  %v59 = vld [vmem:[%s0 + $0x78] sm:$0xff]
  %v60 = vld [vmem:[%s0 + $0x80] sm:$0xff]
  %v61 = vld [vmem:[%s0 + $0x88] sm:$0xff]
  %v62 = vld [vmem:[%s0 + $0x90] sm:$0xff]
  %v63 = vld [vmem:[%s0 + $0x98] sm:$0xff]
  %v64 = vld [vmem:[%s0 + $0xa0] sm:$0xff]
  %v65 = vld [vmem:[%s0 + $0xa8] sm:$0xff]
  %v66 = vld [vmem:[%s0 + $0xb0] sm:$0xff]
  %v67 = vld [vmem:[%s0 + $0xb8] sm:$0xff]
  %v68 = vld [vmem:[%s0 + $0xc0] sm:$0xff]
  %v69 = vld [vmem:[%s0 + $0xc8] sm:$0xff]
  %v70 = vld [vmem:[%s0 + $0xd0] sm:$0xff]
  %v71 = vld [vmem:[%s0 + $0xd8] sm:$0xff]
  %v72 = vld [vmem:[%s0 + $0xe0] sm:$0xff]
  %v73 = vld [vmem:[%s0 + $0xe8] sm:$0xff]
  %v74 = vld [vmem:[%s0 + $0xf0] sm:$0xff]
  %v75 = vld [vmem:[%s0 + $0xf8] sm:$0xff]
  %v76 = vld [vmem:[%s0 + $0x100] sm:$0xff]
  %v77 = vld [vmem:[%s0 + $0x108] sm:$0xff]
  %v78 = vld [vmem:[%s0 + $0x110] sm:$0xff]
  %v79 = vld [vmem:[%s0 + $0x118] sm:$0xff]
  %v80 = vld [vmem:[%s0 + $0x120] sm:$0xff]
  %v81 = vld [vmem:[%s0 + $0x128] sm:$0xff]
  %v82 = vld [vmem:[%s0 + $0x130] sm:$0xff]
  %v83 = vld [vmem:[%s0 + $0x138] sm:$0xff]
  %v84 = vld [vmem:[%s0 + $0x140] sm:$0xff]
  %v85 = vld [vmem:[%s0 + $0x148] sm:$0xff]
  %v86 = vld [vmem:[%s0 + $0x150] sm:$0xff]
  %v87 = vld [vmem:[%s0 + $0x158] sm:$0xff]
  %v88 = vld [vmem:[%s0 + $0x160] sm:$0xff]
  %v89 = vld [vmem:[%s0 + $0x168] sm:$0xff]
  %v90 = vld [vmem:[%s0 + $0x170] sm:$0xff]
  %v91 = vld [vmem:[%s0 + $0x178] sm:$0xff]
  %v92 = vld [vmem:[%s0 + $0x180] sm:$0xff]
  %v93 = vld [vmem:[%s0 + $0x188] sm:$0xff]
  %v94 = vld [vmem:[%s0 + $0x190] sm:$0xff]
  %v95 = vld [vmem:[%s0 + $0x198] sm:$0xff]
  %v96 = vld [vmem:[%s0 + $0x1a0] sm:$0xff]
  %v97 = vld [vmem:[%s0 + $0x1a8] sm:$0xff]
  %v98 = vld [vmem:[%s0 + $0x1b0] sm:$0xff]
  %v99 = vld [vmem:[%s0 + $0x1b8] sm:$0xff]
  %v100 = vld [vmem:[%s0 + $0x1c0] sm:$0xff]
  %v101 = vld [vmem:[%s0 + $0x1c8] sm:$0xff]
  %v102 = vld [vmem:[%s0 + $0x1d0] sm:$0xff]
  %v103 = vld [vmem:[%s0 + $0x1d8] sm:$0xff]
  %v104 = vld [vmem:[%s0 + $0x1e0] sm:$0xff]
  %v105 = vld [vmem:[%s0 + $0x1e8] sm:$0xff]
  %v106 = vld [vmem:[%s0 + $0x1f0] sm:$0xff]
  %v107 = vld [vmem:[%s0 + $0x1f8] sm:$0xff]
  %v108 = vld [vmem:[%s10] sm:$0xff]
  %v109 = vld [vmem:[%s10 + $0x8] sm:$0xf]
  %vm110 = vcmask 97280
  %v112 = vsel %vm110, %v44, 0
  %v115 = vsel %vm110, %v45, 0
  %v118 = vsel %vm110, %v46, 0
  %v121 = vsel %vm110, %v47, 0
  %v124 = vsel %vm110, %v48, 0
  %v127 = vsel %vm110, %v49, 0
  %v130 = vsel %vm110, %v50, 0
  %v133 = vsel %vm110, %v51, 0
  %v136 = vsel %vm110, %v52, 0
  %v139 = vsel %vm110, %v53, 0
  %v142 = vsel %vm110, %v54, 0
  %v145 = vsel %vm110, %v55, 0
  %v148 = vsel %vm110, %v56, 0
  %v151 = vsel %vm110, %v57, 0
  %v154 = vsel %vm110, %v58, 0
  %v157 = vsel %vm110, %v59, 0
  %v160 = vsel %vm110, %v60, 0
  %v163 = vsel %vm110, %v61, 0
  %v166 = vsel %vm110, %v62, 0
  %v169 = vsel %vm110, %v63, 0
  %v172 = vsel %vm110, %v64, 0
  %v175 = vsel %vm110, %v65, 0
  %v178 = vsel %vm110, %v66, 0
  %v181 = vsel %vm110, %v67, 0
  %v184 = vsel %vm110, %v68, 0
  %v187 = vsel %vm110, %v69, 0
  %v190 = vsel %vm110, %v70, 0
  %v193 = vsel %vm110, %v71, 0
  %v196 = vsel %vm110, %v72, 0
  %v199 = vsel %vm110, %v73, 0
  %v202 = vsel %vm110, %v74, 0
  %v205 = vsel %vm110, %v75, 0
  %v208 = vsel %vm110, %v76, 0
  %v211 = vsel %vm110, %v77, 0
  %v214 = vsel %vm110, %v78, 0
  %v217 = vsel %vm110, %v79, 0
  %v220 = vsel %vm110, %v80, 0
  %v223 = vsel %vm110, %v81, 0
  %v226 = vsel %vm110, %v82, 0
  %v229 = vsel %vm110, %v83, 0
  %v232 = vsel %vm110, %v84, 0
  %v235 = vsel %vm110, %v85, 0
  %v238 = vsel %vm110, %v86, 0
  %v241 = vsel %vm110, %v87, 0
  %v244 = vsel %vm110, %v88, 0
  %v247 = vsel %vm110, %v89, 0
  %v250 = vsel %vm110, %v90, 0
  %v253 = vsel %vm110, %v91, 0
  %v256 = vsel %vm110, %v92, 0
  %v259 = vsel %vm110, %v93, 0
  %v262 = vsel %vm110, %v94, 0
  %v265 = vsel %vm110, %v95, 0
  %v268 = vsel %vm110, %v96, 0
  %v271 = vsel %vm110, %v97, 0
  %v274 = vsel %vm110, %v98, 0
  %v277 = vsel %vm110, %v99, 0
  %v280 = vsel %vm110, %v100, 0
  %v283 = vsel %vm110, %v101, 0
  %v286 = vsel %vm110, %v102, 0
  %v289 = vsel %vm110, %v103, 0
  %v292 = vsel %vm110, %v104, 0
  %v295 = vsel %vm110, %v105, 0
  %v298 = vsel %vm110, %v106, 0
  %v301 = vsel %vm110, %v107, 0
  %vm303 = vcmask 1043456
  %v305 = vsel %vm303, %v109, 0
  %307 = vmatprep.subr.mxu0 0.0
  %308 = vmatpush1.msra.mxu0 %v108
  %309 = vmatprep.subr.mxu0 0.0
  %310 = vmatpush1.msra.mxu0 %v305
  %311 = vmatprep.subr.mxu0 0.0
  %312 = vmatpush1.msra.mxu0 0.0
  %313 = vmatprep.subr.mxu0 0.0
  %314 = vmatpush1.msra.mxu0 0.0
  %315 = vmatprep.subr.mxu0 0.0
  %316 = vmatpush1.msra.mxu0 0.0
  %317 = vmatprep.subr.mxu0 0.0
  %318 = vmatpush1.msra.mxu0 0.0
  %319 = vmatprep.subr.mxu0 0.0
  %320 = vmatpush1.msra.mxu0 0.0
  %321 = vmatprep.subr.mxu0 0.0
  %322 = vmatpush1.msra.mxu0 0.0
  %323 = vmatprep.subr.mxu0 0.0
  %324 = vmatpush1.msra.mxu0 0.0
  %325 = vmatprep.subr.mxu0 0.0
  %326 = vmatpush1.msra.mxu0 0.0
  %327 = vmatprep.subr.mxu0 0.0
  %328 = vmatpush1.msra.mxu0 0.0
  %329 = vmatprep.subr.mxu0 0.0
  %330 = vmatpush1.msra.mxu0 0.0
  %331 = vmatprep.subr.mxu0 0.0
  %332 = vmatpush1.msra.mxu0 0.0
  %333 = vmatprep.subr.mxu0 0.0
  %334 = vmatpush1.msra.mxu0 0.0
  %335 = vmatprep.subr.mxu0 0.0
  %336 = vmatpush1.msra.mxu0 0.0
  %337 = vmatprep.subr.mxu0 0.0
  %338 = vmatpush1.msra.mxu0 0.0
  %339 = vmatprep.subr.mxu0 0.0
  %340 = vmatpush1.msra.mxu0 0.0
  %341 = vmatprep.subr.mxu0 0.0
  %342 = vmatpush1.msra.mxu0 0.0
  %343 = vmatprep.subr.mxu0 0.0
  %344 = vmatpush1.msra.mxu0 0.0
  %345 = vmatprep.subr.mxu0 0.0
  %346 = vmatpush1.msra.mxu0 0.0
  %347 = vmatprep.subr.mxu0 0.0
  %348 = vmatpush1.msra.mxu0 0.0
  %349 = vmatprep.subr.mxu0 0.0
  %350 = vmatpush1.msra.mxu0 0.0
  %351 = vmatprep.subr.mxu0 0.0
  %352 = vmatpush1.msra.mxu0 0.0
  %353 = vmatprep.subr.mxu0 0.0
  %354 = vmatpush1.msra.mxu0 0.0
  %355 = vmatprep.subr.mxu0 0.0
  %356 = vmatpush1.msra.mxu0 0.0
  %357 = vmatprep.subr.mxu0 0.0
  %358 = vmatpush1.msra.mxu0 0.0
  %359 = vmatprep.subr.mxu0 0.0
  %360 = vmatpush1.msra.mxu0 0.0
  %361 = vmatprep.subr.mxu0 0.0
  %362 = vmatpush1.msra.mxu0 0.0
  %363 = vmatprep.subr.mxu0 0.0
  %364 = vmatpush1.msra.mxu0 0.0
  %365 = vmatprep.subr.mxu0 0.0
  %366 = vmatpush1.msra.mxu0 0.0
  %367 = vmatprep.subr.mxu0 0.0
  %368 = vmatpush1.msra.mxu0 0.0
  %369 = vmatprep.subr.mxu0 0.0
  %370 = vmatpush1.msra.mxu0 0.0
  %371 = vmatprep.mubr.f32.mxu0 0.0
  %372 = vmatmul.mubr.f32.gmra.mrb[0].mxu0 %v112
  %v373 = vpop.f32.mrb[0].mxu0
  %v374 = vadd.f32 0.0, %v373
  %v375 = vpop.f32.mrb[0].mxu0
  %376 = vmatprep.mubr.f32.mxu0 0.0
  %377 = vmatmul.mubr.f32.gmra.mrb[0].mxu0 %v115
  %v378 = vpop.f32.mrb[0].mxu0
  %v379 = vadd.f32 0.0, %v378
  %v380 = vpop.f32.mrb[0].mxu0
  %381 = vmatprep.mubr.f32.mxu0 0.0
  %382 = vmatmul.mubr.f32.gmra.mrb[0].mxu0 %v118
  %v383 = vpop.f32.mrb[0].mxu0
  %v384 = vadd.f32 0.0, %v383
  %v385 = vpop.f32.mrb[0].mxu0
  %386 = vmatprep.mubr.f32.mxu0 0.0
  %387 = vmatmul.mubr.f32.gmra.mrb[0].mxu0 %v121
  %v388 = vpop.f32.mrb[0].mxu0
  %v389 = vadd.f32 0.0, %v388
  %v390 = vpop.f32.mrb[0].mxu0
  %391 = vmatprep.mubr.f32.mxu0 0.0
  %392 = vmatmul.mubr.f32.gmra.mrb[0].mxu0 %v124
  %v393 = vpop.f32.mrb[0].mxu0
  %v394 = vadd.f32 0.0, %v393
  %v395 = vpop.f32.mrb[0].mxu0
  %396 = vmatprep.mubr.f32.mxu0 0.0
  %397 = vmatmul.mubr.f32.gmra.mrb[0].mxu0 %v127
  %v398 = vpop.f32.mrb[0].mxu0
  %v399 = vadd.f32 0.0, %v398
  %v400 = vpop.f32.mrb[0].mxu0
  %401 = vmatprep.mubr.f32.mxu0 0.0
  %402 = vmatmul.mubr.f32.gmra.mrb[0].mxu0 %v130
  %v403 = vpop.f32.mrb[0].mxu0
  %v404 = vadd.f32 0.0, %v403
  %v405 = vpop.f32.mrb[0].mxu0
  %406 = vmatprep.mubr.f32.mxu0 0.0
  %407 = vmatmul.mubr.f32.gmra.mrb[0].mxu0 %v133
  %v408 = vpop.f32.mrb[0].mxu0
  %v409 = vadd.f32 0.0, %v408
  %v410 = vpop.f32.mrb[0].mxu0
  %411 = vmatprep.mubr.f32.mxu0 0.0
  %412 = vmatmul.mubr.f32.gmra.mrb[0].mxu0 %v136
  %v413 = vpop.f32.mrb[0].mxu0
  %v414 = vadd.f32 0.0, %v413
  %v415 = vpop.f32.mrb[0].mxu0
  %416 = vmatprep.mubr.f32.mxu0 0.0
  %417 = vmatmul.mubr.f32.gmra.mrb[0].mxu0 %v139
  %v418 = vpop.f32.mrb[0].mxu0
  %v419 = vadd.f32 0.0, %v418
  %v420 = vpop.f32.mrb[0].mxu0
  %421 = vmatprep.mubr.f32.mxu0 0.0
  %422 = vmatmul.mubr.f32.gmra.mrb[0].mxu0 %v142
  %v423 = vpop.f32.mrb[0].mxu0
  %v424 = vadd.f32 0.0, %v423
  %v425 = vpop.f32.mrb[0].mxu0
  %426 = vmatprep.mubr.f32.mxu0 0.0
  %427 = vmatmul.mubr.f32.gmra.mrb[0].mxu0 %v145
  %v428 = vpop.f32.mrb[0].mxu0
  %v429 = vadd.f32 0.0, %v428
  %v430 = vpop.f32.mrb[0].mxu0
  %431 = vmatprep.mubr.f32.mxu0 0.0
  %432 = vmatmul.mubr.f32.gmra.mrb[0].mxu0 %v148
  %v433 = vpop.f32.mrb[0].mxu0
  %v434 = vadd.f32 0.0, %v433
  %v435 = vpop.f32.mrb[0].mxu0
  %436 = vmatprep.mubr.f32.mxu0 0.0
  %437 = vmatmul.mubr.f32.gmra.mrb[0].mxu0 %v151
  %v438 = vpop.f32.mrb[0].mxu0
  %v439 = vadd.f32 0.0, %v438
  %v440 = vpop.f32.mrb[0].mxu0
  %441 = vmatprep.mubr.f32.mxu0 0.0
  %442 = vmatmul.mubr.f32.gmra.mrb[0].mxu0 %v154
  %v443 = vpop.f32.mrb[0].mxu0
  %v444 = vadd.f32 0.0, %v443
  %v445 = vpop.f32.mrb[0].mxu0
  %446 = vmatprep.mubr.f32.mxu0 0.0
  %447 = vmatmul.mubr.f32.gmra.mrb[0].mxu0 %v157
  %v448 = vpop.f32.mrb[0].mxu0
  %v449 = vadd.f32 0.0, %v448
  %v450 = vpop.f32.mrb[0].mxu0
  %451 = vmatprep.mubr.f32.mxu0 0.0
  %452 = vmatmul.mubr.f32.gmra.mrb[0].mxu0 %v160
  %v453 = vpop.f32.mrb[0].mxu0
  %v454 = vadd.f32 0.0, %v453
  %v455 = vpop.f32.mrb[0].mxu0
  %456 = vmatprep.mubr.f32.mxu0 0.0
  %457 = vmatmul.mubr.f32.gmra.mrb[0].mxu0 %v163
  %v458 = vpop.f32.mrb[0].mxu0
  %v459 = vadd.f32 0.0, %v458
  %v460 = vpop.f32.mrb[0].mxu0
  %461 = vmatprep.mubr.f32.mxu0 0.0
  %462 = vmatmul.mubr.f32.gmra.mrb[0].mxu0 %v166
  %v463 = vpop.f32.mrb[0].mxu0
  %v464 = vadd.f32 0.0, %v463
  %v465 = vpop.f32.mrb[0].mxu0
  %466 = vmatprep.mubr.f32.mxu0 0.0
  %467 = vmatmul.mubr.f32.gmra.mrb[0].mxu0 %v169
  %v468 = vpop.f32.mrb[0].mxu0
  %v469 = vadd.f32 0.0, %v468
  %v470 = vpop.f32.mrb[0].mxu0
  %471 = vmatprep.mubr.f32.mxu0 0.0
  %472 = vmatmul.mubr.f32.gmra.mrb[0].mxu0 %v172
  %v473 = vpop.f32.mrb[0].mxu0
  %v474 = vadd.f32 0.0, %v473
  %v475 = vpop.f32.mrb[0].mxu0
  %476 = vmatprep.mubr.f32.mxu0 0.0
  %477 = vmatmul.mubr.f32.gmra.mrb[0].mxu0 %v175
  %v478 = vpop.f32.mrb[0].mxu0
  %v479 = vadd.f32 0.0, %v478
  %v480 = vpop.f32.mrb[0].mxu0
  %481 = vmatprep.mubr.f32.mxu0 0.0
  %482 = vmatmul.mubr.f32.gmra.mrb[0].mxu0 %v178
  %v483 = vpop.f32.mrb[0].mxu0
  %v484 = vadd.f32 0.0, %v483
  %v485 = vpop.f32.mrb[0].mxu0
  %486 = vmatprep.mubr.f32.mxu0 0.0
  %487 = vmatmul.mubr.f32.gmra.mrb[0].mxu0 %v181
  %v488 = vpop.f32.mrb[0].mxu0
  %v489 = vadd.f32 0.0, %v488
  %v490 = vpop.f32.mrb[0].mxu0
  %491 = vmatprep.mubr.f32.mxu0 0.0
  %492 = vmatmul.mubr.f32.gmra.mrb[0].mxu0 %v184
  %v493 = vpop.f32.mrb[0].mxu0
  %v494 = vadd.f32 0.0, %v493
  %v495 = vpop.f32.mrb[0].mxu0
  %496 = vmatprep.mubr.f32.mxu0 0.0
  %497 = vmatmul.mubr.f32.gmra.mrb[0].mxu0 %v187
  %v498 = vpop.f32.mrb[0].mxu0
  %v499 = vadd.f32 0.0, %v498
  %v500 = vpop.f32.mrb[0].mxu0
  %501 = vmatprep.mubr.f32.mxu0 0.0
  %502 = vmatmul.mubr.f32.gmra.mrb[0].mxu0 %v190
  %v503 = vpop.f32.mrb[0].mxu0
  %v504 = vadd.f32 0.0, %v503
  %v505 = vpop.f32.mrb[0].mxu0
  %506 = vmatprep.mubr.f32.mxu0 0.0
  %507 = vmatmul.mubr.f32.gmra.mrb[0].mxu0 %v193
  %v508 = vpop.f32.mrb[0].mxu0
  %v509 = vadd.f32 0.0, %v508
  %v510 = vpop.f32.mrb[0].mxu0
  %511 = vmatprep.mubr.f32.mxu0 0.0
  %512 = vmatmul.mubr.f32.gmra.mrb[0].mxu0 %v196
  %v513 = vpop.f32.mrb[0].mxu0
  %v514 = vadd.f32 0.0, %v513
  %v515 = vpop.f32.mrb[0].mxu0
  %516 = vmatprep.mubr.f32.mxu0 0.0
  %517 = vmatmul.mubr.f32.gmra.mrb[0].mxu0 %v199
  %v518 = vpop.f32.mrb[0].mxu0
  %v519 = vadd.f32 0.0, %v518
  %v520 = vpop.f32.mrb[0].mxu0
  %521 = vmatprep.mubr.f32.mxu0 0.0
  %522 = vmatmul.mubr.f32.gmra.mrb[0].mxu0 %v202
  %v523 = vpop.f32.mrb[0].mxu0
  %v524 = vadd.f32 0.0, %v523
  %v525 = vpop.f32.mrb[0].mxu0
  %526 = vmatprep.mubr.f32.mxu0 0.0
  %527 = vmatmul.mubr.f32.gmra.mrb[0].mxu0 %v205
  %v528 = vpop.f32.mrb[0].mxu0
  %v529 = vadd.f32 0.0, %v528
  %v530 = vpop.f32.mrb[0].mxu0
  %531 = vmatprep.mubr.f32.mxu0 0.0
  %532 = vmatmul.mubr.f32.gmra.mrb[0].mxu0 %v208
  %v533 = vpop.f32.mrb[0].mxu0
  %v534 = vadd.f32 0.0, %v533
  %v535 = vpop.f32.mrb[0].mxu0
  %536 = vmatprep.mubr.f32.mxu0 0.0
  %537 = vmatmul.mubr.f32.gmra.mrb[0].mxu0 %v211
  %v538 = vpop.f32.mrb[0].mxu0
  %v539 = vadd.f32 0.0, %v538
  %v540 = vpop.f32.mrb[0].mxu0
  %541 = vmatprep.mubr.f32.mxu0 0.0
  %542 = vmatmul.mubr.f32.gmra.mrb[0].mxu0 %v214
  %v543 = vpop.f32.mrb[0].mxu0
  %v544 = vadd.f32 0.0, %v543
  %v545 = vpop.f32.mrb[0].mxu0
  %546 = vmatprep.mubr.f32.mxu0 0.0
  %547 = vmatmul.mubr.f32.gmra.mrb[0].mxu0 %v217
  %v548 = vpop.f32.mrb[0].mxu0
  %v549 = vadd.f32 0.0, %v548
  %v550 = vpop.f32.mrb[0].mxu0
  %551 = vmatprep.mubr.f32.mxu0 0.0
  %552 = vmatmul.mubr.f32.gmra.mrb[0].mxu0 %v220
  %v553 = vpop.f32.mrb[0].mxu0
  %v554 = vadd.f32 0.0, %v553
  %v555 = vpop.f32.mrb[0].mxu0
  %556 = vmatprep.mubr.f32.mxu0 0.0
  %557 = vmatmul.mubr.f32.gmra.mrb[0].mxu0 %v223
  %v558 = vpop.f32.mrb[0].mxu0
  %v559 = vadd.f32 0.0, %v558
  %v560 = vpop.f32.mrb[0].mxu0
  %561 = vmatprep.mubr.f32.mxu0 0.0
  %562 = vmatmul.mubr.f32.gmra.mrb[0].mxu0 %v226
  %v563 = vpop.f32.mrb[0].mxu0
  %v564 = vadd.f32 0.0, %v563
  %v565 = vpop.f32.mrb[0].mxu0
  %566 = vmatprep.mubr.f32.mxu0 0.0
  %567 = vmatmul.mubr.f32.gmra.mrb[0].mxu0 %v229
  %v568 = vpop.f32.mrb[0].mxu0
  %v569 = vadd.f32 0.0, %v568
  %v570 = vpop.f32.mrb[0].mxu0
  %571 = vmatprep.mubr.f32.mxu0 0.0
  %572 = vmatmul.mubr.f32.gmra.mrb[0].mxu0 %v232
  %v573 = vpop.f32.mrb[0].mxu0
  %v574 = vadd.f32 0.0, %v573
  %v575 = vpop.f32.mrb[0].mxu0
  %576 = vmatprep.mubr.f32.mxu0 0.0
  %577 = vmatmul.mubr.f32.gmra.mrb[0].mxu0 %v235
  %v578 = vpop.f32.mrb[0].mxu0
  %v579 = vadd.f32 0.0, %v578
  %v580 = vpop.f32.mrb[0].mxu0
  %581 = vmatprep.mubr.f32.mxu0 0.0
  %582 = vmatmul.mubr.f32.gmra.mrb[0].mxu0 %v238
  %v583 = vpop.f32.mrb[0].mxu0
  %v584 = vadd.f32 0.0, %v583
  %v585 = vpop.f32.mrb[0].mxu0
  %586 = vmatprep.mubr.f32.mxu0 0.0
  %587 = vmatmul.mubr.f32.gmra.mrb[0].mxu0 %v241
  %v588 = vpop.f32.mrb[0].mxu0
  %v589 = vadd.f32 0.0, %v588
  %v590 = vpop.f32.mrb[0].mxu0
  %591 = vmatprep.mubr.f32.mxu0 0.0
  %592 = vmatmul.mubr.f32.gmra.mrb[0].mxu0 %v244
  %v593 = vpop.f32.mrb[0].mxu0
  %v594 = vadd.f32 0.0, %v593
  %v595 = vpop.f32.mrb[0].mxu0
  %596 = vmatprep.mubr.f32.mxu0 0.0
  %597 = vmatmul.mubr.f32.gmra.mrb[0].mxu0 %v247
  %v598 = vpop.f32.mrb[0].mxu0
  %v599 = vadd.f32 0.0, %v598
  %v600 = vpop.f32.mrb[0].mxu0
  %601 = vmatprep.mubr.f32.mxu0 0.0
  %602 = vmatmul.mubr.f32.gmra.mrb[0].mxu0 %v250
  %v603 = vpop.f32.mrb[0].mxu0
  %v604 = vadd.f32 0.0, %v603
  %v605 = vpop.f32.mrb[0].mxu0
  %606 = vmatprep.mubr.f32.mxu0 0.0
  %607 = vmatmul.mubr.f32.gmra.mrb[0].mxu0 %v253
  %v608 = vpop.f32.mrb[0].mxu0
  %v609 = vadd.f32 0.0, %v608
  %v610 = vpop.f32.mrb[0].mxu0
  %611 = vmatprep.mubr.f32.mxu0 0.0
  %612 = vmatmul.mubr.f32.gmra.mrb[0].mxu0 %v256
  %v613 = vpop.f32.mrb[0].mxu0
  %v614 = vadd.f32 0.0, %v613
  %v615 = vpop.f32.mrb[0].mxu0
  %616 = vmatprep.mubr.f32.mxu0 0.0
  %617 = vmatmul.mubr.f32.gmra.mrb[0].mxu0 %v259
  %v618 = vpop.f32.mrb[0].mxu0
  %v619 = vadd.f32 0.0, %v618
  %v620 = vpop.f32.mrb[0].mxu0
  %621 = vmatprep.mubr.f32.mxu0 0.0
  %622 = vmatmul.mubr.f32.gmra.mrb[0].mxu0 %v262
  %v623 = vpop.f32.mrb[0].mxu0
  %v624 = vadd.f32 0.0, %v623
  %v625 = vpop.f32.mrb[0].mxu0
  %626 = vmatprep.mubr.f32.mxu0 0.0
  %627 = vmatmul.mubr.f32.gmra.mrb[0].mxu0 %v265
  %v628 = vpop.f32.mrb[0].mxu0
  %v629 = vadd.f32 0.0, %v628
  %v630 = vpop.f32.mrb[0].mxu0
  %631 = vmatprep.mubr.f32.mxu0 0.0
  %632 = vmatmul.mubr.f32.gmra.mrb[0].mxu0 %v268
  %v633 = vpop.f32.mrb[0].mxu0
  %v634 = vadd.f32 0.0, %v633
  %v635 = vpop.f32.mrb[0].mxu0
  %636 = vmatprep.mubr.f32.mxu0 0.0
  %637 = vmatmul.mubr.f32.gmra.mrb[0].mxu0 %v271
  %v638 = vpop.f32.mrb[0].mxu0
  %v639 = vadd.f32 0.0, %v638
  %v640 = vpop.f32.mrb[0].mxu0
  %641 = vmatprep.mubr.f32.mxu0 0.0
  %642 = vmatmul.mubr.f32.gmra.mrb[0].mxu0 %v274
  %v643 = vpop.f32.mrb[0].mxu0
  %v644 = vadd.f32 0.0, %v643
  %v645 = vpop.f32.mrb[0].mxu0
  %646 = vmatprep.mubr.f32.mxu0 0.0
  %647 = vmatmul.mubr.f32.gmra.mrb[0].mxu0 %v277
  %v648 = vpop.f32.mrb[0].mxu0
  %v649 = vadd.f32 0.0, %v648
  %v650 = vpop.f32.mrb[0].mxu0
  %651 = vmatprep.mubr.f32.mxu0 0.0
  %652 = vmatmul.mubr.f32.gmra.mrb[0].mxu0 %v280
  %v653 = vpop.f32.mrb[0].mxu0
  %v654 = vadd.f32 0.0, %v653
  %v655 = vpop.f32.mrb[0].mxu0
  %656 = vmatprep.mubr.f32.mxu0 0.0
  %657 = vmatmul.mubr.f32.gmra.mrb[0].mxu0 %v283
  %v658 = vpop.f32.mrb[0].mxu0
  %v659 = vadd.f32 0.0, %v658
  %v660 = vpop.f32.mrb[0].mxu0
  %661 = vmatprep.mubr.f32.mxu0 0.0
  %662 = vmatmul.mubr.f32.gmra.mrb[0].mxu0 %v286
  %v663 = vpop.f32.mrb[0].mxu0
  %v664 = vadd.f32 0.0, %v663
  %v665 = vpop.f32.mrb[0].mxu0
  %666 = vmatprep.mubr.f32.mxu0 0.0
  %667 = vmatmul.mubr.f32.gmra.mrb[0].mxu0 %v289
  %v668 = vpop.f32.mrb[0].mxu0
  %v669 = vadd.f32 0.0, %v668
  %v670 = vpop.f32.mrb[0].mxu0
  %671 = vmatprep.mubr.f32.mxu0 0.0
  %672 = vmatmul.mubr.f32.gmra.mrb[0].mxu0 %v292
  %v673 = vpop.f32.mrb[0].mxu0
  %v674 = vadd.f32 0.0, %v673
  %v675 = vpop.f32.mrb[0].mxu0
  %676 = vmatprep.mubr.f32.mxu0 0.0
  %677 = vmatmul.mubr.f32.gmra.mrb[0].mxu0 %v295
  %v678 = vpop.f32.mrb[0].mxu0
  %v679 = vadd.f32 0.0, %v678
  %v680 = vpop.f32.mrb[0].mxu0
  %681 = vmatprep.mubr.f32.mxu0 0.0
  %682 = vmatmul.mubr.f32.gmra.mrb[0].mxu0 %v298
  %v683 = vpop.f32.mrb[0].mxu0
  %v684 = vadd.f32 0.0, %v683
  %v685 = vpop.f32.mrb[0].mxu0
  %686 = vmatprep.mubr.f32.mxu0 0.0
  %687 = vmatmul.mubr.f32.gmra.mrb[0].mxu0 %v301
  %v688 = vpop.f32.mrb[0].mxu0
  %v689 = vadd.f32 0.0, %v688
  %v690 = vpop.f32.mrb[0].mxu0
  %691 = vdwg.mxu0
  %v692 = vld [vmem:[%s11] sm:$0x1]
  %v693 = vld [vmem:[%s12] sm:$0x1]
  %vm694 = vcmask 195584
  %v695 = vsel %vm694, %v374, 0.0
  %v696 = vsel %vm694, %v379, 0.0
  %v697 = vadd.f32 %v695, %v696
  %v698 = vsel %vm694, %v384, 0.0
  %v699 = vadd.f32 %v697, %v698
  %v700 = vsel %vm694, %v389, 0.0
  %v701 = vadd.f32 %v699, %v700
  %v702 = vsel %vm694, %v394, 0.0
  %v703 = vadd.f32 %v701, %v702
  %v704 = vsel %vm694, %v399, 0.0
  %v705 = vadd.f32 %v703, %v704
  %v706 = vsel %vm694, %v404, 0.0
  %v707 = vadd.f32 %v705, %v706
  %v708 = vsel %vm694, %v409, 0.0
  %v709 = vadd.f32 %v707, %v708
  %v710 = vsel %vm694, %v414, 0.0
  %v711 = vadd.f32 %v709, %v710
  %v712 = vsel %vm694, %v419, 0.0
  %v713 = vadd.f32 %v711, %v712
  %v714 = vsel %vm694, %v424, 0.0
  %v715 = vadd.f32 %v713, %v714
  %v716 = vsel %vm694, %v429, 0.0
  %v717 = vadd.f32 %v715, %v716
  %v718 = vsel %vm694, %v434, 0.0
  %v719 = vadd.f32 %v717, %v718
  %v720 = vsel %vm694, %v439, 0.0
  %v721 = vadd.f32 %v719, %v720
  %v722 = vsel %vm694, %v444, 0.0
  %v723 = vadd.f32 %v721, %v722
  %v724 = vsel %vm694, %v449, 0.0
  %v725 = vadd.f32 %v723, %v724
  %v726 = vsel %vm694, %v454, 0.0
  %v727 = vadd.f32 %v725, %v726
  %v728 = vsel %vm694, %v459, 0.0
  %v729 = vadd.f32 %v727, %v728
  %v730 = vsel %vm694, %v464, 0.0
  %v731 = vadd.f32 %v729, %v730
  %v732 = vsel %vm694, %v469, 0.0
  %v733 = vadd.f32 %v731, %v732
  %v734 = vsel %vm694, %v474, 0.0
  %v735 = vadd.f32 %v733, %v734
  %v736 = vsel %vm694, %v479, 0.0
  %v737 = vadd.f32 %v735, %v736
  %v738 = vsel %vm694, %v484, 0.0
  %v739 = vadd.f32 %v737, %v738
  %v740 = vsel %vm694, %v489, 0.0
  %v741 = vadd.f32 %v739, %v740
  %v742 = vsel %vm694, %v494, 0.0
  %v743 = vadd.f32 %v741, %v742
  %v744 = vsel %vm694, %v499, 0.0
  %v745 = vadd.f32 %v743, %v744
  %v746 = vsel %vm694, %v504, 0.0
  %v747 = vadd.f32 %v745, %v746
  %v748 = vsel %vm694, %v509, 0.0
  %v749 = vadd.f32 %v747, %v748
  %v750 = vsel %vm694, %v514, 0.0
  %v751 = vadd.f32 %v749, %v750
  %v752 = vsel %vm694, %v519, 0.0
  %v753 = vadd.f32 %v751, %v752
  %v754 = vsel %vm694, %v524, 0.0
  %v755 = vadd.f32 %v753, %v754
  %v756 = vsel %vm694, %v529, 0.0
  %v757 = vadd.f32 %v755, %v756
  %v758 = vsel %vm694, %v534, 0.0
  %v759 = vadd.f32 %v757, %v758
  %v760 = vsel %vm694, %v539, 0.0
  %v761 = vadd.f32 %v759, %v760
  %v762 = vsel %vm694, %v544, 0.0
  %v763 = vadd.f32 %v761, %v762
  %v764 = vsel %vm694, %v549, 0.0
  %v765 = vadd.f32 %v763, %v764
  %v766 = vsel %vm694, %v554, 0.0
  %v767 = vadd.f32 %v765, %v766
  %v768 = vsel %vm694, %v559, 0.0
  %v769 = vadd.f32 %v767, %v768
  %v770 = vsel %vm694, %v564, 0.0
  %v771 = vadd.f32 %v769, %v770
  %v772 = vsel %vm694, %v569, 0.0
  %v773 = vadd.f32 %v771, %v772
  %v774 = vsel %vm694, %v574, 0.0
  %v775 = vadd.f32 %v773, %v774
  %v776 = vsel %vm694, %v579, 0.0
  %v777 = vadd.f32 %v775, %v776
  %v778 = vsel %vm694, %v584, 0.0
  %v779 = vadd.f32 %v777, %v778
  %v780 = vsel %vm694, %v589, 0.0
  %v781 = vadd.f32 %v779, %v780
  %v782 = vsel %vm694, %v594, 0.0
  %v783 = vadd.f32 %v781, %v782
  %v784 = vsel %vm694, %v599, 0.0
  %v785 = vadd.f32 %v783, %v784
  %v786 = vsel %vm694, %v604, 0.0
  %v787 = vadd.f32 %v785, %v786
  %v788 = vsel %vm694, %v609, 0.0
  %v789 = vadd.f32 %v787, %v788
  %v790 = vsel %vm694, %v614, 0.0
  %v791 = vadd.f32 %v789, %v790
  %v792 = vsel %vm694, %v619, 0.0
  %v793 = vadd.f32 %v791, %v792
  %v794 = vsel %vm694, %v624, 0.0
  %v795 = vadd.f32 %v793, %v794
  %v796 = vsel %vm694, %v629, 0.0
  %v797 = vadd.f32 %v795, %v796
  %v798 = vsel %vm694, %v634, 0.0
  %v799 = vadd.f32 %v797, %v798
  %v800 = vsel %vm694, %v639, 0.0
  %v801 = vadd.f32 %v799, %v800
  %v802 = vsel %vm694, %v644, 0.0
  %v803 = vadd.f32 %v801, %v802
  %v804 = vsel %vm694, %v649, 0.0
  %v805 = vadd.f32 %v803, %v804
  %v806 = vsel %vm694, %v654, 0.0
  %v807 = vadd.f32 %v805, %v806
  %v808 = vsel %vm694, %v659, 0.0
  %v809 = vadd.f32 %v807, %v808
  %v810 = vsel %vm694, %v664, 0.0
  %v811 = vadd.f32 %v809, %v810
  %v812 = vsel %vm694, %v669, 0.0
  %v813 = vadd.f32 %v811, %v812
  %v814 = vsel %vm694, %v674, 0.0
  %v815 = vadd.f32 %v813, %v814
  %v816 = vsel %vm694, %v679, 0.0
  %v817 = vadd.f32 %v815, %v816
  %v818 = vsel %vm694, %v684, 0.0
  %v819 = vadd.f32 %v817, %v818
  %v820 = vsel %vm694, %v689, 0.0
  %v821 = vadd.f32 %v819, %v820
  %v822 = vrot.slane %v821, 4
  %v823 = vadd.f32 %v821, %v822
  %v824 = vrot.slane %v823, 2
  %v825 = vadd.f32 %v823, %v824
  %v826 = vrot.slane %v825, 1
  %v827 = vadd.f32 %v825, %v826
  %v828 = vmul.f32 %v374, %v374
  %v829 = vmul.f32 %v379, %v379
  %v830 = vmul.f32 %v384, %v384
  %v831 = vmul.f32 %v389, %v389
  %v832 = vmul.f32 %v394, %v394
  %v833 = vmul.f32 %v399, %v399
  %v834 = vmul.f32 %v404, %v404
  %v835 = vmul.f32 %v409, %v409
  %v836 = vmul.f32 %v414, %v414
  %v837 = vmul.f32 %v419, %v419
  %v838 = vmul.f32 %v424, %v424
  %v839 = vmul.f32 %v429, %v429
  %v840 = vmul.f32 %v434, %v434
  %v841 = vmul.f32 %v439, %v439
  %v842 = vmul.f32 %v444, %v444
  %v843 = vmul.f32 %v449, %v449
  %v844 = vmul.f32 %v454, %v454
  %v845 = vmul.f32 %v459, %v459
  %v846 = vmul.f32 %v464, %v464
  %v847 = vmul.f32 %v469, %v469
  %v848 = vmul.f32 %v474, %v474
  %v849 = vmul.f32 %v479, %v479
  %v850 = vmul.f32 %v484, %v484
  %v851 = vmul.f32 %v489, %v489
  %v852 = vmul.f32 %v494, %v494
  %v853 = vmul.f32 %v499, %v499
  %v854 = vmul.f32 %v504, %v504
  %v855 = vmul.f32 %v509, %v509
  %v856 = vmul.f32 %v514, %v514
  %v857 = vmul.f32 %v519, %v519
  %v858 = vmul.f32 %v524, %v524
  %v859 = vmul.f32 %v529, %v529
  %v860 = vmul.f32 %v534, %v534
  %v861 = vmul.f32 %v539, %v539
  %v862 = vmul.f32 %v544, %v544
  %v863 = vmul.f32 %v549, %v549
  %v864 = vmul.f32 %v554, %v554
  %v865 = vmul.f32 %v559, %v559
  %v866 = vmul.f32 %v564, %v564
  %v867 = vmul.f32 %v569, %v569
  %v868 = vmul.f32 %v574, %v574
  %v869 = vmul.f32 %v579, %v579
  %v870 = vmul.f32 %v584, %v584
  %v871 = vmul.f32 %v589, %v589
  %v872 = vmul.f32 %v594, %v594
  %v873 = vmul.f32 %v599, %v599
  %v874 = vmul.f32 %v604, %v604
  %v875 = vmul.f32 %v609, %v609
  %v876 = vmul.f32 %v614, %v614
  %v877 = vmul.f32 %v619, %v619
  %v878 = vmul.f32 %v624, %v624
  %v879 = vmul.f32 %v629, %v629
  %v880 = vmul.f32 %v634, %v634
  %v881 = vmul.f32 %v639, %v639
  %v882 = vmul.f32 %v644, %v644
  %v883 = vmul.f32 %v649, %v649
  %v884 = vmul.f32 %v654, %v654
  %v885 = vmul.f32 %v659, %v659
  %v886 = vmul.f32 %v664, %v664
  %v887 = vmul.f32 %v669, %v669
  %v888 = vmul.f32 %v674, %v674
  %v889 = vmul.f32 %v679, %v679
  %v890 = vmul.f32 %v684, %v684
  %v891 = vmul.f32 %v689, %v689
  %v892 = vsel %vm694, %v828, 0.0
  %v893 = vsel %vm694, %v829, 0.0
  %v894 = vadd.f32 %v892, %v893
  %v895 = vsel %vm694, %v830, 0.0
  %v896 = vadd.f32 %v894, %v895
  %v897 = vsel %vm694, %v831, 0.0
  %v898 = vadd.f32 %v896, %v897
  %v899 = vsel %vm694, %v832, 0.0
  %v900 = vadd.f32 %v898, %v899
  %v901 = vsel %vm694, %v833, 0.0
  %v902 = vadd.f32 %v900, %v901
  %v903 = vsel %vm694, %v834, 0.0
  %v904 = vadd.f32 %v902, %v903
  %v905 = vsel %vm694, %v835, 0.0
  %v906 = vadd.f32 %v904, %v905
  %v907 = vsel %vm694, %v836, 0.0
  %v908 = vadd.f32 %v906, %v907
  %v909 = vsel %vm694, %v837, 0.0
  %v910 = vadd.f32 %v908, %v909
  %v911 = vsel %vm694, %v838, 0.0
  %v912 = vadd.f32 %v910, %v911
  %v913 = vsel %vm694, %v839, 0.0
  %v914 = vadd.f32 %v912, %v913
  %v915 = vsel %vm694, %v840, 0.0
  %v916 = vadd.f32 %v914, %v915
  %v917 = vsel %vm694, %v841, 0.0
  %v918 = vadd.f32 %v916, %v917
  %v919 = vsel %vm694, %v842, 0.0
  %v920 = vadd.f32 %v918, %v919
  %v921 = vsel %vm694, %v843, 0.0
  %v922 = vadd.f32 %v920, %v921
  %v923 = vsel %vm694, %v844, 0.0
  %v924 = vadd.f32 %v922, %v923
  %v925 = vsel %vm694, %v845, 0.0
  %v926 = vadd.f32 %v924, %v925
  %v927 = vsel %vm694, %v846, 0.0
  %v928 = vadd.f32 %v926, %v927
  %v929 = vsel %vm694, %v847, 0.0
  %v930 = vadd.f32 %v928, %v929
  %v931 = vsel %vm694, %v848, 0.0
  %v932 = vadd.f32 %v930, %v931
  %v933 = vsel %vm694, %v849, 0.0
  %v934 = vadd.f32 %v932, %v933
  %v935 = vsel %vm694, %v850, 0.0
  %v936 = vadd.f32 %v934, %v935
  %v937 = vsel %vm694, %v851, 0.0
  %v938 = vadd.f32 %v936, %v937
  %v939 = vsel %vm694, %v852, 0.0
  %v940 = vadd.f32 %v938, %v939
  %v941 = vsel %vm694, %v853, 0.0
  %v942 = vadd.f32 %v940, %v941
  %v943 = vsel %vm694, %v854, 0.0
  %v944 = vadd.f32 %v942, %v943
  %v945 = vsel %vm694, %v855, 0.0
  %v946 = vadd.f32 %v944, %v945
  %v947 = vsel %vm694, %v856, 0.0
  %v948 = vadd.f32 %v946, %v947
  %v949 = vsel %vm694, %v857, 0.0
  %v950 = vadd.f32 %v948, %v949
  %v951 = vsel %vm694, %v858, 0.0
  %v952 = vadd.f32 %v950, %v951
  %v953 = vsel %vm694, %v859, 0.0
  %v954 = vadd.f32 %v952, %v953
  %v955 = vsel %vm694, %v860, 0.0
  %v956 = vadd.f32 %v954, %v955
  %v957 = vsel %vm694, %v861, 0.0
  %v958 = vadd.f32 %v956, %v957
  %v959 = vsel %vm694, %v862, 0.0
  %v960 = vadd.f32 %v958, %v959
  %v961 = vsel %vm694, %v863, 0.0
  %v962 = vadd.f32 %v960, %v961
  %v963 = vsel %vm694, %v864, 0.0
  %v964 = vadd.f32 %v962, %v963
  %v965 = vsel %vm694, %v865, 0.0
  %v966 = vadd.f32 %v964, %v965
  %v967 = vsel %vm694, %v866, 0.0
  %v968 = vadd.f32 %v966, %v967
  %v969 = vsel %vm694, %v867, 0.0
  %v970 = vadd.f32 %v968, %v969
  %v971 = vsel %vm694, %v868, 0.0
  %v972 = vadd.f32 %v970, %v971
  %v973 = vsel %vm694, %v869, 0.0
  %v974 = vadd.f32 %v972, %v973
  %v975 = vsel %vm694, %v870, 0.0
  %v976 = vadd.f32 %v974, %v975
  %v977 = vsel %vm694, %v871, 0.0
  %v978 = vadd.f32 %v976, %v977
  %v979 = vsel %vm694, %v872, 0.0
  %v980 = vadd.f32 %v978, %v979
  %v981 = vsel %vm694, %v873, 0.0
  %v982 = vadd.f32 %v980, %v981
  %v983 = vsel %vm694, %v874, 0.0
  %v984 = vadd.f32 %v982, %v983
  %v985 = vsel %vm694, %v875, 0.0
  %v986 = vadd.f32 %v984, %v985
  %v987 = vsel %vm694, %v876, 0.0
  %v988 = vadd.f32 %v986, %v987
  %v989 = vsel %vm694, %v877, 0.0
  %v990 = vadd.f32 %v988, %v989
  %v991 = vsel %vm694, %v878, 0.0
  %v992 = vadd.f32 %v990, %v991
  %v993 = vsel %vm694, %v879, 0.0
  %v994 = vadd.f32 %v992, %v993
  %v995 = vsel %vm694, %v880, 0.0
  %v996 = vadd.f32 %v994, %v995
  %v997 = vsel %vm694, %v881, 0.0
  %v998 = vadd.f32 %v996, %v997
  %v999 = vsel %vm694, %v882, 0.0
  %v1000 = vadd.f32 %v998, %v999
  %v1001 = vsel %vm694, %v883, 0.0
  %v1002 = vadd.f32 %v1000, %v1001
  %v1003 = vsel %vm694, %v884, 0.0
  %v1004 = vadd.f32 %v1002, %v1003
  %v1005 = vsel %vm694, %v885, 0.0
  %v1006 = vadd.f32 %v1004, %v1005
  %v1007 = vsel %vm694, %v886, 0.0
  %v1008 = vadd.f32 %v1006, %v1007
  %v1009 = vsel %vm694, %v887, 0.0
  %v1010 = vadd.f32 %v1008, %v1009
  %v1011 = vsel %vm694, %v888, 0.0
  %v1012 = vadd.f32 %v1010, %v1011
  %v1013 = vsel %vm694, %v889, 0.0
  %v1014 = vadd.f32 %v1012, %v1013
  %v1015 = vsel %vm694, %v890, 0.0
  %v1016 = vadd.f32 %v1014, %v1015
  %v1017 = vsel %vm694, %v891, 0.0
  %v1018 = vadd.f32 %v1016, %v1017
  %v1019 = vrot.slane %v1018, 4
  %v1020 = vadd.f32 %v1018, %v1019
  %v1021 = vrot.slane %v1020, 2
  %v1022 = vadd.f32 %v1020, %v1021
  %v1023 = vrot.slane %v1022, 1
  %v1024 = vadd.f32 %v1022, %v1023
  %v1025 = vmul.f32 %v827, 0.001953125
  %v1026 = vmul.f32 %v1024, 0.001953125
  %v1027 = vmul.f32 %v1025, %v1025
  %v1028 = vsub.f32 %v1026, %v1027
  %v1029 = vadd.f32 %v1028, 1e-05
  %v1030 = vrsqrt.pop %v1029
  %v1031 = vmul.f32 %v692, %v1030
  %v1032 = vmul.f32 %v1025, %v1031
  %v1033 = vsub.f32 %v693, %v1032
  %v1035 = vlaneseq
  %v1036 = vshrl.u32 %v1035, 7
  %v1037 = vsub.s32 0, %v1036
  %v1038 = vrot.slane %v1031, %v1037
  %v1040 = vmul.f32 %v374, %v1038
  %v1041 = vmul.f32 %v379, %v1038
  %v1042 = vmul.f32 %v384, %v1038
  %v1043 = vmul.f32 %v389, %v1038
  %v1044 = vmul.f32 %v394, %v1038
  %v1045 = vmul.f32 %v399, %v1038
  %v1046 = vmul.f32 %v404, %v1038
  %v1047 = vmul.f32 %v409, %v1038
  %v1048 = vmul.f32 %v414, %v1038
  %v1049 = vmul.f32 %v419, %v1038
  %v1050 = vmul.f32 %v424, %v1038
  %v1051 = vmul.f32 %v429, %v1038
  %v1052 = vmul.f32 %v434, %v1038
  %v1053 = vmul.f32 %v439, %v1038
  %v1054 = vmul.f32 %v444, %v1038
  %v1055 = vmul.f32 %v449, %v1038
  %v1056 = vmul.f32 %v454, %v1038
  %v1057 = vmul.f32 %v459, %v1038
  %v1058 = vmul.f32 %v464, %v1038
  %v1059 = vmul.f32 %v469, %v1038
  %v1060 = vmul.f32 %v474, %v1038
  %v1061 = vmul.f32 %v479, %v1038
  %v1062 = vmul.f32 %v484, %v1038
  %v1063 = vmul.f32 %v489, %v1038
  %v1064 = vmul.f32 %v494, %v1038
  %v1065 = vmul.f32 %v499, %v1038
  %v1066 = vmul.f32 %v504, %v1038
  %v1067 = vmul.f32 %v509, %v1038
  %v1068 = vmul.f32 %v514, %v1038
  %v1069 = vmul.f32 %v519, %v1038
  %v1070 = vmul.f32 %v524, %v1038
  %v1071 = vmul.f32 %v529, %v1038
  %v1072 = vmul.f32 %v534, %v1038
  %v1073 = vmul.f32 %v539, %v1038
  %v1074 = vmul.f32 %v544, %v1038
  %v1075 = vmul.f32 %v549, %v1038
  %v1076 = vmul.f32 %v554, %v1038
  %v1077 = vmul.f32 %v559, %v1038
  %v1078 = vmul.f32 %v564, %v1038
  %v1079 = vmul.f32 %v569, %v1038
  %v1080 = vmul.f32 %v574, %v1038
  %v1081 = vmul.f32 %v579, %v1038
  %v1082 = vmul.f32 %v584, %v1038
  %v1083 = vmul.f32 %v589, %v1038
  %v1084 = vmul.f32 %v594, %v1038
  %v1085 = vmul.f32 %v599, %v1038
  %v1086 = vmul.f32 %v604, %v1038
  %v1087 = vmul.f32 %v609, %v1038
  %v1088 = vmul.f32 %v614, %v1038
  %v1089 = vmul.f32 %v619, %v1038
  %v1090 = vmul.f32 %v624, %v1038
  %v1091 = vmul.f32 %v629, %v1038
  %v1092 = vmul.f32 %v634, %v1038
  %v1093 = vmul.f32 %v639, %v1038
  %v1094 = vmul.f32 %v644, %v1038
  %v1095 = vmul.f32 %v649, %v1038
  %v1096 = vmul.f32 %v654, %v1038
  %v1097 = vmul.f32 %v659, %v1038
  %v1098 = vmul.f32 %v664, %v1038
  %v1099 = vmul.f32 %v669, %v1038
  %v1100 = vmul.f32 %v674, %v1038
  %v1101 = vmul.f32 %v679, %v1038
  %v1102 = vmul.f32 %v684, %v1038
  %v1103 = vmul.f32 %v689, %v1038
  %v1105 = vlaneseq
  %v1106 = vshrl.u32 %v1105, 7
  %v1107 = vsub.s32 0, %v1106
  %v1108 = vrot.slane %v1033, %v1107
  %v1110 = vadd.f32 %v1040, %v1108
  %v1111 = vadd.f32 %v1041, %v1108
  %v1112 = vadd.f32 %v1042, %v1108
  %v1113 = vadd.f32 %v1043, %v1108
  %v1114 = vadd.f32 %v1044, %v1108
  %v1115 = vadd.f32 %v1045, %v1108
  %v1116 = vadd.f32 %v1046, %v1108
  %v1117 = vadd.f32 %v1047, %v1108
  %v1118 = vadd.f32 %v1048, %v1108
  %v1119 = vadd.f32 %v1049, %v1108
  %v1120 = vadd.f32 %v1050, %v1108
  %v1121 = vadd.f32 %v1051, %v1108
  %v1122 = vadd.f32 %v1052, %v1108
  %v1123 = vadd.f32 %v1053, %v1108
  %v1124 = vadd.f32 %v1054, %v1108
  %v1125 = vadd.f32 %v1055, %v1108
  %v1126 = vadd.f32 %v1056, %v1108
  %v1127 = vadd.f32 %v1057, %v1108
  %v1128 = vadd.f32 %v1058, %v1108
  %v1129 = vadd.f32 %v1059, %v1108
  %v1130 = vadd.f32 %v1060, %v1108
  %v1131 = vadd.f32 %v1061, %v1108
  %v1132 = vadd.f32 %v1062, %v1108
  %v1133 = vadd.f32 %v1063, %v1108
  %v1134 = vadd.f32 %v1064, %v1108
  %v1135 = vadd.f32 %v1065, %v1108
  %v1136 = vadd.f32 %v1066, %v1108
  %v1137 = vadd.f32 %v1067, %v1108
  %v1138 = vadd.f32 %v1068, %v1108
  %v1139 = vadd.f32 %v1069, %v1108
  %v1140 = vadd.f32 %v1070, %v1108
  %v1141 = vadd.f32 %v1071, %v1108
  %v1142 = vadd.f32 %v1072, %v1108
  %v1143 = vadd.f32 %v1073, %v1108
  %v1144 = vadd.f32 %v1074, %v1108
  %v1145 = vadd.f32 %v1075, %v1108
  %v1146 = vadd.f32 %v1076, %v1108
  %v1147 = vadd.f32 %v1077, %v1108
  %v1148 = vadd.f32 %v1078, %v1108
  %v1149 = vadd.f32 %v1079, %v1108
  %v1150 = vadd.f32 %v1080, %v1108
  %v1151 = vadd.f32 %v1081, %v1108
  %v1152 = vadd.f32 %v1082, %v1108
  %v1153 = vadd.f32 %v1083, %v1108
  %v1154 = vadd.f32 %v1084, %v1108
  %v1155 = vadd.f32 %v1085, %v1108
  %v1156 = vadd.f32 %v1086, %v1108
  %v1157 = vadd.f32 %v1087, %v1108
  %v1158 = vadd.f32 %v1088, %v1108
  %v1159 = vadd.f32 %v1089, %v1108
  %v1160 = vadd.f32 %v1090, %v1108
  %v1161 = vadd.f32 %v1091, %v1108
  %v1162 = vadd.f32 %v1092, %v1108
  %v1163 = vadd.f32 %v1093, %v1108
  %v1164 = vadd.f32 %v1094, %v1108
  %v1165 = vadd.f32 %v1095, %v1108
  %v1166 = vadd.f32 %v1096, %v1108
  %v1167 = vadd.f32 %v1097, %v1108
  %v1168 = vadd.f32 %v1098, %v1108
  %v1169 = vadd.f32 %v1099, %v1108
  %v1170 = vadd.f32 %v1100, %v1108
  %v1171 = vadd.f32 %v1101, %v1108
  %v1172 = vadd.f32 %v1102, %v1108
  %v1173 = vadd.f32 %v1103, %v1108
  %v1174 = vld [vmem:[%s1] sm:$0xff]
  %v1175 = vld [vmem:[%s1 + $0x8] sm:$0xf]
  %v1177 = vsel %vm303, %v1175, 0
  %1179 = vmatprep.subr.mxu0 0.0
  %1180 = vmatpush1.msra.mxu0 %v1174
  %1181 = vmatprep.subr.mxu0 0.0
  %1182 = vmatpush1.msra.mxu0 %v1177
  %1183 = vmatprep.subr.mxu0 0.0
  %1184 = vmatpush1.msra.mxu0 0.0
  %1185 = vmatprep.subr.mxu0 0.0
  %1186 = vmatpush1.msra.mxu0 0.0
  %1187 = vmatprep.subr.mxu0 0.0
  %1188 = vmatpush1.msra.mxu0 0.0
  %1189 = vmatprep.subr.mxu0 0.0
  %1190 = vmatpush1.msra.mxu0 0.0
  %1191 = vmatprep.subr.mxu0 0.0
  %1192 = vmatpush1.msra.mxu0 0.0
  %1193 = vmatprep.subr.mxu0 0.0
  %1194 = vmatpush1.msra.mxu0 0.0
  %1195 = vmatprep.subr.mxu0 0.0
  %1196 = vmatpush1.msra.mxu0 0.0
  %1197 = vmatprep.subr.mxu0 0.0
  %1198 = vmatpush1.msra.mxu0 0.0
  %1199 = vmatprep.subr.mxu0 0.0
  %1200 = vmatpush1.msra.mxu0 0.0
  %1201 = vmatprep.subr.mxu0 0.0
  %1202 = vmatpush1.msra.mxu0 0.0
  %1203 = vmatprep.subr.mxu0 0.0
  %1204 = vmatpush1.msra.mxu0 0.0
  %1205 = vmatprep.subr.mxu0 0.0
  %1206 = vmatpush1.msra.mxu0 0.0
  %1207 = vmatprep.subr.mxu0 0.0
  %1208 = vmatpush1.msra.mxu0 0.0
  %1209 = vmatprep.subr.mxu0 0.0
  %1210 = vmatpush1.msra.mxu0 0.0
  %1211 = vmatprep.subr.mxu0 0.0
  %1212 = vmatpush1.msra.mxu0 0.0
  %1213 = vmatprep.subr.mxu0 0.0
  %1214 = vmatpush1.msra.mxu0 0.0
  %1215 = vmatprep.subr.mxu0 0.0
  %1216 = vmatpush1.msra.mxu0 0.0
  %1217 = vmatprep.subr.mxu0 0.0
  %1218 = vmatpush1.msra.mxu0 0.0
  %1219 = vmatprep.subr.mxu0 0.0
  %1220 = vmatpush1.msra.mxu0 0.0
  %1221 = vmatprep.subr.mxu0 0.0
  %1222 = vmatpush1.msra.mxu0 0.0
  %1223 = vmatprep.subr.mxu0 0.0
  %1224 = vmatpush1.msra.mxu0 0.0
  %1225 = vmatprep.subr.mxu0 0.0
  %1226 = vmatpush1.msra.mxu0 0.0
  %1227 = vmatprep.subr.mxu0 0.0
  %1228 = vmatpush1.msra.mxu0 0.0
  %1229 = vmatprep.subr.mxu0 0.0
  %1230 = vmatpush1.msra.mxu0 0.0
  %1231 = vmatprep.subr.mxu0 0.0
  %1232 = vmatpush1.msra.mxu0 0.0
  %1233 = vmatprep.subr.mxu0 0.0
  %1234 = vmatpush1.msra.mxu0 0.0
  %1235 = vmatprep.subr.mxu0 0.0
  %1236 = vmatpush1.msra.mxu0 0.0
  %1237 = vmatprep.subr.mxu0 0.0
  %1238 = vmatpush1.msra.mxu0 0.0
  %1239 = vmatprep.subr.mxu0 0.0
  %1240 = vmatpush1.msra.mxu0 0.0
  %1241 = vmatprep.subr.mxu0 0.0
  %1242 = vmatpush1.msra.mxu0 0.0
  %1243 = vmatprep.mubr.f32.mxu0 0.0
  %1244 = vmatmul.mubr.f32.gmra.mrb[0].mxu0 %v112
  %v1245 = vpop.f32.mrb[0].mxu0
  %v1246 = vadd.f32 0.0, %v1245
  %v1247 = vpop.f32.mrb[0].mxu0
  %1248 = vmatprep.mubr.f32.mxu0 0.0
  %1249 = vmatmul.mubr.f32.gmra.mrb[0].mxu0 %v115
  %v1250 = vpop.f32.mrb[0].mxu0
  %v1251 = vadd.f32 0.0, %v1250
  %v1252 = vpop.f32.mrb[0].mxu0
  %1253 = vmatprep.mubr.f32.mxu0 0.0
  %1254 = vmatmul.mubr.f32.gmra.mrb[0].mxu0 %v118
  %v1255 = vpop.f32.mrb[0].mxu0
  %v1256 = vadd.f32 0.0, %v1255
  %v1257 = vpop.f32.mrb[0].mxu0
  %1258 = vmatprep.mubr.f32.mxu0 0.0
  %1259 = vmatmul.mubr.f32.gmra.mrb[0].mxu0 %v121
  %v1260 = vpop.f32.mrb[0].mxu0
  %v1261 = vadd.f32 0.0, %v1260
  %v1262 = vpop.f32.mrb[0].mxu0
  %1263 = vmatprep.mubr.f32.mxu0 0.0
  %1264 = vmatmul.mubr.f32.gmra.mrb[0].mxu0 %v124
  %v1265 = vpop.f32.mrb[0].mxu0
  %v1266 = vadd.f32 0.0, %v1265
  %v1267 = vpop.f32.mrb[0].mxu0
  %1268 = vmatprep.mubr.f32.mxu0 0.0
  %1269 = vmatmul.mubr.f32.gmra.mrb[0].mxu0 %v127
  %v1270 = vpop.f32.mrb[0].mxu0
  %v1271 = vadd.f32 0.0, %v1270
  %v1272 = vpop.f32.mrb[0].mxu0
  %1273 = vmatprep.mubr.f32.mxu0 0.0
  %1274 = vmatmul.mubr.f32.gmra.mrb[0].mxu0 %v130
  %v1275 = vpop.f32.mrb[0].mxu0
  %v1276 = vadd.f32 0.0, %v1275
  %v1277 = vpop.f32.mrb[0].mxu0
  %1278 = vmatprep.mubr.f32.mxu0 0.0
  %1279 = vmatmul.mubr.f32.gmra.mrb[0].mxu0 %v133
  %v1280 = vpop.f32.mrb[0].mxu0
  %v1281 = vadd.f32 0.0, %v1280
  %v1282 = vpop.f32.mrb[0].mxu0
  %1283 = vmatprep.mubr.f32.mxu0 0.0
  %1284 = vmatmul.mubr.f32.gmra.mrb[0].mxu0 %v136
  %v1285 = vpop.f32.mrb[0].mxu0
  %v1286 = vadd.f32 0.0, %v1285
  %v1287 = vpop.f32.mrb[0].mxu0
  %1288 = vmatprep.mubr.f32.mxu0 0.0
  %1289 = vmatmul.mubr.f32.gmra.mrb[0].mxu0 %v139
  %v1290 = vpop.f32.mrb[0].mxu0
  %v1291 = vadd.f32 0.0, %v1290
  %v1292 = vpop.f32.mrb[0].mxu0
  %1293 = vmatprep.mubr.f32.mxu0 0.0
  %1294 = vmatmul.mubr.f32.gmra.mrb[0].mxu0 %v142
  %v1295 = vpop.f32.mrb[0].mxu0
  %v1296 = vadd.f32 0.0, %v1295
  %v1297 = vpop.f32.mrb[0].mxu0
  %1298 = vmatprep.mubr.f32.mxu0 0.0
  %1299 = vmatmul.mubr.f32.gmra.mrb[0].mxu0 %v145
  %v1300 = vpop.f32.mrb[0].mxu0
  %v1301 = vadd.f32 0.0, %v1300
  %v1302 = vpop.f32.mrb[0].mxu0
  %1303 = vmatprep.mubr.f32.mxu0 0.0
  %1304 = vmatmul.mubr.f32.gmra.mrb[0].mxu0 %v148
  %v1305 = vpop.f32.mrb[0].mxu0
  %v1306 = vadd.f32 0.0, %v1305
  %v1307 = vpop.f32.mrb[0].mxu0
  %1308 = vmatprep.mubr.f32.mxu0 0.0
  %1309 = vmatmul.mubr.f32.gmra.mrb[0].mxu0 %v151
  %v1310 = vpop.f32.mrb[0].mxu0
  %v1311 = vadd.f32 0.0, %v1310
  %v1312 = vpop.f32.mrb[0].mxu0
  %1313 = vmatprep.mubr.f32.mxu0 0.0
  %1314 = vmatmul.mubr.f32.gmra.mrb[0].mxu0 %v154
  %v1315 = vpop.f32.mrb[0].mxu0
  %v1316 = vadd.f32 0.0, %v1315
  %v1317 = vpop.f32.mrb[0].mxu0
  %1318 = vmatprep.mubr.f32.mxu0 0.0
  %1319 = vmatmul.mubr.f32.gmra.mrb[0].mxu0 %v157
  %v1320 = vpop.f32.mrb[0].mxu0
  %v1321 = vadd.f32 0.0, %v1320
  %v1322 = vpop.f32.mrb[0].mxu0
  %1323 = vmatprep.mubr.f32.mxu0 0.0
  %1324 = vmatmul.mubr.f32.gmra.mrb[0].mxu0 %v160
  %v1325 = vpop.f32.mrb[0].mxu0
  %v1326 = vadd.f32 0.0, %v1325
  %v1327 = vpop.f32.mrb[0].mxu0
  %1328 = vmatprep.mubr.f32.mxu0 0.0
  %1329 = vmatmul.mubr.f32.gmra.mrb[0].mxu0 %v163
  %v1330 = vpop.f32.mrb[0].mxu0
  %v1331 = vadd.f32 0.0, %v1330
  %v1332 = vpop.f32.mrb[0].mxu0
  %1333 = vmatprep.mubr.f32.mxu0 0.0
  %1334 = vmatmul.mubr.f32.gmra.mrb[0].mxu0 %v166
  %v1335 = vpop.f32.mrb[0].mxu0
  %v1336 = vadd.f32 0.0, %v1335
  %v1337 = vpop.f32.mrb[0].mxu0
  %1338 = vmatprep.mubr.f32.mxu0 0.0
  %1339 = vmatmul.mubr.f32.gmra.mrb[0].mxu0 %v169
  %v1340 = vpop.f32.mrb[0].mxu0
  %v1341 = vadd.f32 0.0, %v1340
  %v1342 = vpop.f32.mrb[0].mxu0
  %1343 = vmatprep.mubr.f32.mxu0 0.0
  %1344 = vmatmul.mubr.f32.gmra.mrb[0].mxu0 %v172
  %v1345 = vpop.f32.mrb[0].mxu0
  %v1346 = vadd.f32 0.0, %v1345
  %v1347 = vpop.f32.mrb[0].mxu0
  %1348 = vmatprep.mubr.f32.mxu0 0.0
  %1349 = vmatmul.mubr.f32.gmra.mrb[0].mxu0 %v175
  %v1350 = vpop.f32.mrb[0].mxu0
  %v1351 = vadd.f32 0.0, %v1350
  %v1352 = vpop.f32.mrb[0].mxu0
  %1353 = vmatprep.mubr.f32.mxu0 0.0
  %1354 = vmatmul.mubr.f32.gmra.mrb[0].mxu0 %v178
  %v1355 = vpop.f32.mrb[0].mxu0
  %v1356 = vadd.f32 0.0, %v1355
  %v1357 = vpop.f32.mrb[0].mxu0
  %1358 = vmatprep.mubr.f32.mxu0 0.0
  %1359 = vmatmul.mubr.f32.gmra.mrb[0].mxu0 %v181
  %v1360 = vpop.f32.mrb[0].mxu0
  %v1361 = vadd.f32 0.0, %v1360
  %v1362 = vpop.f32.mrb[0].mxu0
  %1363 = vmatprep.mubr.f32.mxu0 0.0
  %1364 = vmatmul.mubr.f32.gmra.mrb[0].mxu0 %v184
  %v1365 = vpop.f32.mrb[0].mxu0
  %v1366 = vadd.f32 0.0, %v1365
  %v1367 = vpop.f32.mrb[0].mxu0
  %1368 = vmatprep.mubr.f32.mxu0 0.0
  %1369 = vmatmul.mubr.f32.gmra.mrb[0].mxu0 %v187
  %v1370 = vpop.f32.mrb[0].mxu0
  %v1371 = vadd.f32 0.0, %v1370
  %v1372 = vpop.f32.mrb[0].mxu0
  %1373 = vmatprep.mubr.f32.mxu0 0.0
  %1374 = vmatmul.mubr.f32.gmra.mrb[0].mxu0 %v190
  %v1375 = vpop.f32.mrb[0].mxu0
  %v1376 = vadd.f32 0.0, %v1375
  %v1377 = vpop.f32.mrb[0].mxu0
  %1378 = vmatprep.mubr.f32.mxu0 0.0
  %1379 = vmatmul.mubr.f32.gmra.mrb[0].mxu0 %v193
  %v1380 = vpop.f32.mrb[0].mxu0
  %v1381 = vadd.f32 0.0, %v1380
  %v1382 = vpop.f32.mrb[0].mxu0
  %1383 = vmatprep.mubr.f32.mxu0 0.0
  %1384 = vmatmul.mubr.f32.gmra.mrb[0].mxu0 %v196
  %v1385 = vpop.f32.mrb[0].mxu0
  %v1386 = vadd.f32 0.0, %v1385
  %v1387 = vpop.f32.mrb[0].mxu0
  %1388 = vmatprep.mubr.f32.mxu0 0.0
  %1389 = vmatmul.mubr.f32.gmra.mrb[0].mxu0 %v199
  %v1390 = vpop.f32.mrb[0].mxu0
  %v1391 = vadd.f32 0.0, %v1390
  %v1392 = vpop.f32.mrb[0].mxu0
  %1393 = vmatprep.mubr.f32.mxu0 0.0
  %1394 = vmatmul.mubr.f32.gmra.mrb[0].mxu0 %v202
  %v1395 = vpop.f32.mrb[0].mxu0
  %v1396 = vadd.f32 0.0, %v1395
  %v1397 = vpop.f32.mrb[0].mxu0
  %1398 = vmatprep.mubr.f32.mxu0 0.0
  %1399 = vmatmul.mubr.f32.gmra.mrb[0].mxu0 %v205
  %v1400 = vpop.f32.mrb[0].mxu0
  %v1401 = vadd.f32 0.0, %v1400
  %v1402 = vpop.f32.mrb[0].mxu0
  %1403 = vmatprep.mubr.f32.mxu0 0.0
  %1404 = vmatmul.mubr.f32.gmra.mrb[0].mxu0 %v208
  %v1405 = vpop.f32.mrb[0].mxu0
  %v1406 = vadd.f32 0.0, %v1405
  %v1407 = vpop.f32.mrb[0].mxu0
  %1408 = vmatprep.mubr.f32.mxu0 0.0
  %1409 = vmatmul.mubr.f32.gmra.mrb[0].mxu0 %v211
  %v1410 = vpop.f32.mrb[0].mxu0
  %v1411 = vadd.f32 0.0, %v1410
  %v1412 = vpop.f32.mrb[0].mxu0
  %1413 = vmatprep.mubr.f32.mxu0 0.0
  %1414 = vmatmul.mubr.f32.gmra.mrb[0].mxu0 %v214
  %v1415 = vpop.f32.mrb[0].mxu0
  %v1416 = vadd.f32 0.0, %v1415
  %v1417 = vpop.f32.mrb[0].mxu0
  %1418 = vmatprep.mubr.f32.mxu0 0.0
  %1419 = vmatmul.mubr.f32.gmra.mrb[0].mxu0 %v217
  %v1420 = vpop.f32.mrb[0].mxu0
  %v1421 = vadd.f32 0.0, %v1420
  %v1422 = vpop.f32.mrb[0].mxu0
  %1423 = vmatprep.mubr.f32.mxu0 0.0
  %1424 = vmatmul.mubr.f32.gmra.mrb[0].mxu0 %v220
  %v1425 = vpop.f32.mrb[0].mxu0
  %v1426 = vadd.f32 0.0, %v1425
  %v1427 = vpop.f32.mrb[0].mxu0
  %1428 = vmatprep.mubr.f32.mxu0 0.0
  %1429 = vmatmul.mubr.f32.gmra.mrb[0].mxu0 %v223
  %v1430 = vpop.f32.mrb[0].mxu0
  %v1431 = vadd.f32 0.0, %v1430
  %v1432 = vpop.f32.mrb[0].mxu0
  %1433 = vmatprep.mubr.f32.mxu0 0.0
  %1434 = vmatmul.mubr.f32.gmra.mrb[0].mxu0 %v226
  %v1435 = vpop.f32.mrb[0].mxu0
  %v1436 = vadd.f32 0.0, %v1435
  %v1437 = vpop.f32.mrb[0].mxu0
  %1438 = vmatprep.mubr.f32.mxu0 0.0
  %1439 = vmatmul.mubr.f32.gmra.mrb[0].mxu0 %v229
  %v1440 = vpop.f32.mrb[0].mxu0
  %v1441 = vadd.f32 0.0, %v1440
  %v1442 = vpop.f32.mrb[0].mxu0
  %1443 = vmatprep.mubr.f32.mxu0 0.0
  %1444 = vmatmul.mubr.f32.gmra.mrb[0].mxu0 %v232
  %v1445 = vpop.f32.mrb[0].mxu0
  %v1446 = vadd.f32 0.0, %v1445
  %v1447 = vpop.f32.mrb[0].mxu0
  %1448 = vmatprep.mubr.f32.mxu0 0.0
  %1449 = vmatmul.mubr.f32.gmra.mrb[0].mxu0 %v235
  %v1450 = vpop.f32.mrb[0].mxu0
  %v1451 = vadd.f32 0.0, %v1450
  %v1452 = vpop.f32.mrb[0].mxu0
  %1453 = vmatprep.mubr.f32.mxu0 0.0
  %1454 = vmatmul.mubr.f32.gmra.mrb[0].mxu0 %v238
  %v1455 = vpop.f32.mrb[0].mxu0
  %v1456 = vadd.f32 0.0, %v1455
  %v1457 = vpop.f32.mrb[0].mxu0
  %1458 = vmatprep.mubr.f32.mxu0 0.0
  %1459 = vmatmul.mubr.f32.gmra.mrb[0].mxu0 %v241
  %v1460 = vpop.f32.mrb[0].mxu0
  %v1461 = vadd.f32 0.0, %v1460
  %v1462 = vpop.f32.mrb[0].mxu0
  %1463 = vmatprep.mubr.f32.mxu0 0.0
  %1464 = vmatmul.mubr.f32.gmra.mrb[0].mxu0 %v244
  %v1465 = vpop.f32.mrb[0].mxu0
  %v1466 = vadd.f32 0.0, %v1465
  %v1467 = vpop.f32.mrb[0].mxu0
  %1468 = vmatprep.mubr.f32.mxu0 0.0
  %1469 = vmatmul.mubr.f32.gmra.mrb[0].mxu0 %v247
  %v1470 = vpop.f32.mrb[0].mxu0
  %v1471 = vadd.f32 0.0, %v1470
  %v1472 = vpop.f32.mrb[0].mxu0
  %1473 = vmatprep.mubr.f32.mxu0 0.0
  %1474 = vmatmul.mubr.f32.gmra.mrb[0].mxu0 %v250
  %v1475 = vpop.f32.mrb[0].mxu0
  %v1476 = vadd.f32 0.0, %v1475
  %v1477 = vpop.f32.mrb[0].mxu0
  %1478 = vmatprep.mubr.f32.mxu0 0.0
  %1479 = vmatmul.mubr.f32.gmra.mrb[0].mxu0 %v253
  %v1480 = vpop.f32.mrb[0].mxu0
  %v1481 = vadd.f32 0.0, %v1480
  %v1482 = vpop.f32.mrb[0].mxu0
  %1483 = vmatprep.mubr.f32.mxu0 0.0
  %1484 = vmatmul.mubr.f32.gmra.mrb[0].mxu0 %v256
  %v1485 = vpop.f32.mrb[0].mxu0
  %v1486 = vadd.f32 0.0, %v1485
  %v1487 = vpop.f32.mrb[0].mxu0
  %1488 = vmatprep.mubr.f32.mxu0 0.0
  %1489 = vmatmul.mubr.f32.gmra.mrb[0].mxu0 %v259
  %v1490 = vpop.f32.mrb[0].mxu0
  %v1491 = vadd.f32 0.0, %v1490
  %v1492 = vpop.f32.mrb[0].mxu0
  %1493 = vmatprep.mubr.f32.mxu0 0.0
  %1494 = vmatmul.mubr.f32.gmra.mrb[0].mxu0 %v262
  %v1495 = vpop.f32.mrb[0].mxu0
  %v1496 = vadd.f32 0.0, %v1495
  %v1497 = vpop.f32.mrb[0].mxu0
  %1498 = vmatprep.mubr.f32.mxu0 0.0
  %1499 = vmatmul.mubr.f32.gmra.mrb[0].mxu0 %v265
  %v1500 = vpop.f32.mrb[0].mxu0
  %v1501 = vadd.f32 0.0, %v1500
  %v1502 = vpop.f32.mrb[0].mxu0
  %1503 = vmatprep.mubr.f32.mxu0 0.0
  %1504 = vmatmul.mubr.f32.gmra.mrb[0].mxu0 %v268
  %v1505 = vpop.f32.mrb[0].mxu0
  %v1506 = vadd.f32 0.0, %v1505
  %v1507 = vpop.f32.mrb[0].mxu0
  %1508 = vmatprep.mubr.f32.mxu0 0.0
  %1509 = vmatmul.mubr.f32.gmra.mrb[0].mxu0 %v271
  %v1510 = vpop.f32.mrb[0].mxu0
  %v1511 = vadd.f32 0.0, %v1510
  %v1512 = vpop.f32.mrb[0].mxu0
  %1513 = vmatprep.mubr.f32.mxu0 0.0
  %1514 = vmatmul.mubr.f32.gmra.mrb[0].mxu0 %v274
  %v1515 = vpop.f32.mrb[0].mxu0
  %v1516 = vadd.f32 0.0, %v1515
  %v1517 = vpop.f32.mrb[0].mxu0
  %1518 = vmatprep.mubr.f32.mxu0 0.0
  %1519 = vmatmul.mubr.f32.gmra.mrb[0].mxu0 %v277
  %v1520 = vpop.f32.mrb[0].mxu0
  %v1521 = vadd.f32 0.0, %v1520
  %v1522 = vpop.f32.mrb[0].mxu0
  %1523 = vmatprep.mubr.f32.mxu0 0.0
  %1524 = vmatmul.mubr.f32.gmra.mrb[0].mxu0 %v280
  %v1525 = vpop.f32.mrb[0].mxu0
  %v1526 = vadd.f32 0.0, %v1525
  %v1527 = vpop.f32.mrb[0].mxu0
  %1528 = vmatprep.mubr.f32.mxu0 0.0
  %1529 = vmatmul.mubr.f32.gmra.mrb[0].mxu0 %v283
  %v1530 = vpop.f32.mrb[0].mxu0
  %v1531 = vadd.f32 0.0, %v1530
  %v1532 = vpop.f32.mrb[0].mxu0
  %1533 = vmatprep.mubr.f32.mxu0 0.0
  %1534 = vmatmul.mubr.f32.gmra.mrb[0].mxu0 %v286
  %v1535 = vpop.f32.mrb[0].mxu0
  %v1536 = vadd.f32 0.0, %v1535
  %v1537 = vpop.f32.mrb[0].mxu0
  %1538 = vmatprep.mubr.f32.mxu0 0.0
  %1539 = vmatmul.mubr.f32.gmra.mrb[0].mxu0 %v289
  %v1540 = vpop.f32.mrb[0].mxu0
  %v1541 = vadd.f32 0.0, %v1540
  %v1542 = vpop.f32.mrb[0].mxu0
  %1543 = vmatprep.mubr.f32.mxu0 0.0
  %1544 = vmatmul.mubr.f32.gmra.mrb[0].mxu0 %v292
  %v1545 = vpop.f32.mrb[0].mxu0
  %v1546 = vadd.f32 0.0, %v1545
  %v1547 = vpop.f32.mrb[0].mxu0
  %1548 = vmatprep.mubr.f32.mxu0 0.0
  %1549 = vmatmul.mubr.f32.gmra.mrb[0].mxu0 %v295
  %v1550 = vpop.f32.mrb[0].mxu0
  %v1551 = vadd.f32 0.0, %v1550
  %v1552 = vpop.f32.mrb[0].mxu0
  %1553 = vmatprep.mubr.f32.mxu0 0.0
  %1554 = vmatmul.mubr.f32.gmra.mrb[0].mxu0 %v298
  %v1555 = vpop.f32.mrb[0].mxu0
  %v1556 = vadd.f32 0.0, %v1555
  %v1557 = vpop.f32.mrb[0].mxu0
  %1558 = vmatprep.mubr.f32.mxu0 0.0
  %1559 = vmatmul.mubr.f32.gmra.mrb[0].mxu0 %v301
  %v1560 = vpop.f32.mrb[0].mxu0
  %v1561 = vadd.f32 0.0, %v1560
  %v1562 = vpop.f32.mrb[0].mxu0
  %1563 = vdwg.mxu0
  %v1564 = vld [vmem:[%s2] sm:$0x1]
  %v1565 = vld [vmem:[%s3] sm:$0x1]
  %vm1566 = vcmask 48128
  %v1567 = vsel %vm1566, %v1246, 0.0
  %v1568 = vsel %vm1566, %v1251, 0.0
  %v1569 = vadd.f32 %v1567, %v1568
  %v1570 = vsel %vm1566, %v1256, 0.0
  %v1571 = vadd.f32 %v1569, %v1570
  %v1572 = vsel %vm1566, %v1261, 0.0
  %v1573 = vadd.f32 %v1571, %v1572
  %v1574 = vsel %vm1566, %v1266, 0.0
  %v1575 = vadd.f32 %v1573, %v1574
  %v1576 = vsel %vm1566, %v1271, 0.0
  %v1577 = vadd.f32 %v1575, %v1576
  %v1578 = vsel %vm1566, %v1276, 0.0
  %v1579 = vadd.f32 %v1577, %v1578
  %v1580 = vsel %vm1566, %v1281, 0.0
  %v1581 = vadd.f32 %v1579, %v1580
  %v1582 = vsel %vm1566, %v1286, 0.0
  %v1583 = vadd.f32 %v1581, %v1582
  %v1584 = vsel %vm1566, %v1291, 0.0
  %v1585 = vadd.f32 %v1583, %v1584
  %v1586 = vsel %vm1566, %v1296, 0.0
  %v1587 = vadd.f32 %v1585, %v1586
  %v1588 = vsel %vm1566, %v1301, 0.0
  %v1589 = vadd.f32 %v1587, %v1588
  %v1590 = vsel %vm1566, %v1306, 0.0
  %v1591 = vadd.f32 %v1589, %v1590
  %v1592 = vsel %vm1566, %v1311, 0.0
  %v1593 = vadd.f32 %v1591, %v1592
  %v1594 = vsel %vm1566, %v1316, 0.0
  %v1595 = vadd.f32 %v1593, %v1594
  %v1596 = vsel %vm1566, %v1321, 0.0
  %v1597 = vadd.f32 %v1595, %v1596
  %v1598 = vsel %vm1566, %v1326, 0.0
  %v1599 = vadd.f32 %v1597, %v1598
  %v1600 = vsel %vm1566, %v1331, 0.0
  %v1601 = vadd.f32 %v1599, %v1600
  %v1602 = vsel %vm1566, %v1336, 0.0
  %v1603 = vadd.f32 %v1601, %v1602
  %v1604 = vsel %vm1566, %v1341, 0.0
  %v1605 = vadd.f32 %v1603, %v1604
  %v1606 = vsel %vm1566, %v1346, 0.0
  %v1607 = vadd.f32 %v1605, %v1606
  %v1608 = vsel %vm1566, %v1351, 0.0
  %v1609 = vadd.f32 %v1607, %v1608
  %v1610 = vsel %vm1566, %v1356, 0.0
  %v1611 = vadd.f32 %v1609, %v1610
  %v1612 = vsel %vm1566, %v1361, 0.0
  %v1613 = vadd.f32 %v1611, %v1612
  %v1614 = vsel %vm1566, %v1366, 0.0
  %v1615 = vadd.f32 %v1613, %v1614
  %v1616 = vsel %vm1566, %v1371, 0.0
  %v1617 = vadd.f32 %v1615, %v1616
  %v1618 = vsel %vm1566, %v1376, 0.0
  %v1619 = vadd.f32 %v1617, %v1618
  %v1620 = vsel %vm1566, %v1381, 0.0
  %v1621 = vadd.f32 %v1619, %v1620
  %v1622 = vsel %vm1566, %v1386, 0.0
  %v1623 = vadd.f32 %v1621, %v1622
  %v1624 = vsel %vm1566, %v1391, 0.0
  %v1625 = vadd.f32 %v1623, %v1624
  %v1626 = vsel %vm1566, %v1396, 0.0
  %v1627 = vadd.f32 %v1625, %v1626
  %v1628 = vsel %vm1566, %v1401, 0.0
  %v1629 = vadd.f32 %v1627, %v1628
  %v1630 = vsel %vm1566, %v1406, 0.0
  %v1631 = vadd.f32 %v1629, %v1630
  %v1632 = vsel %vm1566, %v1411, 0.0
  %v1633 = vadd.f32 %v1631, %v1632
  %v1634 = vsel %vm1566, %v1416, 0.0
  %v1635 = vadd.f32 %v1633, %v1634
  %v1636 = vsel %vm1566, %v1421, 0.0
  %v1637 = vadd.f32 %v1635, %v1636
  %v1638 = vsel %vm1566, %v1426, 0.0
  %v1639 = vadd.f32 %v1637, %v1638
  %v1640 = vsel %vm1566, %v1431, 0.0
  %v1641 = vadd.f32 %v1639, %v1640
  %v1642 = vsel %vm1566, %v1436, 0.0
  %v1643 = vadd.f32 %v1641, %v1642
  %v1644 = vsel %vm1566, %v1441, 0.0
  %v1645 = vadd.f32 %v1643, %v1644
  %v1646 = vsel %vm1566, %v1446, 0.0
  %v1647 = vadd.f32 %v1645, %v1646
  %v1648 = vsel %vm1566, %v1451, 0.0
  %v1649 = vadd.f32 %v1647, %v1648
  %v1650 = vsel %vm1566, %v1456, 0.0
  %v1651 = vadd.f32 %v1649, %v1650
  %v1652 = vsel %vm1566, %v1461, 0.0
  %v1653 = vadd.f32 %v1651, %v1652
  %v1654 = vsel %vm1566, %v1466, 0.0
  %v1655 = vadd.f32 %v1653, %v1654
  %v1656 = vsel %vm1566, %v1471, 0.0
  %v1657 = vadd.f32 %v1655, %v1656
  %v1658 = vsel %vm1566, %v1476, 0.0
  %v1659 = vadd.f32 %v1657, %v1658
  %v1660 = vsel %vm1566, %v1481, 0.0
  %v1661 = vadd.f32 %v1659, %v1660
  %v1662 = vsel %vm1566, %v1486, 0.0
  %v1663 = vadd.f32 %v1661, %v1662
  %v1664 = vsel %vm1566, %v1491, 0.0
  %v1665 = vadd.f32 %v1663, %v1664
  %v1666 = vsel %vm1566, %v1496, 0.0
  %v1667 = vadd.f32 %v1665, %v1666
  %v1668 = vsel %vm1566, %v1501, 0.0
  %v1669 = vadd.f32 %v1667, %v1668
  %v1670 = vsel %vm1566, %v1506, 0.0
  %v1671 = vadd.f32 %v1669, %v1670
  %v1672 = vsel %vm1566, %v1511, 0.0
  %v1673 = vadd.f32 %v1671, %v1672
  %v1674 = vsel %vm1566, %v1516, 0.0
  %v1675 = vadd.f32 %v1673, %v1674
  %v1676 = vsel %vm1566, %v1521, 0.0
  %v1677 = vadd.f32 %v1675, %v1676
  %v1678 = vsel %vm1566, %v1526, 0.0
  %v1679 = vadd.f32 %v1677, %v1678
  %v1680 = vsel %vm1566, %v1531, 0.0
  %v1681 = vadd.f32 %v1679, %v1680
  %v1682 = vsel %vm1566, %v1536, 0.0
  %v1683 = vadd.f32 %v1681, %v1682
  %v1684 = vsel %vm1566, %v1541, 0.0
  %v1685 = vadd.f32 %v1683, %v1684
  %v1686 = vsel %vm1566, %v1546, 0.0
  %v1687 = vadd.f32 %v1685, %v1686
  %v1688 = vsel %vm1566, %v1551, 0.0
  %v1689 = vadd.f32 %v1687, %v1688
  %v1690 = vsel %vm1566, %v1556, 0.0
  %v1691 = vadd.f32 %v1689, %v1690
  %v1692 = vsel %vm1566, %v1561, 0.0
  %v1693 = vadd.f32 %v1691, %v1692
  %v1694 = vrot.slane %v1693, 4
  %v1695 = vadd.f32 %v1693, %v1694
  %v1696 = vrot.slane %v1695, 2
  %v1697 = vadd.f32 %v1695, %v1696
  %v1698 = vrot.slane %v1697, 1
  %v1699 = vadd.f32 %v1697, %v1698
  %v1700 = vmul.f32 %v1246, %v1246
  %v1701 = vmul.f32 %v1251, %v1251
  %v1702 = vmul.f32 %v1256, %v1256
  %v1703 = vmul.f32 %v1261, %v1261
  %v1704 = vmul.f32 %v1266, %v1266
  %v1705 = vmul.f32 %v1271, %v1271
  %v1706 = vmul.f32 %v1276, %v1276
  %v1707 = vmul.f32 %v1281, %v1281
  %v1708 = vmul.f32 %v1286, %v1286
  %v1709 = vmul.f32 %v1291, %v1291
  %v1710 = vmul.f32 %v1296, %v1296
  %v1711 = vmul.f32 %v1301, %v1301
  %v1712 = vmul.f32 %v1306, %v1306
  %v1713 = vmul.f32 %v1311, %v1311
  %v1714 = vmul.f32 %v1316, %v1316
  %v1715 = vmul.f32 %v1321, %v1321
  %v1716 = vmul.f32 %v1326, %v1326
  %v1717 = vmul.f32 %v1331, %v1331
  %v1718 = vmul.f32 %v1336, %v1336
  %v1719 = vmul.f32 %v1341, %v1341
  %v1720 = vmul.f32 %v1346, %v1346
  %v1721 = vmul.f32 %v1351, %v1351
  %v1722 = vmul.f32 %v1356, %v1356
  %v1723 = vmul.f32 %v1361, %v1361
  %v1724 = vmul.f32 %v1366, %v1366
  %v1725 = vmul.f32 %v1371, %v1371
  %v1726 = vmul.f32 %v1376, %v1376
  %v1727 = vmul.f32 %v1381, %v1381
  %v1728 = vmul.f32 %v1386, %v1386
  %v1729 = vmul.f32 %v1391, %v1391
  %v1730 = vmul.f32 %v1396, %v1396
  %v1731 = vmul.f32 %v1401, %v1401
  %v1732 = vmul.f32 %v1406, %v1406
  %v1733 = vmul.f32 %v1411, %v1411
  %v1734 = vmul.f32 %v1416, %v1416
  %v1735 = vmul.f32 %v1421, %v1421
  %v1736 = vmul.f32 %v1426, %v1426
  %v1737 = vmul.f32 %v1431, %v1431
  %v1738 = vmul.f32 %v1436, %v1436
  %v1739 = vmul.f32 %v1441, %v1441
  %v1740 = vmul.f32 %v1446, %v1446
  %v1741 = vmul.f32 %v1451, %v1451
  %v1742 = vmul.f32 %v1456, %v1456
  %v1743 = vmul.f32 %v1461, %v1461
  %v1744 = vmul.f32 %v1466, %v1466
  %v1745 = vmul.f32 %v1471, %v1471
  %v1746 = vmul.f32 %v1476, %v1476
  %v1747 = vmul.f32 %v1481, %v1481
  %v1748 = vmul.f32 %v1486, %v1486
  %v1749 = vmul.f32 %v1491, %v1491
  %v1750 = vmul.f32 %v1496, %v1496
  %v1751 = vmul.f32 %v1501, %v1501
  %v1752 = vmul.f32 %v1506, %v1506
  %v1753 = vmul.f32 %v1511, %v1511
  %v1754 = vmul.f32 %v1516, %v1516
  %v1755 = vmul.f32 %v1521, %v1521
  %v1756 = vmul.f32 %v1526, %v1526
  %v1757 = vmul.f32 %v1531, %v1531
  %v1758 = vmul.f32 %v1536, %v1536
  %v1759 = vmul.f32 %v1541, %v1541
  %v1760 = vmul.f32 %v1546, %v1546
  %v1761 = vmul.f32 %v1551, %v1551
  %v1762 = vmul.f32 %v1556, %v1556
  %v1763 = vmul.f32 %v1561, %v1561
  %v1764 = vsel %vm1566, %v1700, 0.0
  %v1765 = vsel %vm1566, %v1701, 0.0
  %v1766 = vadd.f32 %v1764, %v1765
  %v1767 = vsel %vm1566, %v1702, 0.0
  %v1768 = vadd.f32 %v1766, %v1767
  %v1769 = vsel %vm1566, %v1703, 0.0
  %v1770 = vadd.f32 %v1768, %v1769
  %v1771 = vsel %vm1566, %v1704, 0.0
  %v1772 = vadd.f32 %v1770, %v1771
  %v1773 = vsel %vm1566, %v1705, 0.0
  %v1774 = vadd.f32 %v1772, %v1773
  %v1775 = vsel %vm1566, %v1706, 0.0
  %v1776 = vadd.f32 %v1774, %v1775
  %v1777 = vsel %vm1566, %v1707, 0.0
  %v1778 = vadd.f32 %v1776, %v1777
  %v1779 = vsel %vm1566, %v1708, 0.0
  %v1780 = vadd.f32 %v1778, %v1779
  %v1781 = vsel %vm1566, %v1709, 0.0
  %v1782 = vadd.f32 %v1780, %v1781
  %v1783 = vsel %vm1566, %v1710, 0.0
  %v1784 = vadd.f32 %v1782, %v1783
  %v1785 = vsel %vm1566, %v1711, 0.0
  %v1786 = vadd.f32 %v1784, %v1785
  %v1787 = vsel %vm1566, %v1712, 0.0
  %v1788 = vadd.f32 %v1786, %v1787
  %v1789 = vsel %vm1566, %v1713, 0.0
  %v1790 = vadd.f32 %v1788, %v1789
  %v1791 = vsel %vm1566, %v1714, 0.0
  %v1792 = vadd.f32 %v1790, %v1791
  %v1793 = vsel %vm1566, %v1715, 0.0
  %v1794 = vadd.f32 %v1792, %v1793
  %v1795 = vsel %vm1566, %v1716, 0.0
  %v1796 = vadd.f32 %v1794, %v1795
  %v1797 = vsel %vm1566, %v1717, 0.0
  %v1798 = vadd.f32 %v1796, %v1797
  %v1799 = vsel %vm1566, %v1718, 0.0
  %v1800 = vadd.f32 %v1798, %v1799
  %v1801 = vsel %vm1566, %v1719, 0.0
  %v1802 = vadd.f32 %v1800, %v1801
  %v1803 = vsel %vm1566, %v1720, 0.0
  %v1804 = vadd.f32 %v1802, %v1803
  %v1805 = vsel %vm1566, %v1721, 0.0
  %v1806 = vadd.f32 %v1804, %v1805
  %v1807 = vsel %vm1566, %v1722, 0.0
  %v1808 = vadd.f32 %v1806, %v1807
  %v1809 = vsel %vm1566, %v1723, 0.0
  %v1810 = vadd.f32 %v1808, %v1809
  %v1811 = vsel %vm1566, %v1724, 0.0
  %v1812 = vadd.f32 %v1810, %v1811
  %v1813 = vsel %vm1566, %v1725, 0.0
  %v1814 = vadd.f32 %v1812, %v1813
  %v1815 = vsel %vm1566, %v1726, 0.0
  %v1816 = vadd.f32 %v1814, %v1815
  %v1817 = vsel %vm1566, %v1727, 0.0
  %v1818 = vadd.f32 %v1816, %v1817
  %v1819 = vsel %vm1566, %v1728, 0.0
  %v1820 = vadd.f32 %v1818, %v1819
  %v1821 = vsel %vm1566, %v1729, 0.0
  %v1822 = vadd.f32 %v1820, %v1821
  %v1823 = vsel %vm1566, %v1730, 0.0
  %v1824 = vadd.f32 %v1822, %v1823
  %v1825 = vsel %vm1566, %v1731, 0.0
  %v1826 = vadd.f32 %v1824, %v1825
  %v1827 = vsel %vm1566, %v1732, 0.0
  %v1828 = vadd.f32 %v1826, %v1827
  %v1829 = vsel %vm1566, %v1733, 0.0
  %v1830 = vadd.f32 %v1828, %v1829
  %v1831 = vsel %vm1566, %v1734, 0.0
  %v1832 = vadd.f32 %v1830, %v1831
  %v1833 = vsel %vm1566, %v1735, 0.0
  %v1834 = vadd.f32 %v1832, %v1833
  %v1835 = vsel %vm1566, %v1736, 0.0
  %v1836 = vadd.f32 %v1834, %v1835
  %v1837 = vsel %vm1566, %v1737, 0.0
  %v1838 = vadd.f32 %v1836, %v1837
  %v1839 = vsel %vm1566, %v1738, 0.0
  %v1840 = vadd.f32 %v1838, %v1839
  %v1841 = vsel %vm1566, %v1739, 0.0
  %v1842 = vadd.f32 %v1840, %v1841
  %v1843 = vsel %vm1566, %v1740, 0.0
  %v1844 = vadd.f32 %v1842, %v1843
  %v1845 = vsel %vm1566, %v1741, 0.0
  %v1846 = vadd.f32 %v1844, %v1845
  %v1847 = vsel %vm1566, %v1742, 0.0
  %v1848 = vadd.f32 %v1846, %v1847
  %v1849 = vsel %vm1566, %v1743, 0.0
  %v1850 = vadd.f32 %v1848, %v1849
  %v1851 = vsel %vm1566, %v1744, 0.0
  %v1852 = vadd.f32 %v1850, %v1851
  %v1853 = vsel %vm1566, %v1745, 0.0
  %v1854 = vadd.f32 %v1852, %v1853
  %v1855 = vsel %vm1566, %v1746, 0.0
  %v1856 = vadd.f32 %v1854, %v1855
  %v1857 = vsel %vm1566, %v1747, 0.0
  %v1858 = vadd.f32 %v1856, %v1857
  %v1859 = vsel %vm1566, %v1748, 0.0
  %v1860 = vadd.f32 %v1858, %v1859
  %v1861 = vsel %vm1566, %v1749, 0.0
  %v1862 = vadd.f32 %v1860, %v1861
  %v1863 = vsel %vm1566, %v1750, 0.0
  %v1864 = vadd.f32 %v1862, %v1863
  %v1865 = vsel %vm1566, %v1751, 0.0
  %v1866 = vadd.f32 %v1864, %v1865
  %v1867 = vsel %vm1566, %v1752, 0.0
  %v1868 = vadd.f32 %v1866, %v1867
  %v1869 = vsel %vm1566, %v1753, 0.0
  %v1870 = vadd.f32 %v1868, %v1869
  %v1871 = vsel %vm1566, %v1754, 0.0
  %v1872 = vadd.f32 %v1870, %v1871
  %v1873 = vsel %vm1566, %v1755, 0.0
  %v1874 = vadd.f32 %v1872, %v1873
  %v1875 = vsel %vm1566, %v1756, 0.0
  %v1876 = vadd.f32 %v1874, %v1875
  %v1877 = vsel %vm1566, %v1757, 0.0
  %v1878 = vadd.f32 %v1876, %v1877
  %v1879 = vsel %vm1566, %v1758, 0.0
  %v1880 = vadd.f32 %v1878, %v1879
  %v1881 = vsel %vm1566, %v1759, 0.0
  %v1882 = vadd.f32 %v1880, %v1881
  %v1883 = vsel %vm1566, %v1760, 0.0
  %v1884 = vadd.f32 %v1882, %v1883
  %v1885 = vsel %vm1566, %v1761, 0.0
  %v1886 = vadd.f32 %v1884, %v1885
  %v1887 = vsel %vm1566, %v1762, 0.0
  %v1888 = vadd.f32 %v1886, %v1887
  %v1889 = vsel %vm1566, %v1763, 0.0
  %v1890 = vadd.f32 %v1888, %v1889
  %v1891 = vrot.slane %v1890, 4
  %v1892 = vadd.f32 %v1890, %v1891
  %v1893 = vrot.slane %v1892, 2
  %v1894 = vadd.f32 %v1892, %v1893
  %v1895 = vrot.slane %v1894, 1
  %v1896 = vadd.f32 %v1894, %v1895
  %v1897 = vmul.f32 %v1699, 0.001953125
  %v1898 = vmul.f32 %v1896, 0.001953125
  %v1899 = vmul.f32 %v1897, %v1897
  %v1900 = vsub.f32 %v1898, %v1899
  %v1901 = vadd.f32 %v1900, 1e-05
  %v1902 = vrsqrt.pop %v1901
  %v1903 = vmul.f32 %v1564, %v1902
  %v1904 = vmul.f32 %v1897, %v1903
  %v1905 = vsub.f32 %v1565, %v1904
  %v1907 = vlaneseq
  %v1908 = vshrl.u32 %v1907, 7
  %v1909 = vsub.s32 0, %v1908
  %v1910 = vrot.slane %v1903, %v1909
  %v1912 = vmul.f32 %v1246, %v1910
  %v1913 = vmul.f32 %v1251, %v1910
  %v1914 = vmul.f32 %v1256, %v1910
  %v1915 = vmul.f32 %v1261, %v1910
  %v1916 = vmul.f32 %v1266, %v1910
  %v1917 = vmul.f32 %v1271, %v1910
  %v1918 = vmul.f32 %v1276, %v1910
  %v1919 = vmul.f32 %v1281, %v1910
  %v1920 = vmul.f32 %v1286, %v1910
  %v1921 = vmul.f32 %v1291, %v1910
  %v1922 = vmul.f32 %v1296, %v1910
  %v1923 = vmul.f32 %v1301, %v1910
  %v1924 = vmul.f32 %v1306, %v1910
  %v1925 = vmul.f32 %v1311, %v1910
  %v1926 = vmul.f32 %v1316, %v1910
  %v1927 = vmul.f32 %v1321, %v1910
  %v1928 = vmul.f32 %v1326, %v1910
  %v1929 = vmul.f32 %v1331, %v1910
  %v1930 = vmul.f32 %v1336, %v1910
  %v1931 = vmul.f32 %v1341, %v1910
  %v1932 = vmul.f32 %v1346, %v1910
  %v1933 = vmul.f32 %v1351, %v1910
  %v1934 = vmul.f32 %v1356, %v1910
  %v1935 = vmul.f32 %v1361, %v1910
  %v1936 = vmul.f32 %v1366, %v1910
  %v1937 = vmul.f32 %v1371, %v1910
  %v1938 = vmul.f32 %v1376, %v1910
  %v1939 = vmul.f32 %v1381, %v1910
  %v1940 = vmul.f32 %v1386, %v1910
  %v1941 = vmul.f32 %v1391, %v1910
  %v1942 = vmul.f32 %v1396, %v1910
  %v1943 = vmul.f32 %v1401, %v1910
  %v1944 = vmul.f32 %v1406, %v1910
  %v1945 = vmul.f32 %v1411, %v1910
  %v1946 = vmul.f32 %v1416, %v1910
  %v1947 = vmul.f32 %v1421, %v1910
  %v1948 = vmul.f32 %v1426, %v1910
  %v1949 = vmul.f32 %v1431, %v1910
  %v1950 = vmul.f32 %v1436, %v1910
  %v1951 = vmul.f32 %v1441, %v1910
  %v1952 = vmul.f32 %v1446, %v1910
  %v1953 = vmul.f32 %v1451, %v1910
  %v1954 = vmul.f32 %v1456, %v1910
  %v1955 = vmul.f32 %v1461, %v1910
  %v1956 = vmul.f32 %v1466, %v1910
  %v1957 = vmul.f32 %v1471, %v1910
  %v1958 = vmul.f32 %v1476, %v1910
  %v1959 = vmul.f32 %v1481, %v1910
  %v1960 = vmul.f32 %v1486, %v1910
  %v1961 = vmul.f32 %v1491, %v1910
  %v1962 = vmul.f32 %v1496, %v1910
  %v1963 = vmul.f32 %v1501, %v1910
  %v1964 = vmul.f32 %v1506, %v1910
  %v1965 = vmul.f32 %v1511, %v1910
  %v1966 = vmul.f32 %v1516, %v1910
  %v1967 = vmul.f32 %v1521, %v1910
  %v1968 = vmul.f32 %v1526, %v1910
  %v1969 = vmul.f32 %v1531, %v1910
  %v1970 = vmul.f32 %v1536, %v1910
  %v1971 = vmul.f32 %v1541, %v1910
  %v1972 = vmul.f32 %v1546, %v1910
  %v1973 = vmul.f32 %v1551, %v1910
  %v1974 = vmul.f32 %v1556, %v1910
  %v1975 = vmul.f32 %v1561, %v1910
  %v1977 = vlaneseq
  %v1978 = vshrl.u32 %v1977, 7
  %v1979 = vsub.s32 0, %v1978
  %v1980 = vrot.slane %v1905, %v1979
  %v1982 = vadd.f32 %v1912, %v1980
  %v1983 = vadd.f32 %v1913, %v1980
  %v1984 = vadd.f32 %v1914, %v1980
  %v1985 = vadd.f32 %v1915, %v1980
  %v1986 = vadd.f32 %v1916, %v1980
  %v1987 = vadd.f32 %v1917, %v1980
  %v1988 = vadd.f32 %v1918, %v1980
  %v1989 = vadd.f32 %v1919, %v1980
  %v1990 = vadd.f32 %v1920, %v1980
  %v1991 = vadd.f32 %v1921, %v1980
  %v1992 = vadd.f32 %v1922, %v1980
  %v1993 = vadd.f32 %v1923, %v1980
  %v1994 = vadd.f32 %v1924, %v1980
  %v1995 = vadd.f32 %v1925, %v1980
  %v1996 = vadd.f32 %v1926, %v1980
  %v1997 = vadd.f32 %v1927, %v1980
  %v1998 = vadd.f32 %v1928, %v1980
  %v1999 = vadd.f32 %v1929, %v1980
  %v2000 = vadd.f32 %v1930, %v1980
  %v2001 = vadd.f32 %v1931, %v1980
  %v2002 = vadd.f32 %v1932, %v1980
  %v2003 = vadd.f32 %v1933, %v1980
  %v2004 = vadd.f32 %v1934, %v1980
  %v2005 = vadd.f32 %v1935, %v1980
  %v2006 = vadd.f32 %v1936, %v1980
  %v2007 = vadd.f32 %v1937, %v1980
  %v2008 = vadd.f32 %v1938, %v1980
  %v2009 = vadd.f32 %v1939, %v1980
  %v2010 = vadd.f32 %v1940, %v1980
  %v2011 = vadd.f32 %v1941, %v1980
  %v2012 = vadd.f32 %v1942, %v1980
  %v2013 = vadd.f32 %v1943, %v1980
  %v2014 = vadd.f32 %v1944, %v1980
  %v2015 = vadd.f32 %v1945, %v1980
  %v2016 = vadd.f32 %v1946, %v1980
  %v2017 = vadd.f32 %v1947, %v1980
  %v2018 = vadd.f32 %v1948, %v1980
  %v2019 = vadd.f32 %v1949, %v1980
  %v2020 = vadd.f32 %v1950, %v1980
  %v2021 = vadd.f32 %v1951, %v1980
  %v2022 = vadd.f32 %v1952, %v1980
  %v2023 = vadd.f32 %v1953, %v1980
  %v2024 = vadd.f32 %v1954, %v1980
  %v2025 = vadd.f32 %v1955, %v1980
  %v2026 = vadd.f32 %v1956, %v1980
  %v2027 = vadd.f32 %v1957, %v1980
  %v2028 = vadd.f32 %v1958, %v1980
  %v2029 = vadd.f32 %v1959, %v1980
  %v2030 = vadd.f32 %v1960, %v1980
  %v2031 = vadd.f32 %v1961, %v1980
  %v2032 = vadd.f32 %v1962, %v1980
  %v2033 = vadd.f32 %v1963, %v1980
  %v2034 = vadd.f32 %v1964, %v1980
  %v2035 = vadd.f32 %v1965, %v1980
  %v2036 = vadd.f32 %v1966, %v1980
  %v2037 = vadd.f32 %v1967, %v1980
  %v2038 = vadd.f32 %v1968, %v1980
  %v2039 = vadd.f32 %v1969, %v1980
  %v2040 = vadd.f32 %v1970, %v1980
  %v2041 = vadd.f32 %v1971, %v1980
  %v2042 = vadd.f32 %v1972, %v1980
  %v2043 = vadd.f32 %v1973, %v1980
  %v2044 = vadd.f32 %v1974, %v1980
  %v2045 = vadd.f32 %v1975, %v1980
  %v2046 = vmax.f32 %v1982, 0.0
  %v2047 = vmax.f32 %v1983, 0.0
  %v2048 = vmax.f32 %v1984, 0.0
  %v2049 = vmax.f32 %v1985, 0.0
  %v2050 = vmax.f32 %v1986, 0.0
  %v2051 = vmax.f32 %v1987, 0.0
  %v2052 = vmax.f32 %v1988, 0.0
  %v2053 = vmax.f32 %v1989, 0.0
  %v2054 = vmax.f32 %v1990, 0.0
  %v2055 = vmax.f32 %v1991, 0.0
  %v2056 = vmax.f32 %v1992, 0.0
  %v2057 = vmax.f32 %v1993, 0.0
  %v2058 = vmax.f32 %v1994, 0.0
  %v2059 = vmax.f32 %v1995, 0.0
  %v2060 = vmax.f32 %v1996, 0.0
  %v2061 = vmax.f32 %v1997, 0.0
  %v2062 = vmax.f32 %v1998, 0.0
  %v2063 = vmax.f32 %v1999, 0.0
  %v2064 = vmax.f32 %v2000, 0.0
  %v2065 = vmax.f32 %v2001, 0.0
  %v2066 = vmax.f32 %v2002, 0.0
  %v2067 = vmax.f32 %v2003, 0.0
  %v2068 = vmax.f32 %v2004, 0.0
  %v2069 = vmax.f32 %v2005, 0.0
  %v2070 = vmax.f32 %v2006, 0.0
  %v2071 = vmax.f32 %v2007, 0.0
  %v2072 = vmax.f32 %v2008, 0.0
  %v2073 = vmax.f32 %v2009, 0.0
  %v2074 = vmax.f32 %v2010, 0.0
  %v2075 = vmax.f32 %v2011, 0.0
  %v2076 = vmax.f32 %v2012, 0.0
  %v2077 = vmax.f32 %v2013, 0.0
  %v2078 = vmax.f32 %v2014, 0.0
  %v2079 = vmax.f32 %v2015, 0.0
  %v2080 = vmax.f32 %v2016, 0.0
  %v2081 = vmax.f32 %v2017, 0.0
  %v2082 = vmax.f32 %v2018, 0.0
  %v2083 = vmax.f32 %v2019, 0.0
  %v2084 = vmax.f32 %v2020, 0.0
  %v2085 = vmax.f32 %v2021, 0.0
  %v2086 = vmax.f32 %v2022, 0.0
  %v2087 = vmax.f32 %v2023, 0.0
  %v2088 = vmax.f32 %v2024, 0.0
  %v2089 = vmax.f32 %v2025, 0.0
  %v2090 = vmax.f32 %v2026, 0.0
  %v2091 = vmax.f32 %v2027, 0.0
  %v2092 = vmax.f32 %v2028, 0.0
  %v2093 = vmax.f32 %v2029, 0.0
  %v2094 = vmax.f32 %v2030, 0.0
  %v2095 = vmax.f32 %v2031, 0.0
  %v2096 = vmax.f32 %v2032, 0.0
  %v2097 = vmax.f32 %v2033, 0.0
  %v2098 = vmax.f32 %v2034, 0.0
  %v2099 = vmax.f32 %v2035, 0.0
  %v2100 = vmax.f32 %v2036, 0.0
  %v2101 = vmax.f32 %v2037, 0.0
  %v2102 = vmax.f32 %v2038, 0.0
  %v2103 = vmax.f32 %v2039, 0.0
  %v2104 = vmax.f32 %v2040, 0.0
  %v2105 = vmax.f32 %v2041, 0.0
  %v2106 = vmax.f32 %v2042, 0.0
  %v2107 = vmax.f32 %v2043, 0.0
  %v2108 = vmax.f32 %v2044, 0.0
  %v2109 = vmax.f32 %v2045, 0.0
  %2110 = vst.msk [vmem:[#allocation2] sm:$0xff] %vm1566, 0.0
  %2111 = vst.msk [vmem:[#allocation2 + $0x8] sm:$0xff] %vm1566, 0.0
  %2112 = vst.msk [vmem:[#allocation2 + $0x10] sm:$0xff] %vm1566, 0.0
  %2113 = vst.msk [vmem:[#allocation2 + $0x18] sm:$0xff] %vm1566, 0.0
  %2114 = vst.msk [vmem:[#allocation2 + $0x20] sm:$0xff] %vm1566, 0.0
  %2115 = vst.msk [vmem:[#allocation2 + $0x28] sm:$0xff] %vm1566, 0.0
  %2116 = vst.msk [vmem:[#allocation2 + $0x30] sm:$0xff] %vm1566, 0.0
  %2117 = vst.msk [vmem:[#allocation2 + $0x38] sm:$0xff] %vm1566, 0.0
  %2118 = vst.msk [vmem:[#allocation2 + $0x40] sm:$0xff] %vm1566, 0.0
  %2119 = vst.msk [vmem:[#allocation2 + $0x48] sm:$0xff] %vm1566, 0.0
  %2120 = vst.msk [vmem:[#allocation2 + $0x50] sm:$0xff] %vm1566, 0.0
  %2121 = vst.msk [vmem:[#allocation2 + $0x58] sm:$0xff] %vm1566, 0.0
  %2122 = vst.msk [vmem:[#allocation2 + $0x60] sm:$0xff] %vm1566, 0.0
  %2123 = vst.msk [vmem:[#allocation2 + $0x68] sm:$0xff] %vm1566, 0.0
  %2124 = vst.msk [vmem:[#allocation2 + $0x70] sm:$0xff] %vm1566, 0.0
  %2125 = vst.msk [vmem:[#allocation2 + $0x78] sm:$0xff] %vm1566, 0.0
  %2126 = vst.msk [vmem:[#allocation2 + $0x80] sm:$0xff] %vm1566, 0.0
  %2127 = vst.msk [vmem:[#allocation2 + $0x88] sm:$0xff] %vm1566, 0.0
  %2128 = vst.msk [vmem:[#allocation2 + $0x90] sm:$0xff] %vm1566, 0.0
  %2129 = vst.msk [vmem:[#allocation2 + $0x98] sm:$0xff] %vm1566, 0.0
  %2130 = vst.msk [vmem:[#allocation2 + $0xa0] sm:$0xff] %vm1566, 0.0
  %2131 = vst.msk [vmem:[#allocation2 + $0xa8] sm:$0xff] %vm1566, 0.0
  %2132 = vst.msk [vmem:[#allocation2 + $0xb0] sm:$0xff] %vm1566, 0.0
  %2133 = vst.msk [vmem:[#allocation2 + $0xb8] sm:$0xff] %vm1566, 0.0
  %2134 = vst.msk [vmem:[#allocation2 + $0xc0] sm:$0xff] %vm1566, 0.0
  %2135 = vst.msk [vmem:[#allocation2 + $0xc8] sm:$0xff] %vm1566, 0.0
  %2136 = vst.msk [vmem:[#allocation2 + $0xd0] sm:$0xff] %vm1566, 0.0
  %2137 = vst.msk [vmem:[#allocation2 + $0xd8] sm:$0xff] %vm1566, 0.0
  %2138 = vst.msk [vmem:[#allocation2 + $0xe0] sm:$0xff] %vm1566, 0.0
  %2139 = vst.msk [vmem:[#allocation2 + $0xe8] sm:$0xff] %vm1566, 0.0
  %2140 = vst.msk [vmem:[#allocation2 + $0xf0] sm:$0xff] %vm1566, 0.0
  %2141 = vst.msk [vmem:[#allocation2 + $0xf8] sm:$0xff] %vm1566, 0.0
  %2142 = vst.msk [vmem:[#allocation2 + $0x100] sm:$0xff] %vm1566, 0.0
  %2143 = vst.msk [vmem:[#allocation2 + $0x108] sm:$0xff] %vm1566, 0.0
  %2144 = vst.msk [vmem:[#allocation2 + $0x110] sm:$0xff] %vm1566, 0.0
  %2145 = vst.msk [vmem:[#allocation2 + $0x118] sm:$0xff] %vm1566, 0.0
  %2146 = vst.msk [vmem:[#allocation2 + $0x120] sm:$0xff] %vm1566, 0.0
  %2147 = vst.msk [vmem:[#allocation2 + $0x128] sm:$0xff] %vm1566, 0.0
  %2148 = vst.msk [vmem:[#allocation2 + $0x130] sm:$0xff] %vm1566, 0.0
  %2149 = vst.msk [vmem:[#allocation2 + $0x138] sm:$0xff] %vm1566, 0.0
  %2150 = vst.msk [vmem:[#allocation2 + $0x140] sm:$0xff] %vm1566, 0.0
  %2151 = vst.msk [vmem:[#allocation2 + $0x148] sm:$0xff] %vm1566, 0.0
  %2152 = vst.msk [vmem:[#allocation2 + $0x150] sm:$0xff] %vm1566, 0.0
  %2153 = vst.msk [vmem:[#allocation2 + $0x158] sm:$0xff] %vm1566, 0.0
  %2154 = vst.msk [vmem:[#allocation2 + $0x160] sm:$0xff] %vm1566, 0.0
  %2155 = vst.msk [vmem:[#allocation2 + $0x168] sm:$0xff] %vm1566, 0.0
  %2156 = vst.msk [vmem:[#allocation2 + $0x170] sm:$0xff] %vm1566, 0.0
  %2157 = vst.msk [vmem:[#allocation2 + $0x178] sm:$0xff] %vm1566, 0.0
  %2158 = vst.msk [vmem:[#allocation2 + $0x180] sm:$0xff] %vm1566, 0.0
  %2159 = vst.msk [vmem:[#allocation2 + $0x188] sm:$0xff] %vm1566, 0.0
  %2160 = vst.msk [vmem:[#allocation2 + $0x190] sm:$0xff] %vm1566, 0.0
  %2161 = vst.msk [vmem:[#allocation2 + $0x198] sm:$0xff] %vm1566, 0.0
  %2162 = vst.msk [vmem:[#allocation2 + $0x1a0] sm:$0xff] %vm1566, 0.0
  %2163 = vst.msk [vmem:[#allocation2 + $0x1a8] sm:$0xff] %vm1566, 0.0
  %2164 = vst.msk [vmem:[#allocation2 + $0x1b0] sm:$0xff] %vm1566, 0.0
  %2165 = vst.msk [vmem:[#allocation2 + $0x1b8] sm:$0xff] %vm1566, 0.0
  %2166 = vst.msk [vmem:[#allocation2 + $0x1c0] sm:$0xff] %vm1566, 0.0
  %2167 = vst.msk [vmem:[#allocation2 + $0x1c8] sm:$0xff] %vm1566, 0.0
  %2168 = vst.msk [vmem:[#allocation2 + $0x1d0] sm:$0xff] %vm1566, 0.0
  %2169 = vst.msk [vmem:[#allocation2 + $0x1d8] sm:$0xff] %vm1566, 0.0
  %2170 = vst.msk [vmem:[#allocation2 + $0x1e0] sm:$0xff] %vm1566, 0.0
  %2171 = vst.msk [vmem:[#allocation2 + $0x1e8] sm:$0xff] %vm1566, 0.0
  %2172 = vst.msk [vmem:[#allocation2 + $0x1f0] sm:$0xff] %vm1566, 0.0
  %2173 = vst.msk [vmem:[#allocation2 + $0x1f8] sm:$0xff] %vm1566, 0.0
  %2174 = vst.msk [vmem:[#allocation2 + $0x200] sm:$0xff] %vm1566, 0.0
  %2175 = vst.msk [vmem:[#allocation2 + $0x208] sm:$0xff] %vm1566, 0.0
  %2176 = vst.msk [vmem:[#allocation2 + $0x210] sm:$0xff] %vm1566, 0.0
  %2177 = vst.msk [vmem:[#allocation2 + $0x218] sm:$0xff] %vm1566, 0.0
  %2178 = vst.msk [vmem:[#allocation2 + $0x220] sm:$0xff] %vm1566, 0.0
  %2179 = vst.msk [vmem:[#allocation2 + $0x228] sm:$0xff] %vm1566, 0.0
  %2180 = vst.msk [vmem:[#allocation2 + $0x230] sm:$0xff] %vm1566, 0.0
  %2181 = vst.msk [vmem:[#allocation2 + $0x238] sm:$0xff] %vm1566, 0.0
  %2182 = vst.msk [vmem:[#allocation2 + $0x240] sm:$0xff] %vm1566, 0.0
  %2183 = vst.msk [vmem:[#allocation2 + $0x248] sm:$0xff] %vm1566, 0.0
  %2184 = vst.msk [vmem:[#allocation2 + $0x250] sm:$0xff] %vm1566, 0.0
  %2185 = vst.msk [vmem:[#allocation2 + $0x258] sm:$0xff] %vm1566, 0.0
  %2186 = vst.msk [vmem:[#allocation2 + $0x260] sm:$0xff] %vm1566, 0.0
  %2187 = vst.msk [vmem:[#allocation2 + $0x268] sm:$0xff] %vm1566, 0.0
  %2188 = vst.msk [vmem:[#allocation2 + $0x270] sm:$0xff] %vm1566, 0.0
  %2189 = vst.msk [vmem:[#allocation2 + $0x278] sm:$0xff] %vm1566, 0.0
  %2190 = vst.msk [vmem:[#allocation2 + $0x280] sm:$0xff] %vm1566, 0.0
  %2191 = vst.msk [vmem:[#allocation2 + $0x288] sm:$0xff] %vm1566, 0.0
  %2192 = vst.msk [vmem:[#allocation2 + $0x290] sm:$0xff] %vm1566, 0.0
  %2193 = vst.msk [vmem:[#allocation2 + $0x298] sm:$0xff] %vm1566, 0.0
  %2194 = vst.msk [vmem:[#allocation2 + $0x2a0] sm:$0xff] %vm1566, 0.0
  %2195 = vst.msk [vmem:[#allocation2 + $0x2a8] sm:$0xff] %vm1566, 0.0
  %2196 = vst.msk [vmem:[#allocation2 + $0x2b0] sm:$0xff] %vm1566, 0.0
  %2197 = vst.msk [vmem:[#allocation2 + $0x2b8] sm:$0xff] %vm1566, 0.0
  %2198 = vst.msk [vmem:[#allocation2 + $0x2c0] sm:$0xff] %vm1566, 0.0
  %2199 = vst.msk [vmem:[#allocation2 + $0x2c8] sm:$0xff] %vm1566, 0.0
  %2200 = vst.msk [vmem:[#allocation2 + $0x2d0] sm:$0xff] %vm1566, 0.0
  %2201 = vst.msk [vmem:[#allocation2 + $0x2d8] sm:$0xff] %vm1566, 0.0
  %2202 = vst.msk [vmem:[#allocation2 + $0x2e0] sm:$0xff] %vm1566, 0.0
  %2203 = vst.msk [vmem:[#allocation2 + $0x2e8] sm:$0xff] %vm1566, 0.0
  %2204 = vst.msk [vmem:[#allocation2 + $0x2f0] sm:$0xff] %vm1566, 0.0
  %2205 = vst.msk [vmem:[#allocation2 + $0x2f8] sm:$0xff] %vm1566, 0.0
  %2206 = vst.msk [vmem:[#allocation2 + $0x300] sm:$0xff] %vm1566, 0.0
  %2207 = vst.msk [vmem:[#allocation2 + $0x308] sm:$0xff] %vm1566, 0.0
  %2208 = vst.msk [vmem:[#allocation2 + $0x310] sm:$0xff] %vm1566, 0.0
  %2209 = vst.msk [vmem:[#allocation2 + $0x318] sm:$0xff] %vm1566, 0.0
  %2210 = vst.msk [vmem:[#allocation2 + $0x320] sm:$0xff] %vm1566, 0.0
  %2211 = vst.msk [vmem:[#allocation2 + $0x328] sm:$0xff] %vm1566, 0.0
  %2212 = vst.msk [vmem:[#allocation2 + $0x330] sm:$0xff] %vm1566, 0.0
  %2213 = vst.msk [vmem:[#allocation2 + $0x338] sm:$0xff] %vm1566, 0.0
  %2214 = vst.msk [vmem:[#allocation2 + $0x340] sm:$0xff] %vm1566, 0.0
  %2215 = vst.msk [vmem:[#allocation2 + $0x348] sm:$0xff] %vm1566, 0.0
  %2216 = vst.msk [vmem:[#allocation2 + $0x350] sm:$0xff] %vm1566, 0.0
  %2217 = vst.msk [vmem:[#allocation2 + $0x358] sm:$0xff] %vm1566, 0.0
  %2218 = vst.msk [vmem:[#allocation2 + $0x360] sm:$0xff] %vm1566, 0.0
  %2219 = vst.msk [vmem:[#allocation2 + $0x368] sm:$0xff] %vm1566, 0.0
  %2220 = vst.msk [vmem:[#allocation2 + $0x370] sm:$0xff] %vm1566, 0.0
  %2221 = vst.msk [vmem:[#allocation2 + $0x378] sm:$0xff] %vm1566, 0.0
  %2222 = vst.msk [vmem:[#allocation2 + $0x380] sm:$0xff] %vm1566, 0.0
  %2223 = vst.msk [vmem:[#allocation2 + $0x388] sm:$0xff] %vm1566, 0.0
  %2224 = vst.msk [vmem:[#allocation2 + $0x390] sm:$0xff] %vm1566, 0.0
  %2225 = vst.msk [vmem:[#allocation2 + $0x398] sm:$0xff] %vm1566, 0.0
  %2226 = vst.msk [vmem:[#allocation2 + $0x3a0] sm:$0xff] %vm1566, 0.0
  %2227 = vst.msk [vmem:[#allocation2 + $0x3a8] sm:$0xff] %vm1566, 0.0
  %2228 = vst.msk [vmem:[#allocation2 + $0x3b0] sm:$0xff] %vm1566, 0.0
  %2229 = vst.msk [vmem:[#allocation2 + $0x3b8] sm:$0xff] %vm1566, 0.0
  %2230 = vst.msk [vmem:[#allocation2 + $0x3c0] sm:$0xff] %vm1566, 0.0
  %2231 = vst.msk [vmem:[#allocation2 + $0x3c8] sm:$0xff] %vm1566, 0.0
  %2232 = vst.msk [vmem:[#allocation2 + $0x3d0] sm:$0xff] %vm1566, 0.0
  %2233 = vst.msk [vmem:[#allocation2 + $0x3d8] sm:$0xff] %vm1566, 0.0
  %2234 = vst.msk [vmem:[#allocation2 + $0x3e0] sm:$0xff] %vm1566, 0.0
  %2235 = vst.msk [vmem:[#allocation2 + $0x3e8] sm:$0xff] %vm1566, 0.0
  %2236 = vst.msk [vmem:[#allocation2 + $0x3f0] sm:$0xff] %vm1566, 0.0
  %2237 = vst.msk [vmem:[#allocation2 + $0x3f8] sm:$0xff] %vm1566, 0.0
  %2238 = vst.msk [vmem:[#allocation2 + $0x400] sm:$0xff] %vm1566, 0.0
  %2239 = vst.msk [vmem:[#allocation2 + $0x408] sm:$0xff] %vm1566, 0.0
  %2240 = vst.msk [vmem:[#allocation2 + $0x410] sm:$0xff] %vm1566, 0.0
  %2241 = vst.msk [vmem:[#allocation2 + $0x418] sm:$0xff] %vm1566, 0.0
  %2242 = vst.msk [vmem:[#allocation2 + $0x420] sm:$0xff] %vm1566, 0.0
  %2243 = vst.msk [vmem:[#allocation2 + $0x428] sm:$0xff] %vm1566, 0.0
  %2244 = vst.msk [vmem:[#allocation2 + $0x430] sm:$0xff] %vm1566, 0.0
  %2245 = vst.msk [vmem:[#allocation2 + $0x438] sm:$0xff] %vm1566, 0.0
  %2246 = vst.msk [vmem:[#allocation2 + $0x440] sm:$0xff] %vm1566, 0.0
  %2247 = vst.msk [vmem:[#allocation2 + $0x448] sm:$0xff] %vm1566, 0.0
  %2248 = vst.msk [vmem:[#allocation2 + $0x450] sm:$0xff] %vm1566, 0.0
  %2249 = vst.msk [vmem:[#allocation2 + $0x458] sm:$0xff] %vm1566, 0.0
  %2250 = vst.msk [vmem:[#allocation2 + $0x460] sm:$0xff] %vm1566, 0.0
  %2251 = vst.msk [vmem:[#allocation2 + $0x468] sm:$0xff] %vm1566, 0.0
  %2252 = vst.msk [vmem:[#allocation2 + $0x470] sm:$0xff] %vm1566, 0.0
  %2253 = vst.msk [vmem:[#allocation2 + $0x478] sm:$0xff] %vm1566, 0.0
  %s2254 = scalar_lea.vmem [#allocation2], 32
  %2255 = vst.msk [vmem:[%s2254 + $0x8] sm:$0xff] %vm1566, %v2046
  %2256 = vst.msk [vmem:[%s2254 + $0x10] sm:$0xff] %vm1566, %v2047
  %2257 = vst.msk [vmem:[%s2254 + $0x28] sm:$0xff] %vm1566, %v2048
  %2258 = vst.msk [vmem:[%s2254 + $0x30] sm:$0xff] %vm1566, %v2049
  %2259 = vst.msk [vmem:[%s2254 + $0x48] sm:$0xff] %vm1566, %v2050
  %2260 = vst.msk [vmem:[%s2254 + $0x50] sm:$0xff] %vm1566, %v2051
  %2261 = vst.msk [vmem:[%s2254 + $0x68] sm:$0xff] %vm1566, %v2052
  %2262 = vst.msk [vmem:[%s2254 + $0x70] sm:$0xff] %vm1566, %v2053
  %2263 = vst.msk [vmem:[%s2254 + $0x88] sm:$0xff] %vm1566, %v2054
  %2264 = vst.msk [vmem:[%s2254 + $0x90] sm:$0xff] %vm1566, %v2055
  %2265 = vst.msk [vmem:[%s2254 + $0xa8] sm:$0xff] %vm1566, %v2056
  %2266 = vst.msk [vmem:[%s2254 + $0xb0] sm:$0xff] %vm1566, %v2057
  %2267 = vst.msk [vmem:[%s2254 + $0xc8] sm:$0xff] %vm1566, %v2058
  %2268 = vst.msk [vmem:[%s2254 + $0xd0] sm:$0xff] %vm1566, %v2059
  %2269 = vst.msk [vmem:[%s2254 + $0xe8] sm:$0xff] %vm1566, %v2060
  %2270 = vst.msk [vmem:[%s2254 + $0xf0] sm:$0xff] %vm1566, %v2061
  %2271 = vst.msk [vmem:[%s2254 + $0x108] sm:$0xff] %vm1566, %v2062
  %2272 = vst.msk [vmem:[%s2254 + $0x110] sm:$0xff] %vm1566, %v2063
  %2273 = vst.msk [vmem:[%s2254 + $0x128] sm:$0xff] %vm1566, %v2064
  %2274 = vst.msk [vmem:[%s2254 + $0x130] sm:$0xff] %vm1566, %v2065
  %2275 = vst.msk [vmem:[%s2254 + $0x148] sm:$0xff] %vm1566, %v2066
  %2276 = vst.msk [vmem:[%s2254 + $0x150] sm:$0xff] %vm1566, %v2067
  %2277 = vst.msk [vmem:[%s2254 + $0x168] sm:$0xff] %vm1566, %v2068
  %2278 = vst.msk [vmem:[%s2254 + $0x170] sm:$0xff] %vm1566, %v2069
  %2279 = vst.msk [vmem:[%s2254 + $0x188] sm:$0xff] %vm1566, %v2070
  %2280 = vst.msk [vmem:[%s2254 + $0x190] sm:$0xff] %vm1566, %v2071
  %2281 = vst.msk [vmem:[%s2254 + $0x1a8] sm:$0xff] %vm1566, %v2072
  %2282 = vst.msk [vmem:[%s2254 + $0x1b0] sm:$0xff] %vm1566, %v2073
  %2283 = vst.msk [vmem:[%s2254 + $0x1c8] sm:$0xff] %vm1566, %v2074
  %2284 = vst.msk [vmem:[%s2254 + $0x1d0] sm:$0xff] %vm1566, %v2075
  %2285 = vst.msk [vmem:[%s2254 + $0x1e8] sm:$0xff] %vm1566, %v2076
  %2286 = vst.msk [vmem:[%s2254 + $0x1f0] sm:$0xff] %vm1566, %v2077
  %2287 = vst.msk [vmem:[%s2254 + $0x248] sm:$0xff] %vm1566, %v2078
  %2288 = vst.msk [vmem:[%s2254 + $0x250] sm:$0xff] %vm1566, %v2079
  %2289 = vst.msk [vmem:[%s2254 + $0x268] sm:$0xff] %vm1566, %v2080
  %2290 = vst.msk [vmem:[%s2254 + $0x270] sm:$0xff] %vm1566, %v2081
  %2291 = vst.msk [vmem:[%s2254 + $0x288] sm:$0xff] %vm1566, %v2082
  %2292 = vst.msk [vmem:[%s2254 + $0x290] sm:$0xff] %vm1566, %v2083
  %2293 = vst.msk [vmem:[%s2254 + $0x2a8] sm:$0xff] %vm1566, %v2084
  %2294 = vst.msk [vmem:[%s2254 + $0x2b0] sm:$0xff] %vm1566, %v2085
  %2295 = vst.msk [vmem:[%s2254 + $0x2c8] sm:$0xff] %vm1566, %v2086
  %2296 = vst.msk [vmem:[%s2254 + $0x2d0] sm:$0xff] %vm1566, %v2087
  %2297 = vst.msk [vmem:[%s2254 + $0x2e8] sm:$0xff] %vm1566, %v2088
  %2298 = vst.msk [vmem:[%s2254 + $0x2f0] sm:$0xff] %vm1566, %v2089
  %2299 = vst.msk [vmem:[%s2254 + $0x308] sm:$0xff] %vm1566, %v2090
  %2300 = vst.msk [vmem:[%s2254 + $0x310] sm:$0xff] %vm1566, %v2091
  %2301 = vst.msk [vmem:[%s2254 + $0x328] sm:$0xff] %vm1566, %v2092
  %2302 = vst.msk [vmem:[%s2254 + $0x330] sm:$0xff] %vm1566, %v2093
  %2303 = vst.msk [vmem:[%s2254 + $0x348] sm:$0xff] %vm1566, %v2094
  %2304 = vst.msk [vmem:[%s2254 + $0x350] sm:$0xff] %vm1566, %v2095
  %2305 = vst.msk [vmem:[%s2254 + $0x368] sm:$0xff] %vm1566, %v2096
  %2306 = vst.msk [vmem:[%s2254 + $0x370] sm:$0xff] %vm1566, %v2097
  %2307 = vst.msk [vmem:[%s2254 + $0x388] sm:$0xff] %vm1566, %v2098
  %2308 = vst.msk [vmem:[%s2254 + $0x390] sm:$0xff] %vm1566, %v2099
  %2309 = vst.msk [vmem:[%s2254 + $0x3a8] sm:$0xff] %vm1566, %v2100
  %2310 = vst.msk [vmem:[%s2254 + $0x3b0] sm:$0xff] %vm1566, %v2101
  %2311 = vst.msk [vmem:[%s2254 + $0x3c8] sm:$0xff] %vm1566, %v2102
  %2312 = vst.msk [vmem:[%s2254 + $0x3d0] sm:$0xff] %vm1566, %v2103
  %2313 = vst.msk [vmem:[%s2254 + $0x3e8] sm:$0xff] %vm1566, %v2104
  %2314 = vst.msk [vmem:[%s2254 + $0x3f0] sm:$0xff] %vm1566, %v2105
  %2315 = vst.msk [vmem:[%s2254 + $0x408] sm:$0xff] %vm1566, %v2106
  %2316 = vst.msk [vmem:[%s2254 + $0x410] sm:$0xff] %vm1566, %v2107
  %2317 = vst.msk [vmem:[%s2254 + $0x428] sm:$0xff] %vm1566, %v2108
  %2318 = vst.msk [vmem:[%s2254 + $0x430] sm:$0xff] %vm1566, %v2109
  %v2319 = vld [vmem:[#allocation2] sm:$0xff]
  %v2320 = vld [vmem:[#allocation2 + $0x8] sm:$0xff]
  %v2321 = vld [vmem:[#allocation2 + $0x10] sm:$0xff]
  %v2322 = vld [vmem:[#allocation2 + $0x18] sm:$0xff]
  %v2323 = vld [vmem:[#allocation2 + $0x20] sm:$0xff]
  %v2324 = vld [vmem:[#allocation2 + $0x28] sm:$0xff]
  %v2325 = vld [vmem:[#allocation2 + $0x30] sm:$0xff]
  %v2326 = vld [vmem:[#allocation2 + $0x38] sm:$0xff]
  %v2327 = vld [vmem:[#allocation2 + $0x40] sm:$0xff]
  %v2328 = vld [vmem:[#allocation2 + $0x48] sm:$0xff]
  %v2329 = vld [vmem:[#allocation2 + $0x50] sm:$0xff]
  %v2330 = vld [vmem:[#allocation2 + $0x58] sm:$0xff]
  %v2331 = vld [vmem:[#allocation2 + $0x60] sm:$0xff]
  %v2332 = vld [vmem:[#allocation2 + $0x68] sm:$0xff]
  %v2333 = vld [vmem:[#allocation2 + $0x70] sm:$0xff]
  %v2334 = vld [vmem:[#allocation2 + $0x78] sm:$0xff]
  %v2335 = vld [vmem:[#allocation2 + $0x80] sm:$0xff]
  %v2336 = vld [vmem:[#allocation2 + $0x88] sm:$0xff]
  %v2337 = vld [vmem:[#allocation2 + $0x90] sm:$0xff]
  %v2338 = vld [vmem:[#allocation2 + $0x98] sm:$0xff]
  %v2339 = vld [vmem:[#allocation2 + $0xa0] sm:$0xff]
  %v2340 = vld [vmem:[#allocation2 + $0xa8] sm:$0xff]
  %v2341 = vld [vmem:[#allocation2 + $0xb0] sm:$0xff]
  %v2342 = vld [vmem:[#allocation2 + $0xb8] sm:$0xff]
  %v2343 = vld [vmem:[#allocation2 + $0xc0] sm:$0xff]
  %v2344 = vld [vmem:[#allocation2 + $0xc8] sm:$0xff]
  %v2345 = vld [vmem:[#allocation2 + $0xd0] sm:$0xff]
  %v2346 = vld [vmem:[#allocation2 + $0xd8] sm:$0xff]
  %v2347 = vld [vmem:[#allocation2 + $0xe0] sm:$0xff]
  %v2348 = vld [vmem:[#allocation2 + $0xe8] sm:$0xff]
  %v2349 = vld [vmem:[#allocation2 + $0xf0] sm:$0xff]
  %v2350 = vld [vmem:[#allocation2 + $0xf8] sm:$0xff]
  %v2351 = vld [vmem:[#allocation2 + $0x100] sm:$0xff]
  %v2352 = vld [vmem:[#allocation2 + $0x108] sm:$0xff]
  %v2353 = vld [vmem:[#allocation2 + $0x110] sm:$0xff]
  %v2354 = vld [vmem:[#allocation2 + $0x118] sm:$0xff]
  %v2355 = vld [vmem:[#allocation2 + $0x120] sm:$0xff]
  %v2356 = vld [vmem:[#allocation2 + $0x128] sm:$0xff]
  %v2357 = vld [vmem:[#allocation2 + $0x130] sm:$0xff]
  %v2358 = vld [vmem:[#allocation2 + $0x138] sm:$0xff]
  %v2359 = vld [vmem:[#allocation2 + $0x140] sm:$0xff]
  %v2360 = vld [vmem:[#allocation2 + $0x148] sm:$0xff]
  %v2361 = vld [vmem:[#allocation2 + $0x150] sm:$0xff]
  %v2362 = vld [vmem:[#allocation2 + $0x158] sm:$0xff]
  %v2363 = vld [vmem:[#allocation2 + $0x160] sm:$0xff]
  %v2364 = vld [vmem:[#allocation2 + $0x168] sm:$0xff]
  %v2365 = vld [vmem:[#allocation2 + $0x170] sm:$0xff]
  %v2366 = vld [vmem:[#allocation2 + $0x178] sm:$0xff]
  %v2367 = vld [vmem:[#allocation2 + $0x180] sm:$0xff]
  %v2368 = vld [vmem:[#allocation2 + $0x188] sm:$0xff]
  %v2369 = vld [vmem:[#allocation2 + $0x190] sm:$0xff]
  %v2370 = vld [vmem:[#allocation2 + $0x198] sm:$0xff]
  %v2371 = vld [vmem:[#allocation2 + $0x1a0] sm:$0xff]
  %v2372 = vld [vmem:[#allocation2 + $0x1a8] sm:$0xff]
  %v2373 = vld [vmem:[#allocation2 + $0x1b0] sm:$0xff]
  %v2374 = vld [vmem:[#allocation2 + $0x1b8] sm:$0xff]
  %v2375 = vld [vmem:[#allocation2 + $0x1c0] sm:$0xff]
  %v2376 = vld [vmem:[#allocation2 + $0x1c8] sm:$0xff]
  %v2377 = vld [vmem:[#allocation2 + $0x1d0] sm:$0xff]
  %v2378 = vld [vmem:[#allocation2 + $0x1d8] sm:$0xff]
  %v2379 = vld [vmem:[#allocation2 + $0x1e0] sm:$0xff]
  %v2380 = vld [vmem:[#allocation2 + $0x1e8] sm:$0xff]
  %v2381 = vld [vmem:[#allocation2 + $0x1f0] sm:$0xff]
  %v2382 = vld [vmem:[#allocation2 + $0x1f8] sm:$0xff]
  %v2383 = vld [vmem:[#allocation2 + $0x200] sm:$0xff]
  %v2384 = vld [vmem:[#allocation2 + $0x208] sm:$0xff]
  %v2385 = vld [vmem:[#allocation2 + $0x210] sm:$0xff]
  %v2386 = vld [vmem:[#allocation2 + $0x218] sm:$0xff]
  %v2387 = vld [vmem:[#allocation2 + $0x220] sm:$0xff]
  %v2388 = vld [vmem:[#allocation2 + $0x228] sm:$0xff]
  %v2389 = vld [vmem:[#allocation2 + $0x230] sm:$0xff]
  %v2390 = vld [vmem:[#allocation2 + $0x238] sm:$0xff]
  %v2391 = vld [vmem:[#allocation2 + $0x240] sm:$0xff]
  %v2392 = vld [vmem:[#allocation2 + $0x248] sm:$0xff]
  %v2393 = vld [vmem:[#allocation2 + $0x250] sm:$0xff]
  %v2394 = vld [vmem:[#allocation2 + $0x258] sm:$0xff]
  %v2395 = vld [vmem:[#allocation2 + $0x260] sm:$0xff]
  %v2396 = vld [vmem:[#allocation2 + $0x268] sm:$0xff]
  %v2397 = vld [vmem:[#allocation2 + $0x270] sm:$0xff]
  %v2398 = vld [vmem:[#allocation2 + $0x278] sm:$0xff]
  %v2399 = vld [vmem:[#allocation2 + $0x280] sm:$0xff]
  %v2400 = vld [vmem:[#allocation2 + $0x288] sm:$0xff]
  %v2401 = vld [vmem:[#allocation2 + $0x290] sm:$0xff]
  %v2402 = vld [vmem:[#allocation2 + $0x298] sm:$0xff]
  %v2403 = vld [vmem:[#allocation2 + $0x2a0] sm:$0xff]
  %v2404 = vld [vmem:[#allocation2 + $0x2a8] sm:$0xff]
  %v2405 = vld [vmem:[#allocation2 + $0x2b0] sm:$0xff]
  %v2406 = vld [vmem:[#allocation2 + $0x2b8] sm:$0xff]
  %v2407 = vld [vmem:[#allocation2 + $0x2c0] sm:$0xff]
  %v2408 = vld [vmem:[#allocation2 + $0x2c8] sm:$0xff]
  %v2409 = vld [vmem:[#allocation2 + $0x2d0] sm:$0xff]
  %v2410 = vld [vmem:[#allocation2 + $0x2d8] sm:$0xff]
  %v2411 = vld [vmem:[#allocation2 + $0x2e0] sm:$0xff]
  %v2412 = vld [vmem:[#allocation2 + $0x2e8] sm:$0xff]
  %v2413 = vld [vmem:[#allocation2 + $0x2f0] sm:$0xff]
  %v2414 = vld [vmem:[#allocation2 + $0x2f8] sm:$0xff]
  %v2415 = vld [vmem:[#allocation2 + $0x300] sm:$0xff]
  %v2416 = vld [vmem:[#allocation2 + $0x308] sm:$0xff]
  %v2417 = vld [vmem:[#allocation2 + $0x310] sm:$0xff]
  %v2418 = vld [vmem:[#allocation2 + $0x318] sm:$0xff]
  %v2419 = vld [vmem:[#allocation2 + $0x320] sm:$0xff]
  %v2420 = vld [vmem:[#allocation2 + $0x328] sm:$0xff]
  %v2421 = vld [vmem:[#allocation2 + $0x330] sm:$0xff]
  %v2422 = vld [vmem:[#allocation2 + $0x338] sm:$0xff]
  %v2423 = vld [vmem:[#allocation2 + $0x340] sm:$0xff]
  %v2424 = vld [vmem:[#allocation2 + $0x348] sm:$0xff]
  %v2425 = vld [vmem:[#allocation2 + $0x350] sm:$0xff]
  %v2426 = vld [vmem:[#allocation2 + $0x358] sm:$0xff]
  %v2427 = vld [vmem:[#allocation2 + $0x360] sm:$0xff]
  %v2428 = vld [vmem:[#allocation2 + $0x368] sm:$0xff]
  %v2429 = vld [vmem:[#allocation2 + $0x370] sm:$0xff]
  %v2430 = vld [vmem:[#allocation2 + $0x378] sm:$0xff]
  %v2431 = vld [vmem:[#allocation2 + $0x380] sm:$0xff]
  %v2432 = vld [vmem:[#allocation2 + $0x388] sm:$0xff]
  %v2433 = vld [vmem:[#allocation2 + $0x390] sm:$0xff]
  %v2434 = vld [vmem:[#allocation2 + $0x398] sm:$0xff]
  %v2435 = vld [vmem:[#allocation2 + $0x3a0] sm:$0xff]
  %v2436 = vld [vmem:[#allocation2 + $0x3a8] sm:$0xff]
  %v2437 = vld [vmem:[#allocation2 + $0x3b0] sm:$0xff]
  %v2438 = vld [vmem:[#allocation2 + $0x3b8] sm:$0xff]
  %v2439 = vld [vmem:[#allocation2 + $0x3c0] sm:$0xff]
  %v2440 = vld [vmem:[#allocation2 + $0x3c8] sm:$0xff]
  %v2441 = vld [vmem:[#allocation2 + $0x3d0] sm:$0xff]
  %v2442 = vld [vmem:[#allocation2 + $0x3d8] sm:$0xff]
  %v2443 = vld [vmem:[#allocation2 + $0x3e0] sm:$0xff]
  %v2444 = vld [vmem:[#allocation2 + $0x3e8] sm:$0xff]
  %v2445 = vld [vmem:[#allocation2 + $0x3f0] sm:$0xff]
  %v2446 = vld [vmem:[#allocation2 + $0x3f8] sm:$0xff]
  %v2447 = vld [vmem:[#allocation2 + $0x400] sm:$0xff]
  %v2448 = vld [vmem:[#allocation2 + $0x408] sm:$0xff]
  %v2449 = vld [vmem:[#allocation2 + $0x410] sm:$0xff]
  %v2450 = vld [vmem:[#allocation2 + $0x418] sm:$0xff]
  %v2451 = vld [vmem:[#allocation2 + $0x420] sm:$0xff]
  %v2452 = vld [vmem:[#allocation2 + $0x428] sm:$0xff]
  %v2453 = vld [vmem:[#allocation2 + $0x430] sm:$0xff]
  %v2454 = vld [vmem:[#allocation2 + $0x438] sm:$0xff]
  %v2455 = vld [vmem:[#allocation2 + $0x440] sm:$0xff]
  %v2456 = vld [vmem:[#allocation2 + $0x448] sm:$0xff]
  %v2457 = vld [vmem:[#allocation2 + $0x450] sm:$0xff]
  %v2458 = vld [vmem:[#allocation2 + $0x458] sm:$0xff]
  %v2459 = vld [vmem:[#allocation2 + $0x460] sm:$0xff]
  %v2460 = vld [vmem:[#allocation2 + $0x468] sm:$0xff]
  %v2461 = vld [vmem:[#allocation2 + $0x470] sm:$0xff]
  %v2462 = vld [vmem:[#allocation2 + $0x478] sm:$0xff]
  %v2463 = vld [vmem:[%s4] sm:$0x1]
  %v2464 = vlaneseq
  %v2465 = vshrl.u32 %v2464, 7
  %v2466 = vsub.s32 0, %v2465
  %v2467 = vrot.slane %v2463, %v2466
  %v2468 = vmul.f32 %v2319, %v2467
  %v2469 = vmul.f32 %v2320, %v2467
  %v2470 = vmul.f32 %v2321, %v2467
  %v2471 = vmul.f32 %v2323, %v2467
  %v2472 = vmul.f32 %v2324, %v2467
  %v2473 = vmul.f32 %v2325, %v2467
  %v2474 = vmul.f32 %v2327, %v2467
  %v2475 = vmul.f32 %v2328, %v2467
  %v2476 = vmul.f32 %v2329, %v2467
  %v2477 = vmul.f32 %v2331, %v2467
  %v2478 = vmul.f32 %v2332, %v2467
  %v2479 = vmul.f32 %v2333, %v2467
  %v2480 = vmul.f32 %v2335, %v2467
  %v2481 = vmul.f32 %v2336, %v2467
  %v2482 = vmul.f32 %v2337, %v2467
  %v2483 = vmul.f32 %v2339, %v2467
  %v2484 = vmul.f32 %v2340, %v2467
  %v2485 = vmul.f32 %v2341, %v2467
  %v2486 = vmul.f32 %v2343, %v2467
  %v2487 = vmul.f32 %v2344, %v2467
  %v2488 = vmul.f32 %v2345, %v2467
  %v2489 = vmul.f32 %v2347, %v2467
  %v2490 = vmul.f32 %v2348, %v2467
  %v2491 = vmul.f32 %v2349, %v2467
  %v2492 = vmul.f32 %v2351, %v2467
  %v2493 = vmul.f32 %v2352, %v2467
  %v2494 = vmul.f32 %v2353, %v2467
  %v2495 = vmul.f32 %v2355, %v2467
  %v2496 = vmul.f32 %v2356, %v2467
  %v2497 = vmul.f32 %v2357, %v2467
  %v2498 = vmul.f32 %v2359, %v2467
  %v2499 = vmul.f32 %v2360, %v2467
  %v2500 = vmul.f32 %v2361, %v2467
  %v2501 = vmul.f32 %v2363, %v2467
  %v2502 = vmul.f32 %v2364, %v2467
  %v2503 = vmul.f32 %v2365, %v2467
  %v2504 = vmul.f32 %v2367, %v2467
  %v2505 = vmul.f32 %v2368, %v2467
  %v2506 = vmul.f32 %v2369, %v2467
  %v2507 = vmul.f32 %v2371, %v2467
  %v2508 = vmul.f32 %v2372, %v2467
  %v2509 = vmul.f32 %v2373, %v2467
  %v2510 = vmul.f32 %v2375, %v2467
  %v2511 = vmul.f32 %v2376, %v2467
  %v2512 = vmul.f32 %v2377, %v2467
  %v2513 = vmul.f32 %v2379, %v2467
  %v2514 = vmul.f32 %v2380, %v2467
  %v2515 = vmul.f32 %v2381, %v2467
  %v2516 = vmul.f32 %v2391, %v2467
  %v2517 = vmul.f32 %v2392, %v2467
  %v2518 = vmul.f32 %v2393, %v2467
  %v2519 = vmul.f32 %v2395, %v2467
  %v2520 = vmul.f32 %v2396, %v2467
  %v2521 = vmul.f32 %v2397, %v2467
  %v2522 = vmul.f32 %v2399, %v2467
  %v2523 = vmul.f32 %v2400, %v2467
  %v2524 = vmul.f32 %v2401, %v2467
  %v2525 = vmul.f32 %v2403, %v2467
  %v2526 = vmul.f32 %v2404, %v2467
  %v2527 = vmul.f32 %v2405, %v2467
  %v2528 = vmul.f32 %v2407, %v2467
  %v2529 = vmul.f32 %v2408, %v2467
  %v2530 = vmul.f32 %v2409, %v2467
  %v2531 = vmul.f32 %v2411, %v2467
  %v2532 = vmul.f32 %v2412, %v2467
  %v2533 = vmul.f32 %v2413, %v2467
  %v2534 = vmul.f32 %v2415, %v2467
  %v2535 = vmul.f32 %v2416, %v2467
  %v2536 = vmul.f32 %v2417, %v2467
  %v2537 = vmul.f32 %v2419, %v2467
  %v2538 = vmul.f32 %v2420, %v2467
  %v2539 = vmul.f32 %v2421, %v2467
  %v2540 = vmul.f32 %v2423, %v2467
  %v2541 = vmul.f32 %v2424, %v2467
  %v2542 = vmul.f32 %v2425, %v2467
  %v2543 = vmul.f32 %v2427, %v2467
  %v2544 = vmul.f32 %v2428, %v2467
  %v2545 = vmul.f32 %v2429, %v2467
  %v2546 = vmul.f32 %v2431, %v2467
  %v2547 = vmul.f32 %v2432, %v2467
  %v2548 = vmul.f32 %v2433, %v2467
  %v2549 = vmul.f32 %v2435, %v2467
  %v2550 = vmul.f32 %v2436, %v2467
  %v2551 = vmul.f32 %v2437, %v2467
  %v2552 = vmul.f32 %v2439, %v2467
  %v2553 = vmul.f32 %v2440, %v2467
  %v2554 = vmul.f32 %v2441, %v2467
  %v2555 = vmul.f32 %v2443, %v2467
  %v2556 = vmul.f32 %v2444, %v2467
  %v2557 = vmul.f32 %v2445, %v2467
  %v2558 = vmul.f32 %v2447, %v2467
  %v2559 = vmul.f32 %v2448, %v2467
  %v2560 = vmul.f32 %v2449, %v2467
  %v2561 = vmul.f32 %v2451, %v2467
  %v2562 = vmul.f32 %v2452, %v2467
  %v2563 = vmul.f32 %v2453, %v2467
  %v2564 = vadd.f32 %v2468, 0.0
  %v2565 = vadd.f32 %v2469, 0.0
  %v2566 = vadd.f32 %v2470, 0.0
  %v2567 = vadd.f32 %v2471, 0.0
  %v2568 = vadd.f32 %v2472, 0.0
  %v2569 = vadd.f32 %v2473, 0.0
  %v2570 = vadd.f32 %v2474, 0.0
  %v2571 = vadd.f32 %v2475, 0.0
  %v2572 = vadd.f32 %v2476, 0.0
  %v2573 = vadd.f32 %v2477, 0.0
  %v2574 = vadd.f32 %v2478, 0.0
  %v2575 = vadd.f32 %v2479, 0.0
  %v2576 = vadd.f32 %v2480, 0.0
  %v2577 = vadd.f32 %v2481, 0.0
  %v2578 = vadd.f32 %v2482, 0.0
  %v2579 = vadd.f32 %v2483, 0.0
  %v2580 = vadd.f32 %v2484, 0.0
  %v2581 = vadd.f32 %v2485, 0.0
  %v2582 = vadd.f32 %v2486, 0.0
  %v2583 = vadd.f32 %v2487, 0.0
  %v2584 = vadd.f32 %v2488, 0.0
  %v2585 = vadd.f32 %v2489, 0.0
  %v2586 = vadd.f32 %v2490, 0.0
  %v2587 = vadd.f32 %v2491, 0.0
  %v2588 = vadd.f32 %v2492, 0.0
  %v2589 = vadd.f32 %v2493, 0.0
  %v2590 = vadd.f32 %v2494, 0.0
  %v2591 = vadd.f32 %v2495, 0.0
  %v2592 = vadd.f32 %v2496, 0.0
  %v2593 = vadd.f32 %v2497, 0.0
  %v2594 = vadd.f32 %v2498, 0.0
  %v2595 = vadd.f32 %v2499, 0.0
  %v2596 = vadd.f32 %v2500, 0.0
  %v2597 = vadd.f32 %v2501, 0.0
  %v2598 = vadd.f32 %v2502, 0.0
  %v2599 = vadd.f32 %v2503, 0.0
  %v2600 = vadd.f32 %v2504, 0.0
  %v2601 = vadd.f32 %v2505, 0.0
  %v2602 = vadd.f32 %v2506, 0.0
  %v2603 = vadd.f32 %v2507, 0.0
  %v2604 = vadd.f32 %v2508, 0.0
  %v2605 = vadd.f32 %v2509, 0.0
  %v2606 = vadd.f32 %v2510, 0.0
  %v2607 = vadd.f32 %v2511, 0.0
  %v2608 = vadd.f32 %v2512, 0.0
  %v2609 = vadd.f32 %v2513, 0.0
  %v2610 = vadd.f32 %v2514, 0.0
  %v2611 = vadd.f32 %v2515, 0.0
  %v2612 = vadd.f32 %v2516, 0.0
  %v2613 = vadd.f32 %v2517, 0.0
  %v2614 = vadd.f32 %v2518, 0.0
  %v2615 = vadd.f32 %v2519, 0.0
  %v2616 = vadd.f32 %v2520, 0.0
  %v2617 = vadd.f32 %v2521, 0.0
  %v2618 = vadd.f32 %v2522, 0.0
  %v2619 = vadd.f32 %v2523, 0.0
  %v2620 = vadd.f32 %v2524, 0.0
  %v2621 = vadd.f32 %v2525, 0.0
  %v2622 = vadd.f32 %v2526, 0.0
  %v2623 = vadd.f32 %v2527, 0.0
  %v2624 = vadd.f32 %v2528, 0.0
  %v2625 = vadd.f32 %v2529, 0.0
  %v2626 = vadd.f32 %v2530, 0.0
  %v2627 = vadd.f32 %v2531, 0.0
  %v2628 = vadd.f32 %v2532, 0.0
  %v2629 = vadd.f32 %v2533, 0.0
  %v2630 = vadd.f32 %v2534, 0.0
  %v2631 = vadd.f32 %v2535, 0.0
  %v2632 = vadd.f32 %v2536, 0.0
  %v2633 = vadd.f32 %v2537, 0.0
  %v2634 = vadd.f32 %v2538, 0.0
  %v2635 = vadd.f32 %v2539, 0.0
  %v2636 = vadd.f32 %v2540, 0.0
  %v2637 = vadd.f32 %v2541, 0.0
  %v2638 = vadd.f32 %v2542, 0.0
  %v2639 = vadd.f32 %v2543, 0.0
  %v2640 = vadd.f32 %v2544, 0.0
  %v2641 = vadd.f32 %v2545, 0.0
  %v2642 = vadd.f32 %v2546, 0.0
  %v2643 = vadd.f32 %v2547, 0.0
  %v2644 = vadd.f32 %v2548, 0.0
  %v2645 = vadd.f32 %v2549, 0.0
  %v2646 = vadd.f32 %v2550, 0.0
  %v2647 = vadd.f32 %v2551, 0.0
  %v2648 = vadd.f32 %v2552, 0.0
  %v2649 = vadd.f32 %v2553, 0.0
  %v2650 = vadd.f32 %v2554, 0.0
  %v2651 = vadd.f32 %v2555, 0.0
  %v2652 = vadd.f32 %v2556, 0.0
  %v2653 = vadd.f32 %v2557, 0.0
  %v2654 = vadd.f32 %v2558, 0.0
  %v2655 = vadd.f32 %v2559, 0.0
  %v2656 = vadd.f32 %v2560, 0.0
  %v2657 = vadd.f32 %v2561, 0.0
  %v2658 = vadd.f32 %v2562, 0.0
  %v2659 = vadd.f32 %v2563, 0.0
  %v2660 = vld [vmem:[%s4 + $0x1] sm:$0x1]
  %v2661 = vlaneseq
  %v2662 = vshrl.u32 %v2661, 7
  %v2663 = vsub.s32 0, %v2662
  %v2664 = vrot.slane %v2660, %v2663
  %v2665 = vmul.f32 %v2320, %v2664
  %v2666 = vmul.f32 %v2321, %v2664
  %v2667 = vmul.f32 %v2324, %v2664
  %v2668 = vmul.f32 %v2325, %v2664
  %v2669 = vmul.f32 %v2328, %v2664
  %v2670 = vmul.f32 %v2329, %v2664
  %v2671 = vmul.f32 %v2332, %v2664
  %v2672 = vmul.f32 %v2333, %v2664
  %v2673 = vmul.f32 %v2336, %v2664
  %v2674 = vmul.f32 %v2337, %v2664
  %v2675 = vmul.f32 %v2340, %v2664
  %v2676 = vmul.f32 %v2341, %v2664
  %v2677 = vmul.f32 %v2344, %v2664
  %v2678 = vmul.f32 %v2345, %v2664
  %v2679 = vmul.f32 %v2348, %v2664
  %v2680 = vmul.f32 %v2349, %v2664
  %v2681 = vmul.f32 %v2352, %v2664
  %v2682 = vmul.f32 %v2353, %v2664
  %v2683 = vmul.f32 %v2356, %v2664
  %v2684 = vmul.f32 %v2357, %v2664
  %v2685 = vmul.f32 %v2360, %v2664
  %v2686 = vmul.f32 %v2361, %v2664
  %v2687 = vmul.f32 %v2364, %v2664
  %v2688 = vmul.f32 %v2365, %v2664
  %v2689 = vmul.f32 %v2368, %v2664
  %v2690 = vmul.f32 %v2369, %v2664
  %v2691 = vmul.f32 %v2372, %v2664
  %v2692 = vmul.f32 %v2373, %v2664
  %v2693 = vmul.f32 %v2376, %v2664
  %v2694 = vmul.f32 %v2377, %v2664
  %v2695 = vmul.f32 %v2380, %v2664
  %v2696 = vmul.f32 %v2381, %v2664
  %v2697 = vmul.f32 %v2392, %v2664
  %v2698 = vmul.f32 %v2393, %v2664
  %v2699 = vmul.f32 %v2396, %v2664
  %v2700 = vmul.f32 %v2397, %v2664
  %v2701 = vmul.f32 %v2400, %v2664
  %v2702 = vmul.f32 %v2401, %v2664
  %v2703 = vmul.f32 %v2404, %v2664
  %v2704 = vmul.f32 %v2405, %v2664
  %v2705 = vmul.f32 %v2408, %v2664
  %v2706 = vmul.f32 %v2409, %v2664
  %v2707 = vmul.f32 %v2412, %v2664
  %v2708 = vmul.f32 %v2413, %v2664
  %v2709 = vmul.f32 %v2416, %v2664
  %v2710 = vmul.f32 %v2417, %v2664
  %v2711 = vmul.f32 %v2420, %v2664
  %v2712 = vmul.f32 %v2421, %v2664
  %v2713 = vmul.f32 %v2424, %v2664
  %v2714 = vmul.f32 %v2425, %v2664
  %v2715 = vmul.f32 %v2428, %v2664
  %v2716 = vmul.f32 %v2429, %v2664
  %v2717 = vmul.f32 %v2432, %v2664
  %v2718 = vmul.f32 %v2433, %v2664
  %v2719 = vmul.f32 %v2436, %v2664
  %v2720 = vmul.f32 %v2437, %v2664
  %v2721 = vmul.f32 %v2440, %v2664
  %v2722 = vmul.f32 %v2441, %v2664
  %v2723 = vmul.f32 %v2444, %v2664
  %v2724 = vmul.f32 %v2445, %v2664
  %v2725 = vmul.f32 %v2448, %v2664
  %v2726 = vmul.f32 %v2449, %v2664
  %v2727 = vmul.f32 %v2452, %v2664
  %v2728 = vmul.f32 %v2453, %v2664
  %vm2793 = vcmask 1046528
  %v2794 = vrot.slane %v2665, 1
  %v2795 = vrot.slane %v2666, 1
  %v2796 = vsel %vm2793, %v2794, %v2795
  %v2797 = vrot.slane %v2667, 1
  %v2798 = vrot.slane %v2668, 1
  %v2799 = vsel %vm2793, %v2797, %v2798
  %v2800 = vrot.slane %v2669, 1
  %v2801 = vrot.slane %v2670, 1
  %v2802 = vsel %vm2793, %v2800, %v2801
  %v2803 = vrot.slane %v2671, 1
  %v2804 = vrot.slane %v2672, 1
  %v2805 = vsel %vm2793, %v2803, %v2804
  %v2806 = vrot.slane %v2673, 1
  %v2807 = vrot.slane %v2674, 1
  %v2808 = vsel %vm2793, %v2806, %v2807
  %v2809 = vrot.slane %v2675, 1
  %v2810 = vrot.slane %v2676, 1
  %v2811 = vsel %vm2793, %v2809, %v2810
  %v2812 = vrot.slane %v2677, 1
  %v2813 = vrot.slane %v2678, 1
  %v2814 = vsel %vm2793, %v2812, %v2813
  %v2815 = vrot.slane %v2679, 1
  %v2816 = vrot.slane %v2680, 1
  %v2817 = vsel %vm2793, %v2815, %v2816
  %v2818 = vrot.slane %v2681, 1
  %v2819 = vrot.slane %v2682, 1
  %v2820 = vsel %vm2793, %v2818, %v2819
  %v2821 = vrot.slane %v2683, 1
  %v2822 = vrot.slane %v2684, 1
  %v2823 = vsel %vm2793, %v2821, %v2822
  %v2824 = vrot.slane %v2685, 1
  %v2825 = vrot.slane %v2686, 1
  %v2826 = vsel %vm2793, %v2824, %v2825
  %v2827 = vrot.slane %v2687, 1
  %v2828 = vrot.slane %v2688, 1
  %v2829 = vsel %vm2793, %v2827, %v2828
  %v2830 = vrot.slane %v2689, 1
  %v2831 = vrot.slane %v2690, 1
  %v2832 = vsel %vm2793, %v2830, %v2831
  %v2833 = vrot.slane %v2691, 1
  %v2834 = vrot.slane %v2692, 1
  %v2835 = vsel %vm2793, %v2833, %v2834
  %v2836 = vrot.slane %v2693, 1
  %v2837 = vrot.slane %v2694, 1
  %v2838 = vsel %vm2793, %v2836, %v2837
  %v2839 = vrot.slane %v2695, 1
  %v2840 = vrot.slane %v2696, 1
  %v2841 = vsel %vm2793, %v2839, %v2840
  %v2842 = vrot.slane %v2697, 1
  %v2843 = vrot.slane %v2698, 1
  %v2844 = vsel %vm2793, %v2842, %v2843
  %v2845 = vrot.slane %v2699, 1
  %v2846 = vrot.slane %v2700, 1
  %v2847 = vsel %vm2793, %v2845, %v2846
  %v2848 = vrot.slane %v2701, 1
  %v2849 = vrot.slane %v2702, 1
  %v2850 = vsel %vm2793, %v2848, %v2849
  %v2851 = vrot.slane %v2703, 1
  %v2852 = vrot.slane %v2704, 1
  %v2853 = vsel %vm2793, %v2851, %v2852
  %v2854 = vrot.slane %v2705, 1
  %v2855 = vrot.slane %v2706, 1
  %v2856 = vsel %vm2793, %v2854, %v2855
  %v2857 = vrot.slane %v2707, 1
  %v2858 = vrot.slane %v2708, 1
  %v2859 = vsel %vm2793, %v2857, %v2858
  %v2860 = vrot.slane %v2709, 1
  %v2861 = vrot.slane %v2710, 1
  %v2862 = vsel %vm2793, %v2860, %v2861
  %v2863 = vrot.slane %v2711, 1
  %v2864 = vrot.slane %v2712, 1
  %v2865 = vsel %vm2793, %v2863, %v2864
  %v2866 = vrot.slane %v2713, 1
  %v2867 = vrot.slane %v2714, 1
  %v2868 = vsel %vm2793, %v2866, %v2867
  %v2869 = vrot.slane %v2715, 1
  %v2870 = vrot.slane %v2716, 1
  %v2871 = vsel %vm2793, %v2869, %v2870
  %v2872 = vrot.slane %v2717, 1
  %v2873 = vrot.slane %v2718, 1
  %v2874 = vsel %vm2793, %v2872, %v2873
  %v2875 = vrot.slane %v2719, 1
  %v2876 = vrot.slane %v2720, 1
  %v2877 = vsel %vm2793, %v2875, %v2876
  %v2878 = vrot.slane %v2721, 1
  %v2879 = vrot.slane %v2722, 1
  %v2880 = vsel %vm2793, %v2878, %v2879
  %v2881 = vrot.slane %v2723, 1
  %v2882 = vrot.slane %v2724, 1
  %v2883 = vsel %vm2793, %v2881, %v2882
  %v2884 = vrot.slane %v2725, 1
  %v2885 = vrot.slane %v2726, 1
  %v2886 = vsel %vm2793, %v2884, %v2885
  %v2887 = vrot.slane %v2727, 1
  %v2888 = vrot.slane %v2728, 1
  %v2889 = vsel %vm2793, %v2887, %v2888
  %v2986 = vadd.f32 %v2564, %v2794
  %v2987 = vadd.f32 %v2565, %v2796
  %v2988 = vadd.f32 %v2566, %v2795
  %v2989 = vadd.f32 %v2567, %v2797
  %v2990 = vadd.f32 %v2568, %v2799
  %v2991 = vadd.f32 %v2569, %v2798
  %v2992 = vadd.f32 %v2570, %v2800
  %v2993 = vadd.f32 %v2571, %v2802
  %v2994 = vadd.f32 %v2572, %v2801
  %v2995 = vadd.f32 %v2573, %v2803
  %v2996 = vadd.f32 %v2574, %v2805
  %v2997 = vadd.f32 %v2575, %v2804
  %v2998 = vadd.f32 %v2576, %v2806
  %v2999 = vadd.f32 %v2577, %v2808
  %v3000 = vadd.f32 %v2578, %v2807
  %v3001 = vadd.f32 %v2579, %v2809
  %v3002 = vadd.f32 %v2580, %v2811
  %v3003 = vadd.f32 %v2581, %v2810
  %v3004 = vadd.f32 %v2582, %v2812
  %v3005 = vadd.f32 %v2583, %v2814
  %v3006 = vadd.f32 %v2584, %v2813
  %v3007 = vadd.f32 %v2585, %v2815
  %v3008 = vadd.f32 %v2586, %v2817
  %v3009 = vadd.f32 %v2587, %v2816
  %v3010 = vadd.f32 %v2588, %v2818
  %v3011 = vadd.f32 %v2589, %v2820
  %v3012 = vadd.f32 %v2590, %v2819
  %v3013 = vadd.f32 %v2591, %v2821
  %v3014 = vadd.f32 %v2592, %v2823
  %v3015 = vadd.f32 %v2593, %v2822
  %v3016 = vadd.f32 %v2594, %v2824
  %v3017 = vadd.f32 %v2595, %v2826
  %v3018 = vadd.f32 %v2596, %v2825
  %v3019 = vadd.f32 %v2597, %v2827
  %v3020 = vadd.f32 %v2598, %v2829
  %v3021 = vadd.f32 %v2599, %v2828
  %v3022 = vadd.f32 %v2600, %v2830
  %v3023 = vadd.f32 %v2601, %v2832
  %v3024 = vadd.f32 %v2602, %v2831
  %v3025 = vadd.f32 %v2603, %v2833
  %v3026 = vadd.f32 %v2604, %v2835
  %v3027 = vadd.f32 %v2605, %v2834
  %v3028 = vadd.f32 %v2606, %v2836
  %v3029 = vadd.f32 %v2607, %v2838
  %v3030 = vadd.f32 %v2608, %v2837
  %v3031 = vadd.f32 %v2609, %v2839
  %v3032 = vadd.f32 %v2610, %v2841
  %v3033 = vadd.f32 %v2611, %v2840
  %v3034 = vadd.f32 %v2612, %v2842
  %v3035 = vadd.f32 %v2613, %v2844
  %v3036 = vadd.f32 %v2614, %v2843
  %v3037 = vadd.f32 %v2615, %v2845
  %v3038 = vadd.f32 %v2616, %v2847
  %v3039 = vadd.f32 %v2617, %v2846
  %v3040 = vadd.f32 %v2618, %v2848
  %v3041 = vadd.f32 %v2619, %v2850
  %v3042 = vadd.f32 %v2620, %v2849
  %v3043 = vadd.f32 %v2621, %v2851
  %v3044 = vadd.f32 %v2622, %v2853
  %v3045 = vadd.f32 %v2623, %v2852
  %v3046 = vadd.f32 %v2624, %v2854
  %v3047 = vadd.f32 %v2625, %v2856
  %v3048 = vadd.f32 %v2626, %v2855
  %v3049 = vadd.f32 %v2627, %v2857
  %v3050 = vadd.f32 %v2628, %v2859
  %v3051 = vadd.f32 %v2629, %v2858
  %v3052 = vadd.f32 %v2630, %v2860
  %v3053 = vadd.f32 %v2631, %v2862
  %v3054 = vadd.f32 %v2632, %v2861
  %v3055 = vadd.f32 %v2633, %v2863
  %v3056 = vadd.f32 %v2634, %v2865
  %v3057 = vadd.f32 %v2635, %v2864
  %v3058 = vadd.f32 %v2636, %v2866
  %v3059 = vadd.f32 %v2637, %v2868
  %v3060 = vadd.f32 %v2638, %v2867
  %v3061 = vadd.f32 %v2639, %v2869
  %v3062 = vadd.f32 %v2640, %v2871
  %v3063 = vadd.f32 %v2641, %v2870
  %v3064 = vadd.f32 %v2642, %v2872
  %v3065 = vadd.f32 %v2643, %v2874
  %v3066 = vadd.f32 %v2644, %v2873
  %v3067 = vadd.f32 %v2645, %v2875
  %v3068 = vadd.f32 %v2646, %v2877
  %v3069 = vadd.f32 %v2647, %v2876
  %v3070 = vadd.f32 %v2648, %v2878
  %v3071 = vadd.f32 %v2649, %v2880
  %v3072 = vadd.f32 %v2650, %v2879
  %v3073 = vadd.f32 %v2651, %v2881
  %v3074 = vadd.f32 %v2652, %v2883
  %v3075 = vadd.f32 %v2653, %v2882
  %v3076 = vadd.f32 %v2654, %v2884
  %v3077 = vadd.f32 %v2655, %v2886
  %v3078 = vadd.f32 %v2656, %v2885
  %v3079 = vadd.f32 %v2657, %v2887
  %v3080 = vadd.f32 %v2658, %v2889
  %v3081 = vadd.f32 %v2659, %v2888
  %v3082 = vld [vmem:[%s4 + $0x2] sm:$0x1]
  %v3083 = vlaneseq
  %v3084 = vshrl.u32 %v3083, 7
  %v3085 = vsub.s32 0, %v3084
  %v3086 = vrot.slane %v3082, %v3085
  %v3087 = vmul.f32 %v2320, %v3086
  %v3088 = vmul.f32 %v2321, %v3086
  %v3089 = vmul.f32 %v2322, %v3086
  %v3090 = vmul.f32 %v2324, %v3086
  %v3091 = vmul.f32 %v2325, %v3086
  %v3092 = vmul.f32 %v2326, %v3086
  %v3093 = vmul.f32 %v2328, %v3086
  %v3094 = vmul.f32 %v2329, %v3086
  %v3095 = vmul.f32 %v2330, %v3086
  %v3096 = vmul.f32 %v2332, %v3086
  %v3097 = vmul.f32 %v2333, %v3086
  %v3098 = vmul.f32 %v2334, %v3086
  %v3099 = vmul.f32 %v2336, %v3086
  %v3100 = vmul.f32 %v2337, %v3086
  %v3101 = vmul.f32 %v2338, %v3086
  %v3102 = vmul.f32 %v2340, %v3086
  %v3103 = vmul.f32 %v2341, %v3086
  %v3104 = vmul.f32 %v2342, %v3086
  %v3105 = vmul.f32 %v2344, %v3086
  %v3106 = vmul.f32 %v2345, %v3086
  %v3107 = vmul.f32 %v2346, %v3086
  %v3108 = vmul.f32 %v2348, %v3086
  %v3109 = vmul.f32 %v2349, %v3086
  %v3110 = vmul.f32 %v2350, %v3086
  %v3111 = vmul.f32 %v2352, %v3086
  %v3112 = vmul.f32 %v2353, %v3086
  %v3113 = vmul.f32 %v2354, %v3086
  %v3114 = vmul.f32 %v2356, %v3086
  %v3115 = vmul.f32 %v2357, %v3086
  %v3116 = vmul.f32 %v2358, %v3086
  %v3117 = vmul.f32 %v2360, %v3086
  %v3118 = vmul.f32 %v2361, %v3086
  %v3119 = vmul.f32 %v2362, %v3086
  %v3120 = vmul.f32 %v2364, %v3086
  %v3121 = vmul.f32 %v2365, %v3086
  %v3122 = vmul.f32 %v2366, %v3086
  %v3123 = vmul.f32 %v2368, %v3086
  %v3124 = vmul.f32 %v2369, %v3086
  %v3125 = vmul.f32 %v2370, %v3086
  %v3126 = vmul.f32 %v2372, %v3086
  %v3127 = vmul.f32 %v2373, %v3086
  %v3128 = vmul.f32 %v2374, %v3086
  %v3129 = vmul.f32 %v2376, %v3086
  %v3130 = vmul.f32 %v2377, %v3086
  %v3131 = vmul.f32 %v2378, %v3086
  %v3132 = vmul.f32 %v2380, %v3086
  %v3133 = vmul.f32 %v2381, %v3086
  %v3134 = vmul.f32 %v2382, %v3086
  %v3135 = vmul.f32 %v2392, %v3086
  %v3136 = vmul.f32 %v2393, %v3086
  %v3137 = vmul.f32 %v2394, %v3086
  %v3138 = vmul.f32 %v2396, %v3086
  %v3139 = vmul.f32 %v2397, %v3086
  %v3140 = vmul.f32 %v2398, %v3086
  %v3141 = vmul.f32 %v2400, %v3086
  %v3142 = vmul.f32 %v2401, %v3086
  %v3143 = vmul.f32 %v2402, %v3086
  %v3144 = vmul.f32 %v2404, %v3086
  %v3145 = vmul.f32 %v2405, %v3086
  %v3146 = vmul.f32 %v2406, %v3086
  %v3147 = vmul.f32 %v2408, %v3086
  %v3148 = vmul.f32 %v2409, %v3086
  %v3149 = vmul.f32 %v2410, %v3086
  %v3150 = vmul.f32 %v2412, %v3086
  %v3151 = vmul.f32 %v2413, %v3086
  %v3152 = vmul.f32 %v2414, %v3086
  %v3153 = vmul.f32 %v2416, %v3086
  %v3154 = vmul.f32 %v2417, %v3086
  %v3155 = vmul.f32 %v2418, %v3086
  %v3156 = vmul.f32 %v2420, %v3086
  %v3157 = vmul.f32 %v2421, %v3086
  %v3158 = vmul.f32 %v2422, %v3086
  %v3159 = vmul.f32 %v2424, %v3086
  %v3160 = vmul.f32 %v2425, %v3086
  %v3161 = vmul.f32 %v2426, %v3086
  %v3162 = vmul.f32 %v2428, %v3086
  %v3163 = vmul.f32 %v2429, %v3086
  %v3164 = vmul.f32 %v2430, %v3086
  %v3165 = vmul.f32 %v2432, %v3086
  %v3166 = vmul.f32 %v2433, %v3086
  %v3167 = vmul.f32 %v2434, %v3086
  %v3168 = vmul.f32 %v2436, %v3086
  %v3169 = vmul.f32 %v2437, %v3086
  %v3170 = vmul.f32 %v2438, %v3086
  %v3171 = vmul.f32 %v2440, %v3086
  %v3172 = vmul.f32 %v2441, %v3086
  %v3173 = vmul.f32 %v2442, %v3086
  %v3174 = vmul.f32 %v2444, %v3086
  %v3175 = vmul.f32 %v2445, %v3086
  %v3176 = vmul.f32 %v2446, %v3086
  %v3177 = vmul.f32 %v2448, %v3086
  %v3178 = vmul.f32 %v2449, %v3086
  %v3179 = vmul.f32 %v2450, %v3086
  %v3180 = vmul.f32 %v2452, %v3086
  %v3181 = vmul.f32 %v2453, %v3086
  %v3182 = vmul.f32 %v2454, %v3086
  %vm3279 = vcmask 1045504
  %v3280 = vrot.slane %v3087, 2
  %v3281 = vrot.slane %v3088, 2
  %v3282 = vsel %vm3279, %v3280, %v3281
  %v3283 = vrot.slane %v3089, 2
  %v3284 = vsel %vm3279, %v3281, %v3283
  %v3285 = vrot.slane %v3090, 2
  %v3286 = vrot.slane %v3091, 2
  %v3287 = vsel %vm3279, %v3285, %v3286
  %v3288 = vrot.slane %v3092, 2
  %v3289 = vsel %vm3279, %v3286, %v3288
  %v3290 = vrot.slane %v3093, 2
  %v3291 = vrot.slane %v3094, 2
  %v3292 = vsel %vm3279, %v3290, %v3291
  %v3293 = vrot.slane %v3095, 2
  %v3294 = vsel %vm3279, %v3291, %v3293
  %v3295 = vrot.slane %v3096, 2
  %v3296 = vrot.slane %v3097, 2
  %v3297 = vsel %vm3279, %v3295, %v3296
  %v3298 = vrot.slane %v3098, 2
  %v3299 = vsel %vm3279, %v3296, %v3298
  %v3300 = vrot.slane %v3099, 2
  %v3301 = vrot.slane %v3100, 2
  %v3302 = vsel %vm3279, %v3300, %v3301
  %v3303 = vrot.slane %v3101, 2
  %v3304 = vsel %vm3279, %v3301, %v3303
  %v3305 = vrot.slane %v3102, 2
  %v3306 = vrot.slane %v3103, 2
  %v3307 = vsel %vm3279, %v3305, %v3306
  %v3308 = vrot.slane %v3104, 2
  %v3309 = vsel %vm3279, %v3306, %v3308
  %v3310 = vrot.slane %v3105, 2
  %v3311 = vrot.slane %v3106, 2
  %v3312 = vsel %vm3279, %v3310, %v3311
  %v3313 = vrot.slane %v3107, 2
  %v3314 = vsel %vm3279, %v3311, %v3313
  %v3315 = vrot.slane %v3108, 2
  %v3316 = vrot.slane %v3109, 2
  %v3317 = vsel %vm3279, %v3315, %v3316
  %v3318 = vrot.slane %v3110, 2
  %v3319 = vsel %vm3279, %v3316, %v3318
  %v3320 = vrot.slane %v3111, 2
  %v3321 = vrot.slane %v3112, 2
  %v3322 = vsel %vm3279, %v3320, %v3321
  %v3323 = vrot.slane %v3113, 2
  %v3324 = vsel %vm3279, %v3321, %v3323
  %v3325 = vrot.slane %v3114, 2
  %v3326 = vrot.slane %v3115, 2
  %v3327 = vsel %vm3279, %v3325, %v3326
  %v3328 = vrot.slane %v3116, 2
  %v3329 = vsel %vm3279, %v3326, %v3328
  %v3330 = vrot.slane %v3117, 2
  %v3331 = vrot.slane %v3118, 2
  %v3332 = vsel %vm3279, %v3330, %v3331
  %v3333 = vrot.slane %v3119, 2
  %v3334 = vsel %vm3279, %v3331, %v3333
  %v3335 = vrot.slane %v3120, 2
  %v3336 = vrot.slane %v3121, 2
  %v3337 = vsel %vm3279, %v3335, %v3336
  %v3338 = vrot.slane %v3122, 2
  %v3339 = vsel %vm3279, %v3336, %v3338
  %v3340 = vrot.slane %v3123, 2
  %v3341 = vrot.slane %v3124, 2
  %v3342 = vsel %vm3279, %v3340, %v3341
  %v3343 = vrot.slane %v3125, 2
  %v3344 = vsel %vm3279, %v3341, %v3343
  %v3345 = vrot.slane %v3126, 2
  %v3346 = vrot.slane %v3127, 2
  %v3347 = vsel %vm3279, %v3345, %v3346
  %v3348 = vrot.slane %v3128, 2
  %v3349 = vsel %vm3279, %v3346, %v3348
  %v3350 = vrot.slane %v3129, 2
  %v3351 = vrot.slane %v3130, 2
  %v3352 = vsel %vm3279, %v3350, %v3351
  %v3353 = vrot.slane %v3131, 2
  %v3354 = vsel %vm3279, %v3351, %v3353
  %v3355 = vrot.slane %v3132, 2
  %v3356 = vrot.slane %v3133, 2
  %v3357 = vsel %vm3279, %v3355, %v3356
  %v3358 = vrot.slane %v3134, 2
  %v3359 = vsel %vm3279, %v3356, %v3358
  %v3360 = vrot.slane %v3135, 2
  %v3361 = vrot.slane %v3136, 2
  %v3362 = vsel %vm3279, %v3360, %v3361
  %v3363 = vrot.slane %v3137, 2
  %v3364 = vsel %vm3279, %v3361, %v3363
  %v3365 = vrot.slane %v3138, 2
  %v3366 = vrot.slane %v3139, 2
  %v3367 = vsel %vm3279, %v3365, %v3366
  %v3368 = vrot.slane %v3140, 2
  %v3369 = vsel %vm3279, %v3366, %v3368
  %v3370 = vrot.slane %v3141, 2
  %v3371 = vrot.slane %v3142, 2
  %v3372 = vsel %vm3279, %v3370, %v3371
  %v3373 = vrot.slane %v3143, 2
  %v3374 = vsel %vm3279, %v3371, %v3373
  %v3375 = vrot.slane %v3144, 2
  %v3376 = vrot.slane %v3145, 2
  %v3377 = vsel %vm3279, %v3375, %v3376
  %v3378 = vrot.slane %v3146, 2
  %v3379 = vsel %vm3279, %v3376, %v3378
  %v3380 = vrot.slane %v3147, 2
  %v3381 = vrot.slane %v3148, 2
  %v3382 = vsel %vm3279, %v3380, %v3381
  %v3383 = vrot.slane %v3149, 2
  %v3384 = vsel %vm3279, %v3381, %v3383
  %v3385 = vrot.slane %v3150, 2
  %v3386 = vrot.slane %v3151, 2
  %v3387 = vsel %vm3279, %v3385, %v3386
  %v3388 = vrot.slane %v3152, 2
  %v3389 = vsel %vm3279, %v3386, %v3388
  %v3390 = vrot.slane %v3153, 2
  %v3391 = vrot.slane %v3154, 2
  %v3392 = vsel %vm3279, %v3390, %v3391
  %v3393 = vrot.slane %v3155, 2
  %v3394 = vsel %vm3279, %v3391, %v3393
  %v3395 = vrot.slane %v3156, 2
  %v3396 = vrot.slane %v3157, 2
  %v3397 = vsel %vm3279, %v3395, %v3396
  %v3398 = vrot.slane %v3158, 2
  %v3399 = vsel %vm3279, %v3396, %v3398
  %v3400 = vrot.slane %v3159, 2
  %v3401 = vrot.slane %v3160, 2
  %v3402 = vsel %vm3279, %v3400, %v3401
  %v3403 = vrot.slane %v3161, 2
  %v3404 = vsel %vm3279, %v3401, %v3403
  %v3405 = vrot.slane %v3162, 2
  %v3406 = vrot.slane %v3163, 2
  %v3407 = vsel %vm3279, %v3405, %v3406
  %v3408 = vrot.slane %v3164, 2
  %v3409 = vsel %vm3279, %v3406, %v3408
  %v3410 = vrot.slane %v3165, 2
  %v3411 = vrot.slane %v3166, 2
  %v3412 = vsel %vm3279, %v3410, %v3411
  %v3413 = vrot.slane %v3167, 2
  %v3414 = vsel %vm3279, %v3411, %v3413
  %v3415 = vrot.slane %v3168, 2
  %v3416 = vrot.slane %v3169, 2
  %v3417 = vsel %vm3279, %v3415, %v3416
  %v3418 = vrot.slane %v3170, 2
  %v3419 = vsel %vm3279, %v3416, %v3418
  %v3420 = vrot.slane %v3171, 2
  %v3421 = vrot.slane %v3172, 2
  %v3422 = vsel %vm3279, %v3420, %v3421
  %v3423 = vrot.slane %v3173, 2
  %v3424 = vsel %vm3279, %v3421, %v3423
  %v3425 = vrot.slane %v3174, 2
  %v3426 = vrot.slane %v3175, 2
  %v3427 = vsel %vm3279, %v3425, %v3426
  %v3428 = vrot.slane %v3176, 2
  %v3429 = vsel %vm3279, %v3426, %v3428
  %v3430 = vrot.slane %v3177, 2
  %v3431 = vrot.slane %v3178, 2
  %v3432 = vsel %vm3279, %v3430, %v3431
  %v3433 = vrot.slane %v3179, 2
  %v3434 = vsel %vm3279, %v3431, %v3433
  %v3435 = vrot.slane %v3180, 2
  %v3436 = vrot.slane %v3181, 2
  %v3437 = vsel %vm3279, %v3435, %v3436
  %v3438 = vrot.slane %v3182, 2
  %v3439 = vsel %vm3279, %v3436, %v3438
  %v3536 = vadd.f32 %v2986, %v3280
  %v3537 = vadd.f32 %v2987, %v3282
  %v3538 = vadd.f32 %v2988, %v3284
  %v3539 = vadd.f32 %v2989, %v3285
  %v3540 = vadd.f32 %v2990, %v3287
  %v3541 = vadd.f32 %v2991, %v3289
  %v3542 = vadd.f32 %v2992, %v3290
  %v3543 = vadd.f32 %v2993, %v3292
  %v3544 = vadd.f32 %v2994, %v3294
  %v3545 = vadd.f32 %v2995, %v3295
  %v3546 = vadd.f32 %v2996, %v3297
  %v3547 = vadd.f32 %v2997, %v3299
  %v3548 = vadd.f32 %v2998, %v3300
  %v3549 = vadd.f32 %v2999, %v3302
  %v3550 = vadd.f32 %v3000, %v3304
  %v3551 = vadd.f32 %v3001, %v3305
  %v3552 = vadd.f32 %v3002, %v3307
  %v3553 = vadd.f32 %v3003, %v3309
  %v3554 = vadd.f32 %v3004, %v3310
  %v3555 = vadd.f32 %v3005, %v3312
  %v3556 = vadd.f32 %v3006, %v3314
  %v3557 = vadd.f32 %v3007, %v3315
  %v3558 = vadd.f32 %v3008, %v3317
  %v3559 = vadd.f32 %v3009, %v3319
  %v3560 = vadd.f32 %v3010, %v3320
  %v3561 = vadd.f32 %v3011, %v3322
  %v3562 = vadd.f32 %v3012, %v3324
  %v3563 = vadd.f32 %v3013, %v3325
  %v3564 = vadd.f32 %v3014, %v3327
  %v3565 = vadd.f32 %v3015, %v3329
  %v3566 = vadd.f32 %v3016, %v3330
  %v3567 = vadd.f32 %v3017, %v3332
  %v3568 = vadd.f32 %v3018, %v3334
  %v3569 = vadd.f32 %v3019, %v3335
  %v3570 = vadd.f32 %v3020, %v3337
  %v3571 = vadd.f32 %v3021, %v3339
  %v3572 = vadd.f32 %v3022, %v3340
  %v3573 = vadd.f32 %v3023, %v3342
  %v3574 = vadd.f32 %v3024, %v3344
  %v3575 = vadd.f32 %v3025, %v3345
  %v3576 = vadd.f32 %v3026, %v3347
  %v3577 = vadd.f32 %v3027, %v3349
  %v3578 = vadd.f32 %v3028, %v3350
  %v3579 = vadd.f32 %v3029, %v3352
  %v3580 = vadd.f32 %v3030, %v3354
  %v3581 = vadd.f32 %v3031, %v3355
  %v3582 = vadd.f32 %v3032, %v3357
  %v3583 = vadd.f32 %v3033, %v3359
  %v3584 = vadd.f32 %v3034, %v3360
  %v3585 = vadd.f32 %v3035, %v3362
  %v3586 = vadd.f32 %v3036, %v3364
  %v3587 = vadd.f32 %v3037, %v3365
  %v3588 = vadd.f32 %v3038, %v3367
  %v3589 = vadd.f32 %v3039, %v3369
  %v3590 = vadd.f32 %v3040, %v3370
  %v3591 = vadd.f32 %v3041, %v3372
  %v3592 = vadd.f32 %v3042, %v3374
  %v3593 = vadd.f32 %v3043, %v3375
  %v3594 = vadd.f32 %v3044, %v3377
  %v3595 = vadd.f32 %v3045, %v3379
  %v3596 = vadd.f32 %v3046, %v3380
  %v3597 = vadd.f32 %v3047, %v3382
  %v3598 = vadd.f32 %v3048, %v3384
  %v3599 = vadd.f32 %v3049, %v3385
  %v3600 = vadd.f32 %v3050, %v3387
  %v3601 = vadd.f32 %v3051, %v3389
  %v3602 = vadd.f32 %v3052, %v3390
  %v3603 = vadd.f32 %v3053, %v3392
  %v3604 = vadd.f32 %v3054, %v3394
  %v3605 = vadd.f32 %v3055, %v3395
  %v3606 = vadd.f32 %v3056, %v3397
  %v3607 = vadd.f32 %v3057, %v3399
  %v3608 = vadd.f32 %v3058, %v3400
  %v3609 = vadd.f32 %v3059, %v3402
  %v3610 = vadd.f32 %v3060, %v3404
  %v3611 = vadd.f32 %v3061, %v3405
  %v3612 = vadd.f32 %v3062, %v3407
  %v3613 = vadd.f32 %v3063, %v3409
  %v3614 = vadd.f32 %v3064, %v3410
  %v3615 = vadd.f32 %v3065, %v3412
  %v3616 = vadd.f32 %v3066, %v3414
  %v3617 = vadd.f32 %v3067, %v3415
  %v3618 = vadd.f32 %v3068, %v3417
  %v3619 = vadd.f32 %v3069, %v3419
  %v3620 = vadd.f32 %v3070, %v3420
  %v3621 = vadd.f32 %v3071, %v3422
  %v3622 = vadd.f32 %v3072, %v3424
  %v3623 = vadd.f32 %v3073, %v3425
  %v3624 = vadd.f32 %v3074, %v3427
  %v3625 = vadd.f32 %v3075, %v3429
  %v3626 = vadd.f32 %v3076, %v3430
  %v3627 = vadd.f32 %v3077, %v3432
  %v3628 = vadd.f32 %v3078, %v3434
  %v3629 = vadd.f32 %v3079, %v3435
  %v3630 = vadd.f32 %v3080, %v3437
  %v3631 = vadd.f32 %v3081, %v3439
  %v3632 = vld [vmem:[%s4 + $0x3] sm:$0x1]
  %v3633 = vlaneseq
  %v3634 = vshrl.u32 %v3633, 7
  %v3635 = vsub.s32 0, %v3634
  %v3636 = vrot.slane %v3632, %v3635
  %v3637 = vmul.f32 %v2323, %v3636
  %v3638 = vmul.f32 %v2324, %v3636
  %v3639 = vmul.f32 %v2325, %v3636
  %v3640 = vmul.f32 %v2327, %v3636
  %v3641 = vmul.f32 %v2328, %v3636
  %v3642 = vmul.f32 %v2329, %v3636
  %v3643 = vmul.f32 %v2331, %v3636
  %v3644 = vmul.f32 %v2332, %v3636
  %v3645 = vmul.f32 %v2333, %v3636
  %v3646 = vmul.f32 %v2335, %v3636
  %v3647 = vmul.f32 %v2336, %v3636
  %v3648 = vmul.f32 %v2337, %v3636
  %v3649 = vmul.f32 %v2339, %v3636
  %v3650 = vmul.f32 %v2340, %v3636
  %v3651 = vmul.f32 %v2341, %v3636
  %v3652 = vmul.f32 %v2343, %v3636
  %v3653 = vmul.f32 %v2344, %v3636
  %v3654 = vmul.f32 %v2345, %v3636
  %v3655 = vmul.f32 %v2347, %v3636
  %v3656 = vmul.f32 %v2348, %v3636
  %v3657 = vmul.f32 %v2349, %v3636
  %v3658 = vmul.f32 %v2351, %v3636
  %v3659 = vmul.f32 %v2352, %v3636
  %v3660 = vmul.f32 %v2353, %v3636
  %v3661 = vmul.f32 %v2355, %v3636
  %v3662 = vmul.f32 %v2356, %v3636
  %v3663 = vmul.f32 %v2357, %v3636
  %v3664 = vmul.f32 %v2359, %v3636
  %v3665 = vmul.f32 %v2360, %v3636
  %v3666 = vmul.f32 %v2361, %v3636
  %v3667 = vmul.f32 %v2363, %v3636
  %v3668 = vmul.f32 %v2364, %v3636
  %v3669 = vmul.f32 %v2365, %v3636
  %v3670 = vmul.f32 %v2367, %v3636
  %v3671 = vmul.f32 %v2368, %v3636
  %v3672 = vmul.f32 %v2369, %v3636
  %v3673 = vmul.f32 %v2371, %v3636
  %v3674 = vmul.f32 %v2372, %v3636
  %v3675 = vmul.f32 %v2373, %v3636
  %v3676 = vmul.f32 %v2375, %v3636
  %v3677 = vmul.f32 %v2376, %v3636
  %v3678 = vmul.f32 %v2377, %v3636
  %v3679 = vmul.f32 %v2379, %v3636
  %v3680 = vmul.f32 %v2380, %v3636
  %v3681 = vmul.f32 %v2381, %v3636
  %v3682 = vmul.f32 %v2383, %v3636
  %v3683 = vmul.f32 %v2384, %v3636
  %v3684 = vmul.f32 %v2385, %v3636
  %v3685 = vmul.f32 %v2395, %v3636
  %v3686 = vmul.f32 %v2396, %v3636
  %v3687 = vmul.f32 %v2397, %v3636
  %v3688 = vmul.f32 %v2399, %v3636
  %v3689 = vmul.f32 %v2400, %v3636
  %v3690 = vmul.f32 %v2401, %v3636
  %v3691 = vmul.f32 %v2403, %v3636
  %v3692 = vmul.f32 %v2404, %v3636
  %v3693 = vmul.f32 %v2405, %v3636
  %v3694 = vmul.f32 %v2407, %v3636
  %v3695 = vmul.f32 %v2408, %v3636
  %v3696 = vmul.f32 %v2409, %v3636
  %v3697 = vmul.f32 %v2411, %v3636
  %v3698 = vmul.f32 %v2412, %v3636
  %v3699 = vmul.f32 %v2413, %v3636
  %v3700 = vmul.f32 %v2415, %v3636
  %v3701 = vmul.f32 %v2416, %v3636
  %v3702 = vmul.f32 %v2417, %v3636
  %v3703 = vmul.f32 %v2419, %v3636
  %v3704 = vmul.f32 %v2420, %v3636
  %v3705 = vmul.f32 %v2421, %v3636
  %v3706 = vmul.f32 %v2423, %v3636
  %v3707 = vmul.f32 %v2424, %v3636
  %v3708 = vmul.f32 %v2425, %v3636
  %v3709 = vmul.f32 %v2427, %v3636
  %v3710 = vmul.f32 %v2428, %v3636
  %v3711 = vmul.f32 %v2429, %v3636
  %v3712 = vmul.f32 %v2431, %v3636
  %v3713 = vmul.f32 %v2432, %v3636
  %v3714 = vmul.f32 %v2433, %v3636
  %v3715 = vmul.f32 %v2435, %v3636
  %v3716 = vmul.f32 %v2436, %v3636
  %v3717 = vmul.f32 %v2437, %v3636
  %v3718 = vmul.f32 %v2439, %v3636
  %v3719 = vmul.f32 %v2440, %v3636
  %v3720 = vmul.f32 %v2441, %v3636
  %v3721 = vmul.f32 %v2443, %v3636
  %v3722 = vmul.f32 %v2444, %v3636
  %v3723 = vmul.f32 %v2445, %v3636
  %v3724 = vmul.f32 %v2447, %v3636
  %v3725 = vmul.f32 %v2448, %v3636
  %v3726 = vmul.f32 %v2449, %v3636
  %v3727 = vmul.f32 %v2451, %v3636
  %v3728 = vmul.f32 %v2452, %v3636
  %v3729 = vmul.f32 %v2453, %v3636
  %v3730 = vmul.f32 %v2455, %v3636
  %v3731 = vmul.f32 %v2456, %v3636
  %v3732 = vmul.f32 %v2457, %v3636
  %v3733 = vadd.f32 %v3536, %v3637
  %v3734 = vadd.f32 %v3537, %v3638
  %v3735 = vadd.f32 %v3538, %v3639
  %v3736 = vadd.f32 %v3539, %v3640
  %v3737 = vadd.f32 %v3540, %v3641
  %v3738 = vadd.f32 %v3541, %v3642
  %v3739 = vadd.f32 %v3542, %v3643
  %v3740 = vadd.f32 %v3543, %v3644
  %v3741 = vadd.f32 %v3544, %v3645
  %v3742 = vadd.f32 %v3545, %v3646
  %v3743 = vadd.f32 %v3546, %v3647
  %v3744 = vadd.f32 %v3547, %v3648
  %v3745 = vadd.f32 %v3548, %v3649
  %v3746 = vadd.f32 %v3549, %v3650
  %v3747 = vadd.f32 %v3550, %v3651
  %v3748 = vadd.f32 %v3551, %v3652
  %v3749 = vadd.f32 %v3552, %v3653
  %v3750 = vadd.f32 %v3553, %v3654
  %v3751 = vadd.f32 %v3554, %v3655
  %v3752 = vadd.f32 %v3555, %v3656
  %v3753 = vadd.f32 %v3556, %v3657
  %v3754 = vadd.f32 %v3557, %v3658
  %v3755 = vadd.f32 %v3558, %v3659
  %v3756 = vadd.f32 %v3559, %v3660
  %v3757 = vadd.f32 %v3560, %v3661
  %v3758 = vadd.f32 %v3561, %v3662
  %v3759 = vadd.f32 %v3562, %v3663
  %v3760 = vadd.f32 %v3563, %v3664
  %v3761 = vadd.f32 %v3564, %v3665
  %v3762 = vadd.f32 %v3565, %v3666
  %v3763 = vadd.f32 %v3566, %v3667
  %v3764 = vadd.f32 %v3567, %v3668
  %v3765 = vadd.f32 %v3568, %v3669
  %v3766 = vadd.f32 %v3569, %v3670
  %v3767 = vadd.f32 %v3570, %v3671
  %v3768 = vadd.f32 %v3571, %v3672
  %v3769 = vadd.f32 %v3572, %v3673
  %v3770 = vadd.f32 %v3573, %v3674
  %v3771 = vadd.f32 %v3574, %v3675
  %v3772 = vadd.f32 %v3575, %v3676
  %v3773 = vadd.f32 %v3576, %v3677
  %v3774 = vadd.f32 %v3577, %v3678
  %v3775 = vadd.f32 %v3578, %v3679
  %v3776 = vadd.f32 %v3579, %v3680
  %v3777 = vadd.f32 %v3580, %v3681
  %v3778 = vadd.f32 %v3581, %v3682
  %v3779 = vadd.f32 %v3582, %v3683
  %v3780 = vadd.f32 %v3583, %v3684
  %v3781 = vadd.f32 %v3584, %v3685
  %v3782 = vadd.f32 %v3585, %v3686
  %v3783 = vadd.f32 %v3586, %v3687
  %v3784 = vadd.f32 %v3587, %v3688
  %v3785 = vadd.f32 %v3588, %v3689
  %v3786 = vadd.f32 %v3589, %v3690
  %v3787 = vadd.f32 %v3590, %v3691
  %v3788 = vadd.f32 %v3591, %v3692
  %v3789 = vadd.f32 %v3592, %v3693
  %v3790 = vadd.f32 %v3593, %v3694
  %v3791 = vadd.f32 %v3594, %v3695
  %v3792 = vadd.f32 %v3595, %v3696
  %v3793 = vadd.f32 %v3596, %v3697
  %v3794 = vadd.f32 %v3597, %v3698
  %v3795 = vadd.f32 %v3598, %v3699
  %v3796 = vadd.f32 %v3599, %v3700
  %v3797 = vadd.f32 %v3600, %v3701
  %v3798 = vadd.f32 %v3601, %v3702
  %v3799 = vadd.f32 %v3602, %v3703
  %v3800 = vadd.f32 %v3603, %v3704
  %v3801 = vadd.f32 %v3604, %v3705
  %v3802 = vadd.f32 %v3605, %v3706
  %v3803 = vadd.f32 %v3606, %v3707
  %v3804 = vadd.f32 %v3607, %v3708
  %v3805 = vadd.f32 %v3608, %v3709
  %v3806 = vadd.f32 %v3609, %v3710
  %v3807 = vadd.f32 %v3610, %v3711
  %v3808 = vadd.f32 %v3611, %v3712
  %v3809 = vadd.f32 %v3612, %v3713
  %v3810 = vadd.f32 %v3613, %v3714
  %v3811 = vadd.f32 %v3614, %v3715
  %v3812 = vadd.f32 %v3615, %v3716
  %v3813 = vadd.f32 %v3616, %v3717
  %v3814 = vadd.f32 %v3617, %v3718
  %v3815 = vadd.f32 %v3618, %v3719
  %v3816 = vadd.f32 %v3619, %v3720
  %v3817 = vadd.f32 %v3620, %v3721
  %v3818 = vadd.f32 %v3621, %v3722
  %v3819 = vadd.f32 %v3622, %v3723
  %v3820 = vadd.f32 %v3623, %v3724
  %v3821 = vadd.f32 %v3624, %v3725
  %v3822 = vadd.f32 %v3625, %v3726
  %v3823 = vadd.f32 %v3626, %v3727
  %v3824 = vadd.f32 %v3627, %v3728
  %v3825 = vadd.f32 %v3628, %v3729
  %v3826 = vadd.f32 %v3629, %v3730
  %v3827 = vadd.f32 %v3630, %v3731
  %v3828 = vadd.f32 %v3631, %v3732
  %v3829 = vld [vmem:[%s4 + $0x4] sm:$0x1]
  %v3830 = vlaneseq
  %v3831 = vshrl.u32 %v3830, 7
  %v3832 = vsub.s32 0, %v3831
  %v3833 = vrot.slane %v3829, %v3832
  %v3834 = vmul.f32 %v2324, %v3833
  %v3835 = vmul.f32 %v2325, %v3833
  %v3836 = vmul.f32 %v2328, %v3833
  %v3837 = vmul.f32 %v2329, %v3833
  %v3838 = vmul.f32 %v2332, %v3833
  %v3839 = vmul.f32 %v2333, %v3833
  %v3840 = vmul.f32 %v2336, %v3833
  %v3841 = vmul.f32 %v2337, %v3833
  %v3842 = vmul.f32 %v2340, %v3833
  %v3843 = vmul.f32 %v2341, %v3833
  %v3844 = vmul.f32 %v2344, %v3833
  %v3845 = vmul.f32 %v2345, %v3833
  %v3846 = vmul.f32 %v2348, %v3833
  %v3847 = vmul.f32 %v2349, %v3833
  %v3848 = vmul.f32 %v2352, %v3833
  %v3849 = vmul.f32 %v2353, %v3833
  %v3850 = vmul.f32 %v2356, %v3833
  %v3851 = vmul.f32 %v2357, %v3833
  %v3852 = vmul.f32 %v2360, %v3833
  %v3853 = vmul.f32 %v2361, %v3833
  %v3854 = vmul.f32 %v2364, %v3833
  %v3855 = vmul.f32 %v2365, %v3833
  %v3856 = vmul.f32 %v2368, %v3833
  %v3857 = vmul.f32 %v2369, %v3833
  %v3858 = vmul.f32 %v2372, %v3833
  %v3859 = vmul.f32 %v2373, %v3833
  %v3860 = vmul.f32 %v2376, %v3833
  %v3861 = vmul.f32 %v2377, %v3833
  %v3862 = vmul.f32 %v2380, %v3833
  %v3863 = vmul.f32 %v2381, %v3833
  %v3864 = vmul.f32 %v2384, %v3833
  %v3865 = vmul.f32 %v2385, %v3833
  %v3866 = vmul.f32 %v2396, %v3833
  %v3867 = vmul.f32 %v2397, %v3833
  %v3868 = vmul.f32 %v2400, %v3833
  %v3869 = vmul.f32 %v2401, %v3833
  %v3870 = vmul.f32 %v2404, %v3833
  %v3871 = vmul.f32 %v2405, %v3833
  %v3872 = vmul.f32 %v2408, %v3833
  %v3873 = vmul.f32 %v2409, %v3833
  %v3874 = vmul.f32 %v2412, %v3833
  %v3875 = vmul.f32 %v2413, %v3833
  %v3876 = vmul.f32 %v2416, %v3833
  %v3877 = vmul.f32 %v2417, %v3833
  %v3878 = vmul.f32 %v2420, %v3833
  %v3879 = vmul.f32 %v2421, %v3833
  %v3880 = vmul.f32 %v2424, %v3833
  %v3881 = vmul.f32 %v2425, %v3833
  %v3882 = vmul.f32 %v2428, %v3833
  %v3883 = vmul.f32 %v2429, %v3833
  %v3884 = vmul.f32 %v2432, %v3833
  %v3885 = vmul.f32 %v2433, %v3833
  %v3886 = vmul.f32 %v2436, %v3833
  %v3887 = vmul.f32 %v2437, %v3833
  %v3888 = vmul.f32 %v2440, %v3833
  %v3889 = vmul.f32 %v2441, %v3833
  %v3890 = vmul.f32 %v2444, %v3833
  %v3891 = vmul.f32 %v2445, %v3833
  %v3892 = vmul.f32 %v2448, %v3833
  %v3893 = vmul.f32 %v2449, %v3833
  %v3894 = vmul.f32 %v2452, %v3833
  %v3895 = vmul.f32 %v2453, %v3833
  %v3896 = vmul.f32 %v2456, %v3833
  %v3897 = vmul.f32 %v2457, %v3833
  %v3962 = vrot.slane %v3834, 1
  %v3963 = vrot.slane %v3835, 1
  %v3964 = vsel %vm2793, %v3962, %v3963
  %v3965 = vrot.slane %v3836, 1
  %v3966 = vrot.slane %v3837, 1
  %v3967 = vsel %vm2793, %v3965, %v3966
  %v3968 = vrot.slane %v3838, 1
  %v3969 = vrot.slane %v3839, 1
  %v3970 = vsel %vm2793, %v3968, %v3969
  %v3971 = vrot.slane %v3840, 1
  %v3972 = vrot.slane %v3841, 1
  %v3973 = vsel %vm2793, %v3971, %v3972
  %v3974 = vrot.slane %v3842, 1
  %v3975 = vrot.slane %v3843, 1
  %v3976 = vsel %vm2793, %v3974, %v3975
  %v3977 = vrot.slane %v3844, 1
  %v3978 = vrot.slane %v3845, 1
  %v3979 = vsel %vm2793, %v3977, %v3978
  %v3980 = vrot.slane %v3846, 1
  %v3981 = vrot.slane %v3847, 1
  %v3982 = vsel %vm2793, %v3980, %v3981
  %v3983 = vrot.slane %v3848, 1
  %v3984 = vrot.slane %v3849, 1
  %v3985 = vsel %vm2793, %v3983, %v3984
  %v3986 = vrot.slane %v3850, 1
  %v3987 = vrot.slane %v3851, 1
  %v3988 = vsel %vm2793, %v3986, %v3987
  %v3989 = vrot.slane %v3852, 1
  %v3990 = vrot.slane %v3853, 1
  %v3991 = vsel %vm2793, %v3989, %v3990
  %v3992 = vrot.slane %v3854, 1
  %v3993 = vrot.slane %v3855, 1
  %v3994 = vsel %vm2793, %v3992, %v3993
  %v3995 = vrot.slane %v3856, 1
  %v3996 = vrot.slane %v3857, 1
  %v3997 = vsel %vm2793, %v3995, %v3996
  %v3998 = vrot.slane %v3858, 1
  %v3999 = vrot.slane %v3859, 1
  %v4000 = vsel %vm2793, %v3998, %v3999
  %v4001 = vrot.slane %v3860, 1
  %v4002 = vrot.slane %v3861, 1
  %v4003 = vsel %vm2793, %v4001, %v4002
  %v4004 = vrot.slane %v3862, 1
  %v4005 = vrot.slane %v3863, 1
  %v4006 = vsel %vm2793, %v4004, %v4005
  %v4007 = vrot.slane %v3864, 1
  %v4008 = vrot.slane %v3865, 1
  %v4009 = vsel %vm2793, %v4007, %v4008
  %v4010 = vrot.slane %v3866, 1
  %v4011 = vrot.slane %v3867, 1
  %v4012 = vsel %vm2793, %v4010, %v4011
  %v4013 = vrot.slane %v3868, 1
  %v4014 = vrot.slane %v3869, 1
  %v4015 = vsel %vm2793, %v4013, %v4014
  %v4016 = vrot.slane %v3870, 1
  %v4017 = vrot.slane %v3871, 1
  %v4018 = vsel %vm2793, %v4016, %v4017
  %v4019 = vrot.slane %v3872, 1
  %v4020 = vrot.slane %v3873, 1
  %v4021 = vsel %vm2793, %v4019, %v4020
  %v4022 = vrot.slane %v3874, 1
  %v4023 = vrot.slane %v3875, 1
  %v4024 = vsel %vm2793, %v4022, %v4023
  %v4025 = vrot.slane %v3876, 1
  %v4026 = vrot.slane %v3877, 1
  %v4027 = vsel %vm2793, %v4025, %v4026
  %v4028 = vrot.slane %v3878, 1
  %v4029 = vrot.slane %v3879, 1
  %v4030 = vsel %vm2793, %v4028, %v4029
  %v4031 = vrot.slane %v3880, 1
  %v4032 = vrot.slane %v3881, 1
  %v4033 = vsel %vm2793, %v4031, %v4032
  %v4034 = vrot.slane %v3882, 1
  %v4035 = vrot.slane %v3883, 1
  %v4036 = vsel %vm2793, %v4034, %v4035
  %v4037 = vrot.slane %v3884, 1
  %v4038 = vrot.slane %v3885, 1
  %v4039 = vsel %vm2793, %v4037, %v4038
  %v4040 = vrot.slane %v3886, 1
  %v4041 = vrot.slane %v3887, 1
  %v4042 = vsel %vm2793, %v4040, %v4041
  %v4043 = vrot.slane %v3888, 1
  %v4044 = vrot.slane %v3889, 1
  %v4045 = vsel %vm2793, %v4043, %v4044
  %v4046 = vrot.slane %v3890, 1
  %v4047 = vrot.slane %v3891, 1
  %v4048 = vsel %vm2793, %v4046, %v4047
  %v4049 = vrot.slane %v3892, 1
  %v4050 = vrot.slane %v3893, 1
  %v4051 = vsel %vm2793, %v4049, %v4050
  %v4052 = vrot.slane %v3894, 1
  %v4053 = vrot.slane %v3895, 1
  %v4054 = vsel %vm2793, %v4052, %v4053
  %v4055 = vrot.slane %v3896, 1
  %v4056 = vrot.slane %v3897, 1
  %v4057 = vsel %vm2793, %v4055, %v4056
  %v4154 = vadd.f32 %v3733, %v3962
  %v4155 = vadd.f32 %v3734, %v3964
  %v4156 = vadd.f32 %v3735, %v3963
  %v4157 = vadd.f32 %v3736, %v3965
  %v4158 = vadd.f32 %v3737, %v3967
  %v4159 = vadd.f32 %v3738, %v3966
  %v4160 = vadd.f32 %v3739, %v3968
  %v4161 = vadd.f32 %v3740, %v3970
  %v4162 = vadd.f32 %v3741, %v3969
  %v4163 = vadd.f32 %v3742, %v3971
  %v4164 = vadd.f32 %v3743, %v3973
  %v4165 = vadd.f32 %v3744, %v3972
  %v4166 = vadd.f32 %v3745, %v3974
  %v4167 = vadd.f32 %v3746, %v3976
  %v4168 = vadd.f32 %v3747, %v3975
  %v4169 = vadd.f32 %v3748, %v3977
  %v4170 = vadd.f32 %v3749, %v3979
  %v4171 = vadd.f32 %v3750, %v3978
  %v4172 = vadd.f32 %v3751, %v3980
  %v4173 = vadd.f32 %v3752, %v3982
  %v4174 = vadd.f32 %v3753, %v3981
  %v4175 = vadd.f32 %v3754, %v3983
  %v4176 = vadd.f32 %v3755, %v3985
  %v4177 = vadd.f32 %v3756, %v3984
  %v4178 = vadd.f32 %v3757, %v3986
  %v4179 = vadd.f32 %v3758, %v3988
  %v4180 = vadd.f32 %v3759, %v3987
  %v4181 = vadd.f32 %v3760, %v3989
  %v4182 = vadd.f32 %v3761, %v3991
  %v4183 = vadd.f32 %v3762, %v3990
  %v4184 = vadd.f32 %v3763, %v3992
  %v4185 = vadd.f32 %v3764, %v3994
  %v4186 = vadd.f32 %v3765, %v3993
  %v4187 = vadd.f32 %v3766, %v3995
  %v4188 = vadd.f32 %v3767, %v3997
  %v4189 = vadd.f32 %v3768, %v3996
  %v4190 = vadd.f32 %v3769, %v3998
  %v4191 = vadd.f32 %v3770, %v4000
  %v4192 = vadd.f32 %v3771, %v3999
  %v4193 = vadd.f32 %v3772, %v4001
  %v4194 = vadd.f32 %v3773, %v4003
  %v4195 = vadd.f32 %v3774, %v4002
  %v4196 = vadd.f32 %v3775, %v4004
  %v4197 = vadd.f32 %v3776, %v4006
  %v4198 = vadd.f32 %v3777, %v4005
  %v4199 = vadd.f32 %v3778, %v4007
  %v4200 = vadd.f32 %v3779, %v4009
  %v4201 = vadd.f32 %v3780, %v4008
  %v4202 = vadd.f32 %v3781, %v4010
  %v4203 = vadd.f32 %v3782, %v4012
  %v4204 = vadd.f32 %v3783, %v4011
  %v4205 = vadd.f32 %v3784, %v4013
  %v4206 = vadd.f32 %v3785, %v4015
  %v4207 = vadd.f32 %v3786, %v4014
  %v4208 = vadd.f32 %v3787, %v4016
  %v4209 = vadd.f32 %v3788, %v4018
  %v4210 = vadd.f32 %v3789, %v4017
  %v4211 = vadd.f32 %v3790, %v4019
  %v4212 = vadd.f32 %v3791, %v4021
  %v4213 = vadd.f32 %v3792, %v4020
  %v4214 = vadd.f32 %v3793, %v4022
  %v4215 = vadd.f32 %v3794, %v4024
  %v4216 = vadd.f32 %v3795, %v4023
  %v4217 = vadd.f32 %v3796, %v4025
  %v4218 = vadd.f32 %v3797, %v4027
  %v4219 = vadd.f32 %v3798, %v4026
  %v4220 = vadd.f32 %v3799, %v4028
  %v4221 = vadd.f32 %v3800, %v4030
  %v4222 = vadd.f32 %v3801, %v4029
  %v4223 = vadd.f32 %v3802, %v4031
  %v4224 = vadd.f32 %v3803, %v4033
  %v4225 = vadd.f32 %v3804, %v4032
  %v4226 = vadd.f32 %v3805, %v4034
  %v4227 = vadd.f32 %v3806, %v4036
  %v4228 = vadd.f32 %v3807, %v4035
  %v4229 = vadd.f32 %v3808, %v4037
  %v4230 = vadd.f32 %v3809, %v4039
  %v4231 = vadd.f32 %v3810, %v4038
  %v4232 = vadd.f32 %v3811, %v4040
  %v4233 = vadd.f32 %v3812, %v4042
  %v4234 = vadd.f32 %v3813, %v4041
  %v4235 = vadd.f32 %v3814, %v4043
  %v4236 = vadd.f32 %v3815, %v4045
  %v4237 = vadd.f32 %v3816, %v4044
  %v4238 = vadd.f32 %v3817, %v4046
  %v4239 = vadd.f32 %v3818, %v4048
  %v4240 = vadd.f32 %v3819, %v4047
  %v4241 = vadd.f32 %v3820, %v4049
  %v4242 = vadd.f32 %v3821, %v4051
  %v4243 = vadd.f32 %v3822, %v4050
  %v4244 = vadd.f32 %v3823, %v4052
  %v4245 = vadd.f32 %v3824, %v4054
  %v4246 = vadd.f32 %v3825, %v4053
  %v4247 = vadd.f32 %v3826, %v4055
  %v4248 = vadd.f32 %v3827, %v4057
  %v4249 = vadd.f32 %v3828, %v4056
  %v4250 = vld [vmem:[%s4 + $0x5] sm:$0x1]
  %v4251 = vlaneseq
  %v4252 = vshrl.u32 %v4251, 7
  %v4253 = vsub.s32 0, %v4252
  %v4254 = vrot.slane %v4250, %v4253
  %v4255 = vmul.f32 %v2324, %v4254
  %v4256 = vmul.f32 %v2325, %v4254
  %v4257 = vmul.f32 %v2326, %v4254
  %v4258 = vmul.f32 %v2328, %v4254
  %v4259 = vmul.f32 %v2329, %v4254
  %v4260 = vmul.f32 %v2330, %v4254
  %v4261 = vmul.f32 %v2332, %v4254
  %v4262 = vmul.f32 %v2333, %v4254
  %v4263 = vmul.f32 %v2334, %v4254
  %v4264 = vmul.f32 %v2336, %v4254
  %v4265 = vmul.f32 %v2337, %v4254
  %v4266 = vmul.f32 %v2338, %v4254
  %v4267 = vmul.f32 %v2340, %v4254
  %v4268 = vmul.f32 %v2341, %v4254
  %v4269 = vmul.f32 %v2342, %v4254
  %v4270 = vmul.f32 %v2344, %v4254
  %v4271 = vmul.f32 %v2345, %v4254
  %v4272 = vmul.f32 %v2346, %v4254
  %v4273 = vmul.f32 %v2348, %v4254
  %v4274 = vmul.f32 %v2349, %v4254
  %v4275 = vmul.f32 %v2350, %v4254
  %v4276 = vmul.f32 %v2352, %v4254
  %v4277 = vmul.f32 %v2353, %v4254
  %v4278 = vmul.f32 %v2354, %v4254
  %v4279 = vmul.f32 %v2356, %v4254
  %v4280 = vmul.f32 %v2357, %v4254
  %v4281 = vmul.f32 %v2358, %v4254
  %v4282 = vmul.f32 %v2360, %v4254
  %v4283 = vmul.f32 %v2361, %v4254
  %v4284 = vmul.f32 %v2362, %v4254
  %v4285 = vmul.f32 %v2364, %v4254
  %v4286 = vmul.f32 %v2365, %v4254
  %v4287 = vmul.f32 %v2366, %v4254
  %v4288 = vmul.f32 %v2368, %v4254
  %v4289 = vmul.f32 %v2369, %v4254
  %v4290 = vmul.f32 %v2370, %v4254
  %v4291 = vmul.f32 %v2372, %v4254
  %v4292 = vmul.f32 %v2373, %v4254
  %v4293 = vmul.f32 %v2374, %v4254
  %v4294 = vmul.f32 %v2376, %v4254
  %v4295 = vmul.f32 %v2377, %v4254
  %v4296 = vmul.f32 %v2378, %v4254
  %v4297 = vmul.f32 %v2380, %v4254
  %v4298 = vmul.f32 %v2381, %v4254
  %v4299 = vmul.f32 %v2382, %v4254
  %v4300 = vmul.f32 %v2384, %v4254
  %v4301 = vmul.f32 %v2385, %v4254
  %v4302 = vmul.f32 %v2386, %v4254
  %v4303 = vmul.f32 %v2396, %v4254
  %v4304 = vmul.f32 %v2397, %v4254
  %v4305 = vmul.f32 %v2398, %v4254
  %v4306 = vmul.f32 %v2400, %v4254
  %v4307 = vmul.f32 %v2401, %v4254
  %v4308 = vmul.f32 %v2402, %v4254
  %v4309 = vmul.f32 %v2404, %v4254
  %v4310 = vmul.f32 %v2405, %v4254
  %v4311 = vmul.f32 %v2406, %v4254
  %v4312 = vmul.f32 %v2408, %v4254
  %v4313 = vmul.f32 %v2409, %v4254
  %v4314 = vmul.f32 %v2410, %v4254
  %v4315 = vmul.f32 %v2412, %v4254
  %v4316 = vmul.f32 %v2413, %v4254
  %v4317 = vmul.f32 %v2414, %v4254
  %v4318 = vmul.f32 %v2416, %v4254
  %v4319 = vmul.f32 %v2417, %v4254
  %v4320 = vmul.f32 %v2418, %v4254
  %v4321 = vmul.f32 %v2420, %v4254
  %v4322 = vmul.f32 %v2421, %v4254
  %v4323 = vmul.f32 %v2422, %v4254
  %v4324 = vmul.f32 %v2424, %v4254
  %v4325 = vmul.f32 %v2425, %v4254
  %v4326 = vmul.f32 %v2426, %v4254
  %v4327 = vmul.f32 %v2428, %v4254
  %v4328 = vmul.f32 %v2429, %v4254
  %v4329 = vmul.f32 %v2430, %v4254
  %v4330 = vmul.f32 %v2432, %v4254
  %v4331 = vmul.f32 %v2433, %v4254
  %v4332 = vmul.f32 %v2434, %v4254
  %v4333 = vmul.f32 %v2436, %v4254
  %v4334 = vmul.f32 %v2437, %v4254
  %v4335 = vmul.f32 %v2438, %v4254
  %v4336 = vmul.f32 %v2440, %v4254
  %v4337 = vmul.f32 %v2441, %v4254
  %v4338 = vmul.f32 %v2442, %v4254
  %v4339 = vmul.f32 %v2444, %v4254
  %v4340 = vmul.f32 %v2445, %v4254
  %v4341 = vmul.f32 %v2446, %v4254
  %v4342 = vmul.f32 %v2448, %v4254
  %v4343 = vmul.f32 %v2449, %v4254
  %v4344 = vmul.f32 %v2450, %v4254
  %v4345 = vmul.f32 %v2452, %v4254
  %v4346 = vmul.f32 %v2453, %v4254
  %v4347 = vmul.f32 %v2454, %v4254
  %v4348 = vmul.f32 %v2456, %v4254
  %v4349 = vmul.f32 %v2457, %v4254
  %v4350 = vmul.f32 %v2458, %v4254
  %v4447 = vrot.slane %v4255, 2
  %v4448 = vrot.slane %v4256, 2
  %v4449 = vsel %vm3279, %v4447, %v4448
  %v4450 = vrot.slane %v4257, 2
  %v4451 = vsel %vm3279, %v4448, %v4450
  %v4452 = vrot.slane %v4258, 2
  %v4453 = vrot.slane %v4259, 2
  %v4454 = vsel %vm3279, %v4452, %v4453
  %v4455 = vrot.slane %v4260, 2
  %v4456 = vsel %vm3279, %v4453, %v4455
  %v4457 = vrot.slane %v4261, 2
  %v4458 = vrot.slane %v4262, 2
  %v4459 = vsel %vm3279, %v4457, %v4458
  %v4460 = vrot.slane %v4263, 2
  %v4461 = vsel %vm3279, %v4458, %v4460
  %v4462 = vrot.slane %v4264, 2
  %v4463 = vrot.slane %v4265, 2
  %v4464 = vsel %vm3279, %v4462, %v4463
  %v4465 = vrot.slane %v4266, 2
  %v4466 = vsel %vm3279, %v4463, %v4465
  %v4467 = vrot.slane %v4267, 2
  %v4468 = vrot.slane %v4268, 2
  %v4469 = vsel %vm3279, %v4467, %v4468
  %v4470 = vrot.slane %v4269, 2
  %v4471 = vsel %vm3279, %v4468, %v4470
  %v4472 = vrot.slane %v4270, 2
  %v4473 = vrot.slane %v4271, 2
  %v4474 = vsel %vm3279, %v4472, %v4473
  %v4475 = vrot.slane %v4272, 2
  %v4476 = vsel %vm3279, %v4473, %v4475
  %v4477 = vrot.slane %v4273, 2
  %v4478 = vrot.slane %v4274, 2
  %v4479 = vsel %vm3279, %v4477, %v4478
  %v4480 = vrot.slane %v4275, 2
  %v4481 = vsel %vm3279, %v4478, %v4480
  %v4482 = vrot.slane %v4276, 2
  %v4483 = vrot.slane %v4277, 2
  %v4484 = vsel %vm3279, %v4482, %v4483
  %v4485 = vrot.slane %v4278, 2
  %v4486 = vsel %vm3279, %v4483, %v4485
  %v4487 = vrot.slane %v4279, 2
  %v4488 = vrot.slane %v4280, 2
  %v4489 = vsel %vm3279, %v4487, %v4488
  %v4490 = vrot.slane %v4281, 2
  %v4491 = vsel %vm3279, %v4488, %v4490
  %v4492 = vrot.slane %v4282, 2
  %v4493 = vrot.slane %v4283, 2
  %v4494 = vsel %vm3279, %v4492, %v4493
  %v4495 = vrot.slane %v4284, 2
  %v4496 = vsel %vm3279, %v4493, %v4495
  %v4497 = vrot.slane %v4285, 2
  %v4498 = vrot.slane %v4286, 2
  %v4499 = vsel %vm3279, %v4497, %v4498
  %v4500 = vrot.slane %v4287, 2
  %v4501 = vsel %vm3279, %v4498, %v4500
  %v4502 = vrot.slane %v4288, 2
  %v4503 = vrot.slane %v4289, 2
  %v4504 = vsel %vm3279, %v4502, %v4503
  %v4505 = vrot.slane %v4290, 2
  %v4506 = vsel %vm3279, %v4503, %v4505
  %v4507 = vrot.slane %v4291, 2
  %v4508 = vrot.slane %v4292, 2
  %v4509 = vsel %vm3279, %v4507, %v4508
  %v4510 = vrot.slane %v4293, 2
  %v4511 = vsel %vm3279, %v4508, %v4510
  %v4512 = vrot.slane %v4294, 2
  %v4513 = vrot.slane %v4295, 2
  %v4514 = vsel %vm3279, %v4512, %v4513
  %v4515 = vrot.slane %v4296, 2
  %v4516 = vsel %vm3279, %v4513, %v4515
  %v4517 = vrot.slane %v4297, 2
  %v4518 = vrot.slane %v4298, 2
  %v4519 = vsel %vm3279, %v4517, %v4518
  %v4520 = vrot.slane %v4299, 2
  %v4521 = vsel %vm3279, %v4518, %v4520
  %v4522 = vrot.slane %v4300, 2
  %v4523 = vrot.slane %v4301, 2
  %v4524 = vsel %vm3279, %v4522, %v4523
  %v4525 = vrot.slane %v4302, 2
  %v4526 = vsel %vm3279, %v4523, %v4525
  %v4527 = vrot.slane %v4303, 2
  %v4528 = vrot.slane %v4304, 2
  %v4529 = vsel %vm3279, %v4527, %v4528
  %v4530 = vrot.slane %v4305, 2
  %v4531 = vsel %vm3279, %v4528, %v4530
  %v4532 = vrot.slane %v4306, 2
  %v4533 = vrot.slane %v4307, 2
  %v4534 = vsel %vm3279, %v4532, %v4533
  %v4535 = vrot.slane %v4308, 2
  %v4536 = vsel %vm3279, %v4533, %v4535
  %v4537 = vrot.slane %v4309, 2
  %v4538 = vrot.slane %v4310, 2
  %v4539 = vsel %vm3279, %v4537, %v4538
  %v4540 = vrot.slane %v4311, 2
  %v4541 = vsel %vm3279, %v4538, %v4540
  %v4542 = vrot.slane %v4312, 2
  %v4543 = vrot.slane %v4313, 2
  %v4544 = vsel %vm3279, %v4542, %v4543
  %v4545 = vrot.slane %v4314, 2
  %v4546 = vsel %vm3279, %v4543, %v4545
  %v4547 = vrot.slane %v4315, 2
  %v4548 = vrot.slane %v4316, 2
  %v4549 = vsel %vm3279, %v4547, %v4548
  %v4550 = vrot.slane %v4317, 2
  %v4551 = vsel %vm3279, %v4548, %v4550
  %v4552 = vrot.slane %v4318, 2
  %v4553 = vrot.slane %v4319, 2
  %v4554 = vsel %vm3279, %v4552, %v4553
  %v4555 = vrot.slane %v4320, 2
  %v4556 = vsel %vm3279, %v4553, %v4555
  %v4557 = vrot.slane %v4321, 2
  %v4558 = vrot.slane %v4322, 2
  %v4559 = vsel %vm3279, %v4557, %v4558
  %v4560 = vrot.slane %v4323, 2
  %v4561 = vsel %vm3279, %v4558, %v4560
  %v4562 = vrot.slane %v4324, 2
  %v4563 = vrot.slane %v4325, 2
  %v4564 = vsel %vm3279, %v4562, %v4563
  %v4565 = vrot.slane %v4326, 2
  %v4566 = vsel %vm3279, %v4563, %v4565
  %v4567 = vrot.slane %v4327, 2
  %v4568 = vrot.slane %v4328, 2
  %v4569 = vsel %vm3279, %v4567, %v4568
  %v4570 = vrot.slane %v4329, 2
  %v4571 = vsel %vm3279, %v4568, %v4570
  %v4572 = vrot.slane %v4330, 2
  %v4573 = vrot.slane %v4331, 2
  %v4574 = vsel %vm3279, %v4572, %v4573
  %v4575 = vrot.slane %v4332, 2
  %v4576 = vsel %vm3279, %v4573, %v4575
  %v4577 = vrot.slane %v4333, 2
  %v4578 = vrot.slane %v4334, 2
  %v4579 = vsel %vm3279, %v4577, %v4578
  %v4580 = vrot.slane %v4335, 2
  %v4581 = vsel %vm3279, %v4578, %v4580
  %v4582 = vrot.slane %v4336, 2
  %v4583 = vrot.slane %v4337, 2
  %v4584 = vsel %vm3279, %v4582, %v4583
  %v4585 = vrot.slane %v4338, 2
  %v4586 = vsel %vm3279, %v4583, %v4585
  %v4587 = vrot.slane %v4339, 2
  %v4588 = vrot.slane %v4340, 2
  %v4589 = vsel %vm3279, %v4587, %v4588
  %v4590 = vrot.slane %v4341, 2
  %v4591 = vsel %vm3279, %v4588, %v4590
  %v4592 = vrot.slane %v4342, 2
  %v4593 = vrot.slane %v4343, 2
  %v4594 = vsel %vm3279, %v4592, %v4593
  %v4595 = vrot.slane %v4344, 2
  %v4596 = vsel %vm3279, %v4593, %v4595
  %v4597 = vrot.slane %v4345, 2
  %v4598 = vrot.slane %v4346, 2
  %v4599 = vsel %vm3279, %v4597, %v4598
  %v4600 = vrot.slane %v4347, 2
  %v4601 = vsel %vm3279, %v4598, %v4600
  %v4602 = vrot.slane %v4348, 2
  %v4603 = vrot.slane %v4349, 2
  %v4604 = vsel %vm3279, %v4602, %v4603
  %v4605 = vrot.slane %v4350, 2
  %v4606 = vsel %vm3279, %v4603, %v4605
  %v4703 = vadd.f32 %v4154, %v4447
  %v4704 = vadd.f32 %v4155, %v4449
  %v4705 = vadd.f32 %v4156, %v4451
  %v4706 = vadd.f32 %v4157, %v4452
  %v4707 = vadd.f32 %v4158, %v4454
  %v4708 = vadd.f32 %v4159, %v4456
  %v4709 = vadd.f32 %v4160, %v4457
  %v4710 = vadd.f32 %v4161, %v4459
  %v4711 = vadd.f32 %v4162, %v4461
  %v4712 = vadd.f32 %v4163, %v4462
  %v4713 = vadd.f32 %v4164, %v4464
  %v4714 = vadd.f32 %v4165, %v4466
  %v4715 = vadd.f32 %v4166, %v4467
  %v4716 = vadd.f32 %v4167, %v4469
  %v4717 = vadd.f32 %v4168, %v4471
  %v4718 = vadd.f32 %v4169, %v4472
  %v4719 = vadd.f32 %v4170, %v4474
  %v4720 = vadd.f32 %v4171, %v4476
  %v4721 = vadd.f32 %v4172, %v4477
  %v4722 = vadd.f32 %v4173, %v4479
  %v4723 = vadd.f32 %v4174, %v4481
  %v4724 = vadd.f32 %v4175, %v4482
  %v4725 = vadd.f32 %v4176, %v4484
  %v4726 = vadd.f32 %v4177, %v4486
  %v4727 = vadd.f32 %v4178, %v4487
  %v4728 = vadd.f32 %v4179, %v4489
  %v4729 = vadd.f32 %v4180, %v4491
  %v4730 = vadd.f32 %v4181, %v4492
  %v4731 = vadd.f32 %v4182, %v4494
  %v4732 = vadd.f32 %v4183, %v4496
  %v4733 = vadd.f32 %v4184, %v4497
  %v4734 = vadd.f32 %v4185, %v4499
  %v4735 = vadd.f32 %v4186, %v4501
  %v4736 = vadd.f32 %v4187, %v4502
  %v4737 = vadd.f32 %v4188, %v4504
  %v4738 = vadd.f32 %v4189, %v4506
  %v4739 = vadd.f32 %v4190, %v4507
  %v4740 = vadd.f32 %v4191, %v4509
  %v4741 = vadd.f32 %v4192, %v4511
  %v4742 = vadd.f32 %v4193, %v4512
  %v4743 = vadd.f32 %v4194, %v4514
  %v4744 = vadd.f32 %v4195, %v4516
  %v4745 = vadd.f32 %v4196, %v4517
  %v4746 = vadd.f32 %v4197, %v4519
  %v4747 = vadd.f32 %v4198, %v4521
  %v4748 = vadd.f32 %v4199, %v4522
  %v4749 = vadd.f32 %v4200, %v4524
  %v4750 = vadd.f32 %v4201, %v4526
  %v4751 = vadd.f32 %v4202, %v4527
  %v4752 = vadd.f32 %v4203, %v4529
  %v4753 = vadd.f32 %v4204, %v4531
  %v4754 = vadd.f32 %v4205, %v4532
  %v4755 = vadd.f32 %v4206, %v4534
  %v4756 = vadd.f32 %v4207, %v4536
  %v4757 = vadd.f32 %v4208, %v4537
  %v4758 = vadd.f32 %v4209, %v4539
  %v4759 = vadd.f32 %v4210, %v4541
  %v4760 = vadd.f32 %v4211, %v4542
  %v4761 = vadd.f32 %v4212, %v4544
  %v4762 = vadd.f32 %v4213, %v4546
  %v4763 = vadd.f32 %v4214, %v4547
  %v4764 = vadd.f32 %v4215, %v4549
  %v4765 = vadd.f32 %v4216, %v4551
  %v4766 = vadd.f32 %v4217, %v4552
  %v4767 = vadd.f32 %v4218, %v4554
  %v4768 = vadd.f32 %v4219, %v4556
  %v4769 = vadd.f32 %v4220, %v4557
  %v4770 = vadd.f32 %v4221, %v4559
  %v4771 = vadd.f32 %v4222, %v4561
  %v4772 = vadd.f32 %v4223, %v4562
  %v4773 = vadd.f32 %v4224, %v4564
  %v4774 = vadd.f32 %v4225, %v4566
  %v4775 = vadd.f32 %v4226, %v4567
  %v4776 = vadd.f32 %v4227, %v4569
  %v4777 = vadd.f32 %v4228, %v4571
  %v4778 = vadd.f32 %v4229, %v4572
  %v4779 = vadd.f32 %v4230, %v4574
  %v4780 = vadd.f32 %v4231, %v4576
  %v4781 = vadd.f32 %v4232, %v4577
  %v4782 = vadd.f32 %v4233, %v4579
  %v4783 = vadd.f32 %v4234, %v4581
  %v4784 = vadd.f32 %v4235, %v4582
  %v4785 = vadd.f32 %v4236, %v4584
  %v4786 = vadd.f32 %v4237, %v4586
  %v4787 = vadd.f32 %v4238, %v4587
  %v4788 = vadd.f32 %v4239, %v4589
  %v4789 = vadd.f32 %v4240, %v4591
  %v4790 = vadd.f32 %v4241, %v4592
  %v4791 = vadd.f32 %v4242, %v4594
  %v4792 = vadd.f32 %v4243, %v4596
  %v4793 = vadd.f32 %v4244, %v4597
  %v4794 = vadd.f32 %v4245, %v4599
  %v4795 = vadd.f32 %v4246, %v4601
  %v4796 = vadd.f32 %v4247, %v4602
  %v4797 = vadd.f32 %v4248, %v4604
  %v4798 = vadd.f32 %v4249, %v4606
  %v4799 = vld [vmem:[%s4 + $0x6] sm:$0x1]
  %v4800 = vlaneseq
  %v4801 = vshrl.u32 %v4800, 7
  %v4802 = vsub.s32 0, %v4801
  %v4803 = vrot.slane %v4799, %v4802
  %v4804 = vmul.f32 %v2327, %v4803
  %v4805 = vmul.f32 %v2328, %v4803
  %v4806 = vmul.f32 %v2329, %v4803
  %v4807 = vmul.f32 %v2331, %v4803
  %v4808 = vmul.f32 %v2332, %v4803
  %v4809 = vmul.f32 %v2333, %v4803
  %v4810 = vmul.f32 %v2335, %v4803
  %v4811 = vmul.f32 %v2336, %v4803
  %v4812 = vmul.f32 %v2337, %v4803
  %v4813 = vmul.f32 %v2339, %v4803
  %v4814 = vmul.f32 %v2340, %v4803
  %v4815 = vmul.f32 %v2341, %v4803
  %v4816 = vmul.f32 %v2343, %v4803
  %v4817 = vmul.f32 %v2344, %v4803
  %v4818 = vmul.f32 %v2345, %v4803
  %v4819 = vmul.f32 %v2347, %v4803
  %v4820 = vmul.f32 %v2348, %v4803
  %v4821 = vmul.f32 %v2349, %v4803
  %v4822 = vmul.f32 %v2351, %v4803
  %v4823 = vmul.f32 %v2352, %v4803
  %v4824 = vmul.f32 %v2353, %v4803
  %v4825 = vmul.f32 %v2355, %v4803
  %v4826 = vmul.f32 %v2356, %v4803
  %v4827 = vmul.f32 %v2357, %v4803
  %v4828 = vmul.f32 %v2359, %v4803
  %v4829 = vmul.f32 %v2360, %v4803
  %v4830 = vmul.f32 %v2361, %v4803
  %v4831 = vmul.f32 %v2363, %v4803
  %v4832 = vmul.f32 %v2364, %v4803
  %v4833 = vmul.f32 %v2365, %v4803
  %v4834 = vmul.f32 %v2367, %v4803
  %v4835 = vmul.f32 %v2368, %v4803
  %v4836 = vmul.f32 %v2369, %v4803
  %v4837 = vmul.f32 %v2371, %v4803
  %v4838 = vmul.f32 %v2372, %v4803
  %v4839 = vmul.f32 %v2373, %v4803
  %v4840 = vmul.f32 %v2375, %v4803
  %v4841 = vmul.f32 %v2376, %v4803
  %v4842 = vmul.f32 %v2377, %v4803
  %v4843 = vmul.f32 %v2379, %v4803
  %v4844 = vmul.f32 %v2380, %v4803
  %v4845 = vmul.f32 %v2381, %v4803
  %v4846 = vmul.f32 %v2383, %v4803
  %v4847 = vmul.f32 %v2384, %v4803
  %v4848 = vmul.f32 %v2385, %v4803
  %v4849 = vmul.f32 %v2387, %v4803
  %v4850 = vmul.f32 %v2388, %v4803
  %v4851 = vmul.f32 %v2389, %v4803
  %v4852 = vmul.f32 %v2399, %v4803
  %v4853 = vmul.f32 %v2400, %v4803
  %v4854 = vmul.f32 %v2401, %v4803
  %v4855 = vmul.f32 %v2403, %v4803
  %v4856 = vmul.f32 %v2404, %v4803
  %v4857 = vmul.f32 %v2405, %v4803
  %v4858 = vmul.f32 %v2407, %v4803
  %v4859 = vmul.f32 %v2408, %v4803
  %v4860 = vmul.f32 %v2409, %v4803
  %v4861 = vmul.f32 %v2411, %v4803
  %v4862 = vmul.f32 %v2412, %v4803
  %v4863 = vmul.f32 %v2413, %v4803
  %v4864 = vmul.f32 %v2415, %v4803
  %v4865 = vmul.f32 %v2416, %v4803
  %v4866 = vmul.f32 %v2417, %v4803
  %v4867 = vmul.f32 %v2419, %v4803
  %v4868 = vmul.f32 %v2420, %v4803
  %v4869 = vmul.f32 %v2421, %v4803
  %v4870 = vmul.f32 %v2423, %v4803
  %v4871 = vmul.f32 %v2424, %v4803
  %v4872 = vmul.f32 %v2425, %v4803
  %v4873 = vmul.f32 %v2427, %v4803
  %v4874 = vmul.f32 %v2428, %v4803
  %v4875 = vmul.f32 %v2429, %v4803
  %v4876 = vmul.f32 %v2431, %v4803
  %v4877 = vmul.f32 %v2432, %v4803
  %v4878 = vmul.f32 %v2433, %v4803
  %v4879 = vmul.f32 %v2435, %v4803
  %v4880 = vmul.f32 %v2436, %v4803
  %v4881 = vmul.f32 %v2437, %v4803
  %v4882 = vmul.f32 %v2439, %v4803
  %v4883 = vmul.f32 %v2440, %v4803
  %v4884 = vmul.f32 %v2441, %v4803
  %v4885 = vmul.f32 %v2443, %v4803
  %v4886 = vmul.f32 %v2444, %v4803
  %v4887 = vmul.f32 %v2445, %v4803
  %v4888 = vmul.f32 %v2447, %v4803
  %v4889 = vmul.f32 %v2448, %v4803
  %v4890 = vmul.f32 %v2449, %v4803
  %v4891 = vmul.f32 %v2451, %v4803
  %v4892 = vmul.f32 %v2452, %v4803
  %v4893 = vmul.f32 %v2453, %v4803
  %v4894 = vmul.f32 %v2455, %v4803
  %v4895 = vmul.f32 %v2456, %v4803
  %v4896 = vmul.f32 %v2457, %v4803
  %v4897 = vmul.f32 %v2459, %v4803
  %v4898 = vmul.f32 %v2460, %v4803
  %v4899 = vmul.f32 %v2461, %v4803
  %v4900 = vadd.f32 %v4703, %v4804
  %v4901 = vadd.f32 %v4704, %v4805
  %v4902 = vadd.f32 %v4705, %v4806
  %v4903 = vadd.f32 %v4706, %v4807
  %v4904 = vadd.f32 %v4707, %v4808
  %v4905 = vadd.f32 %v4708, %v4809
  %v4906 = vadd.f32 %v4709, %v4810
  %v4907 = vadd.f32 %v4710, %v4811
  %v4908 = vadd.f32 %v4711, %v4812
  %v4909 = vadd.f32 %v4712, %v4813
  %v4910 = vadd.f32 %v4713, %v4814
  %v4911 = vadd.f32 %v4714, %v4815
  %v4912 = vadd.f32 %v4715, %v4816
  %v4913 = vadd.f32 %v4716, %v4817
  %v4914 = vadd.f32 %v4717, %v4818
  %v4915 = vadd.f32 %v4718, %v4819
  %v4916 = vadd.f32 %v4719, %v4820
  %v4917 = vadd.f32 %v4720, %v4821
  %v4918 = vadd.f32 %v4721, %v4822
  %v4919 = vadd.f32 %v4722, %v4823
  %v4920 = vadd.f32 %v4723, %v4824
  %v4921 = vadd.f32 %v4724, %v4825
  %v4922 = vadd.f32 %v4725, %v4826
  %v4923 = vadd.f32 %v4726, %v4827
  %v4924 = vadd.f32 %v4727, %v4828
  %v4925 = vadd.f32 %v4728, %v4829
  %v4926 = vadd.f32 %v4729, %v4830
  %v4927 = vadd.f32 %v4730, %v4831
  %v4928 = vadd.f32 %v4731, %v4832
  %v4929 = vadd.f32 %v4732, %v4833
  %v4930 = vadd.f32 %v4733, %v4834
  %v4931 = vadd.f32 %v4734, %v4835
  %v4932 = vadd.f32 %v4735, %v4836
  %v4933 = vadd.f32 %v4736, %v4837
  %v4934 = vadd.f32 %v4737, %v4838
  %v4935 = vadd.f32 %v4738, %v4839
  %v4936 = vadd.f32 %v4739, %v4840
  %v4937 = vadd.f32 %v4740, %v4841
  %v4938 = vadd.f32 %v4741, %v4842
  %v4939 = vadd.f32 %v4742, %v4843
  %v4940 = vadd.f32 %v4743, %v4844
  %v4941 = vadd.f32 %v4744, %v4845
  %v4942 = vadd.f32 %v4745, %v4846
  %v4943 = vadd.f32 %v4746, %v4847
  %v4944 = vadd.f32 %v4747, %v4848
  %v4945 = vadd.f32 %v4748, %v4849
  %v4946 = vadd.f32 %v4749, %v4850
  %v4947 = vadd.f32 %v4750, %v4851
  %v4948 = vadd.f32 %v4751, %v4852
  %v4949 = vadd.f32 %v4752, %v4853
  %v4950 = vadd.f32 %v4753, %v4854
  %v4951 = vadd.f32 %v4754, %v4855
  %v4952 = vadd.f32 %v4755, %v4856
  %v4953 = vadd.f32 %v4756, %v4857
  %v4954 = vadd.f32 %v4757, %v4858
  %v4955 = vadd.f32 %v4758, %v4859
  %v4956 = vadd.f32 %v4759, %v4860
  %v4957 = vadd.f32 %v4760, %v4861
  %v4958 = vadd.f32 %v4761, %v4862
  %v4959 = vadd.f32 %v4762, %v4863
  %v4960 = vadd.f32 %v4763, %v4864
  %v4961 = vadd.f32 %v4764, %v4865
  %v4962 = vadd.f32 %v4765, %v4866
  %v4963 = vadd.f32 %v4766, %v4867
  %v4964 = vadd.f32 %v4767, %v4868
  %v4965 = vadd.f32 %v4768, %v4869
  %v4966 = vadd.f32 %v4769, %v4870
  %v4967 = vadd.f32 %v4770, %v4871
  %v4968 = vadd.f32 %v4771, %v4872
  %v4969 = vadd.f32 %v4772, %v4873
  %v4970 = vadd.f32 %v4773, %v4874
  %v4971 = vadd.f32 %v4774, %v4875
  %v4972 = vadd.f32 %v4775, %v4876
  %v4973 = vadd.f32 %v4776, %v4877
  %v4974 = vadd.f32 %v4777, %v4878
  %v4975 = vadd.f32 %v4778, %v4879
  %v4976 = vadd.f32 %v4779, %v4880
  %v4977 = vadd.f32 %v4780, %v4881
  %v4978 = vadd.f32 %v4781, %v4882
  %v4979 = vadd.f32 %v4782, %v4883
  %v4980 = vadd.f32 %v4783, %v4884
  %v4981 = vadd.f32 %v4784, %v4885
  %v4982 = vadd.f32 %v4785, %v4886
  %v4983 = vadd.f32 %v4786, %v4887
  %v4984 = vadd.f32 %v4787, %v4888
  %v4985 = vadd.f32 %v4788, %v4889
  %v4986 = vadd.f32 %v4789, %v4890
  %v4987 = vadd.f32 %v4790, %v4891
  %v4988 = vadd.f32 %v4791, %v4892
  %v4989 = vadd.f32 %v4792, %v4893
  %v4990 = vadd.f32 %v4793, %v4894
  %v4991 = vadd.f32 %v4794, %v4895
  %v4992 = vadd.f32 %v4795, %v4896
  %v4993 = vadd.f32 %v4796, %v4897
  %v4994 = vadd.f32 %v4797, %v4898
  %v4995 = vadd.f32 %v4798, %v4899
  %v4996 = vld [vmem:[%s4 + $0x7] sm:$0x1]
  %v4997 = vlaneseq
  %v4998 = vshrl.u32 %v4997, 7
  %v4999 = vsub.s32 0, %v4998
  %v5000 = vrot.slane %v4996, %v4999
  %v5001 = vmul.f32 %v2328, %v5000
  %v5002 = vmul.f32 %v2329, %v5000
  %v5003 = vmul.f32 %v2332, %v5000
  %v5004 = vmul.f32 %v2333, %v5000
  %v5005 = vmul.f32 %v2336, %v5000
  %v5006 = vmul.f32 %v2337, %v5000
  %v5007 = vmul.f32 %v2340, %v5000
  %v5008 = vmul.f32 %v2341, %v5000
  %v5009 = vmul.f32 %v2344, %v5000
  %v5010 = vmul.f32 %v2345, %v5000
  %v5011 = vmul.f32 %v2348, %v5000
  %v5012 = vmul.f32 %v2349, %v5000
  %v5013 = vmul.f32 %v2352, %v5000
  %v5014 = vmul.f32 %v2353, %v5000
  %v5015 = vmul.f32 %v2356, %v5000
  %v5016 = vmul.f32 %v2357, %v5000
  %v5017 = vmul.f32 %v2360, %v5000
  %v5018 = vmul.f32 %v2361, %v5000
  %v5019 = vmul.f32 %v2364, %v5000
  %v5020 = vmul.f32 %v2365, %v5000
  %v5021 = vmul.f32 %v2368, %v5000
  %v5022 = vmul.f32 %v2369, %v5000
  %v5023 = vmul.f32 %v2372, %v5000
  %v5024 = vmul.f32 %v2373, %v5000
  %v5025 = vmul.f32 %v2376, %v5000
  %v5026 = vmul.f32 %v2377, %v5000
  %v5027 = vmul.f32 %v2380, %v5000
  %v5028 = vmul.f32 %v2381, %v5000
  %v5029 = vmul.f32 %v2384, %v5000
  %v5030 = vmul.f32 %v2385, %v5000
  %v5031 = vmul.f32 %v2388, %v5000
  %v5032 = vmul.f32 %v2389, %v5000
  %v5033 = vmul.f32 %v2400, %v5000
  %v5034 = vmul.f32 %v2401, %v5000
  %v5035 = vmul.f32 %v2404, %v5000
  %v5036 = vmul.f32 %v2405, %v5000
  %v5037 = vmul.f32 %v2408, %v5000
  %v5038 = vmul.f32 %v2409, %v5000
  %v5039 = vmul.f32 %v2412, %v5000
  %v5040 = vmul.f32 %v2413, %v5000
  %v5041 = vmul.f32 %v2416, %v5000
  %v5042 = vmul.f32 %v2417, %v5000
  %v5043 = vmul.f32 %v2420, %v5000
  %v5044 = vmul.f32 %v2421, %v5000
  %v5045 = vmul.f32 %v2424, %v5000
  %v5046 = vmul.f32 %v2425, %v5000
  %v5047 = vmul.f32 %v2428, %v5000
  %v5048 = vmul.f32 %v2429, %v5000
  %v5049 = vmul.f32 %v2432, %v5000
  %v5050 = vmul.f32 %v2433, %v5000
  %v5051 = vmul.f32 %v2436, %v5000
  %v5052 = vmul.f32 %v2437, %v5000
  %v5053 = vmul.f32 %v2440, %v5000
  %v5054 = vmul.f32 %v2441, %v5000
  %v5055 = vmul.f32 %v2444, %v5000
  %v5056 = vmul.f32 %v2445, %v5000
  %v5057 = vmul.f32 %v2448, %v5000
  %v5058 = vmul.f32 %v2449, %v5000
  %v5059 = vmul.f32 %v2452, %v5000
  %v5060 = vmul.f32 %v2453, %v5000
  %v5061 = vmul.f32 %v2456, %v5000
  %v5062 = vmul.f32 %v2457, %v5000
  %v5063 = vmul.f32 %v2460, %v5000
  %v5064 = vmul.f32 %v2461, %v5000
  %v5129 = vrot.slane %v5001, 1
  %v5130 = vrot.slane %v5002, 1
  %v5131 = vsel %vm2793, %v5129, %v5130
  %v5132 = vrot.slane %v5003, 1
  %v5133 = vrot.slane %v5004, 1
  %v5134 = vsel %vm2793, %v5132, %v5133
  %v5135 = vrot.slane %v5005, 1
  %v5136 = vrot.slane %v5006, 1
  %v5137 = vsel %vm2793, %v5135, %v5136
  %v5138 = vrot.slane %v5007, 1
  %v5139 = vrot.slane %v5008, 1
  %v5140 = vsel %vm2793, %v5138, %v5139
  %v5141 = vrot.slane %v5009, 1
  %v5142 = vrot.slane %v5010, 1
  %v5143 = vsel %vm2793, %v5141, %v5142
  %v5144 = vrot.slane %v5011, 1
  %v5145 = vrot.slane %v5012, 1
  %v5146 = vsel %vm2793, %v5144, %v5145
  %v5147 = vrot.slane %v5013, 1
  %v5148 = vrot.slane %v5014, 1
  %v5149 = vsel %vm2793, %v5147, %v5148
  %v5150 = vrot.slane %v5015, 1
  %v5151 = vrot.slane %v5016, 1
  %v5152 = vsel %vm2793, %v5150, %v5151
  %v5153 = vrot.slane %v5017, 1
  %v5154 = vrot.slane %v5018, 1
  %v5155 = vsel %vm2793, %v5153, %v5154
  %v5156 = vrot.slane %v5019, 1
  %v5157 = vrot.slane %v5020, 1
  %v5158 = vsel %vm2793, %v5156, %v5157
  %v5159 = vrot.slane %v5021, 1
  %v5160 = vrot.slane %v5022, 1
  %v5161 = vsel %vm2793, %v5159, %v5160
  %v5162 = vrot.slane %v5023, 1
  %v5163 = vrot.slane %v5024, 1
  %v5164 = vsel %vm2793, %v5162, %v5163
  %v5165 = vrot.slane %v5025, 1
  %v5166 = vrot.slane %v5026, 1
  %v5167 = vsel %vm2793, %v5165, %v5166
  %v5168 = vrot.slane %v5027, 1
  %v5169 = vrot.slane %v5028, 1
  %v5170 = vsel %vm2793, %v5168, %v5169
  %v5171 = vrot.slane %v5029, 1
  %v5172 = vrot.slane %v5030, 1
  %v5173 = vsel %vm2793, %v5171, %v5172
  %v5174 = vrot.slane %v5031, 1
  %v5175 = vrot.slane %v5032, 1
  %v5176 = vsel %vm2793, %v5174, %v5175
  %v5177 = vrot.slane %v5033, 1
  %v5178 = vrot.slane %v5034, 1
  %v5179 = vsel %vm2793, %v5177, %v5178
  %v5180 = vrot.slane %v5035, 1
  %v5181 = vrot.slane %v5036, 1
  %v5182 = vsel %vm2793, %v5180, %v5181
  %v5183 = vrot.slane %v5037, 1
  %v5184 = vrot.slane %v5038, 1
  %v5185 = vsel %vm2793, %v5183, %v5184
  %v5186 = vrot.slane %v5039, 1
  %v5187 = vrot.slane %v5040, 1
  %v5188 = vsel %vm2793, %v5186, %v5187
  %v5189 = vrot.slane %v5041, 1
  %v5190 = vrot.slane %v5042, 1
  %v5191 = vsel %vm2793, %v5189, %v5190
  %v5192 = vrot.slane %v5043, 1
  %v5193 = vrot.slane %v5044, 1
  %v5194 = vsel %vm2793, %v5192, %v5193
  %v5195 = vrot.slane %v5045, 1
  %v5196 = vrot.slane %v5046, 1
  %v5197 = vsel %vm2793, %v5195, %v5196
  %v5198 = vrot.slane %v5047, 1
  %v5199 = vrot.slane %v5048, 1
  %v5200 = vsel %vm2793, %v5198, %v5199
  %v5201 = vrot.slane %v5049, 1
  %v5202 = vrot.slane %v5050, 1
  %v5203 = vsel %vm2793, %v5201, %v5202
  %v5204 = vrot.slane %v5051, 1
  %v5205 = vrot.slane %v5052, 1
  %v5206 = vsel %vm2793, %v5204, %v5205
  %v5207 = vrot.slane %v5053, 1
  %v5208 = vrot.slane %v5054, 1
  %v5209 = vsel %vm2793, %v5207, %v5208
  %v5210 = vrot.slane %v5055, 1
  %v5211 = vrot.slane %v5056, 1
  %v5212 = vsel %vm2793, %v5210, %v5211
  %v5213 = vrot.slane %v5057, 1
  %v5214 = vrot.slane %v5058, 1
  %v5215 = vsel %vm2793, %v5213, %v5214
  %v5216 = vrot.slane %v5059, 1
  %v5217 = vrot.slane %v5060, 1
  %v5218 = vsel %vm2793, %v5216, %v5217
  %v5219 = vrot.slane %v5061, 1
  %v5220 = vrot.slane %v5062, 1
  %v5221 = vsel %vm2793, %v5219, %v5220
  %v5222 = vrot.slane %v5063, 1
  %v5223 = vrot.slane %v5064, 1
  %v5224 = vsel %vm2793, %v5222, %v5223
  %v5321 = vadd.f32 %v4900, %v5129
  %v5322 = vadd.f32 %v4901, %v5131
  %v5323 = vadd.f32 %v4902, %v5130
  %v5324 = vadd.f32 %v4903, %v5132
  %v5325 = vadd.f32 %v4904, %v5134
  %v5326 = vadd.f32 %v4905, %v5133
  %v5327 = vadd.f32 %v4906, %v5135
  %v5328 = vadd.f32 %v4907, %v5137
  %v5329 = vadd.f32 %v4908, %v5136
  %v5330 = vadd.f32 %v4909, %v5138
  %v5331 = vadd.f32 %v4910, %v5140
  %v5332 = vadd.f32 %v4911, %v5139
  %v5333 = vadd.f32 %v4912, %v5141
  %v5334 = vadd.f32 %v4913, %v5143
  %v5335 = vadd.f32 %v4914, %v5142
  %v5336 = vadd.f32 %v4915, %v5144
  %v5337 = vadd.f32 %v4916, %v5146
  %v5338 = vadd.f32 %v4917, %v5145
  %v5339 = vadd.f32 %v4918, %v5147
  %v5340 = vadd.f32 %v4919, %v5149
  %v5341 = vadd.f32 %v4920, %v5148
  %v5342 = vadd.f32 %v4921, %v5150
  %v5343 = vadd.f32 %v4922, %v5152
  %v5344 = vadd.f32 %v4923, %v5151
  %v5345 = vadd.f32 %v4924, %v5153
  %v5346 = vadd.f32 %v4925, %v5155
  %v5347 = vadd.f32 %v4926, %v5154
  %v5348 = vadd.f32 %v4927, %v5156
  %v5349 = vadd.f32 %v4928, %v5158
  %v5350 = vadd.f32 %v4929, %v5157
  %v5351 = vadd.f32 %v4930, %v5159
  %v5352 = vadd.f32 %v4931, %v5161
  %v5353 = vadd.f32 %v4932, %v5160
  %v5354 = vadd.f32 %v4933, %v5162
  %v5355 = vadd.f32 %v4934, %v5164
  %v5356 = vadd.f32 %v4935, %v5163
  %v5357 = vadd.f32 %v4936, %v5165
  %v5358 = vadd.f32 %v4937, %v5167
  %v5359 = vadd.f32 %v4938, %v5166
  %v5360 = vadd.f32 %v4939, %v5168
  %v5361 = vadd.f32 %v4940, %v5170
  %v5362 = vadd.f32 %v4941, %v5169
  %v5363 = vadd.f32 %v4942, %v5171
  %v5364 = vadd.f32 %v4943, %v5173
  %v5365 = vadd.f32 %v4944, %v5172
  %v5366 = vadd.f32 %v4945, %v5174
  %v5367 = vadd.f32 %v4946, %v5176
  %v5368 = vadd.f32 %v4947, %v5175
  %v5369 = vadd.f32 %v4948, %v5177
  %v5370 = vadd.f32 %v4949, %v5179
  %v5371 = vadd.f32 %v4950, %v5178
  %v5372 = vadd.f32 %v4951, %v5180
  %v5373 = vadd.f32 %v4952, %v5182
  %v5374 = vadd.f32 %v4953, %v5181
  %v5375 = vadd.f32 %v4954, %v5183
  %v5376 = vadd.f32 %v4955, %v5185
  %v5377 = vadd.f32 %v4956, %v5184
  %v5378 = vadd.f32 %v4957, %v5186
  %v5379 = vadd.f32 %v4958, %v5188
  %v5380 = vadd.f32 %v4959, %v5187
  %v5381 = vadd.f32 %v4960, %v5189
  %v5382 = vadd.f32 %v4961, %v5191
  %v5383 = vadd.f32 %v4962, %v5190
  %v5384 = vadd.f32 %v4963, %v5192
  %v5385 = vadd.f32 %v4964, %v5194
  %v5386 = vadd.f32 %v4965, %v5193
  %v5387 = vadd.f32 %v4966, %v5195
  %v5388 = vadd.f32 %v4967, %v5197
  %v5389 = vadd.f32 %v4968, %v5196
  %v5390 = vadd.f32 %v4969, %v5198
  %v5391 = vadd.f32 %v4970, %v5200
  %v5392 = vadd.f32 %v4971, %v5199
  %v5393 = vadd.f32 %v4972, %v5201
  %v5394 = vadd.f32 %v4973, %v5203
  %v5395 = vadd.f32 %v4974, %v5202
  %v5396 = vadd.f32 %v4975, %v5204
  %v5397 = vadd.f32 %v4976, %v5206
  %v5398 = vadd.f32 %v4977, %v5205
  %v5399 = vadd.f32 %v4978, %v5207
  %v5400 = vadd.f32 %v4979, %v5209
  %v5401 = vadd.f32 %v4980, %v5208
  %v5402 = vadd.f32 %v4981, %v5210
  %v5403 = vadd.f32 %v4982, %v5212
  %v5404 = vadd.f32 %v4983, %v5211
  %v5405 = vadd.f32 %v4984, %v5213
  %v5406 = vadd.f32 %v4985, %v5215
  %v5407 = vadd.f32 %v4986, %v5214
  %v5408 = vadd.f32 %v4987, %v5216
  %v5409 = vadd.f32 %v4988, %v5218
  %v5410 = vadd.f32 %v4989, %v5217
  %v5411 = vadd.f32 %v4990, %v5219
  %v5412 = vadd.f32 %v4991, %v5221
  %v5413 = vadd.f32 %v4992, %v5220
  %v5414 = vadd.f32 %v4993, %v5222
  %v5415 = vadd.f32 %v4994, %v5224
  %v5416 = vadd.f32 %v4995, %v5223
  %v5417 = vld [vmem:[%s4 + $0x8] sm:$0x1]
  %v5418 = vlaneseq
  %v5419 = vshrl.u32 %v5418, 7
  %v5420 = vsub.s32 0, %v5419
  %v5421 = vrot.slane %v5417, %v5420
  %v5422 = vmul.f32 %v2328, %v5421
  %v5423 = vmul.f32 %v2329, %v5421
  %v5424 = vmul.f32 %v2330, %v5421
  %v5425 = vmul.f32 %v2332, %v5421
  %v5426 = vmul.f32 %v2333, %v5421
  %v5427 = vmul.f32 %v2334, %v5421
  %v5428 = vmul.f32 %v2336, %v5421
  %v5429 = vmul.f32 %v2337, %v5421
  %v5430 = vmul.f32 %v2338, %v5421
  %v5431 = vmul.f32 %v2340, %v5421
  %v5432 = vmul.f32 %v2341, %v5421
  %v5433 = vmul.f32 %v2342, %v5421
  %v5434 = vmul.f32 %v2344, %v5421
  %v5435 = vmul.f32 %v2345, %v5421
  %v5436 = vmul.f32 %v2346, %v5421
  %v5437 = vmul.f32 %v2348, %v5421
  %v5438 = vmul.f32 %v2349, %v5421
  %v5439 = vmul.f32 %v2350, %v5421
  %v5440 = vmul.f32 %v2352, %v5421
  %v5441 = vmul.f32 %v2353, %v5421
  %v5442 = vmul.f32 %v2354, %v5421
  %v5443 = vmul.f32 %v2356, %v5421
  %v5444 = vmul.f32 %v2357, %v5421
  %v5445 = vmul.f32 %v2358, %v5421
  %v5446 = vmul.f32 %v2360, %v5421
  %v5447 = vmul.f32 %v2361, %v5421
  %v5448 = vmul.f32 %v2362, %v5421
  %v5449 = vmul.f32 %v2364, %v5421
  %v5450 = vmul.f32 %v2365, %v5421
  %v5451 = vmul.f32 %v2366, %v5421
  %v5452 = vmul.f32 %v2368, %v5421
  %v5453 = vmul.f32 %v2369, %v5421
  %v5454 = vmul.f32 %v2370, %v5421
  %v5455 = vmul.f32 %v2372, %v5421
  %v5456 = vmul.f32 %v2373, %v5421
  %v5457 = vmul.f32 %v2374, %v5421
  %v5458 = vmul.f32 %v2376, %v5421
  %v5459 = vmul.f32 %v2377, %v5421
  %v5460 = vmul.f32 %v2378, %v5421
  %v5461 = vmul.f32 %v2380, %v5421
  %v5462 = vmul.f32 %v2381, %v5421
  %v5463 = vmul.f32 %v2382, %v5421
  %v5464 = vmul.f32 %v2384, %v5421
  %v5465 = vmul.f32 %v2385, %v5421
  %v5466 = vmul.f32 %v2386, %v5421
  %v5467 = vmul.f32 %v2388, %v5421
  %v5468 = vmul.f32 %v2389, %v5421
  %v5469 = vmul.f32 %v2390, %v5421
  %v5470 = vmul.f32 %v2400, %v5421
  %v5471 = vmul.f32 %v2401, %v5421
  %v5472 = vmul.f32 %v2402, %v5421
  %v5473 = vmul.f32 %v2404, %v5421
  %v5474 = vmul.f32 %v2405, %v5421
  %v5475 = vmul.f32 %v2406, %v5421
  %v5476 = vmul.f32 %v2408, %v5421
  %v5477 = vmul.f32 %v2409, %v5421
  %v5478 = vmul.f32 %v2410, %v5421
  %v5479 = vmul.f32 %v2412, %v5421
  %v5480 = vmul.f32 %v2413, %v5421
  %v5481 = vmul.f32 %v2414, %v5421
  %v5482 = vmul.f32 %v2416, %v5421
  %v5483 = vmul.f32 %v2417, %v5421
  %v5484 = vmul.f32 %v2418, %v5421
  %v5485 = vmul.f32 %v2420, %v5421
  %v5486 = vmul.f32 %v2421, %v5421
  %v5487 = vmul.f32 %v2422, %v5421
  %v5488 = vmul.f32 %v2424, %v5421
  %v5489 = vmul.f32 %v2425, %v5421
  %v5490 = vmul.f32 %v2426, %v5421
  %v5491 = vmul.f32 %v2428, %v5421
  %v5492 = vmul.f32 %v2429, %v5421
  %v5493 = vmul.f32 %v2430, %v5421
  %v5494 = vmul.f32 %v2432, %v5421
  %v5495 = vmul.f32 %v2433, %v5421
  %v5496 = vmul.f32 %v2434, %v5421
  %v5497 = vmul.f32 %v2436, %v5421
  %v5498 = vmul.f32 %v2437, %v5421
  %v5499 = vmul.f32 %v2438, %v5421
  %v5500 = vmul.f32 %v2440, %v5421
  %v5501 = vmul.f32 %v2441, %v5421
  %v5502 = vmul.f32 %v2442, %v5421
  %v5503 = vmul.f32 %v2444, %v5421
  %v5504 = vmul.f32 %v2445, %v5421
  %v5505 = vmul.f32 %v2446, %v5421
  %v5506 = vmul.f32 %v2448, %v5421
  %v5507 = vmul.f32 %v2449, %v5421
  %v5508 = vmul.f32 %v2450, %v5421
  %v5509 = vmul.f32 %v2452, %v5421
  %v5510 = vmul.f32 %v2453, %v5421
  %v5511 = vmul.f32 %v2454, %v5421
  %v5512 = vmul.f32 %v2456, %v5421
  %v5513 = vmul.f32 %v2457, %v5421
  %v5514 = vmul.f32 %v2458, %v5421
  %v5515 = vmul.f32 %v2460, %v5421
  %v5516 = vmul.f32 %v2461, %v5421
  %v5517 = vmul.f32 %v2462, %v5421
  %v5614 = vrot.slane %v5422, 2
  %v5615 = vrot.slane %v5423, 2
  %v5616 = vsel %vm3279, %v5614, %v5615
  %v5617 = vrot.slane %v5424, 2
  %v5618 = vsel %vm3279, %v5615, %v5617
  %v5619 = vrot.slane %v5425, 2
  %v5620 = vrot.slane %v5426, 2
  %v5621 = vsel %vm3279, %v5619, %v5620
  %v5622 = vrot.slane %v5427, 2
  %v5623 = vsel %vm3279, %v5620, %v5622
  %v5624 = vrot.slane %v5428, 2
  %v5625 = vrot.slane %v5429, 2
  %v5626 = vsel %vm3279, %v5624, %v5625
  %v5627 = vrot.slane %v5430, 2
  %v5628 = vsel %vm3279, %v5625, %v5627
  %v5629 = vrot.slane %v5431, 2
  %v5630 = vrot.slane %v5432, 2
  %v5631 = vsel %vm3279, %v5629, %v5630
  %v5632 = vrot.slane %v5433, 2
  %v5633 = vsel %vm3279, %v5630, %v5632
  %v5634 = vrot.slane %v5434, 2
  %v5635 = vrot.slane %v5435, 2
  %v5636 = vsel %vm3279, %v5634, %v5635
  %v5637 = vrot.slane %v5436, 2
  %v5638 = vsel %vm3279, %v5635, %v5637
  %v5639 = vrot.slane %v5437, 2
  %v5640 = vrot.slane %v5438, 2
  %v5641 = vsel %vm3279, %v5639, %v5640
  %v5642 = vrot.slane %v5439, 2
  %v5643 = vsel %vm3279, %v5640, %v5642
  %v5644 = vrot.slane %v5440, 2
  %v5645 = vrot.slane %v5441, 2
  %v5646 = vsel %vm3279, %v5644, %v5645
  %v5647 = vrot.slane %v5442, 2
  %v5648 = vsel %vm3279, %v5645, %v5647
  %v5649 = vrot.slane %v5443, 2
  %v5650 = vrot.slane %v5444, 2
  %v5651 = vsel %vm3279, %v5649, %v5650
  %v5652 = vrot.slane %v5445, 2
  %v5653 = vsel %vm3279, %v5650, %v5652
  %v5654 = vrot.slane %v5446, 2
  %v5655 = vrot.slane %v5447, 2
  %v5656 = vsel %vm3279, %v5654, %v5655
  %v5657 = vrot.slane %v5448, 2
  %v5658 = vsel %vm3279, %v5655, %v5657
  %v5659 = vrot.slane %v5449, 2
  %v5660 = vrot.slane %v5450, 2
  %v5661 = vsel %vm3279, %v5659, %v5660
  %v5662 = vrot.slane %v5451, 2
  %v5663 = vsel %vm3279, %v5660, %v5662
  %v5664 = vrot.slane %v5452, 2
  %v5665 = vrot.slane %v5453, 2
  %v5666 = vsel %vm3279, %v5664, %v5665
  %v5667 = vrot.slane %v5454, 2
  %v5668 = vsel %vm3279, %v5665, %v5667
  %v5669 = vrot.slane %v5455, 2
  %v5670 = vrot.slane %v5456, 2
  %v5671 = vsel %vm3279, %v5669, %v5670
  %v5672 = vrot.slane %v5457, 2
  %v5673 = vsel %vm3279, %v5670, %v5672
  %v5674 = vrot.slane %v5458, 2
  %v5675 = vrot.slane %v5459, 2
  %v5676 = vsel %vm3279, %v5674, %v5675
  %v5677 = vrot.slane %v5460, 2
  %v5678 = vsel %vm3279, %v5675, %v5677
  %v5679 = vrot.slane %v5461, 2
  %v5680 = vrot.slane %v5462, 2
  %v5681 = vsel %vm3279, %v5679, %v5680
  %v5682 = vrot.slane %v5463, 2
  %v5683 = vsel %vm3279, %v5680, %v5682
  %v5684 = vrot.slane %v5464, 2
  %v5685 = vrot.slane %v5465, 2
  %v5686 = vsel %vm3279, %v5684, %v5685
  %v5687 = vrot.slane %v5466, 2
  %v5688 = vsel %vm3279, %v5685, %v5687
  %v5689 = vrot.slane %v5467, 2
  %v5690 = vrot.slane %v5468, 2
  %v5691 = vsel %vm3279, %v5689, %v5690
  %v5692 = vrot.slane %v5469, 2
  %v5693 = vsel %vm3279, %v5690, %v5692
  %v5694 = vrot.slane %v5470, 2
  %v5695 = vrot.slane %v5471, 2
  %v5696 = vsel %vm3279, %v5694, %v5695
  %v5697 = vrot.slane %v5472, 2
  %v5698 = vsel %vm3279, %v5695, %v5697
  %v5699 = vrot.slane %v5473, 2
  %v5700 = vrot.slane %v5474, 2
  %v5701 = vsel %vm3279, %v5699, %v5700
  %v5702 = vrot.slane %v5475, 2
  %v5703 = vsel %vm3279, %v5700, %v5702
  %v5704 = vrot.slane %v5476, 2
  %v5705 = vrot.slane %v5477, 2
  %v5706 = vsel %vm3279, %v5704, %v5705
  %v5707 = vrot.slane %v5478, 2
  %v5708 = vsel %vm3279, %v5705, %v5707
  %v5709 = vrot.slane %v5479, 2
  %v5710 = vrot.slane %v5480, 2
  %v5711 = vsel %vm3279, %v5709, %v5710
  %v5712 = vrot.slane %v5481, 2
  %v5713 = vsel %vm3279, %v5710, %v5712
  %v5714 = vrot.slane %v5482, 2
  %v5715 = vrot.slane %v5483, 2
  %v5716 = vsel %vm3279, %v5714, %v5715
  %v5717 = vrot.slane %v5484, 2
  %v5718 = vsel %vm3279, %v5715, %v5717
  %v5719 = vrot.slane %v5485, 2
  %v5720 = vrot.slane %v5486, 2
  %v5721 = vsel %vm3279, %v5719, %v5720
  %v5722 = vrot.slane %v5487, 2
  %v5723 = vsel %vm3279, %v5720, %v5722
  %v5724 = vrot.slane %v5488, 2
  %v5725 = vrot.slane %v5489, 2
  %v5726 = vsel %vm3279, %v5724, %v5725
  %v5727 = vrot.slane %v5490, 2
  %v5728 = vsel %vm3279, %v5725, %v5727
  %v5729 = vrot.slane %v5491, 2
  %v5730 = vrot.slane %v5492, 2
  %v5731 = vsel %vm3279, %v5729, %v5730
  %v5732 = vrot.slane %v5493, 2
  %v5733 = vsel %vm3279, %v5730, %v5732
  %v5734 = vrot.slane %v5494, 2
  %v5735 = vrot.slane %v5495, 2
  %v5736 = vsel %vm3279, %v5734, %v5735
  %v5737 = vrot.slane %v5496, 2
  %v5738 = vsel %vm3279, %v5735, %v5737
  %v5739 = vrot.slane %v5497, 2
  %v5740 = vrot.slane %v5498, 2
  %v5741 = vsel %vm3279, %v5739, %v5740
  %v5742 = vrot.slane %v5499, 2
  %v5743 = vsel %vm3279, %v5740, %v5742
  %v5744 = vrot.slane %v5500, 2
  %v5745 = vrot.slane %v5501, 2
  %v5746 = vsel %vm3279, %v5744, %v5745
  %v5747 = vrot.slane %v5502, 2
  %v5748 = vsel %vm3279, %v5745, %v5747
  %v5749 = vrot.slane %v5503, 2
  %v5750 = vrot.slane %v5504, 2
  %v5751 = vsel %vm3279, %v5749, %v5750
  %v5752 = vrot.slane %v5505, 2
  %v5753 = vsel %vm3279, %v5750, %v5752
  %v5754 = vrot.slane %v5506, 2
  %v5755 = vrot.slane %v5507, 2
  %v5756 = vsel %vm3279, %v5754, %v5755
  %v5757 = vrot.slane %v5508, 2
  %v5758 = vsel %vm3279, %v5755, %v5757
  %v5759 = vrot.slane %v5509, 2
  %v5760 = vrot.slane %v5510, 2
  %v5761 = vsel %vm3279, %v5759, %v5760
  %v5762 = vrot.slane %v5511, 2
  %v5763 = vsel %vm3279, %v5760, %v5762
  %v5764 = vrot.slane %v5512, 2
  %v5765 = vrot.slane %v5513, 2
  %v5766 = vsel %vm3279, %v5764, %v5765
  %v5767 = vrot.slane %v5514, 2
  %v5768 = vsel %vm3279, %v5765, %v5767
  %v5769 = vrot.slane %v5515, 2
  %v5770 = vrot.slane %v5516, 2
  %v5771 = vsel %vm3279, %v5769, %v5770
  %v5772 = vrot.slane %v5517, 2
  %v5773 = vsel %vm3279, %v5770, %v5772
  %v5870 = vadd.f32 %v5321, %v5614
  %v5871 = vadd.f32 %v5322, %v5616
  %v5872 = vadd.f32 %v5323, %v5618
  %v5873 = vadd.f32 %v5324, %v5619
  %v5874 = vadd.f32 %v5325, %v5621
  %v5875 = vadd.f32 %v5326, %v5623
  %v5876 = vadd.f32 %v5327, %v5624
  %v5877 = vadd.f32 %v5328, %v5626
  %v5878 = vadd.f32 %v5329, %v5628
  %v5879 = vadd.f32 %v5330, %v5629
  %v5880 = vadd.f32 %v5331, %v5631
  %v5881 = vadd.f32 %v5332, %v5633
  %v5882 = vadd.f32 %v5333, %v5634
  %v5883 = vadd.f32 %v5334, %v5636
  %v5884 = vadd.f32 %v5335, %v5638
  %v5885 = vadd.f32 %v5336, %v5639
  %v5886 = vadd.f32 %v5337, %v5641
  %v5887 = vadd.f32 %v5338, %v5643
  %v5888 = vadd.f32 %v5339, %v5644
  %v5889 = vadd.f32 %v5340, %v5646
  %v5890 = vadd.f32 %v5341, %v5648
  %v5891 = vadd.f32 %v5342, %v5649
  %v5892 = vadd.f32 %v5343, %v5651
  %v5893 = vadd.f32 %v5344, %v5653
  %v5894 = vadd.f32 %v5345, %v5654
  %v5895 = vadd.f32 %v5346, %v5656
  %v5896 = vadd.f32 %v5347, %v5658
  %v5897 = vadd.f32 %v5348, %v5659
  %v5898 = vadd.f32 %v5349, %v5661
  %v5899 = vadd.f32 %v5350, %v5663
  %v5900 = vadd.f32 %v5351, %v5664
  %v5901 = vadd.f32 %v5352, %v5666
  %v5902 = vadd.f32 %v5353, %v5668
  %v5903 = vadd.f32 %v5354, %v5669
  %v5904 = vadd.f32 %v5355, %v5671
  %v5905 = vadd.f32 %v5356, %v5673
  %v5906 = vadd.f32 %v5357, %v5674
  %v5907 = vadd.f32 %v5358, %v5676
  %v5908 = vadd.f32 %v5359, %v5678
  %v5909 = vadd.f32 %v5360, %v5679
  %v5910 = vadd.f32 %v5361, %v5681
  %v5911 = vadd.f32 %v5362, %v5683
  %v5912 = vadd.f32 %v5363, %v5684
  %v5913 = vadd.f32 %v5364, %v5686
  %v5914 = vadd.f32 %v5365, %v5688
  %v5915 = vadd.f32 %v5366, %v5689
  %v5916 = vadd.f32 %v5367, %v5691
  %v5917 = vadd.f32 %v5368, %v5693
  %v5918 = vadd.f32 %v5369, %v5694
  %v5919 = vadd.f32 %v5370, %v5696
  %v5920 = vadd.f32 %v5371, %v5698
  %v5921 = vadd.f32 %v5372, %v5699
  %v5922 = vadd.f32 %v5373, %v5701
  %v5923 = vadd.f32 %v5374, %v5703
  %v5924 = vadd.f32 %v5375, %v5704
  %v5925 = vadd.f32 %v5376, %v5706
  %v5926 = vadd.f32 %v5377, %v5708
  %v5927 = vadd.f32 %v5378, %v5709
  %v5928 = vadd.f32 %v5379, %v5711
  %v5929 = vadd.f32 %v5380, %v5713
  %v5930 = vadd.f32 %v5381, %v5714
  %v5931 = vadd.f32 %v5382, %v5716
  %v5932 = vadd.f32 %v5383, %v5718
  %v5933 = vadd.f32 %v5384, %v5719
  %v5934 = vadd.f32 %v5385, %v5721
  %v5935 = vadd.f32 %v5386, %v5723
  %v5936 = vadd.f32 %v5387, %v5724
  %v5937 = vadd.f32 %v5388, %v5726
  %v5938 = vadd.f32 %v5389, %v5728
  %v5939 = vadd.f32 %v5390, %v5729
  %v5940 = vadd.f32 %v5391, %v5731
  %v5941 = vadd.f32 %v5392, %v5733
  %v5942 = vadd.f32 %v5393, %v5734
  %v5943 = vadd.f32 %v5394, %v5736
  %v5944 = vadd.f32 %v5395, %v5738
  %v5945 = vadd.f32 %v5396, %v5739
  %v5946 = vadd.f32 %v5397, %v5741
  %v5947 = vadd.f32 %v5398, %v5743
  %v5948 = vadd.f32 %v5399, %v5744
  %v5949 = vadd.f32 %v5400, %v5746
  %v5950 = vadd.f32 %v5401, %v5748
  %v5951 = vadd.f32 %v5402, %v5749
  %v5952 = vadd.f32 %v5403, %v5751
  %v5953 = vadd.f32 %v5404, %v5753
  %v5954 = vadd.f32 %v5405, %v5754
  %v5955 = vadd.f32 %v5406, %v5756
  %v5956 = vadd.f32 %v5407, %v5758
  %v5957 = vadd.f32 %v5408, %v5759
  %v5958 = vadd.f32 %v5409, %v5761
  %v5959 = vadd.f32 %v5410, %v5763
  %v5960 = vadd.f32 %v5411, %v5764
  %v5961 = vadd.f32 %v5412, %v5766
  %v5962 = vadd.f32 %v5413, %v5768
  %v5963 = vadd.f32 %v5414, %v5769
  %v5964 = vadd.f32 %v5415, %v5771
  %v5965 = vadd.f32 %v5416, %v5773
  %vm6062 = vcmask 1040384
  %v6063 = vrot.slane %v5870, 7
  %v6064 = vrot.slane %v5871, 7
  %v6065 = vsel %vm6062, %v6063, %v6064
  %v6066 = vrot.slane %v5872, 7
  %v6067 = vsel %vm6062, %v6064, %v6066
  %v6068 = vrot.slane %v5873, 7
  %v6069 = vrot.slane %v5874, 7
  %v6070 = vsel %vm6062, %v6068, %v6069
  %v6071 = vrot.slane %v5875, 7
  %v6072 = vsel %vm6062, %v6069, %v6071
  %v6073 = vrot.slane %v5876, 7
  %v6074 = vrot.slane %v5877, 7
  %v6075 = vsel %vm6062, %v6073, %v6074
  %v6076 = vrot.slane %v5878, 7
  %v6077 = vsel %vm6062, %v6074, %v6076
  %v6078 = vrot.slane %v5879, 7
  %v6079 = vrot.slane %v5880, 7
  %v6080 = vsel %vm6062, %v6078, %v6079
  %v6081 = vrot.slane %v5881, 7
  %v6082 = vsel %vm6062, %v6079, %v6081
  %v6083 = vrot.slane %v5882, 7
  %v6084 = vrot.slane %v5883, 7
  %v6085 = vsel %vm6062, %v6083, %v6084
  %v6086 = vrot.slane %v5884, 7
  %v6087 = vsel %vm6062, %v6084, %v6086
  %v6088 = vrot.slane %v5885, 7
  %v6089 = vrot.slane %v5886, 7
  %v6090 = vsel %vm6062, %v6088, %v6089
  %v6091 = vrot.slane %v5887, 7
  %v6092 = vsel %vm6062, %v6089, %v6091
  %v6093 = vrot.slane %v5888, 7
  %v6094 = vrot.slane %v5889, 7
  %v6095 = vsel %vm6062, %v6093, %v6094
  %v6096 = vrot.slane %v5890, 7
  %v6097 = vsel %vm6062, %v6094, %v6096
  %v6098 = vrot.slane %v5891, 7
  %v6099 = vrot.slane %v5892, 7
  %v6100 = vsel %vm6062, %v6098, %v6099
  %v6101 = vrot.slane %v5893, 7
  %v6102 = vsel %vm6062, %v6099, %v6101
  %v6103 = vrot.slane %v5894, 7
  %v6104 = vrot.slane %v5895, 7
  %v6105 = vsel %vm6062, %v6103, %v6104
  %v6106 = vrot.slane %v5896, 7
  %v6107 = vsel %vm6062, %v6104, %v6106
  %v6108 = vrot.slane %v5897, 7
  %v6109 = vrot.slane %v5898, 7
  %v6110 = vsel %vm6062, %v6108, %v6109
  %v6111 = vrot.slane %v5899, 7
  %v6112 = vsel %vm6062, %v6109, %v6111
  %v6113 = vrot.slane %v5900, 7
  %v6114 = vrot.slane %v5901, 7
  %v6115 = vsel %vm6062, %v6113, %v6114
  %v6116 = vrot.slane %v5902, 7
  %v6117 = vsel %vm6062, %v6114, %v6116
  %v6118 = vrot.slane %v5903, 7
  %v6119 = vrot.slane %v5904, 7
  %v6120 = vsel %vm6062, %v6118, %v6119
  %v6121 = vrot.slane %v5905, 7
  %v6122 = vsel %vm6062, %v6119, %v6121
  %v6123 = vrot.slane %v5906, 7
  %v6124 = vrot.slane %v5907, 7
  %v6125 = vsel %vm6062, %v6123, %v6124
  %v6126 = vrot.slane %v5908, 7
  %v6127 = vsel %vm6062, %v6124, %v6126
  %v6128 = vrot.slane %v5909, 7
  %v6129 = vrot.slane %v5910, 7
  %v6130 = vsel %vm6062, %v6128, %v6129
  %v6131 = vrot.slane %v5911, 7
  %v6132 = vsel %vm6062, %v6129, %v6131
  %v6133 = vrot.slane %v5912, 7
  %v6134 = vrot.slane %v5913, 7
  %v6135 = vsel %vm6062, %v6133, %v6134
  %v6136 = vrot.slane %v5914, 7
  %v6137 = vsel %vm6062, %v6134, %v6136
  %v6138 = vrot.slane %v5915, 7
  %v6139 = vrot.slane %v5916, 7
  %v6140 = vsel %vm6062, %v6138, %v6139
  %v6141 = vrot.slane %v5917, 7
  %v6142 = vsel %vm6062, %v6139, %v6141
  %v6143 = vrot.slane %v5918, 7
  %v6144 = vrot.slane %v5919, 7
  %v6145 = vsel %vm6062, %v6143, %v6144
  %v6146 = vrot.slane %v5920, 7
  %v6147 = vsel %vm6062, %v6144, %v6146
  %v6148 = vrot.slane %v5921, 7
  %v6149 = vrot.slane %v5922, 7
  %v6150 = vsel %vm6062, %v6148, %v6149
  %v6151 = vrot.slane %v5923, 7
  %v6152 = vsel %vm6062, %v6149, %v6151
  %v6153 = vrot.slane %v5924, 7
  %v6154 = vrot.slane %v5925, 7
  %v6155 = vsel %vm6062, %v6153, %v6154
  %v6156 = vrot.slane %v5926, 7
  %v6157 = vsel %vm6062, %v6154, %v6156
  %v6158 = vrot.slane %v5927, 7
  %v6159 = vrot.slane %v5928, 7
  %v6160 = vsel %vm6062, %v6158, %v6159
  %v6161 = vrot.slane %v5929, 7
  %v6162 = vsel %vm6062, %v6159, %v6161
  %v6163 = vrot.slane %v5930, 7
  %v6164 = vrot.slane %v5931, 7
  %v6165 = vsel %vm6062, %v6163, %v6164
  %v6166 = vrot.slane %v5932, 7
  %v6167 = vsel %vm6062, %v6164, %v6166
  %v6168 = vrot.slane %v5933, 7
  %v6169 = vrot.slane %v5934, 7
  %v6170 = vsel %vm6062, %v6168, %v6169
  %v6171 = vrot.slane %v5935, 7
  %v6172 = vsel %vm6062, %v6169, %v6171
  %v6173 = vrot.slane %v5936, 7
  %v6174 = vrot.slane %v5937, 7
  %v6175 = vsel %vm6062, %v6173, %v6174
  %v6176 = vrot.slane %v5938, 7
  %v6177 = vsel %vm6062, %v6174, %v6176
  %v6178 = vrot.slane %v5939, 7
  %v6179 = vrot.slane %v5940, 7
  %v6180 = vsel %vm6062, %v6178, %v6179
  %v6181 = vrot.slane %v5941, 7
  %v6182 = vsel %vm6062, %v6179, %v6181
  %v6183 = vrot.slane %v5942, 7
  %v6184 = vrot.slane %v5943, 7
  %v6185 = vsel %vm6062, %v6183, %v6184
  %v6186 = vrot.slane %v5944, 7
  %v6187 = vsel %vm6062, %v6184, %v6186
  %v6188 = vrot.slane %v5945, 7
  %v6189 = vrot.slane %v5946, 7
  %v6190 = vsel %vm6062, %v6188, %v6189
  %v6191 = vrot.slane %v5947, 7
  %v6192 = vsel %vm6062, %v6189, %v6191
  %v6193 = vrot.slane %v5948, 7
  %v6194 = vrot.slane %v5949, 7
  %v6195 = vsel %vm6062, %v6193, %v6194
  %v6196 = vrot.slane %v5950, 7
  %v6197 = vsel %vm6062, %v6194, %v6196
  %v6198 = vrot.slane %v5951, 7
  %v6199 = vrot.slane %v5952, 7
  %v6200 = vsel %vm6062, %v6198, %v6199
  %v6201 = vrot.slane %v5953, 7
  %v6202 = vsel %vm6062, %v6199, %v6201
  %v6203 = vrot.slane %v5954, 7
  %v6204 = vrot.slane %v5955, 7
  %v6205 = vsel %vm6062, %v6203, %v6204
  %v6206 = vrot.slane %v5956, 7
  %v6207 = vsel %vm6062, %v6204, %v6206
  %v6208 = vrot.slane %v5957, 7
  %v6209 = vrot.slane %v5958, 7
  %v6210 = vsel %vm6062, %v6208, %v6209
  %v6211 = vrot.slane %v5959, 7
  %v6212 = vsel %vm6062, %v6209, %v6211
  %v6213 = vrot.slane %v5960, 7
  %v6214 = vrot.slane %v5961, 7
  %v6215 = vsel %vm6062, %v6213, %v6214
  %v6216 = vrot.slane %v5962, 7
  %v6217 = vsel %vm6062, %v6214, %v6216
  %v6218 = vrot.slane %v5963, 7
  %v6219 = vrot.slane %v5964, 7
  %v6220 = vsel %vm6062, %v6218, %v6219
  %v6221 = vrot.slane %v5965, 7
  %v6222 = vsel %vm6062, %v6219, %v6221
  %v6287 = vld [vmem:[%s5] sm:$0x1]
  %v6288 = vld [vmem:[%s6] sm:$0x1]
  %v6289 = vsel %vm1566, %v6065, 0.0
  %v6290 = vsel %vm1566, %v6067, 0.0
  %v6291 = vadd.f32 %v6289, %v6290
  %v6292 = vsel %vm1566, %v6070, 0.0
  %v6293 = vadd.f32 %v6291, %v6292
  %v6294 = vsel %vm1566, %v6072, 0.0
  %v6295 = vadd.f32 %v6293, %v6294
  %v6296 = vsel %vm1566, %v6075, 0.0
  %v6297 = vadd.f32 %v6295, %v6296
  %v6298 = vsel %vm1566, %v6077, 0.0
  %v6299 = vadd.f32 %v6297, %v6298
  %v6300 = vsel %vm1566, %v6080, 0.0
  %v6301 = vadd.f32 %v6299, %v6300
  %v6302 = vsel %vm1566, %v6082, 0.0
  %v6303 = vadd.f32 %v6301, %v6302
  %v6304 = vsel %vm1566, %v6085, 0.0
  %v6305 = vadd.f32 %v6303, %v6304
  %v6306 = vsel %vm1566, %v6087, 0.0
  %v6307 = vadd.f32 %v6305, %v6306
  %v6308 = vsel %vm1566, %v6090, 0.0
  %v6309 = vadd.f32 %v6307, %v6308
  %v6310 = vsel %vm1566, %v6092, 0.0
  %v6311 = vadd.f32 %v6309, %v6310
  %v6312 = vsel %vm1566, %v6095, 0.0
  %v6313 = vadd.f32 %v6311, %v6312
  %v6314 = vsel %vm1566, %v6097, 0.0
  %v6315 = vadd.f32 %v6313, %v6314
  %v6316 = vsel %vm1566, %v6100, 0.0
  %v6317 = vadd.f32 %v6315, %v6316
  %v6318 = vsel %vm1566, %v6102, 0.0
  %v6319 = vadd.f32 %v6317, %v6318
  %v6320 = vsel %vm1566, %v6105, 0.0
  %v6321 = vadd.f32 %v6319, %v6320
  %v6322 = vsel %vm1566, %v6107, 0.0
  %v6323 = vadd.f32 %v6321, %v6322
  %v6324 = vsel %vm1566, %v6110, 0.0
  %v6325 = vadd.f32 %v6323, %v6324
  %v6326 = vsel %vm1566, %v6112, 0.0
  %v6327 = vadd.f32 %v6325, %v6326
  %v6328 = vsel %vm1566, %v6115, 0.0
  %v6329 = vadd.f32 %v6327, %v6328
  %v6330 = vsel %vm1566, %v6117, 0.0
  %v6331 = vadd.f32 %v6329, %v6330
  %v6332 = vsel %vm1566, %v6120, 0.0
  %v6333 = vadd.f32 %v6331, %v6332
  %v6334 = vsel %vm1566, %v6122, 0.0
  %v6335 = vadd.f32 %v6333, %v6334
  %v6336 = vsel %vm1566, %v6125, 0.0
  %v6337 = vadd.f32 %v6335, %v6336
  %v6338 = vsel %vm1566, %v6127, 0.0
  %v6339 = vadd.f32 %v6337, %v6338
  %v6340 = vsel %vm1566, %v6130, 0.0
  %v6341 = vadd.f32 %v6339, %v6340
  %v6342 = vsel %vm1566, %v6132, 0.0
  %v6343 = vadd.f32 %v6341, %v6342
  %v6344 = vsel %vm1566, %v6135, 0.0
  %v6345 = vadd.f32 %v6343, %v6344
  %v6346 = vsel %vm1566, %v6137, 0.0
  %v6347 = vadd.f32 %v6345, %v6346
  %v6348 = vsel %vm1566, %v6140, 0.0
  %v6349 = vadd.f32 %v6347, %v6348
  %v6350 = vsel %vm1566, %v6142, 0.0
  %v6351 = vadd.f32 %v6349, %v6350
  %v6352 = vsel %vm1566, %v6145, 0.0
  %v6353 = vadd.f32 %v6351, %v6352
  %v6354 = vsel %vm1566, %v6147, 0.0
  %v6355 = vadd.f32 %v6353, %v6354
  %v6356 = vsel %vm1566, %v6150, 0.0
  %v6357 = vadd.f32 %v6355, %v6356
  %v6358 = vsel %vm1566, %v6152, 0.0
  %v6359 = vadd.f32 %v6357, %v6358
  %v6360 = vsel %vm1566, %v6155, 0.0
  %v6361 = vadd.f32 %v6359, %v6360
  %v6362 = vsel %vm1566, %v6157, 0.0
  %v6363 = vadd.f32 %v6361, %v6362
  %v6364 = vsel %vm1566, %v6160, 0.0
  %v6365 = vadd.f32 %v6363, %v6364
  %v6366 = vsel %vm1566, %v6162, 0.0
  %v6367 = vadd.f32 %v6365, %v6366
  %v6368 = vsel %vm1566, %v6165, 0.0
  %v6369 = vadd.f32 %v6367, %v6368
  %v6370 = vsel %vm1566, %v6167, 0.0
  %v6371 = vadd.f32 %v6369, %v6370
  %v6372 = vsel %vm1566, %v6170, 0.0
  %v6373 = vadd.f32 %v6371, %v6372
  %v6374 = vsel %vm1566, %v6172, 0.0
  %v6375 = vadd.f32 %v6373, %v6374
  %v6376 = vsel %vm1566, %v6175, 0.0
  %v6377 = vadd.f32 %v6375, %v6376
  %v6378 = vsel %vm1566, %v6177, 0.0
  %v6379 = vadd.f32 %v6377, %v6378
  %v6380 = vsel %vm1566, %v6180, 0.0
  %v6381 = vadd.f32 %v6379, %v6380
  %v6382 = vsel %vm1566, %v6182, 0.0
  %v6383 = vadd.f32 %v6381, %v6382
  %v6384 = vsel %vm1566, %v6185, 0.0
  %v6385 = vadd.f32 %v6383, %v6384
  %v6386 = vsel %vm1566, %v6187, 0.0
  %v6387 = vadd.f32 %v6385, %v6386
  %v6388 = vsel %vm1566, %v6190, 0.0
  %v6389 = vadd.f32 %v6387, %v6388
  %v6390 = vsel %vm1566, %v6192, 0.0
  %v6391 = vadd.f32 %v6389, %v6390
  %v6392 = vsel %vm1566, %v6195, 0.0
  %v6393 = vadd.f32 %v6391, %v6392
  %v6394 = vsel %vm1566, %v6197, 0.0
  %v6395 = vadd.f32 %v6393, %v6394
  %v6396 = vsel %vm1566, %v6200, 0.0
  %v6397 = vadd.f32 %v6395, %v6396
  %v6398 = vsel %vm1566, %v6202, 0.0
  %v6399 = vadd.f32 %v6397, %v6398
  %v6400 = vsel %vm1566, %v6205, 0.0
  %v6401 = vadd.f32 %v6399, %v6400
  %v6402 = vsel %vm1566, %v6207, 0.0
  %v6403 = vadd.f32 %v6401, %v6402
  %v6404 = vsel %vm1566, %v6210, 0.0
  %v6405 = vadd.f32 %v6403, %v6404
  %v6406 = vsel %vm1566, %v6212, 0.0
  %v6407 = vadd.f32 %v6405, %v6406
  %v6408 = vsel %vm1566, %v6215, 0.0
  %v6409 = vadd.f32 %v6407, %v6408
  %v6410 = vsel %vm1566, %v6217, 0.0
  %v6411 = vadd.f32 %v6409, %v6410
  %v6412 = vsel %vm1566, %v6220, 0.0
  %v6413 = vadd.f32 %v6411, %v6412
  %v6414 = vsel %vm1566, %v6222, 0.0
  %v6415 = vadd.f32 %v6413, %v6414
  %v6416 = vrot.slane %v6415, 4
  %v6417 = vadd.f32 %v6415, %v6416
  %v6418 = vrot.slane %v6417, 2
  %v6419 = vadd.f32 %v6417, %v6418
  %v6420 = vrot.slane %v6419, 1
  %v6421 = vadd.f32 %v6419, %v6420
  %v6422 = vmul.f32 %v6065, %v6065
  %v6423 = vmul.f32 %v6067, %v6067
  %v6424 = vmul.f32 %v6070, %v6070
  %v6425 = vmul.f32 %v6072, %v6072
  %v6426 = vmul.f32 %v6075, %v6075
  %v6427 = vmul.f32 %v6077, %v6077
  %v6428 = vmul.f32 %v6080, %v6080
  %v6429 = vmul.f32 %v6082, %v6082
  %v6430 = vmul.f32 %v6085, %v6085
  %v6431 = vmul.f32 %v6087, %v6087
  %v6432 = vmul.f32 %v6090, %v6090
  %v6433 = vmul.f32 %v6092, %v6092
  %v6434 = vmul.f32 %v6095, %v6095
  %v6435 = vmul.f32 %v6097, %v6097
  %v6436 = vmul.f32 %v6100, %v6100
  %v6437 = vmul.f32 %v6102, %v6102
  %v6438 = vmul.f32 %v6105, %v6105
  %v6439 = vmul.f32 %v6107, %v6107
  %v6440 = vmul.f32 %v6110, %v6110
  %v6441 = vmul.f32 %v6112, %v6112
  %v6442 = vmul.f32 %v6115, %v6115
  %v6443 = vmul.f32 %v6117, %v6117
  %v6444 = vmul.f32 %v6120, %v6120
  %v6445 = vmul.f32 %v6122, %v6122
  %v6446 = vmul.f32 %v6125, %v6125
  %v6447 = vmul.f32 %v6127, %v6127
  %v6448 = vmul.f32 %v6130, %v6130
  %v6449 = vmul.f32 %v6132, %v6132
  %v6450 = vmul.f32 %v6135, %v6135
  %v6451 = vmul.f32 %v6137, %v6137
  %v6452 = vmul.f32 %v6140, %v6140
  %v6453 = vmul.f32 %v6142, %v6142
  %v6454 = vmul.f32 %v6145, %v6145
  %v6455 = vmul.f32 %v6147, %v6147
  %v6456 = vmul.f32 %v6150, %v6150
  %v6457 = vmul.f32 %v6152, %v6152
  %v6458 = vmul.f32 %v6155, %v6155
  %v6459 = vmul.f32 %v6157, %v6157
  %v6460 = vmul.f32 %v6160, %v6160
  %v6461 = vmul.f32 %v6162, %v6162
  %v6462 = vmul.f32 %v6165, %v6165
  %v6463 = vmul.f32 %v6167, %v6167
  %v6464 = vmul.f32 %v6170, %v6170
  %v6465 = vmul.f32 %v6172, %v6172
  %v6466 = vmul.f32 %v6175, %v6175
  %v6467 = vmul.f32 %v6177, %v6177
  %v6468 = vmul.f32 %v6180, %v6180
  %v6469 = vmul.f32 %v6182, %v6182
  %v6470 = vmul.f32 %v6185, %v6185
  %v6471 = vmul.f32 %v6187, %v6187
  %v6472 = vmul.f32 %v6190, %v6190
  %v6473 = vmul.f32 %v6192, %v6192
  %v6474 = vmul.f32 %v6195, %v6195
  %v6475 = vmul.f32 %v6197, %v6197
  %v6476 = vmul.f32 %v6200, %v6200
  %v6477 = vmul.f32 %v6202, %v6202
  %v6478 = vmul.f32 %v6205, %v6205
  %v6479 = vmul.f32 %v6207, %v6207
  %v6480 = vmul.f32 %v6210, %v6210
  %v6481 = vmul.f32 %v6212, %v6212
  %v6482 = vmul.f32 %v6215, %v6215
  %v6483 = vmul.f32 %v6217, %v6217
  %v6484 = vmul.f32 %v6220, %v6220
  %v6485 = vmul.f32 %v6222, %v6222
  %v6486 = vsel %vm1566, %v6422, 0.0
  %v6487 = vsel %vm1566, %v6423, 0.0
  %v6488 = vadd.f32 %v6486, %v6487
  %v6489 = vsel %vm1566, %v6424, 0.0
  %v6490 = vadd.f32 %v6488, %v6489
  %v6491 = vsel %vm1566, %v6425, 0.0
  %v6492 = vadd.f32 %v6490, %v6491
  %v6493 = vsel %vm1566, %v6426, 0.0
  %v6494 = vadd.f32 %v6492, %v6493
  %v6495 = vsel %vm1566, %v6427, 0.0
  %v6496 = vadd.f32 %v6494, %v6495
  %v6497 = vsel %vm1566, %v6428, 0.0
  %v6498 = vadd.f32 %v6496, %v6497
  %v6499 = vsel %vm1566, %v6429, 0.0
  %v6500 = vadd.f32 %v6498, %v6499
  %v6501 = vsel %vm1566, %v6430, 0.0
  %v6502 = vadd.f32 %v6500, %v6501
  %v6503 = vsel %vm1566, %v6431, 0.0
  %v6504 = vadd.f32 %v6502, %v6503
  %v6505 = vsel %vm1566, %v6432, 0.0
  %v6506 = vadd.f32 %v6504, %v6505
  %v6507 = vsel %vm1566, %v6433, 0.0
  %v6508 = vadd.f32 %v6506, %v6507
  %v6509 = vsel %vm1566, %v6434, 0.0
  %v6510 = vadd.f32 %v6508, %v6509
  %v6511 = vsel %vm1566, %v6435, 0.0
  %v6512 = vadd.f32 %v6510, %v6511
  %v6513 = vsel %vm1566, %v6436, 0.0
  %v6514 = vadd.f32 %v6512, %v6513
  %v6515 = vsel %vm1566, %v6437, 0.0
  %v6516 = vadd.f32 %v6514, %v6515
  %v6517 = vsel %vm1566, %v6438, 0.0
  %v6518 = vadd.f32 %v6516, %v6517
  %v6519 = vsel %vm1566, %v6439, 0.0
  %v6520 = vadd.f32 %v6518, %v6519
  %v6521 = vsel %vm1566, %v6440, 0.0
  %v6522 = vadd.f32 %v6520, %v6521
  %v6523 = vsel %vm1566, %v6441, 0.0
  %v6524 = vadd.f32 %v6522, %v6523
  %v6525 = vsel %vm1566, %v6442, 0.0
  %v6526 = vadd.f32 %v6524, %v6525
  %v6527 = vsel %vm1566, %v6443, 0.0
  %v6528 = vadd.f32 %v6526, %v6527
  %v6529 = vsel %vm1566, %v6444, 0.0
  %v6530 = vadd.f32 %v6528, %v6529
  %v6531 = vsel %vm1566, %v6445, 0.0
  %v6532 = vadd.f32 %v6530, %v6531
  %v6533 = vsel %vm1566, %v6446, 0.0
  %v6534 = vadd.f32 %v6532, %v6533
  %v6535 = vsel %vm1566, %v6447, 0.0
  %v6536 = vadd.f32 %v6534, %v6535
  %v6537 = vsel %vm1566, %v6448, 0.0
  %v6538 = vadd.f32 %v6536, %v6537
  %v6539 = vsel %vm1566, %v6449, 0.0
  %v6540 = vadd.f32 %v6538, %v6539
  %v6541 = vsel %vm1566, %v6450, 0.0
  %v6542 = vadd.f32 %v6540, %v6541
  %v6543 = vsel %vm1566, %v6451, 0.0
  %v6544 = vadd.f32 %v6542, %v6543
  %v6545 = vsel %vm1566, %v6452, 0.0
  %v6546 = vadd.f32 %v6544, %v6545
  %v6547 = vsel %vm1566, %v6453, 0.0
  %v6548 = vadd.f32 %v6546, %v6547
  %v6549 = vsel %vm1566, %v6454, 0.0
  %v6550 = vadd.f32 %v6548, %v6549
  %v6551 = vsel %vm1566, %v6455, 0.0
  %v6552 = vadd.f32 %v6550, %v6551
  %v6553 = vsel %vm1566, %v6456, 0.0
  %v6554 = vadd.f32 %v6552, %v6553
  %v6555 = vsel %vm1566, %v6457, 0.0
  %v6556 = vadd.f32 %v6554, %v6555
  %v6557 = vsel %vm1566, %v6458, 0.0
  %v6558 = vadd.f32 %v6556, %v6557
  %v6559 = vsel %vm1566, %v6459, 0.0
  %v6560 = vadd.f32 %v6558, %v6559
  %v6561 = vsel %vm1566, %v6460, 0.0
  %v6562 = vadd.f32 %v6560, %v6561
  %v6563 = vsel %vm1566, %v6461, 0.0
  %v6564 = vadd.f32 %v6562, %v6563
  %v6565 = vsel %vm1566, %v6462, 0.0
  %v6566 = vadd.f32 %v6564, %v6565
  %v6567 = vsel %vm1566, %v6463, 0.0
  %v6568 = vadd.f32 %v6566, %v6567
  %v6569 = vsel %vm1566, %v6464, 0.0
  %v6570 = vadd.f32 %v6568, %v6569
  %v6571 = vsel %vm1566, %v6465, 0.0
  %v6572 = vadd.f32 %v6570, %v6571
  %v6573 = vsel %vm1566, %v6466, 0.0
  %v6574 = vadd.f32 %v6572, %v6573
  %v6575 = vsel %vm1566, %v6467, 0.0
  %v6576 = vadd.f32 %v6574, %v6575
  %v6577 = vsel %vm1566, %v6468, 0.0
  %v6578 = vadd.f32 %v6576, %v6577
  %v6579 = vsel %vm1566, %v6469, 0.0
  %v6580 = vadd.f32 %v6578, %v6579
  %v6581 = vsel %vm1566, %v6470, 0.0
  %v6582 = vadd.f32 %v6580, %v6581
  %v6583 = vsel %vm1566, %v6471, 0.0
  %v6584 = vadd.f32 %v6582, %v6583
  %v6585 = vsel %vm1566, %v6472, 0.0
  %v6586 = vadd.f32 %v6584, %v6585
  %v6587 = vsel %vm1566, %v6473, 0.0
  %v6588 = vadd.f32 %v6586, %v6587
  %v6589 = vsel %vm1566, %v6474, 0.0
  %v6590 = vadd.f32 %v6588, %v6589
  %v6591 = vsel %vm1566, %v6475, 0.0
  %v6592 = vadd.f32 %v6590, %v6591
  %v6593 = vsel %vm1566, %v6476, 0.0
  %v6594 = vadd.f32 %v6592, %v6593
  %v6595 = vsel %vm1566, %v6477, 0.0
  %v6596 = vadd.f32 %v6594, %v6595
  %v6597 = vsel %vm1566, %v6478, 0.0
  %v6598 = vadd.f32 %v6596, %v6597
  %v6599 = vsel %vm1566, %v6479, 0.0
  %v6600 = vadd.f32 %v6598, %v6599
  %v6601 = vsel %vm1566, %v6480, 0.0
  %v6602 = vadd.f32 %v6600, %v6601
  %v6603 = vsel %vm1566, %v6481, 0.0
  %v6604 = vadd.f32 %v6602, %v6603
  %v6605 = vsel %vm1566, %v6482, 0.0
  %v6606 = vadd.f32 %v6604, %v6605
  %v6607 = vsel %vm1566, %v6483, 0.0
  %v6608 = vadd.f32 %v6606, %v6607
  %v6609 = vsel %vm1566, %v6484, 0.0
  %v6610 = vadd.f32 %v6608, %v6609
  %v6611 = vsel %vm1566, %v6485, 0.0
  %v6612 = vadd.f32 %v6610, %v6611
  %v6613 = vrot.slane %v6612, 4
  %v6614 = vadd.f32 %v6612, %v6613
  %v6615 = vrot.slane %v6614, 2
  %v6616 = vadd.f32 %v6614, %v6615
  %v6617 = vrot.slane %v6616, 1
  %v6618 = vadd.f32 %v6616, %v6617
  %v6619 = vmul.f32 %v6421, 0.001953125
  %v6620 = vmul.f32 %v6618, 0.001953125
  %v6621 = vmul.f32 %v6619, %v6619
  %v6622 = vsub.f32 %v6620, %v6621
  %v6623 = vadd.f32 %v6622, 1e-05
  %v6624 = vrsqrt.pop %v6623
  %v6625 = vmul.f32 %v6287, %v6624
  %v6626 = vmul.f32 %v6619, %v6625
  %v6627 = vsub.f32 %v6288, %v6626
  %v6629 = vlaneseq
  %v6630 = vshrl.u32 %v6629, 7
  %v6631 = vsub.s32 0, %v6630
  %v6632 = vrot.slane %v6625, %v6631
  %v6634 = vmul.f32 %v6065, %v6632
  %v6635 = vmul.f32 %v6067, %v6632
  %v6636 = vmul.f32 %v6070, %v6632
  %v6637 = vmul.f32 %v6072, %v6632
  %v6638 = vmul.f32 %v6075, %v6632
  %v6639 = vmul.f32 %v6077, %v6632
  %v6640 = vmul.f32 %v6080, %v6632
  %v6641 = vmul.f32 %v6082, %v6632
  %v6642 = vmul.f32 %v6085, %v6632
  %v6643 = vmul.f32 %v6087, %v6632
  %v6644 = vmul.f32 %v6090, %v6632
  %v6645 = vmul.f32 %v6092, %v6632
  %v6646 = vmul.f32 %v6095, %v6632
  %v6647 = vmul.f32 %v6097, %v6632
  %v6648 = vmul.f32 %v6100, %v6632
  %v6649 = vmul.f32 %v6102, %v6632
  %v6650 = vmul.f32 %v6105, %v6632
  %v6651 = vmul.f32 %v6107, %v6632
  %v6652 = vmul.f32 %v6110, %v6632
  %v6653 = vmul.f32 %v6112, %v6632
  %v6654 = vmul.f32 %v6115, %v6632
  %v6655 = vmul.f32 %v6117, %v6632
  %v6656 = vmul.f32 %v6120, %v6632
  %v6657 = vmul.f32 %v6122, %v6632
  %v6658 = vmul.f32 %v6125, %v6632
  %v6659 = vmul.f32 %v6127, %v6632
  %v6660 = vmul.f32 %v6130, %v6632
  %v6661 = vmul.f32 %v6132, %v6632
  %v6662 = vmul.f32 %v6135, %v6632
  %v6663 = vmul.f32 %v6137, %v6632
  %v6664 = vmul.f32 %v6140, %v6632
  %v6665 = vmul.f32 %v6142, %v6632
  %v6666 = vmul.f32 %v6145, %v6632
  %v6667 = vmul.f32 %v6147, %v6632
  %v6668 = vmul.f32 %v6150, %v6632
  %v6669 = vmul.f32 %v6152, %v6632
  %v6670 = vmul.f32 %v6155, %v6632
  %v6671 = vmul.f32 %v6157, %v6632
  %v6672 = vmul.f32 %v6160, %v6632
  %v6673 = vmul.f32 %v6162, %v6632
  %v6674 = vmul.f32 %v6165, %v6632
  %v6675 = vmul.f32 %v6167, %v6632
  %v6676 = vmul.f32 %v6170, %v6632
  %v6677 = vmul.f32 %v6172, %v6632
  %v6678 = vmul.f32 %v6175, %v6632
  %v6679 = vmul.f32 %v6177, %v6632
  %v6680 = vmul.f32 %v6180, %v6632
  %v6681 = vmul.f32 %v6182, %v6632
  %v6682 = vmul.f32 %v6185, %v6632
  %v6683 = vmul.f32 %v6187, %v6632
  %v6684 = vmul.f32 %v6190, %v6632
  %v6685 = vmul.f32 %v6192, %v6632
  %v6686 = vmul.f32 %v6195, %v6632
  %v6687 = vmul.f32 %v6197, %v6632
  %v6688 = vmul.f32 %v6200, %v6632
  %v6689 = vmul.f32 %v6202, %v6632
  %v6690 = vmul.f32 %v6205, %v6632
  %v6691 = vmul.f32 %v6207, %v6632
  %v6692 = vmul.f32 %v6210, %v6632
  %v6693 = vmul.f32 %v6212, %v6632
  %v6694 = vmul.f32 %v6215, %v6632
  %v6695 = vmul.f32 %v6217, %v6632
  %v6696 = vmul.f32 %v6220, %v6632
  %v6697 = vmul.f32 %v6222, %v6632
  %v6699 = vlaneseq
  %v6700 = vshrl.u32 %v6699, 7
  %v6701 = vsub.s32 0, %v6700
  %v6702 = vrot.slane %v6627, %v6701
  %v6704 = vadd.f32 %v6634, %v6702
  %v6705 = vadd.f32 %v6635, %v6702
  %v6706 = vadd.f32 %v6636, %v6702
  %v6707 = vadd.f32 %v6637, %v6702
  %v6708 = vadd.f32 %v6638, %v6702
  %v6709 = vadd.f32 %v6639, %v6702
  %v6710 = vadd.f32 %v6640, %v6702
  %v6711 = vadd.f32 %v6641, %v6702
  %v6712 = vadd.f32 %v6642, %v6702
  %v6713 = vadd.f32 %v6643, %v6702
  %v6714 = vadd.f32 %v6644, %v6702
  %v6715 = vadd.f32 %v6645, %v6702
  %v6716 = vadd.f32 %v6646, %v6702
  %v6717 = vadd.f32 %v6647, %v6702
  %v6718 = vadd.f32 %v6648, %v6702
  %v6719 = vadd.f32 %v6649, %v6702
  %v6720 = vadd.f32 %v6650, %v6702
  %v6721 = vadd.f32 %v6651, %v6702
  %v6722 = vadd.f32 %v6652, %v6702
  %v6723 = vadd.f32 %v6653, %v6702
  %v6724 = vadd.f32 %v6654, %v6702
  %v6725 = vadd.f32 %v6655, %v6702
  %v6726 = vadd.f32 %v6656, %v6702
  %v6727 = vadd.f32 %v6657, %v6702
  %v6728 = vadd.f32 %v6658, %v6702
  %v6729 = vadd.f32 %v6659, %v6702
  %v6730 = vadd.f32 %v6660, %v6702
  %v6731 = vadd.f32 %v6661, %v6702
  %v6732 = vadd.f32 %v6662, %v6702
  %v6733 = vadd.f32 %v6663, %v6702
  %v6734 = vadd.f32 %v6664, %v6702
  %v6735 = vadd.f32 %v6665, %v6702
  %v6736 = vadd.f32 %v6666, %v6702
  %v6737 = vadd.f32 %v6667, %v6702
  %v6738 = vadd.f32 %v6668, %v6702
  %v6739 = vadd.f32 %v6669, %v6702
  %v6740 = vadd.f32 %v6670, %v6702
  %v6741 = vadd.f32 %v6671, %v6702
  %v6742 = vadd.f32 %v6672, %v6702
  %v6743 = vadd.f32 %v6673, %v6702
  %v6744 = vadd.f32 %v6674, %v6702
  %v6745 = vadd.f32 %v6675, %v6702
  %v6746 = vadd.f32 %v6676, %v6702
  %v6747 = vadd.f32 %v6677, %v6702
  %v6748 = vadd.f32 %v6678, %v6702
  %v6749 = vadd.f32 %v6679, %v6702
  %v6750 = vadd.f32 %v6680, %v6702
  %v6751 = vadd.f32 %v6681, %v6702
  %v6752 = vadd.f32 %v6682, %v6702
  %v6753 = vadd.f32 %v6683, %v6702
  %v6754 = vadd.f32 %v6684, %v6702
  %v6755 = vadd.f32 %v6685, %v6702
  %v6756 = vadd.f32 %v6686, %v6702
  %v6757 = vadd.f32 %v6687, %v6702
  %v6758 = vadd.f32 %v6688, %v6702
  %v6759 = vadd.f32 %v6689, %v6702
  %v6760 = vadd.f32 %v6690, %v6702
  %v6761 = vadd.f32 %v6691, %v6702
  %v6762 = vadd.f32 %v6692, %v6702
  %v6763 = vadd.f32 %v6693, %v6702
  %v6764 = vadd.f32 %v6694, %v6702
  %v6765 = vadd.f32 %v6695, %v6702
  %v6766 = vadd.f32 %v6696, %v6702
  %v6767 = vadd.f32 %v6697, %v6702
  %v6768 = vld [vmem:[%s7] sm:$0x3f]
  %v6770 = vsel %vm1566, %v6704, 0
  %v6773 = vsel %vm1566, %v6705, 0
  %v6776 = vsel %vm1566, %v6706, 0
  %v6779 = vsel %vm1566, %v6707, 0
  %v6782 = vsel %vm1566, %v6708, 0
  %v6785 = vsel %vm1566, %v6709, 0
  %v6788 = vsel %vm1566, %v6710, 0
  %v6791 = vsel %vm1566, %v6711, 0
  %v6794 = vsel %vm1566, %v6712, 0
  %v6797 = vsel %vm1566, %v6713, 0
  %v6800 = vsel %vm1566, %v6714, 0
  %v6803 = vsel %vm1566, %v6715, 0
  %v6806 = vsel %vm1566, %v6716, 0
  %v6809 = vsel %vm1566, %v6717, 0
  %v6812 = vsel %vm1566, %v6718, 0
  %v6815 = vsel %vm1566, %v6719, 0
  %v6818 = vsel %vm1566, %v6720, 0
  %v6821 = vsel %vm1566, %v6721, 0
  %v6824 = vsel %vm1566, %v6722, 0
  %v6827 = vsel %vm1566, %v6723, 0
  %v6830 = vsel %vm1566, %v6724, 0
  %v6833 = vsel %vm1566, %v6725, 0
  %v6836 = vsel %vm1566, %v6726, 0
  %v6839 = vsel %vm1566, %v6727, 0
  %v6842 = vsel %vm1566, %v6728, 0
  %v6845 = vsel %vm1566, %v6729, 0
  %v6848 = vsel %vm1566, %v6730, 0
  %v6851 = vsel %vm1566, %v6731, 0
  %v6854 = vsel %vm1566, %v6732, 0
  %v6857 = vsel %vm1566, %v6733, 0
  %v6860 = vsel %vm1566, %v6734, 0
  %v6863 = vsel %vm1566, %v6735, 0
  %v6866 = vsel %vm1566, %v6736, 0
  %v6869 = vsel %vm1566, %v6737, 0
  %v6872 = vsel %vm1566, %v6738, 0
  %v6875 = vsel %vm1566, %v6739, 0
  %v6878 = vsel %vm1566, %v6740, 0
  %v6881 = vsel %vm1566, %v6741, 0
  %v6884 = vsel %vm1566, %v6742, 0
  %v6887 = vsel %vm1566, %v6743, 0
  %v6890 = vsel %vm1566, %v6744, 0
  %v6893 = vsel %vm1566, %v6745, 0
  %v6896 = vsel %vm1566, %v6746, 0
  %v6899 = vsel %vm1566, %v6747, 0
  %v6902 = vsel %vm1566, %v6748, 0
  %v6905 = vsel %vm1566, %v6749, 0
  %v6908 = vsel %vm1566, %v6750, 0
  %v6911 = vsel %vm1566, %v6751, 0
  %v6914 = vsel %vm1566, %v6752, 0
  %v6917 = vsel %vm1566, %v6753, 0
  %v6920 = vsel %vm1566, %v6754, 0
  %v6923 = vsel %vm1566, %v6755, 0
  %v6926 = vsel %vm1566, %v6756, 0
  %v6929 = vsel %vm1566, %v6757, 0
  %v6932 = vsel %vm1566, %v6758, 0
  %v6935 = vsel %vm1566, %v6759, 0
  %v6938 = vsel %vm1566, %v6760, 0
  %v6941 = vsel %vm1566, %v6761, 0
  %v6944 = vsel %vm1566, %v6762, 0
  %v6947 = vsel %vm1566, %v6763, 0
  %v6950 = vsel %vm1566, %v6764, 0
  %v6953 = vsel %vm1566, %v6765, 0
  %v6956 = vsel %vm1566, %v6766, 0
  %v6959 = vsel %vm1566, %v6767, 0
  %v6962 = vsel %vm3279, %v6768, 0
  %6964 = vmatprep.subr.mxu0 0.0
  %6965 = vmatpush1.msra.mxu0 %v6962
  %6966 = vmatprep.subr.mxu0 0.0
  %6967 = vmatpush1.msra.mxu0 0.0
  %6968 = vmatprep.subr.mxu0 0.0
  %6969 = vmatpush1.msra.mxu0 0.0
  %6970 = vmatprep.subr.mxu0 0.0
  %6971 = vmatpush1.msra.mxu0 0.0
  %6972 = vmatprep.subr.mxu0 0.0
  %6973 = vmatpush1.msra.mxu0 0.0
  %6974 = vmatprep.subr.mxu0 0.0
  %6975 = vmatpush1.msra.mxu0 0.0
  %6976 = vmatprep.subr.mxu0 0.0
  %6977 = vmatpush1.msra.mxu0 0.0
  %6978 = vmatprep.subr.mxu0 0.0
  %6979 = vmatpush1.msra.mxu0 0.0
  %6980 = vmatprep.subr.mxu0 0.0
  %6981 = vmatpush1.msra.mxu0 0.0
  %6982 = vmatprep.subr.mxu0 0.0
  %6983 = vmatpush1.msra.mxu0 0.0
  %6984 = vmatprep.subr.mxu0 0.0
  %6985 = vmatpush1.msra.mxu0 0.0
  %6986 = vmatprep.subr.mxu0 0.0
  %6987 = vmatpush1.msra.mxu0 0.0
  %6988 = vmatprep.subr.mxu0 0.0
  %6989 = vmatpush1.msra.mxu0 0.0
  %6990 = vmatprep.subr.mxu0 0.0
  %6991 = vmatpush1.msra.mxu0 0.0
  %6992 = vmatprep.subr.mxu0 0.0
  %6993 = vmatpush1.msra.mxu0 0.0
  %6994 = vmatprep.subr.mxu0 0.0
  %6995 = vmatpush1.msra.mxu0 0.0
  %6996 = vmatprep.subr.mxu0 0.0
  %6997 = vmatpush1.msra.mxu0 0.0
  %6998 = vmatprep.subr.mxu0 0.0
  %6999 = vmatpush1.msra.mxu0 0.0
  %7000 = vmatprep.subr.mxu0 0.0
  %7001 = vmatpush1.msra.mxu0 0.0
  %7002 = vmatprep.subr.mxu0 0.0
  %7003 = vmatpush1.msra.mxu0 0.0
  %7004 = vmatprep.subr.mxu0 0.0
  %7005 = vmatpush1.msra.mxu0 0.0
  %7006 = vmatprep.subr.mxu0 0.0
  %7007 = vmatpush1.msra.mxu0 0.0
  %7008 = vmatprep.subr.mxu0 0.0
  %7009 = vmatpush1.msra.mxu0 0.0
  %7010 = vmatprep.subr.mxu0 0.0
  %7011 = vmatpush1.msra.mxu0 0.0
  %7012 = vmatprep.subr.mxu0 0.0
  %7013 = vmatpush1.msra.mxu0 0.0
  %7014 = vmatprep.subr.mxu0 0.0
  %7015 = vmatpush1.msra.mxu0 0.0
  %7016 = vmatprep.subr.mxu0 0.0
  %7017 = vmatpush1.msra.mxu0 0.0
  %7018 = vmatprep.subr.mxu0 0.0
  %7019 = vmatpush1.msra.mxu0 0.0
  %7020 = vmatprep.subr.mxu0 0.0
  %7021 = vmatpush1.msra.mxu0 0.0
  %7022 = vmatprep.subr.mxu0 0.0
  %7023 = vmatpush1.msra.mxu0 0.0
  %7024 = vmatprep.subr.mxu0 0.0
  %7025 = vmatpush1.msra.mxu0 0.0
  %7026 = vmatprep.subr.mxu0 0.0
  %7027 = vmatpush1.msra.mxu0 0.0
  %7028 = vmatprep.mubr.f32.mxu0 0.0
  %7029 = vmatmul.mubr.f32.gmra.mrb[0].mxu0 %v6770
  %v7030 = vpop.f32.mrb[0].mxu0
  %v7031 = vadd.f32 0.0, %v7030
  %v7032 = vpop.f32.mrb[0].mxu0
  %7033 = vmatprep.mubr.f32.mxu0 0.0
  %7034 = vmatmul.mubr.f32.gmra.mrb[0].mxu0 %v6773
  %v7035 = vpop.f32.mrb[0].mxu0
  %v7036 = vadd.f32 0.0, %v7035
  %v7037 = vpop.f32.mrb[0].mxu0
  %7038 = vmatprep.mubr.f32.mxu0 0.0
  %7039 = vmatmul.mubr.f32.gmra.mrb[0].mxu0 %v6776
  %v7040 = vpop.f32.mrb[0].mxu0
  %v7041 = vadd.f32 0.0, %v7040
  %v7042 = vpop.f32.mrb[0].mxu0
  %7043 = vmatprep.mubr.f32.mxu0 0.0
  %7044 = vmatmul.mubr.f32.gmra.mrb[0].mxu0 %v6779
  %v7045 = vpop.f32.mrb[0].mxu0
  %v7046 = vadd.f32 0.0, %v7045
  %v7047 = vpop.f32.mrb[0].mxu0
  %7048 = vmatprep.mubr.f32.mxu0 0.0
  %7049 = vmatmul.mubr.f32.gmra.mrb[0].mxu0 %v6782
  %v7050 = vpop.f32.mrb[0].mxu0
  %v7051 = vadd.f32 0.0, %v7050
  %v7052 = vpop.f32.mrb[0].mxu0
  %7053 = vmatprep.mubr.f32.mxu0 0.0
  %7054 = vmatmul.mubr.f32.gmra.mrb[0].mxu0 %v6785
  %v7055 = vpop.f32.mrb[0].mxu0
  %v7056 = vadd.f32 0.0, %v7055
  %v7057 = vpop.f32.mrb[0].mxu0
  %7058 = vmatprep.mubr.f32.mxu0 0.0
  %7059 = vmatmul.mubr.f32.gmra.mrb[0].mxu0 %v6788
  %v7060 = vpop.f32.mrb[0].mxu0
  %v7061 = vadd.f32 0.0, %v7060
  %v7062 = vpop.f32.mrb[0].mxu0
  %7063 = vmatprep.mubr.f32.mxu0 0.0
  %7064 = vmatmul.mubr.f32.gmra.mrb[0].mxu0 %v6791
  %v7065 = vpop.f32.mrb[0].mxu0
  %v7066 = vadd.f32 0.0, %v7065
  %v7067 = vpop.f32.mrb[0].mxu0
  %7068 = vmatprep.mubr.f32.mxu0 0.0
  %7069 = vmatmul.mubr.f32.gmra.mrb[0].mxu0 %v6794
  %v7070 = vpop.f32.mrb[0].mxu0
  %v7071 = vadd.f32 0.0, %v7070
  %v7072 = vpop.f32.mrb[0].mxu0
  %7073 = vmatprep.mubr.f32.mxu0 0.0
  %7074 = vmatmul.mubr.f32.gmra.mrb[0].mxu0 %v6797
  %v7075 = vpop.f32.mrb[0].mxu0
  %v7076 = vadd.f32 0.0, %v7075
  %v7077 = vpop.f32.mrb[0].mxu0
  %7078 = vmatprep.mubr.f32.mxu0 0.0
  %7079 = vmatmul.mubr.f32.gmra.mrb[0].mxu0 %v6800
  %v7080 = vpop.f32.mrb[0].mxu0
  %v7081 = vadd.f32 0.0, %v7080
  %v7082 = vpop.f32.mrb[0].mxu0
  %7083 = vmatprep.mubr.f32.mxu0 0.0
  %7084 = vmatmul.mubr.f32.gmra.mrb[0].mxu0 %v6803
  %v7085 = vpop.f32.mrb[0].mxu0
  %v7086 = vadd.f32 0.0, %v7085
  %v7087 = vpop.f32.mrb[0].mxu0
  %7088 = vmatprep.mubr.f32.mxu0 0.0
  %7089 = vmatmul.mubr.f32.gmra.mrb[0].mxu0 %v6806
  %v7090 = vpop.f32.mrb[0].mxu0
  %v7091 = vadd.f32 0.0, %v7090
  %v7092 = vpop.f32.mrb[0].mxu0
  %7093 = vmatprep.mubr.f32.mxu0 0.0
  %7094 = vmatmul.mubr.f32.gmra.mrb[0].mxu0 %v6809
  %v7095 = vpop.f32.mrb[0].mxu0
  %v7096 = vadd.f32 0.0, %v7095
  %v7097 = vpop.f32.mrb[0].mxu0
  %7098 = vmatprep.mubr.f32.mxu0 0.0
  %7099 = vmatmul.mubr.f32.gmra.mrb[0].mxu0 %v6812
  %v7100 = vpop.f32.mrb[0].mxu0
  %v7101 = vadd.f32 0.0, %v7100
  %v7102 = vpop.f32.mrb[0].mxu0
  %7103 = vmatprep.mubr.f32.mxu0 0.0
  %7104 = vmatmul.mubr.f32.gmra.mrb[0].mxu0 %v6815
  %v7105 = vpop.f32.mrb[0].mxu0
  %v7106 = vadd.f32 0.0, %v7105
  %v7107 = vpop.f32.mrb[0].mxu0
  %7108 = vmatprep.mubr.f32.mxu0 0.0
  %7109 = vmatmul.mubr.f32.gmra.mrb[0].mxu0 %v6818
  %v7110 = vpop.f32.mrb[0].mxu0
  %v7111 = vadd.f32 0.0, %v7110
  %v7112 = vpop.f32.mrb[0].mxu0
  %7113 = vmatprep.mubr.f32.mxu0 0.0
  %7114 = vmatmul.mubr.f32.gmra.mrb[0].mxu0 %v6821
  %v7115 = vpop.f32.mrb[0].mxu0
  %v7116 = vadd.f32 0.0, %v7115
  %v7117 = vpop.f32.mrb[0].mxu0
  %7118 = vmatprep.mubr.f32.mxu0 0.0
  %7119 = vmatmul.mubr.f32.gmra.mrb[0].mxu0 %v6824
  %v7120 = vpop.f32.mrb[0].mxu0
  %v7121 = vadd.f32 0.0, %v7120
  %v7122 = vpop.f32.mrb[0].mxu0
  %7123 = vmatprep.mubr.f32.mxu0 0.0
  %7124 = vmatmul.mubr.f32.gmra.mrb[0].mxu0 %v6827
  %v7125 = vpop.f32.mrb[0].mxu0
  %v7126 = vadd.f32 0.0, %v7125
  %v7127 = vpop.f32.mrb[0].mxu0
  %7128 = vmatprep.mubr.f32.mxu0 0.0
  %7129 = vmatmul.mubr.f32.gmra.mrb[0].mxu0 %v6830
  %v7130 = vpop.f32.mrb[0].mxu0
  %v7131 = vadd.f32 0.0, %v7130
  %v7132 = vpop.f32.mrb[0].mxu0
  %7133 = vmatprep.mubr.f32.mxu0 0.0
  %7134 = vmatmul.mubr.f32.gmra.mrb[0].mxu0 %v6833
  %v7135 = vpop.f32.mrb[0].mxu0
  %v7136 = vadd.f32 0.0, %v7135
  %v7137 = vpop.f32.mrb[0].mxu0
  %7138 = vmatprep.mubr.f32.mxu0 0.0
  %7139 = vmatmul.mubr.f32.gmra.mrb[0].mxu0 %v6836
  %v7140 = vpop.f32.mrb[0].mxu0
  %v7141 = vadd.f32 0.0, %v7140
  %v7142 = vpop.f32.mrb[0].mxu0
  %7143 = vmatprep.mubr.f32.mxu0 0.0
  %7144 = vmatmul.mubr.f32.gmra.mrb[0].mxu0 %v6839
  %v7145 = vpop.f32.mrb[0].mxu0
  %v7146 = vadd.f32 0.0, %v7145
  %v7147 = vpop.f32.mrb[0].mxu0
  %7148 = vmatprep.mubr.f32.mxu0 0.0
  %7149 = vmatmul.mubr.f32.gmra.mrb[0].mxu0 %v6842
  %v7150 = vpop.f32.mrb[0].mxu0
  %v7151 = vadd.f32 0.0, %v7150
  %v7152 = vpop.f32.mrb[0].mxu0
  %7153 = vmatprep.mubr.f32.mxu0 0.0
  %7154 = vmatmul.mubr.f32.gmra.mrb[0].mxu0 %v6845
  %v7155 = vpop.f32.mrb[0].mxu0
  %v7156 = vadd.f32 0.0, %v7155
  %v7157 = vpop.f32.mrb[0].mxu0
  %7158 = vmatprep.mubr.f32.mxu0 0.0
  %7159 = vmatmul.mubr.f32.gmra.mrb[0].mxu0 %v6848
  %v7160 = vpop.f32.mrb[0].mxu0
  %v7161 = vadd.f32 0.0, %v7160
  %v7162 = vpop.f32.mrb[0].mxu0
  %7163 = vmatprep.mubr.f32.mxu0 0.0
  %7164 = vmatmul.mubr.f32.gmra.mrb[0].mxu0 %v6851
  %v7165 = vpop.f32.mrb[0].mxu0
  %v7166 = vadd.f32 0.0, %v7165
  %v7167 = vpop.f32.mrb[0].mxu0
  %7168 = vmatprep.mubr.f32.mxu0 0.0
  %7169 = vmatmul.mubr.f32.gmra.mrb[0].mxu0 %v6854
  %v7170 = vpop.f32.mrb[0].mxu0
  %v7171 = vadd.f32 0.0, %v7170
  %v7172 = vpop.f32.mrb[0].mxu0
  %7173 = vmatprep.mubr.f32.mxu0 0.0
  %7174 = vmatmul.mubr.f32.gmra.mrb[0].mxu0 %v6857
  %v7175 = vpop.f32.mrb[0].mxu0
  %v7176 = vadd.f32 0.0, %v7175
  %v7177 = vpop.f32.mrb[0].mxu0
  %7178 = vmatprep.mubr.f32.mxu0 0.0
  %7179 = vmatmul.mubr.f32.gmra.mrb[0].mxu0 %v6860
  %v7180 = vpop.f32.mrb[0].mxu0
  %v7181 = vadd.f32 0.0, %v7180
  %v7182 = vpop.f32.mrb[0].mxu0
  %7183 = vmatprep.mubr.f32.mxu0 0.0
  %7184 = vmatmul.mubr.f32.gmra.mrb[0].mxu0 %v6863
  %v7185 = vpop.f32.mrb[0].mxu0
  %v7186 = vadd.f32 0.0, %v7185
  %v7187 = vpop.f32.mrb[0].mxu0
  %7188 = vmatprep.mubr.f32.mxu0 0.0
  %7189 = vmatmul.mubr.f32.gmra.mrb[0].mxu0 %v6866
  %v7190 = vpop.f32.mrb[0].mxu0
  %v7191 = vadd.f32 0.0, %v7190
  %v7192 = vpop.f32.mrb[0].mxu0
  %7193 = vmatprep.mubr.f32.mxu0 0.0
  %7194 = vmatmul.mubr.f32.gmra.mrb[0].mxu0 %v6869
  %v7195 = vpop.f32.mrb[0].mxu0
  %v7196 = vadd.f32 0.0, %v7195
  %v7197 = vpop.f32.mrb[0].mxu0
  %7198 = vmatprep.mubr.f32.mxu0 0.0
  %7199 = vmatmul.mubr.f32.gmra.mrb[0].mxu0 %v6872
  %v7200 = vpop.f32.mrb[0].mxu0
  %v7201 = vadd.f32 0.0, %v7200
  %v7202 = vpop.f32.mrb[0].mxu0
  %7203 = vmatprep.mubr.f32.mxu0 0.0
  %7204 = vmatmul.mubr.f32.gmra.mrb[0].mxu0 %v6875
  %v7205 = vpop.f32.mrb[0].mxu0
  %v7206 = vadd.f32 0.0, %v7205
  %v7207 = vpop.f32.mrb[0].mxu0
  %7208 = vmatprep.mubr.f32.mxu0 0.0
  %7209 = vmatmul.mubr.f32.gmra.mrb[0].mxu0 %v6878
  %v7210 = vpop.f32.mrb[0].mxu0
  %v7211 = vadd.f32 0.0, %v7210
  %v7212 = vpop.f32.mrb[0].mxu0
  %7213 = vmatprep.mubr.f32.mxu0 0.0
  %7214 = vmatmul.mubr.f32.gmra.mrb[0].mxu0 %v6881
  %v7215 = vpop.f32.mrb[0].mxu0
  %v7216 = vadd.f32 0.0, %v7215
  %v7217 = vpop.f32.mrb[0].mxu0
  %7218 = vmatprep.mubr.f32.mxu0 0.0
  %7219 = vmatmul.mubr.f32.gmra.mrb[0].mxu0 %v6884
  %v7220 = vpop.f32.mrb[0].mxu0
  %v7221 = vadd.f32 0.0, %v7220
  %v7222 = vpop.f32.mrb[0].mxu0
  %7223 = vmatprep.mubr.f32.mxu0 0.0
  %7224 = vmatmul.mubr.f32.gmra.mrb[0].mxu0 %v6887
  %v7225 = vpop.f32.mrb[0].mxu0
  %v7226 = vadd.f32 0.0, %v7225
  %v7227 = vpop.f32.mrb[0].mxu0
  %7228 = vmatprep.mubr.f32.mxu0 0.0
  %7229 = vmatmul.mubr.f32.gmra.mrb[0].mxu0 %v6890
  %v7230 = vpop.f32.mrb[0].mxu0
  %v7231 = vadd.f32 0.0, %v7230
  %v7232 = vpop.f32.mrb[0].mxu0
  %7233 = vmatprep.mubr.f32.mxu0 0.0
  %7234 = vmatmul.mubr.f32.gmra.mrb[0].mxu0 %v6893
  %v7235 = vpop.f32.mrb[0].mxu0
  %v7236 = vadd.f32 0.0, %v7235
  %v7237 = vpop.f32.mrb[0].mxu0
  %7238 = vmatprep.mubr.f32.mxu0 0.0
  %7239 = vmatmul.mubr.f32.gmra.mrb[0].mxu0 %v6896
  %v7240 = vpop.f32.mrb[0].mxu0
  %v7241 = vadd.f32 0.0, %v7240
  %v7242 = vpop.f32.mrb[0].mxu0
  %7243 = vmatprep.mubr.f32.mxu0 0.0
  %7244 = vmatmul.mubr.f32.gmra.mrb[0].mxu0 %v6899
  %v7245 = vpop.f32.mrb[0].mxu0
  %v7246 = vadd.f32 0.0, %v7245
  %v7247 = vpop.f32.mrb[0].mxu0
  %7248 = vmatprep.mubr.f32.mxu0 0.0
  %7249 = vmatmul.mubr.f32.gmra.mrb[0].mxu0 %v6902
  %v7250 = vpop.f32.mrb[0].mxu0
  %v7251 = vadd.f32 0.0, %v7250
  %v7252 = vpop.f32.mrb[0].mxu0
  %7253 = vmatprep.mubr.f32.mxu0 0.0
  %7254 = vmatmul.mubr.f32.gmra.mrb[0].mxu0 %v6905
  %v7255 = vpop.f32.mrb[0].mxu0
  %v7256 = vadd.f32 0.0, %v7255
  %v7257 = vpop.f32.mrb[0].mxu0
  %7258 = vmatprep.mubr.f32.mxu0 0.0
  %7259 = vmatmul.mubr.f32.gmra.mrb[0].mxu0 %v6908
  %v7260 = vpop.f32.mrb[0].mxu0
  %v7261 = vadd.f32 0.0, %v7260
  %v7262 = vpop.f32.mrb[0].mxu0
  %7263 = vmatprep.mubr.f32.mxu0 0.0
  %7264 = vmatmul.mubr.f32.gmra.mrb[0].mxu0 %v6911
  %v7265 = vpop.f32.mrb[0].mxu0
  %v7266 = vadd.f32 0.0, %v7265
  %v7267 = vpop.f32.mrb[0].mxu0
  %7268 = vmatprep.mubr.f32.mxu0 0.0
  %7269 = vmatmul.mubr.f32.gmra.mrb[0].mxu0 %v6914
  %v7270 = vpop.f32.mrb[0].mxu0
  %v7271 = vadd.f32 0.0, %v7270
  %v7272 = vpop.f32.mrb[0].mxu0
  %7273 = vmatprep.mubr.f32.mxu0 0.0
  %7274 = vmatmul.mubr.f32.gmra.mrb[0].mxu0 %v6917
  %v7275 = vpop.f32.mrb[0].mxu0
  %v7276 = vadd.f32 0.0, %v7275
  %v7277 = vpop.f32.mrb[0].mxu0
  %7278 = vmatprep.mubr.f32.mxu0 0.0
  %7279 = vmatmul.mubr.f32.gmra.mrb[0].mxu0 %v6920
  %v7280 = vpop.f32.mrb[0].mxu0
  %v7281 = vadd.f32 0.0, %v7280
  %v7282 = vpop.f32.mrb[0].mxu0
  %7283 = vmatprep.mubr.f32.mxu0 0.0
  %7284 = vmatmul.mubr.f32.gmra.mrb[0].mxu0 %v6923
  %v7285 = vpop.f32.mrb[0].mxu0
  %v7286 = vadd.f32 0.0, %v7285
  %v7287 = vpop.f32.mrb[0].mxu0
  %7288 = vmatprep.mubr.f32.mxu0 0.0
  %7289 = vmatmul.mubr.f32.gmra.mrb[0].mxu0 %v6926
  %v7290 = vpop.f32.mrb[0].mxu0
  %v7291 = vadd.f32 0.0, %v7290
  %v7292 = vpop.f32.mrb[0].mxu0
  %7293 = vmatprep.mubr.f32.mxu0 0.0
  %7294 = vmatmul.mubr.f32.gmra.mrb[0].mxu0 %v6929
  %v7295 = vpop.f32.mrb[0].mxu0
  %v7296 = vadd.f32 0.0, %v7295
  %v7297 = vpop.f32.mrb[0].mxu0
  %7298 = vmatprep.mubr.f32.mxu0 0.0
  %7299 = vmatmul.mubr.f32.gmra.mrb[0].mxu0 %v6932
  %v7300 = vpop.f32.mrb[0].mxu0
  %v7301 = vadd.f32 0.0, %v7300
  %v7302 = vpop.f32.mrb[0].mxu0
  %7303 = vmatprep.mubr.f32.mxu0 0.0
  %7304 = vmatmul.mubr.f32.gmra.mrb[0].mxu0 %v6935
  %v7305 = vpop.f32.mrb[0].mxu0
  %v7306 = vadd.f32 0.0, %v7305
  %v7307 = vpop.f32.mrb[0].mxu0
  %7308 = vmatprep.mubr.f32.mxu0 0.0
  %7309 = vmatmul.mubr.f32.gmra.mrb[0].mxu0 %v6938
  %v7310 = vpop.f32.mrb[0].mxu0
  %v7311 = vadd.f32 0.0, %v7310
  %v7312 = vpop.f32.mrb[0].mxu0
  %7313 = vmatprep.mubr.f32.mxu0 0.0
  %7314 = vmatmul.mubr.f32.gmra.mrb[0].mxu0 %v6941
  %v7315 = vpop.f32.mrb[0].mxu0
  %v7316 = vadd.f32 0.0, %v7315
  %v7317 = vpop.f32.mrb[0].mxu0
  %7318 = vmatprep.mubr.f32.mxu0 0.0
  %7319 = vmatmul.mubr.f32.gmra.mrb[0].mxu0 %v6944
  %v7320 = vpop.f32.mrb[0].mxu0
  %v7321 = vadd.f32 0.0, %v7320
  %v7322 = vpop.f32.mrb[0].mxu0
  %7323 = vmatprep.mubr.f32.mxu0 0.0
  %7324 = vmatmul.mubr.f32.gmra.mrb[0].mxu0 %v6947
  %v7325 = vpop.f32.mrb[0].mxu0
  %v7326 = vadd.f32 0.0, %v7325
  %v7327 = vpop.f32.mrb[0].mxu0
  %7328 = vmatprep.mubr.f32.mxu0 0.0
  %7329 = vmatmul.mubr.f32.gmra.mrb[0].mxu0 %v6950
  %v7330 = vpop.f32.mrb[0].mxu0
  %v7331 = vadd.f32 0.0, %v7330
  %v7332 = vpop.f32.mrb[0].mxu0
  %7333 = vmatprep.mubr.f32.mxu0 0.0
  %7334 = vmatmul.mubr.f32.gmra.mrb[0].mxu0 %v6953
  %v7335 = vpop.f32.mrb[0].mxu0
  %v7336 = vadd.f32 0.0, %v7335
  %v7337 = vpop.f32.mrb[0].mxu0
  %7338 = vmatprep.mubr.f32.mxu0 0.0
  %7339 = vmatmul.mubr.f32.gmra.mrb[0].mxu0 %v6956
  %v7340 = vpop.f32.mrb[0].mxu0
  %v7341 = vadd.f32 0.0, %v7340
  %v7342 = vpop.f32.mrb[0].mxu0
  %7343 = vmatprep.mubr.f32.mxu0 0.0
  %7344 = vmatmul.mubr.f32.gmra.mrb[0].mxu0 %v6959
  %v7345 = vpop.f32.mrb[0].mxu0
  %v7346 = vadd.f32 0.0, %v7345
  %v7347 = vpop.f32.mrb[0].mxu0
  %7348 = vdwg.mxu0
  %v7349 = vld [vmem:[%s8] sm:$0x1]
  %v7350 = vld [vmem:[%s9] sm:$0x1]
  %v7351 = vsel %vm694, %v7031, 0.0
  %v7352 = vsel %vm694, %v7036, 0.0
  %v7353 = vadd.f32 %v7351, %v7352
  %v7354 = vsel %vm694, %v7041, 0.0
  %v7355 = vadd.f32 %v7353, %v7354
  %v7356 = vsel %vm694, %v7046, 0.0
  %v7357 = vadd.f32 %v7355, %v7356
  %v7358 = vsel %vm694, %v7051, 0.0
  %v7359 = vadd.f32 %v7357, %v7358
  %v7360 = vsel %vm694, %v7056, 0.0
  %v7361 = vadd.f32 %v7359, %v7360
  %v7362 = vsel %vm694, %v7061, 0.0
  %v7363 = vadd.f32 %v7361, %v7362
  %v7364 = vsel %vm694, %v7066, 0.0
  %v7365 = vadd.f32 %v7363, %v7364
  %v7366 = vsel %vm694, %v7071, 0.0
  %v7367 = vadd.f32 %v7365, %v7366
  %v7368 = vsel %vm694, %v7076, 0.0
  %v7369 = vadd.f32 %v7367, %v7368
  %v7370 = vsel %vm694, %v7081, 0.0
  %v7371 = vadd.f32 %v7369, %v7370
  %v7372 = vsel %vm694, %v7086, 0.0
  %v7373 = vadd.f32 %v7371, %v7372
  %v7374 = vsel %vm694, %v7091, 0.0
  %v7375 = vadd.f32 %v7373, %v7374
  %v7376 = vsel %vm694, %v7096, 0.0
  %v7377 = vadd.f32 %v7375, %v7376
  %v7378 = vsel %vm694, %v7101, 0.0
  %v7379 = vadd.f32 %v7377, %v7378
  %v7380 = vsel %vm694, %v7106, 0.0
  %v7381 = vadd.f32 %v7379, %v7380
  %v7382 = vsel %vm694, %v7111, 0.0
  %v7383 = vadd.f32 %v7381, %v7382
  %v7384 = vsel %vm694, %v7116, 0.0
  %v7385 = vadd.f32 %v7383, %v7384
  %v7386 = vsel %vm694, %v7121, 0.0
  %v7387 = vadd.f32 %v7385, %v7386
  %v7388 = vsel %vm694, %v7126, 0.0
  %v7389 = vadd.f32 %v7387, %v7388
  %v7390 = vsel %vm694, %v7131, 0.0
  %v7391 = vadd.f32 %v7389, %v7390
  %v7392 = vsel %vm694, %v7136, 0.0
  %v7393 = vadd.f32 %v7391, %v7392
  %v7394 = vsel %vm694, %v7141, 0.0
  %v7395 = vadd.f32 %v7393, %v7394
  %v7396 = vsel %vm694, %v7146, 0.0
  %v7397 = vadd.f32 %v7395, %v7396
  %v7398 = vsel %vm694, %v7151, 0.0
  %v7399 = vadd.f32 %v7397, %v7398
  %v7400 = vsel %vm694, %v7156, 0.0
  %v7401 = vadd.f32 %v7399, %v7400
  %v7402 = vsel %vm694, %v7161, 0.0
  %v7403 = vadd.f32 %v7401, %v7402
  %v7404 = vsel %vm694, %v7166, 0.0
  %v7405 = vadd.f32 %v7403, %v7404
  %v7406 = vsel %vm694, %v7171, 0.0
  %v7407 = vadd.f32 %v7405, %v7406
  %v7408 = vsel %vm694, %v7176, 0.0
  %v7409 = vadd.f32 %v7407, %v7408
  %v7410 = vsel %vm694, %v7181, 0.0
  %v7411 = vadd.f32 %v7409, %v7410
  %v7412 = vsel %vm694, %v7186, 0.0
  %v7413 = vadd.f32 %v7411, %v7412
  %v7414 = vsel %vm694, %v7191, 0.0
  %v7415 = vadd.f32 %v7413, %v7414
  %v7416 = vsel %vm694, %v7196, 0.0
  %v7417 = vadd.f32 %v7415, %v7416
  %v7418 = vsel %vm694, %v7201, 0.0
  %v7419 = vadd.f32 %v7417, %v7418
  %v7420 = vsel %vm694, %v7206, 0.0
  %v7421 = vadd.f32 %v7419, %v7420
  %v7422 = vsel %vm694, %v7211, 0.0
  %v7423 = vadd.f32 %v7421, %v7422
  %v7424 = vsel %vm694, %v7216, 0.0
  %v7425 = vadd.f32 %v7423, %v7424
  %v7426 = vsel %vm694, %v7221, 0.0
  %v7427 = vadd.f32 %v7425, %v7426
  %v7428 = vsel %vm694, %v7226, 0.0
  %v7429 = vadd.f32 %v7427, %v7428
  %v7430 = vsel %vm694, %v7231, 0.0
  %v7431 = vadd.f32 %v7429, %v7430
  %v7432 = vsel %vm694, %v7236, 0.0
  %v7433 = vadd.f32 %v7431, %v7432
  %v7434 = vsel %vm694, %v7241, 0.0
  %v7435 = vadd.f32 %v7433, %v7434
  %v7436 = vsel %vm694, %v7246, 0.0
  %v7437 = vadd.f32 %v7435, %v7436
  %v7438 = vsel %vm694, %v7251, 0.0
  %v7439 = vadd.f32 %v7437, %v7438
  %v7440 = vsel %vm694, %v7256, 0.0
  %v7441 = vadd.f32 %v7439, %v7440
  %v7442 = vsel %vm694, %v7261, 0.0
  %v7443 = vadd.f32 %v7441, %v7442
  %v7444 = vsel %vm694, %v7266, 0.0
  %v7445 = vadd.f32 %v7443, %v7444
  %v7446 = vsel %vm694, %v7271, 0.0
  %v7447 = vadd.f32 %v7445, %v7446
  %v7448 = vsel %vm694, %v7276, 0.0
  %v7449 = vadd.f32 %v7447, %v7448
  %v7450 = vsel %vm694, %v7281, 0.0
  %v7451 = vadd.f32 %v7449, %v7450
  %v7452 = vsel %vm694, %v7286, 0.0
  %v7453 = vadd.f32 %v7451, %v7452
  %v7454 = vsel %vm694, %v7291, 0.0
  %v7455 = vadd.f32 %v7453, %v7454
  %v7456 = vsel %vm694, %v7296, 0.0
  %v7457 = vadd.f32 %v7455, %v7456
  %v7458 = vsel %vm694, %v7301, 0.0
  %v7459 = vadd.f32 %v7457, %v7458
  %v7460 = vsel %vm694, %v7306, 0.0
  %v7461 = vadd.f32 %v7459, %v7460
  %v7462 = vsel %vm694, %v7311, 0.0
  %v7463 = vadd.f32 %v7461, %v7462
  %v7464 = vsel %vm694, %v7316, 0.0
  %v7465 = vadd.f32 %v7463, %v7464
  %v7466 = vsel %vm694, %v7321, 0.0
  %v7467 = vadd.f32 %v7465, %v7466
  %v7468 = vsel %vm694, %v7326, 0.0
  %v7469 = vadd.f32 %v7467, %v7468
  %v7470 = vsel %vm694, %v7331, 0.0
  %v7471 = vadd.f32 %v7469, %v7470
  %v7472 = vsel %vm694, %v7336, 0.0
  %v7473 = vadd.f32 %v7471, %v7472
  %v7474 = vsel %vm694, %v7341, 0.0
  %v7475 = vadd.f32 %v7473, %v7474
  %v7476 = vsel %vm694, %v7346, 0.0
  %v7477 = vadd.f32 %v7475, %v7476
  %v7478 = vrot.slane %v7477, 4
  %v7479 = vadd.f32 %v7477, %v7478
  %v7480 = vrot.slane %v7479, 2
  %v7481 = vadd.f32 %v7479, %v7480
  %v7482 = vrot.slane %v7481, 1
  %v7483 = vadd.f32 %v7481, %v7482
  %v7484 = vmul.f32 %v7031, %v7031
  %v7485 = vmul.f32 %v7036, %v7036
  %v7486 = vmul.f32 %v7041, %v7041
  %v7487 = vmul.f32 %v7046, %v7046
  %v7488 = vmul.f32 %v7051, %v7051
  %v7489 = vmul.f32 %v7056, %v7056
  %v7490 = vmul.f32 %v7061, %v7061
  %v7491 = vmul.f32 %v7066, %v7066
  %v7492 = vmul.f32 %v7071, %v7071
  %v7493 = vmul.f32 %v7076, %v7076
  %v7494 = vmul.f32 %v7081, %v7081
  %v7495 = vmul.f32 %v7086, %v7086
  %v7496 = vmul.f32 %v7091, %v7091
  %v7497 = vmul.f32 %v7096, %v7096
  %v7498 = vmul.f32 %v7101, %v7101
  %v7499 = vmul.f32 %v7106, %v7106
  %v7500 = vmul.f32 %v7111, %v7111
  %v7501 = vmul.f32 %v7116, %v7116
  %v7502 = vmul.f32 %v7121, %v7121
  %v7503 = vmul.f32 %v7126, %v7126
  %v7504 = vmul.f32 %v7131, %v7131
  %v7505 = vmul.f32 %v7136, %v7136
  %v7506 = vmul.f32 %v7141, %v7141
  %v7507 = vmul.f32 %v7146, %v7146
  %v7508 = vmul.f32 %v7151, %v7151
  %v7509 = vmul.f32 %v7156, %v7156
  %v7510 = vmul.f32 %v7161, %v7161
  %v7511 = vmul.f32 %v7166, %v7166
  %v7512 = vmul.f32 %v7171, %v7171
  %v7513 = vmul.f32 %v7176, %v7176
  %v7514 = vmul.f32 %v7181, %v7181
  %v7515 = vmul.f32 %v7186, %v7186
  %v7516 = vmul.f32 %v7191, %v7191
  %v7517 = vmul.f32 %v7196, %v7196
  %v7518 = vmul.f32 %v7201, %v7201
  %v7519 = vmul.f32 %v7206, %v7206
  %v7520 = vmul.f32 %v7211, %v7211
  %v7521 = vmul.f32 %v7216, %v7216
  %v7522 = vmul.f32 %v7221, %v7221
  %v7523 = vmul.f32 %v7226, %v7226
  %v7524 = vmul.f32 %v7231, %v7231
  %v7525 = vmul.f32 %v7236, %v7236
  %v7526 = vmul.f32 %v7241, %v7241
  %v7527 = vmul.f32 %v7246, %v7246
  %v7528 = vmul.f32 %v7251, %v7251
  %v7529 = vmul.f32 %v7256, %v7256
  %v7530 = vmul.f32 %v7261, %v7261
  %v7531 = vmul.f32 %v7266, %v7266
  %v7532 = vmul.f32 %v7271, %v7271
  %v7533 = vmul.f32 %v7276, %v7276
  %v7534 = vmul.f32 %v7281, %v7281
  %v7535 = vmul.f32 %v7286, %v7286
  %v7536 = vmul.f32 %v7291, %v7291
  %v7537 = vmul.f32 %v7296, %v7296
  %v7538 = vmul.f32 %v7301, %v7301
  %v7539 = vmul.f32 %v7306, %v7306
  %v7540 = vmul.f32 %v7311, %v7311
  %v7541 = vmul.f32 %v7316, %v7316
  %v7542 = vmul.f32 %v7321, %v7321
  %v7543 = vmul.f32 %v7326, %v7326
  %v7544 = vmul.f32 %v7331, %v7331
  %v7545 = vmul.f32 %v7336, %v7336
  %v7546 = vmul.f32 %v7341, %v7341
  %v7547 = vmul.f32 %v7346, %v7346
  %v7548 = vsel %vm694, %v7484, 0.0
  %v7549 = vsel %vm694, %v7485, 0.0
  %v7550 = vadd.f32 %v7548, %v7549
  %v7551 = vsel %vm694, %v7486, 0.0
  %v7552 = vadd.f32 %v7550, %v7551
  %v7553 = vsel %vm694, %v7487, 0.0
  %v7554 = vadd.f32 %v7552, %v7553
  %v7555 = vsel %vm694, %v7488, 0.0
  %v7556 = vadd.f32 %v7554, %v7555
  %v7557 = vsel %vm694, %v7489, 0.0
  %v7558 = vadd.f32 %v7556, %v7557
  %v7559 = vsel %vm694, %v7490, 0.0
  %v7560 = vadd.f32 %v7558, %v7559
  %v7561 = vsel %vm694, %v7491, 0.0
  %v7562 = vadd.f32 %v7560, %v7561
  %v7563 = vsel %vm694, %v7492, 0.0
  %v7564 = vadd.f32 %v7562, %v7563
  %v7565 = vsel %vm694, %v7493, 0.0
  %v7566 = vadd.f32 %v7564, %v7565
  %v7567 = vsel %vm694, %v7494, 0.0
  %v7568 = vadd.f32 %v7566, %v7567
  %v7569 = vsel %vm694, %v7495, 0.0
  %v7570 = vadd.f32 %v7568, %v7569
  %v7571 = vsel %vm694, %v7496, 0.0
  %v7572 = vadd.f32 %v7570, %v7571
  %v7573 = vsel %vm694, %v7497, 0.0
  %v7574 = vadd.f32 %v7572, %v7573
  %v7575 = vsel %vm694, %v7498, 0.0
  %v7576 = vadd.f32 %v7574, %v7575
  %v7577 = vsel %vm694, %v7499, 0.0
  %v7578 = vadd.f32 %v7576, %v7577
  %v7579 = vsel %vm694, %v7500, 0.0
  %v7580 = vadd.f32 %v7578, %v7579
  %v7581 = vsel %vm694, %v7501, 0.0
  %v7582 = vadd.f32 %v7580, %v7581
  %v7583 = vsel %vm694, %v7502, 0.0
  %v7584 = vadd.f32 %v7582, %v7583
  %v7585 = vsel %vm694, %v7503, 0.0
  %v7586 = vadd.f32 %v7584, %v7585
  %v7587 = vsel %vm694, %v7504, 0.0
  %v7588 = vadd.f32 %v7586, %v7587
  %v7589 = vsel %vm694, %v7505, 0.0
  %v7590 = vadd.f32 %v7588, %v7589
  %v7591 = vsel %vm694, %v7506, 0.0
  %v7592 = vadd.f32 %v7590, %v7591
  %v7593 = vsel %vm694, %v7507, 0.0
  %v7594 = vadd.f32 %v7592, %v7593
  %v7595 = vsel %vm694, %v7508, 0.0
  %v7596 = vadd.f32 %v7594, %v7595
  %v7597 = vsel %vm694, %v7509, 0.0
  %v7598 = vadd.f32 %v7596, %v7597
  %v7599 = vsel %vm694, %v7510, 0.0
  %v7600 = vadd.f32 %v7598, %v7599
  %v7601 = vsel %vm694, %v7511, 0.0
  %v7602 = vadd.f32 %v7600, %v7601
  %v7603 = vsel %vm694, %v7512, 0.0
  %v7604 = vadd.f32 %v7602, %v7603
  %v7605 = vsel %vm694, %v7513, 0.0
  %v7606 = vadd.f32 %v7604, %v7605
  %v7607 = vsel %vm694, %v7514, 0.0
  %v7608 = vadd.f32 %v7606, %v7607
  %v7609 = vsel %vm694, %v7515, 0.0
  %v7610 = vadd.f32 %v7608, %v7609
  %v7611 = vsel %vm694, %v7516, 0.0
  %v7612 = vadd.f32 %v7610, %v7611
  %v7613 = vsel %vm694, %v7517, 0.0
  %v7614 = vadd.f32 %v7612, %v7613
  %v7615 = vsel %vm694, %v7518, 0.0
  %v7616 = vadd.f32 %v7614, %v7615
  %v7617 = vsel %vm694, %v7519, 0.0
  %v7618 = vadd.f32 %v7616, %v7617
  %v7619 = vsel %vm694, %v7520, 0.0
  %v7620 = vadd.f32 %v7618, %v7619
  %v7621 = vsel %vm694, %v7521, 0.0
  %v7622 = vadd.f32 %v7620, %v7621
  %v7623 = vsel %vm694, %v7522, 0.0
  %v7624 = vadd.f32 %v7622, %v7623
  %v7625 = vsel %vm694, %v7523, 0.0
  %v7626 = vadd.f32 %v7624, %v7625
  %v7627 = vsel %vm694, %v7524, 0.0
  %v7628 = vadd.f32 %v7626, %v7627
  %v7629 = vsel %vm694, %v7525, 0.0
  %v7630 = vadd.f32 %v7628, %v7629
  %v7631 = vsel %vm694, %v7526, 0.0
  %v7632 = vadd.f32 %v7630, %v7631
  %v7633 = vsel %vm694, %v7527, 0.0
  %v7634 = vadd.f32 %v7632, %v7633
  %v7635 = vsel %vm694, %v7528, 0.0
  %v7636 = vadd.f32 %v7634, %v7635
  %v7637 = vsel %vm694, %v7529, 0.0
  %v7638 = vadd.f32 %v7636, %v7637
  %v7639 = vsel %vm694, %v7530, 0.0
  %v7640 = vadd.f32 %v7638, %v7639
  %v7641 = vsel %vm694, %v7531, 0.0
  %v7642 = vadd.f32 %v7640, %v7641
  %v7643 = vsel %vm694, %v7532, 0.0
  %v7644 = vadd.f32 %v7642, %v7643
  %v7645 = vsel %vm694, %v7533, 0.0
  %v7646 = vadd.f32 %v7644, %v7645
  %v7647 = vsel %vm694, %v7534, 0.0
  %v7648 = vadd.f32 %v7646, %v7647
  %v7649 = vsel %vm694, %v7535, 0.0
  %v7650 = vadd.f32 %v7648, %v7649
  %v7651 = vsel %vm694, %v7536, 0.0
  %v7652 = vadd.f32 %v7650, %v7651
  %v7653 = vsel %vm694, %v7537, 0.0
  %v7654 = vadd.f32 %v7652, %v7653
  %v7655 = vsel %vm694, %v7538, 0.0
  %v7656 = vadd.f32 %v7654, %v7655
  %v7657 = vsel %vm694, %v7539, 0.0
  %v7658 = vadd.f32 %v7656, %v7657
  %v7659 = vsel %vm694, %v7540, 0.0
  %v7660 = vadd.f32 %v7658, %v7659
  %v7661 = vsel %vm694, %v7541, 0.0
  %v7662 = vadd.f32 %v7660, %v7661
  %v7663 = vsel %vm694, %v7542, 0.0
  %v7664 = vadd.f32 %v7662, %v7663
  %v7665 = vsel %vm694, %v7543, 0.0
  %v7666 = vadd.f32 %v7664, %v7665
  %v7667 = vsel %vm694, %v7544, 0.0
  %v7668 = vadd.f32 %v7666, %v7667
  %v7669 = vsel %vm694, %v7545, 0.0
  %v7670 = vadd.f32 %v7668, %v7669
  %v7671 = vsel %vm694, %v7546, 0.0
  %v7672 = vadd.f32 %v7670, %v7671
  %v7673 = vsel %vm694, %v7547, 0.0
  %v7674 = vadd.f32 %v7672, %v7673
  %v7675 = vrot.slane %v7674, 4
  %v7676 = vadd.f32 %v7674, %v7675
  %v7677 = vrot.slane %v7676, 2
  %v7678 = vadd.f32 %v7676, %v7677
  %v7679 = vrot.slane %v7678, 1
  %v7680 = vadd.f32 %v7678, %v7679
  %v7681 = vmul.f32 %v7483, 0.001953125
  %v7682 = vmul.f32 %v7680, 0.001953125
  %v7683 = vmul.f32 %v7681, %v7681
  %v7684 = vsub.f32 %v7682, %v7683
  %v7685 = vadd.f32 %v7684, 1e-05
  %v7686 = vrsqrt.pop %v7685
  %v7687 = vmul.f32 %v7349, %v7686
  %v7688 = vmul.f32 %v7681, %v7687
  %v7689 = vsub.f32 %v7350, %v7688
  %v7691 = vlaneseq
  %v7692 = vshrl.u32 %v7691, 7
  %v7693 = vsub.s32 0, %v7692
  %v7694 = vrot.slane %v7687, %v7693
  %v7696 = vmul.f32 %v7031, %v7694
  %v7697 = vmul.f32 %v7036, %v7694
  %v7698 = vmul.f32 %v7041, %v7694
  %v7699 = vmul.f32 %v7046, %v7694
  %v7700 = vmul.f32 %v7051, %v7694
  %v7701 = vmul.f32 %v7056, %v7694
  %v7702 = vmul.f32 %v7061, %v7694
  %v7703 = vmul.f32 %v7066, %v7694
  %v7704 = vmul.f32 %v7071, %v7694
  %v7705 = vmul.f32 %v7076, %v7694
  %v7706 = vmul.f32 %v7081, %v7694
  %v7707 = vmul.f32 %v7086, %v7694
  %v7708 = vmul.f32 %v7091, %v7694
  %v7709 = vmul.f32 %v7096, %v7694
  %v7710 = vmul.f32 %v7101, %v7694
  %v7711 = vmul.f32 %v7106, %v7694
  %v7712 = vmul.f32 %v7111, %v7694
  %v7713 = vmul.f32 %v7116, %v7694
  %v7714 = vmul.f32 %v7121, %v7694
  %v7715 = vmul.f32 %v7126, %v7694
  %v7716 = vmul.f32 %v7131, %v7694
  %v7717 = vmul.f32 %v7136, %v7694
  %v7718 = vmul.f32 %v7141, %v7694
  %v7719 = vmul.f32 %v7146, %v7694
  %v7720 = vmul.f32 %v7151, %v7694
  %v7721 = vmul.f32 %v7156, %v7694
  %v7722 = vmul.f32 %v7161, %v7694
  %v7723 = vmul.f32 %v7166, %v7694
  %v7724 = vmul.f32 %v7171, %v7694
  %v7725 = vmul.f32 %v7176, %v7694
  %v7726 = vmul.f32 %v7181, %v7694
  %v7727 = vmul.f32 %v7186, %v7694
  %v7728 = vmul.f32 %v7191, %v7694
  %v7729 = vmul.f32 %v7196, %v7694
  %v7730 = vmul.f32 %v7201, %v7694
  %v7731 = vmul.f32 %v7206, %v7694
  %v7732 = vmul.f32 %v7211, %v7694
  %v7733 = vmul.f32 %v7216, %v7694
  %v7734 = vmul.f32 %v7221, %v7694
  %v7735 = vmul.f32 %v7226, %v7694
  %v7736 = vmul.f32 %v7231, %v7694
  %v7737 = vmul.f32 %v7236, %v7694
  %v7738 = vmul.f32 %v7241, %v7694
  %v7739 = vmul.f32 %v7246, %v7694
  %v7740 = vmul.f32 %v7251, %v7694
  %v7741 = vmul.f32 %v7256, %v7694
  %v7742 = vmul.f32 %v7261, %v7694
  %v7743 = vmul.f32 %v7266, %v7694
  %v7744 = vmul.f32 %v7271, %v7694
  %v7745 = vmul.f32 %v7276, %v7694
  %v7746 = vmul.f32 %v7281, %v7694
  %v7747 = vmul.f32 %v7286, %v7694
  %v7748 = vmul.f32 %v7291, %v7694
  %v7749 = vmul.f32 %v7296, %v7694
  %v7750 = vmul.f32 %v7301, %v7694
  %v7751 = vmul.f32 %v7306, %v7694
  %v7752 = vmul.f32 %v7311, %v7694
  %v7753 = vmul.f32 %v7316, %v7694
  %v7754 = vmul.f32 %v7321, %v7694
  %v7755 = vmul.f32 %v7326, %v7694
  %v7756 = vmul.f32 %v7331, %v7694
  %v7757 = vmul.f32 %v7336, %v7694
  %v7758 = vmul.f32 %v7341, %v7694
  %v7759 = vmul.f32 %v7346, %v7694
  %v7761 = vlaneseq
  %v7762 = vshrl.u32 %v7761, 7
  %v7763 = vsub.s32 0, %v7762
  %v7764 = vrot.slane %v7689, %v7763
  %v7766 = vadd.f32 %v7696, %v7764
  %v7767 = vadd.f32 %v7697, %v7764
  %v7768 = vadd.f32 %v7698, %v7764
  %v7769 = vadd.f32 %v7699, %v7764
  %v7770 = vadd.f32 %v7700, %v7764
  %v7771 = vadd.f32 %v7701, %v7764
  %v7772 = vadd.f32 %v7702, %v7764
  %v7773 = vadd.f32 %v7703, %v7764
  %v7774 = vadd.f32 %v7704, %v7764
  %v7775 = vadd.f32 %v7705, %v7764
  %v7776 = vadd.f32 %v7706, %v7764
  %v7777 = vadd.f32 %v7707, %v7764
  %v7778 = vadd.f32 %v7708, %v7764
  %v7779 = vadd.f32 %v7709, %v7764
  %v7780 = vadd.f32 %v7710, %v7764
  %v7781 = vadd.f32 %v7711, %v7764
  %v7782 = vadd.f32 %v7712, %v7764
  %v7783 = vadd.f32 %v7713, %v7764
  %v7784 = vadd.f32 %v7714, %v7764
  %v7785 = vadd.f32 %v7715, %v7764
  %v7786 = vadd.f32 %v7716, %v7764
  %v7787 = vadd.f32 %v7717, %v7764
  %v7788 = vadd.f32 %v7718, %v7764
  %v7789 = vadd.f32 %v7719, %v7764
  %v7790 = vadd.f32 %v7720, %v7764
  %v7791 = vadd.f32 %v7721, %v7764
  %v7792 = vadd.f32 %v7722, %v7764
  %v7793 = vadd.f32 %v7723, %v7764
  %v7794 = vadd.f32 %v7724, %v7764
  %v7795 = vadd.f32 %v7725, %v7764
  %v7796 = vadd.f32 %v7726, %v7764
  %v7797 = vadd.f32 %v7727, %v7764
  %v7798 = vadd.f32 %v7728, %v7764
  %v7799 = vadd.f32 %v7729, %v7764
  %v7800 = vadd.f32 %v7730, %v7764
  %v7801 = vadd.f32 %v7731, %v7764
  %v7802 = vadd.f32 %v7732, %v7764
  %v7803 = vadd.f32 %v7733, %v7764
  %v7804 = vadd.f32 %v7734, %v7764
  %v7805 = vadd.f32 %v7735, %v7764
  %v7806 = vadd.f32 %v7736, %v7764
  %v7807 = vadd.f32 %v7737, %v7764
  %v7808 = vadd.f32 %v7738, %v7764
  %v7809 = vadd.f32 %v7739, %v7764
  %v7810 = vadd.f32 %v7740, %v7764
  %v7811 = vadd.f32 %v7741, %v7764
  %v7812 = vadd.f32 %v7742, %v7764
  %v7813 = vadd.f32 %v7743, %v7764
  %v7814 = vadd.f32 %v7744, %v7764
  %v7815 = vadd.f32 %v7745, %v7764
  %v7816 = vadd.f32 %v7746, %v7764
  %v7817 = vadd.f32 %v7747, %v7764
  %v7818 = vadd.f32 %v7748, %v7764
  %v7819 = vadd.f32 %v7749, %v7764
  %v7820 = vadd.f32 %v7750, %v7764
  %v7821 = vadd.f32 %v7751, %v7764
  %v7822 = vadd.f32 %v7752, %v7764
  %v7823 = vadd.f32 %v7753, %v7764
  %v7824 = vadd.f32 %v7754, %v7764
  %v7825 = vadd.f32 %v7755, %v7764
  %v7826 = vadd.f32 %v7756, %v7764
  %v7827 = vadd.f32 %v7757, %v7764
  %v7828 = vadd.f32 %v7758, %v7764
  %v7829 = vadd.f32 %v7759, %v7764
  %v7830 = vmax.f32 %v7766, 0.0
  %v7831 = vmax.f32 %v7767, 0.0
  %v7832 = vmax.f32 %v7768, 0.0
  %v7833 = vmax.f32 %v7769, 0.0
  %v7834 = vmax.f32 %v7770, 0.0
  %v7835 = vmax.f32 %v7771, 0.0
  %v7836 = vmax.f32 %v7772, 0.0
  %v7837 = vmax.f32 %v7773, 0.0
  %v7838 = vmax.f32 %v7774, 0.0
  %v7839 = vmax.f32 %v7775, 0.0
  %v7840 = vmax.f32 %v7776, 0.0
  %v7841 = vmax.f32 %v7777, 0.0
  %v7842 = vmax.f32 %v7778, 0.0
  %v7843 = vmax.f32 %v7779, 0.0
  %v7844 = vmax.f32 %v7780, 0.0
  %v7845 = vmax.f32 %v7781, 0.0
  %v7846 = vmax.f32 %v7782, 0.0
  %v7847 = vmax.f32 %v7783, 0.0
  %v7848 = vmax.f32 %v7784, 0.0
  %v7849 = vmax.f32 %v7785, 0.0
  %v7850 = vmax.f32 %v7786, 0.0
  %v7851 = vmax.f32 %v7787, 0.0
  %v7852 = vmax.f32 %v7788, 0.0
  %v7853 = vmax.f32 %v7789, 0.0
  %v7854 = vmax.f32 %v7790, 0.0
  %v7855 = vmax.f32 %v7791, 0.0
  %v7856 = vmax.f32 %v7792, 0.0
  %v7857 = vmax.f32 %v7793, 0.0
  %v7858 = vmax.f32 %v7794, 0.0
  %v7859 = vmax.f32 %v7795, 0.0
  %v7860 = vmax.f32 %v7796, 0.0
  %v7861 = vmax.f32 %v7797, 0.0
  %v7862 = vmax.f32 %v7798, 0.0
  %v7863 = vmax.f32 %v7799, 0.0
  %v7864 = vmax.f32 %v7800, 0.0
  %v7865 = vmax.f32 %v7801, 0.0
  %v7866 = vmax.f32 %v7802, 0.0
  %v7867 = vmax.f32 %v7803, 0.0
  %v7868 = vmax.f32 %v7804, 0.0
  %v7869 = vmax.f32 %v7805, 0.0
  %v7870 = vmax.f32 %v7806, 0.0
  %v7871 = vmax.f32 %v7807, 0.0
  %v7872 = vmax.f32 %v7808, 0.0
  %v7873 = vmax.f32 %v7809, 0.0
  %v7874 = vmax.f32 %v7810, 0.0
  %v7875 = vmax.f32 %v7811, 0.0
  %v7876 = vmax.f32 %v7812, 0.0
  %v7877 = vmax.f32 %v7813, 0.0
  %v7878 = vmax.f32 %v7814, 0.0
  %v7879 = vmax.f32 %v7815, 0.0
  %v7880 = vmax.f32 %v7816, 0.0
  %v7881 = vmax.f32 %v7817, 0.0
  %v7882 = vmax.f32 %v7818, 0.0
  %v7883 = vmax.f32 %v7819, 0.0
  %v7884 = vmax.f32 %v7820, 0.0
  %v7885 = vmax.f32 %v7821, 0.0
  %v7886 = vmax.f32 %v7822, 0.0
  %v7887 = vmax.f32 %v7823, 0.0
  %v7888 = vmax.f32 %v7824, 0.0
  %v7889 = vmax.f32 %v7825, 0.0
  %v7890 = vmax.f32 %v7826, 0.0
  %v7891 = vmax.f32 %v7827, 0.0
  %v7892 = vmax.f32 %v7828, 0.0
  %v7893 = vmax.f32 %v7829, 0.0
  %v7894 = vadd.f32 %v7830, %v1110
  %v7895 = vadd.f32 %v7831, %v1111
  %v7896 = vadd.f32 %v7832, %v1112
  %v7897 = vadd.f32 %v7833, %v1113
  %v7898 = vadd.f32 %v7834, %v1114
  %v7899 = vadd.f32 %v7835, %v1115
  %v7900 = vadd.f32 %v7836, %v1116
  %v7901 = vadd.f32 %v7837, %v1117
  %v7902 = vadd.f32 %v7838, %v1118
  %v7903 = vadd.f32 %v7839, %v1119
  %v7904 = vadd.f32 %v7840, %v1120
  %v7905 = vadd.f32 %v7841, %v1121
  %v7906 = vadd.f32 %v7842, %v1122
  %v7907 = vadd.f32 %v7843, %v1123
  %v7908 = vadd.f32 %v7844, %v1124
  %v7909 = vadd.f32 %v7845, %v1125
  %v7910 = vadd.f32 %v7846, %v1126
  %v7911 = vadd.f32 %v7847, %v1127
  %v7912 = vadd.f32 %v7848, %v1128
  %v7913 = vadd.f32 %v7849, %v1129
  %v7914 = vadd.f32 %v7850, %v1130
  %v7915 = vadd.f32 %v7851, %v1131
  %v7916 = vadd.f32 %v7852, %v1132
  %v7917 = vadd.f32 %v7853, %v1133
  %v7918 = vadd.f32 %v7854, %v1134
  %v7919 = vadd.f32 %v7855, %v1135
  %v7920 = vadd.f32 %v7856, %v1136
  %v7921 = vadd.f32 %v7857, %v1137
  %v7922 = vadd.f32 %v7858, %v1138
  %v7923 = vadd.f32 %v7859, %v1139
  %v7924 = vadd.f32 %v7860, %v1140
  %v7925 = vadd.f32 %v7861, %v1141
  %v7926 = vadd.f32 %v7862, %v1142
  %v7927 = vadd.f32 %v7863, %v1143
  %v7928 = vadd.f32 %v7864, %v1144
  %v7929 = vadd.f32 %v7865, %v1145
  %v7930 = vadd.f32 %v7866, %v1146
  %v7931 = vadd.f32 %v7867, %v1147
  %v7932 = vadd.f32 %v7868, %v1148
  %v7933 = vadd.f32 %v7869, %v1149
  %v7934 = vadd.f32 %v7870, %v1150
  %v7935 = vadd.f32 %v7871, %v1151
  %v7936 = vadd.f32 %v7872, %v1152
  %v7937 = vadd.f32 %v7873, %v1153
  %v7938 = vadd.f32 %v7874, %v1154
  %v7939 = vadd.f32 %v7875, %v1155
  %v7940 = vadd.f32 %v7876, %v1156
  %v7941 = vadd.f32 %v7877, %v1157
  %v7942 = vadd.f32 %v7878, %v1158
  %v7943 = vadd.f32 %v7879, %v1159
  %v7944 = vadd.f32 %v7880, %v1160
  %v7945 = vadd.f32 %v7881, %v1161
  %v7946 = vadd.f32 %v7882, %v1162
  %v7947 = vadd.f32 %v7883, %v1163
  %v7948 = vadd.f32 %v7884, %v1164
  %v7949 = vadd.f32 %v7885, %v1165
  %v7950 = vadd.f32 %v7886, %v1166
  %v7951 = vadd.f32 %v7887, %v1167
  %v7952 = vadd.f32 %v7888, %v1168
  %v7953 = vadd.f32 %v7889, %v1169
  %v7954 = vadd.f32 %v7890, %v1170
  %v7955 = vadd.f32 %v7891, %v1171
  %v7956 = vadd.f32 %v7892, %v1172
  %v7957 = vadd.f32 %v7893, %v1173
  %7958 = vst.msk [vmem:[%s13] sm:$0xff] %vm694, %v7894
  %7959 = vst.msk [vmem:[%s13 + $0x8] sm:$0xff] %vm694, %v7895
  %7960 = vst.msk [vmem:[%s13 + $0x10] sm:$0xff] %vm694, %v7896
  %7961 = vst.msk [vmem:[%s13 + $0x18] sm:$0xff] %vm694, %v7897
  %7962 = vst.msk [vmem:[%s13 + $0x20] sm:$0xff] %vm694, %v7898
  %7963 = vst.msk [vmem:[%s13 + $0x28] sm:$0xff] %vm694, %v7899
  %7964 = vst.msk [vmem:[%s13 + $0x30] sm:$0xff] %vm694, %v7900
  %7965 = vst.msk [vmem:[%s13 + $0x38] sm:$0xff] %vm694, %v7901
  %7966 = vst.msk [vmem:[%s13 + $0x40] sm:$0xff] %vm694, %v7902
  %7967 = vst.msk [vmem:[%s13 + $0x48] sm:$0xff] %vm694, %v7903
  %7968 = vst.msk [vmem:[%s13 + $0x50] sm:$0xff] %vm694, %v7904
  %7969 = vst.msk [vmem:[%s13 + $0x58] sm:$0xff] %vm694, %v7905
  %7970 = vst.msk [vmem:[%s13 + $0x60] sm:$0xff] %vm694, %v7906
  %7971 = vst.msk [vmem:[%s13 + $0x68] sm:$0xff] %vm694, %v7907
  %7972 = vst.msk [vmem:[%s13 + $0x70] sm:$0xff] %vm694, %v7908
  %7973 = vst.msk [vmem:[%s13 + $0x78] sm:$0xff] %vm694, %v7909
  %7974 = vst.msk [vmem:[%s13 + $0x80] sm:$0xff] %vm694, %v7910
  %7975 = vst.msk [vmem:[%s13 + $0x88] sm:$0xff] %vm694, %v7911
  %7976 = vst.msk [vmem:[%s13 + $0x90] sm:$0xff] %vm694, %v7912
  %7977 = vst.msk [vmem:[%s13 + $0x98] sm:$0xff] %vm694, %v7913
  %7978 = vst.msk [vmem:[%s13 + $0xa0] sm:$0xff] %vm694, %v7914
  %7979 = vst.msk [vmem:[%s13 + $0xa8] sm:$0xff] %vm694, %v7915
  %7980 = vst.msk [vmem:[%s13 + $0xb0] sm:$0xff] %vm694, %v7916
  %7981 = vst.msk [vmem:[%s13 + $0xb8] sm:$0xff] %vm694, %v7917
  %7982 = vst.msk [vmem:[%s13 + $0xc0] sm:$0xff] %vm694, %v7918
  %7983 = vst.msk [vmem:[%s13 + $0xc8] sm:$0xff] %vm694, %v7919
  %7984 = vst.msk [vmem:[%s13 + $0xd0] sm:$0xff] %vm694, %v7920
  %7985 = vst.msk [vmem:[%s13 + $0xd8] sm:$0xff] %vm694, %v7921
  %7986 = vst.msk [vmem:[%s13 + $0xe0] sm:$0xff] %vm694, %v7922
  %7987 = vst.msk [vmem:[%s13 + $0xe8] sm:$0xff] %vm694, %v7923
  %7988 = vst.msk [vmem:[%s13 + $0xf0] sm:$0xff] %vm694, %v7924
  %7989 = vst.msk [vmem:[%s13 + $0xf8] sm:$0xff] %vm694, %v7925
  %7990 = vst.msk [vmem:[%s13 + $0x100] sm:$0xff] %vm694, %v7926
  %7991 = vst.msk [vmem:[%s13 + $0x108] sm:$0xff] %vm694, %v7927
  %7992 = vst.msk [vmem:[%s13 + $0x110] sm:$0xff] %vm694, %v7928
  %7993 = vst.msk [vmem:[%s13 + $0x118] sm:$0xff] %vm694, %v7929
  %7994 = vst.msk [vmem:[%s13 + $0x120] sm:$0xff] %vm694, %v7930
  %7995 = vst.msk [vmem:[%s13 + $0x128] sm:$0xff] %vm694, %v7931
  %7996 = vst.msk [vmem:[%s13 + $0x130] sm:$0xff] %vm694, %v7932
  %7997 = vst.msk [vmem:[%s13 + $0x138] sm:$0xff] %vm694, %v7933
  %7998 = vst.msk [vmem:[%s13 + $0x140] sm:$0xff] %vm694, %v7934
  %7999 = vst.msk [vmem:[%s13 + $0x148] sm:$0xff] %vm694, %v7935
  %8000 = vst.msk [vmem:[%s13 + $0x150] sm:$0xff] %vm694, %v7936
  %8001 = vst.msk [vmem:[%s13 + $0x158] sm:$0xff] %vm694, %v7937
  %8002 = vst.msk [vmem:[%s13 + $0x160] sm:$0xff] %vm694, %v7938
  %8003 = vst.msk [vmem:[%s13 + $0x168] sm:$0xff] %vm694, %v7939
  %8004 = vst.msk [vmem:[%s13 + $0x170] sm:$0xff] %vm694, %v7940
  %8005 = vst.msk [vmem:[%s13 + $0x178] sm:$0xff] %vm694, %v7941
  %8006 = vst.msk [vmem:[%s13 + $0x180] sm:$0xff] %vm694, %v7942
  %8007 = vst.msk [vmem:[%s13 + $0x188] sm:$0xff] %vm694, %v7943
  %8008 = vst.msk [vmem:[%s13 + $0x190] sm:$0xff] %vm694, %v7944
  %8009 = vst.msk [vmem:[%s13 + $0x198] sm:$0xff] %vm694, %v7945
  %8010 = vst.msk [vmem:[%s13 + $0x1a0] sm:$0xff] %vm694, %v7946
  %8011 = vst.msk [vmem:[%s13 + $0x1a8] sm:$0xff] %vm694, %v7947
  %8012 = vst.msk [vmem:[%s13 + $0x1b0] sm:$0xff] %vm694, %v7948
  %8013 = vst.msk [vmem:[%s13 + $0x1b8] sm:$0xff] %vm694, %v7949
  %8014 = vst.msk [vmem:[%s13 + $0x1c0] sm:$0xff] %vm694, %v7950
  %8015 = vst.msk [vmem:[%s13 + $0x1c8] sm:$0xff] %vm694, %v7951
  %8016 = vst.msk [vmem:[%s13 + $0x1d0] sm:$0xff] %vm694, %v7952
  %8017 = vst.msk [vmem:[%s13 + $0x1d8] sm:$0xff] %vm694, %v7953
  %8018 = vst.msk [vmem:[%s13 + $0x1e0] sm:$0xff] %vm694, %v7954
  %8019 = vst.msk [vmem:[%s13 + $0x1e8] sm:$0xff] %vm694, %v7955
  %8020 = vst.msk [vmem:[%s13 + $0x1f0] sm:$0xff] %vm694, %v7956
  %8021 = vst.msk [vmem:[%s13 + $0x1f8] sm:$0xff] %vm694, %v7957
  // Predicated region
  $region54: #{tpu_custom_call.1} parent=0 // pred_check
    _
  $region55: #{tpu_custom_call.1} parent=0 // pred_check_branch
    %8023 = sbr.rel (0) target = $region57
  $region56: #{tpu_custom_call.1} parent=0 // pred_region
    _
  $region57: #{tpu_custom_call.1} parent=0 // pred_fallthru
    _
  // Predicated region
  $region58: #{tpu_custom_call.1} parent=0 // pred_check
    _
  $region59: #{tpu_custom_call.1} parent=0 // pred_check_branch
    %8025 = sbr.rel (0) target = $region61
  $region60: #{tpu_custom_call.1} parent=0 // pred_region
    _
  $region61: #{tpu_custom_call.1} parent=0 // pred_fallthru
    _

</llo_original>
